<compile_context>
chip_gen: v7x
topology: tpu7x:2x2x1
jax: 0.10.0
libtpu: 0.0.40
codegen_flags: <defaults>
</compile_context>

<pallas_src>
import math
from functools import partial

import numpy as np
import jax
import jax.numpy as jnp
from jax.experimental import pallas as pl
from jax.experimental.pallas import tpu as pltpu


# ---------------------------------------------------------------------------
# Fused Pallas kernel: the whole SPWtransBlock forward for BB batch elements.
# ---------------------------------------------------------------------------

def _spw_block_kernel(x_ref, ln1g_ref, ln1b_ref,
                      wq_ref, wk_ref, wv_ref,
                      mw_ref, convb_ref, hmask_ref,
                      wproj_ref, bproj_ref,
                      ln2g_ref, ln2b_ref,
                      wfc1_ref, bfc1_ref, wfc2_ref, bfc2_ref,
                      o_ref, *, H, W, G, BB, num_heads, eps):
    L = H * W * G
    BL = BB * L
    C = x_ref.shape[-1]
    nh = num_heads
    bf16 = jnp.bfloat16

    x2d = x_ref[...].reshape(BL, C)                          # (BB*L, C) f32

    def layer_norm(v, g, b):
        mean = jnp.mean(v, axis=-1, keepdims=True)
        vc = v - mean
        var = jnp.mean(vc * vc, axis=-1, keepdims=True)      # biased var (torch LN)
        return vc * jax.lax.rsqrt(var + eps) * g + b

    # ---- norm1 + q/k/v projections (qkv_bias=False; attn scale folded into wq) ----
    img = layer_norm(x2d, ln1g_ref[...], ln1b_ref[...]).astype(bf16)
    q_all = jnp.dot(img, wq_ref[...], preferred_element_type=jnp.float32)
    k_all = jnp.dot(img, wk_ref[...], preferred_element_type=jnp.float32)
    v_all = jnp.dot(img, wv_ref[...], preferred_element_type=jnp.float32)

    # ---- LePE: depthwise 3x3x3 conv (padding=1) on v viewed as (H, W, G) tokens ---
    # Tap (dh,dw,dg) -> token offset s = dh*W*G + dw*G + dg.  Each tap is a sublane
    # roll of the whole (BB*L, C) slab (XLU slot, free relative to MXU/VALU) times a
    # precomputed (validity-mask * per-channel weight) plane from mw_ref.  Whenever a
    # neighbour is in-bounds, l+s stays inside the same batch element, so any rows a
    # roll wraps across batch/array boundaries are always multiplied by zero.
    lepe = jnp.zeros((BL, C), jnp.float32) + convb_ref[...]
    for dh in (-1, 0, 1):
        for dw in (-1, 0, 1):
            for dg in (-1, 0, 1):
                t = (dh + 1) * 9 + (dw + 1) * 3 + (dg + 1)   # matches torch weight order
                s = dh * W * G + dw * G + dg
                rolled = v_all if s == 0 else pltpu.roll(v_all, (-s) % BL, axis=0)
                lepe = lepe + rolled * mw_ref[t]

    # ---- attention: all heads via one score matmul + one PV matmul per element ----
    # Head h owns channels [h*hd, (h+1)*hd).  Stacking head-masked q rows gives a
    # (nh*L, C) operand, so scores/PV run as K=C and K=L matmuls with M=nh*L instead
    # of 12 tiny K=hd launches; the head combine is a single masked reduce.
    hm3 = jnp.broadcast_to(hmask_ref[...][:, None, :], (nh, L, C))   # hoisted once
    k_bf = k_all.astype(bf16)
    v_bf = v_all.astype(bf16)
    attn_parts = []
    for b in range(BB):            # static unrolled loop: K/V differ per batch element
        sl = slice(b * L, (b + 1) * L)
        qs = (q_all[sl][None, :, :] * hm3).reshape(nh * L, C).astype(bf16)
        scores = jax.lax.dot_general(qs, k_bf[sl], (((1,), (1,)), ((), ())),
                                     preferred_element_type=jnp.float32)   # (nh*L, L)
        scores = scores - jnp.max(scores, axis=-1, keepdims=True)
        e = jnp.exp(scores)
        p = e * pl.reciprocal(jnp.sum(e, axis=-1, keepdims=True), approx=True)
        pv = jnp.dot(p.astype(bf16), v_bf[sl],
                     preferred_element_type=jnp.float32)                    # (nh*L, C)
        attn_parts.append(jnp.sum(pv.reshape(nh, L, C) * hm3, axis=0))      # (L, C)
    attn = jnp.concatenate(attn_parts, axis=0) + lepe                        # (BL, C)

    # ---- proj + residual ----------------------------------------------------------
    x_attn = x2d + (jnp.dot(attn.astype(bf16), wproj_ref[...],
                            preferred_element_type=jnp.float32) + bproj_ref[...])

    # ---- MLP: LN2 -> fc1 -> exact GELU (erf) -> fc2 -> residual --------------------
    y = layer_norm(x_attn, ln2g_ref[...], ln2b_ref[...]).astype(bf16)
    hfc = jnp.dot(y, wfc1_ref[...], preferred_element_type=jnp.float32) + bfc1_ref[...]
    hfc = 0.5 * hfc * (1.0 + jax.lax.erf(hfc * (1.0 / math.sqrt(2.0))))
    out = x_attn + (jnp.dot(hfc.astype(bf16), wfc2_ref[...],
                            preferred_element_type=jnp.float32) + bfc2_ref[...])

    o_ref[...] = out.reshape(BB, L, C)


# ---------------------------------------------------------------------------
# Wrapper
# ---------------------------------------------------------------------------

def _pick_block_batch(B, max_bb=8):
    """Largest BB dividing B (<= max_bb) that keeps the grid length even (v7x)."""
    best = 1
    for bb in range(1, min(B, max_bb) + 1):
        if B % bb == 0 and (B // bb) % 2 == 0:
            best = bb
    return best


def spw_trans_block_forward(x, params, *, reso, num_heads=12, block_batch=None):
    """x: (B, L, C) with L = reso**3, token l = h*(W*G) + w*G + g."""
    B, L, C = x.shape
    H = W = G = reso
    assert L == H * W * G, "flatten img_tokens has wrong size"
    assert C % num_heads == 0
    hd = C // num_heads
    scale = hd ** (-0.5)                     # qk_scale=None -> head_dim ** -0.5
    Hid = params["w_fc1"].shape[1]
    nh = num_heads

    BB = block_batch if block_batch is not None else _pick_block_batch(B)
    assert B % BB == 0
    BL = BB * L

    # -- constant index machinery, hoisted out of the kernel (trace-time numpy) -----
    lidx = np.arange(L)
    h_i, w_i, g_i = lidx // (W * G), (lidx // G) % W, lidx % G
    valid = np.zeros((27, L, 1), np.float32)
    for dh in (-1, 0, 1):
        for dw in (-1, 0, 1):
            for dg in (-1, 0, 1):
                t = (dh + 1) * 9 + (dw + 1) * 3 + (dg + 1)
                ok = ((h_i + dh >= 0) & (h_i + dh < H) &
                      (w_i + dw >= 0) & (w_i + dw < W) &
                      (g_i + dg >= 0) & (g_i + dg < G))
                valid[t, :, 0] = ok.astype(np.float32)
    # masked per-tap depthwise weights, tiled over the BB batch elements per step
    mw = jnp.tile(jnp.asarray(valid) * params["conv_w"][:, None, :], (1, BB, 1))  # (27, BL, C)

    ch = np.arange(C)
    hmask = jnp.asarray((ch[None, :] // hd == np.arange(nh)[:, None]).astype(np.float32))

    # -- weights: attention scale folded into wq; MXU operands pre-cast to bf16 -----
    bf16 = jnp.bfloat16
    wq = (params["w_qkv"][:, :C] * scale).astype(bf16)
    wk = params["w_qkv"][:, C:2 * C].astype(bf16)
    wv = params["w_qkv"][:, 2 * C:].astype(bf16)
    wproj = params["w_proj"].astype(bf16)
    wfc1 = params["w_fc1"].astype(bf16)
    wfc2 = params["w_fc2"].astype(bf16)

    def rowvec(v):
        return v.reshape(1, -1)

    def const_spec(shape):
        zeros = (0,) * len(shape)
        return pl.BlockSpec(shape, lambda b, _z=zeros: _z)   # constant block -> no re-DMA

    kernel = partial(_spw_block_kernel, H=H, W=W, G=G, BB=BB,
                     num_heads=num_heads, eps=1e-5)

    return pl.pallas_call(
        kernel,
        grid=(B // BB,),
        in_specs=[
            pl.BlockSpec((BB, L, C), lambda b: (b, 0, 0)),    # x
            const_spec((1, C)), const_spec((1, C)),           # ln1 gamma / beta
            const_spec((C, C)), const_spec((C, C)), const_spec((C, C)),   # wq, wk, wv
            const_spec((27, BL, C)), const_spec((1, C)),      # LePE mask*weight / bias
            const_spec((nh, C)),                              # head mask
            const_spec((C, C)), const_spec((1, C)),           # proj weight / bias
            const_spec((1, C)), const_spec((1, C)),           # ln2 gamma / beta
            const_spec((C, Hid)), const_spec((1, Hid)),       # fc1 weight / bias
            const_spec((Hid, C)), const_spec((1, C)),         # fc2 weight / bias
        ],
        out_specs=pl.BlockSpec((BB, L, C), lambda b: (b, 0, 0)),
        out_shape=jax.ShapeDtypeStruct((B, L, C), jnp.float32),
        compiler_params=pltpu.CompilerParams(dimension_semantics=("parallel",)),
    )(x,
      rowvec(params["ln1_g"]), rowvec(params["ln1_b"]),
      wq, wk, wv,
      mw, rowvec(params["conv_b"]),
      hmask,
      wproj, rowvec(params["b_proj"]),
      rowvec(params["ln2_g"]), rowvec(params["ln2_b"]),
      wfc1, rowvec(params["b_fc1"]),
      wfc2, rowvec(params["b_fc2"]))


# ---------------------------------------------------------------------------
# Pure-JAX reference (mirrors the PyTorch forward) for an in-script sanity check.
# ---------------------------------------------------------------------------

def _reference_forward(x, params, *, reso, num_heads=12, eps=1e-5):
    B, L, C = x.shape
    H = W = G = reso
    hd = C // num_heads
    scale = hd ** (-0.5)

    def ln(v, g, b):
        m = jnp.mean(v, axis=-1, keepdims=True)
        vc = v - m
        var = jnp.mean(vc * vc, axis=-1, keepdims=True)
        return vc / jnp.sqrt(var + eps) * g + b

    img = ln(x, params["ln1_g"], params["ln1_b"])
    qkv = img @ params["w_qkv"]
    q, k, v = qkv[..., :C], qkv[..., C:2 * C], qkv[..., 2 * C:]

    vol = v.reshape(B, H, W, G, C)
    volp = jnp.pad(vol, ((0, 0), (1, 1), (1, 1), (1, 1), (0, 0)))
    lepe = jnp.zeros_like(vol) + params["conv_b"]
    idx = 0
    for dh in range(3):
        for dw in range(3):
            for dg in range(3):
                lepe = lepe + volp[:, dh:dh + H, dw:dw + W, dg:dg + G, :] * params["conv_w"][idx]
                idx += 1
    lepe = lepe.reshape(B, L, C)

    def heads(t):
        return t.reshape(B, L, num_heads, hd).transpose(0, 2, 1, 3)

    qh, kh, vh, lh = heads(q * scale), heads(k), heads(v), heads(lepe)
    attn = jnp.einsum("bhqd,bhkd->bhqk", qh, kh)
    attn = jax.nn.softmax(attn, axis=-1)
    oh = jnp.einsum("bhqk,bhkd->bhqd", attn, vh) + lh
    att = oh.transpose(0, 2, 1, 3).reshape(B, L, C)

    x = x + (att @ params["w_proj"] + params["b_proj"])
    y = ln(x, params["ln2_g"], params["ln2_b"])
    hfc = y @ params["w_fc1"] + params["b_fc1"]
    hfc = jax.nn.gelu(hfc, approximate=False)
    return x + (hfc @ params["w_fc2"] + params["b_fc2"])


# ---------------------------------------------------------------------------

if __name__ == "__main__":
    key = jax.random.PRNGKey(0)

    reso = 4                       # patches_resolution == split_size -> last_stage path
    dim = 48                       # divisible by 12 (last-stage LePEAttention heads)
    B = 4                          # BB=2 per grid step, grid=(2,) -> even for v7x
    L = reso ** 3                  # 64 tokens
    mlp_hidden = int(dim * 4.0)    # 192

    keys = jax.random.split(key, 10)
    s = 0.02
    params = {
        "ln1_g": jnp.ones((dim,), jnp.float32),
        "ln1_b": jnp.zeros((dim,), jnp.float32),
        "ln2_g": jnp.ones((dim,), jnp.float32),
        "ln2_b": jnp.zeros((dim,), jnp.float32),
        "w_qkv": s * jax.random.normal(keys[0], (dim, 3 * dim), jnp.float32),
        "w_proj": s * jax.random.normal(keys[1], (dim, dim), jnp.float32),
        "b_proj": s * jax.random.normal(keys[2], (dim,), jnp.float32),
        # depthwise Conv3d weight: torch (C,1,3,3,3) -> squeeze(1).permute(1,2,3,0).reshape(27, C)
        "conv_w": s * jax.random.normal(keys[3], (27, dim), jnp.float32),
        "conv_b": s * jax.random.normal(keys[4], (dim,), jnp.float32),
        "w_fc1": s * jax.random.normal(keys[5], (dim, mlp_hidden), jnp.float32),
        "b_fc1": s * jax.random.normal(keys[6], (mlp_hidden,), jnp.float32),
        "w_fc2": s * jax.random.normal(keys[7], (mlp_hidden, dim), jnp.float32),
        "b_fc2": s * jax.random.normal(keys[8], (dim,), jnp.float32),
    }

    x = jax.random.normal(keys[9], (B, L, dim), jnp.float32)

    fwd = jax.jit(partial(spw_trans_block_forward, reso=reso))
    out = jax.block_until_ready(fwd(x, params))
    assert out.shape == (B, L, dim)
    assert bool(jnp.all(jnp.isfinite(out)))

    with jax.default_matmul_precision("float32"):
        ref = jax.block_until_ready(_reference_forward(x, params, reso=reso))
    err = float(jnp.max(jnp.abs(out - ref)))
    # bf16 MXU operands (f32 accumulation) + approx softmax reciprocal -> ~1e-3 abs error
    assert err < 5e-3, f"mismatch vs reference: {err}"

    print("KERNEL_OK")
</pallas_src>

<mosaic_0001>
module attributes {stable_mosaic.version = 11 : i64} {
  func.func @_spw_block_kernel(%arg0: i32, %arg1: memref<2x64x48xf32, #tpu.memory_space<vmem>>, %arg2: memref<1x48xf32, #tpu.memory_space<vmem>>, %arg3: memref<1x48xf32, #tpu.memory_space<vmem>>, %arg4: memref<48x48xbf16, #tpu.memory_space<vmem>>, %arg5: memref<48x48xbf16, #tpu.memory_space<vmem>>, %arg6: memref<48x48xbf16, #tpu.memory_space<vmem>>, %arg7: memref<27x128x48xf32, #tpu.memory_space<vmem>>, %arg8: memref<1x48xf32, #tpu.memory_space<vmem>>, %arg9: memref<12x48xf32, #tpu.memory_space<vmem>>, %arg10: memref<48x48xbf16, #tpu.memory_space<vmem>>, %arg11: memref<1x48xf32, #tpu.memory_space<vmem>>, %arg12: memref<1x48xf32, #tpu.memory_space<vmem>>, %arg13: memref<1x48xf32, #tpu.memory_space<vmem>>, %arg14: memref<48x192xbf16, #tpu.memory_space<vmem>>, %arg15: memref<1x192xf32, #tpu.memory_space<vmem>>, %arg16: memref<192x48xbf16, #tpu.memory_space<vmem>>, %arg17: memref<1x48xf32, #tpu.memory_space<vmem>>, %arg18: memref<2x64x48xf32, #tpu.memory_space<vmem>>) attributes {dimension_semantics = [#tpu.dimension_semantics<parallel>], iteration_bounds = array<i64: 2>, scalar_prefetch = 0 : i64, scratch_operands = 0 : i64, tpu.core_type = #tpu.core_type<tc>, window_params = [{transform_indices = @transform_0, window_bounds = array<i64: 2, 64, 48>}, {pipeline_mode = #tpu.pipeline_mode<synchronous>, transform_indices = @transform_1, window_bounds = array<i64: 1, 48>}, {pipeline_mode = #tpu.pipeline_mode<synchronous>, transform_indices = @transform_2, window_bounds = array<i64: 1, 48>}, {pipeline_mode = #tpu.pipeline_mode<synchronous>, transform_indices = @transform_3, window_bounds = array<i64: 48, 48>}, {pipeline_mode = #tpu.pipeline_mode<synchronous>, transform_indices = @transform_4, window_bounds = array<i64: 48, 48>}, {pipeline_mode = #tpu.pipeline_mode<synchronous>, transform_indices = @transform_5, window_bounds = array<i64: 48, 48>}, {pipeline_mode = #tpu.pipeline_mode<synchronous>, transform_indices = @transform_6, window_bounds = array<i64: 27, 128, 48>}, {pipeline_mode = #tpu.pipeline_mode<synchronous>, transform_indices = @transform_7, window_bounds = array<i64: 1, 48>}, {pipeline_mode = #tpu.pipeline_mode<synchronous>, transform_indices = @transform_8, window_bounds = array<i64: 12, 48>}, {pipeline_mode = #tpu.pipeline_mode<synchronous>, transform_indices = @transform_9, window_bounds = array<i64: 48, 48>}, {pipeline_mode = #tpu.pipeline_mode<synchronous>, transform_indices = @transform_10, window_bounds = array<i64: 1, 48>}, {pipeline_mode = #tpu.pipeline_mode<synchronous>, transform_indices = @transform_11, window_bounds = array<i64: 1, 48>}, {pipeline_mode = #tpu.pipeline_mode<synchronous>, transform_indices = @transform_12, window_bounds = array<i64: 1, 48>}, {pipeline_mode = #tpu.pipeline_mode<synchronous>, transform_indices = @transform_13, window_bounds = array<i64: 48, 192>}, {pipeline_mode = #tpu.pipeline_mode<synchronous>, transform_indices = @transform_14, window_bounds = array<i64: 1, 192>}, {pipeline_mode = #tpu.pipeline_mode<synchronous>, transform_indices = @transform_15, window_bounds = array<i64: 192, 48>}, {pipeline_mode = #tpu.pipeline_mode<synchronous>, transform_indices = @transform_16, window_bounds = array<i64: 1, 48>}, {transform_indices = @transform_17, window_bounds = array<i64: 2, 64, 48>}]} {
    %c0 = arith.constant 0 : index
    %c0_0 = arith.constant 0 : index
    %c0_1 = arith.constant 0 : index
    %0 = vector.load %arg1[%c0, %c0_0, %c0_1] : memref<2x64x48xf32, #tpu.memory_space<vmem>>, vector<2x64x48xf32>
    %1 = vector.shape_cast %0 : vector<2x64x48xf32> to vector<128x48xf32>
    %c0_2 = arith.constant 0 : index
    %c0_3 = arith.constant 0 : index
    %2 = vector.load %arg2[%c0_2, %c0_3] : memref<1x48xf32, #tpu.memory_space<vmem>>, vector<1x48xf32>
    %c0_4 = arith.constant 0 : index
    %c0_5 = arith.constant 0 : index
    %3 = vector.load %arg3[%c0_4, %c0_5] : memref<1x48xf32, #tpu.memory_space<vmem>>, vector<1x48xf32>
    %cst = arith.constant dense<0.000000e+00> : vector<128xf32>
    %4 = vector.multi_reduction <add>, %1, %cst [1] : vector<128x48xf32> to vector<128xf32>
    %5 = vector.shape_cast %4 : vector<128xf32> to vector<128x1xf32>
    %cst_6 = arith.constant 4.800000e+01 : f32
    %6 = vector.broadcast %cst_6 : f32 to vector<128x1xf32>
    %7 = arith.divf %5, %6 : vector<128x1xf32>
    %8 = vector.broadcast %7 : vector<128x1xf32> to vector<128x48xf32>
    %9 = arith.subf %1, %8 : vector<128x48xf32>
    %10 = arith.mulf %9, %9 : vector<128x48xf32>
    %cst_7 = arith.constant dense<0.000000e+00> : vector<128xf32>
    %11 = vector.multi_reduction <add>, %10, %cst_7 [1] : vector<128x48xf32> to vector<128xf32>
    %12 = vector.shape_cast %11 : vector<128xf32> to vector<128x1xf32>
    %cst_8 = arith.constant 4.800000e+01 : f32
    %13 = vector.broadcast %cst_8 : f32 to vector<128x1xf32>
    %14 = arith.divf %12, %13 : vector<128x1xf32>
    %cst_9 = arith.constant 9.99999974E-6 : f32
    %15 = vector.broadcast %cst_9 : f32 to vector<128x1xf32>
    %16 = arith.addf %14, %15 : vector<128x1xf32>
    %17 = math.rsqrt %16 : vector<128x1xf32>
    %18 = vector.broadcast %17 : vector<128x1xf32> to vector<128x48xf32>
    %19 = arith.mulf %9, %18 : vector<128x48xf32>
    %20 = vector.broadcast %2 : vector<1x48xf32> to vector<128x48xf32>
    %21 = arith.mulf %19, %20 : vector<128x48xf32>
    %22 = vector.broadcast %3 : vector<1x48xf32> to vector<128x48xf32>
    %23 = arith.addf %21, %22 : vector<128x48xf32>
    %24 = arith.truncf %23 : vector<128x48xf32> to vector<128x48xbf16>
    %c0_10 = arith.constant 0 : index
    %c0_11 = arith.constant 0 : index
    %25 = vector.load %arg4[%c0_10, %c0_11] : memref<48x48xbf16, #tpu.memory_space<vmem>>, vector<48x48xbf16>
    %cst_12 = arith.constant dense<0.000000e+00> : vector<128x48xf32>
    %26 = tpu.matmul %24, %25, %cst_12 {dimension_numbers = #tpu.dot_dimension_numbers<[1], [0], [0], [1], [0, 0, 1, 1], [], []>} : vector<128x48xbf16>, vector<48x48xbf16>, vector<128x48xf32> -> vector<128x48xf32>
    %c0_13 = arith.constant 0 : index
    %c0_14 = arith.constant 0 : index
    %27 = vector.load %arg5[%c0_13, %c0_14] : memref<48x48xbf16, #tpu.memory_space<vmem>>, vector<48x48xbf16>
    %cst_15 = arith.constant dense<0.000000e+00> : vector<128x48xf32>
    %28 = tpu.matmul %24, %27, %cst_15 {dimension_numbers = #tpu.dot_dimension_numbers<[1], [0], [0], [1], [0, 0, 1, 1], [], []>} : vector<128x48xbf16>, vector<48x48xbf16>, vector<128x48xf32> -> vector<128x48xf32>
    %c0_16 = arith.constant 0 : index
    %c0_17 = arith.constant 0 : index
    %29 = vector.load %arg6[%c0_16, %c0_17] : memref<48x48xbf16, #tpu.memory_space<vmem>>, vector<48x48xbf16>
    %cst_18 = arith.constant dense<0.000000e+00> : vector<128x48xf32>
    %30 = tpu.matmul %24, %29, %cst_18 {dimension_numbers = #tpu.dot_dimension_numbers<[1], [0], [0], [1], [0, 0, 1, 1], [], []>} : vector<128x48xbf16>, vector<48x48xbf16>, vector<128x48xf32> -> vector<128x48xf32>
    %cst_19 = arith.constant 0.000000e+00 : f32
    %31 = vector.broadcast %cst_19 : f32 to vector<128x48xf32>
    %c0_20 = arith.constant 0 : index
    %c0_21 = arith.constant 0 : index
    %32 = vector.load %arg8[%c0_20, %c0_21] : memref<1x48xf32, #tpu.memory_space<vmem>>, vector<1x48xf32>
    %33 = vector.broadcast %32 : vector<1x48xf32> to vector<128x48xf32>
    %34 = arith.addf %31, %33 : vector<128x48xf32>
    %c21_i32 = arith.constant 21 : i32
    %35 = tpu.dynamic_rotate %30 by %c21_i32 dim 0 : vector<128x48xf32>, i32 -> vector<128x48xf32>
    %c0_22 = arith.constant 0 : index
    %c0_23 = arith.constant 0 : index
    %c0_24 = arith.constant 0 : index
    %36 = vector.load %arg7[%c0_22, %c0_23, %c0_24] : memref<27x128x48xf32, #tpu.memory_space<vmem>>, vector<1x128x48xf32>
    %37 = vector.shape_cast %36 : vector<1x128x48xf32> to vector<128x48xf32>
    %38 = arith.mulf %35, %37 : vector<128x48xf32>
    %39 = arith.addf %34, %38 : vector<128x48xf32>
    %c20_i32 = arith.constant 20 : i32
    %40 = tpu.dynamic_rotate %30 by %c20_i32 dim 0 : vector<128x48xf32>, i32 -> vector<128x48xf32>
    %c1 = arith.constant 1 : index
    %c0_25 = arith.constant 0 : index
    %c0_26 = arith.constant 0 : index
    %41 = vector.load %arg7[%c1, %c0_25, %c0_26] : memref<27x128x48xf32, #tpu.memory_space<vmem>>, vector<1x128x48xf32>
    %42 = vector.shape_cast %41 : vector<1x128x48xf32> to vector<128x48xf32>
    %43 = arith.mulf %40, %42 : vector<128x48xf32>
    %44 = arith.addf %39, %43 : vector<128x48xf32>
    %c19_i32 = arith.constant 19 : i32
    %45 = tpu.dynamic_rotate %30 by %c19_i32 dim 0 : vector<128x48xf32>, i32 -> vector<128x48xf32>
    %c2 = arith.constant 2 : index
    %c0_27 = arith.constant 0 : index
    %c0_28 = arith.constant 0 : index
    %46 = vector.load %arg7[%c2, %c0_27, %c0_28] : memref<27x128x48xf32, #tpu.memory_space<vmem>>, vector<1x128x48xf32>
    %47 = vector.shape_cast %46 : vector<1x128x48xf32> to vector<128x48xf32>
    %48 = arith.mulf %45, %47 : vector<128x48xf32>
    %49 = arith.addf %44, %48 : vector<128x48xf32>
    %c17_i32 = arith.constant 17 : i32
    %50 = tpu.dynamic_rotate %30 by %c17_i32 dim 0 : vector<128x48xf32>, i32 -> vector<128x48xf32>
    %c3 = arith.constant 3 : index
    %c0_29 = arith.constant 0 : index
    %c0_30 = arith.constant 0 : index
    %51 = vector.load %arg7[%c3, %c0_29, %c0_30] : memref<27x128x48xf32, #tpu.memory_space<vmem>>, vector<1x128x48xf32>
    %52 = vector.shape_cast %51 : vector<1x128x48xf32> to vector<128x48xf32>
    %53 = arith.mulf %50, %52 : vector<128x48xf32>
    %54 = arith.addf %49, %53 : vector<128x48xf32>
    %c16_i32 = arith.constant 16 : i32
    %55 = tpu.dynamic_rotate %30 by %c16_i32 dim 0 : vector<128x48xf32>, i32 -> vector<128x48xf32>
    %c4 = arith.constant 4 : index
    %c0_31 = arith.constant 0 : index
    %c0_32 = arith.constant 0 : index
    %56 = vector.load %arg7[%c4, %c0_31, %c0_32] : memref<27x128x48xf32, #tpu.memory_space<vmem>>, vector<1x128x48xf32>
    %57 = vector.shape_cast %56 : vector<1x128x48xf32> to vector<128x48xf32>
    %58 = arith.mulf %55, %57 : vector<128x48xf32>
    %59 = arith.addf %54, %58 : vector<128x48xf32>
    %c15_i32 = arith.constant 15 : i32
    %60 = tpu.dynamic_rotate %30 by %c15_i32 dim 0 : vector<128x48xf32>, i32 -> vector<128x48xf32>
    %c5 = arith.constant 5 : index
    %c0_33 = arith.constant 0 : index
    %c0_34 = arith.constant 0 : index
    %61 = vector.load %arg7[%c5, %c0_33, %c0_34] : memref<27x128x48xf32, #tpu.memory_space<vmem>>, vector<1x128x48xf32>
    %62 = vector.shape_cast %61 : vector<1x128x48xf32> to vector<128x48xf32>
    %63 = arith.mulf %60, %62 : vector<128x48xf32>
    %64 = arith.addf %59, %63 : vector<128x48xf32>
    %c13_i32 = arith.constant 13 : i32
    %65 = tpu.dynamic_rotate %30 by %c13_i32 dim 0 : vector<128x48xf32>, i32 -> vector<128x48xf32>
    %c6 = arith.constant 6 : index
    %c0_35 = arith.constant 0 : index
    %c0_36 = arith.constant 0 : index
    %66 = vector.load %arg7[%c6, %c0_35, %c0_36] : memref<27x128x48xf32, #tpu.memory_space<vmem>>, vector<1x128x48xf32>
    %67 = vector.shape_cast %66 : vector<1x128x48xf32> to vector<128x48xf32>
    %68 = arith.mulf %65, %67 : vector<128x48xf32>
    %69 = arith.addf %64, %68 : vector<128x48xf32>
    %c12_i32 = arith.constant 12 : i32
    %70 = tpu.dynamic_rotate %30 by %c12_i32 dim 0 : vector<128x48xf32>, i32 -> vector<128x48xf32>
    %c7 = arith.constant 7 : index
    %c0_37 = arith.constant 0 : index
    %c0_38 = arith.constant 0 : index
    %71 = vector.load %arg7[%c7, %c0_37, %c0_38] : memref<27x128x48xf32, #tpu.memory_space<vmem>>, vector<1x128x48xf32>
    %72 = vector.shape_cast %71 : vector<1x128x48xf32> to vector<128x48xf32>
    %73 = arith.mulf %70, %72 : vector<128x48xf32>
    %74 = arith.addf %69, %73 : vector<128x48xf32>
    %c11_i32 = arith.constant 11 : i32
    %75 = tpu.dynamic_rotate %30 by %c11_i32 dim 0 : vector<128x48xf32>, i32 -> vector<128x48xf32>
    %c8 = arith.constant 8 : index
    %c0_39 = arith.constant 0 : index
    %c0_40 = arith.constant 0 : index
    %76 = vector.load %arg7[%c8, %c0_39, %c0_40] : memref<27x128x48xf32, #tpu.memory_space<vmem>>, vector<1x128x48xf32>
    %77 = vector.shape_cast %76 : vector<1x128x48xf32> to vector<128x48xf32>
    %78 = arith.mulf %75, %77 : vector<128x48xf32>
    %79 = arith.addf %74, %78 : vector<128x48xf32>
    %c5_i32 = arith.constant 5 : i32
    %80 = tpu.dynamic_rotate %30 by %c5_i32 dim 0 : vector<128x48xf32>, i32 -> vector<128x48xf32>
    %c9 = arith.constant 9 : index
    %c0_41 = arith.constant 0 : index
    %c0_42 = arith.constant 0 : index
    %81 = vector.load %arg7[%c9, %c0_41, %c0_42] : memref<27x128x48xf32, #tpu.memory_space<vmem>>, vector<1x128x48xf32>
    %82 = vector.shape_cast %81 : vector<1x128x48xf32> to vector<128x48xf32>
    %83 = arith.mulf %80, %82 : vector<128x48xf32>
    %84 = arith.addf %79, %83 : vector<128x48xf32>
    %c4_i32 = arith.constant 4 : i32
    %85 = tpu.dynamic_rotate %30 by %c4_i32 dim 0 : vector<128x48xf32>, i32 -> vector<128x48xf32>
    %c10 = arith.constant 10 : index
    %c0_43 = arith.constant 0 : index
    %c0_44 = arith.constant 0 : index
    %86 = vector.load %arg7[%c10, %c0_43, %c0_44] : memref<27x128x48xf32, #tpu.memory_space<vmem>>, vector<1x128x48xf32>
    %87 = vector.shape_cast %86 : vector<1x128x48xf32> to vector<128x48xf32>
    %88 = arith.mulf %85, %87 : vector<128x48xf32>
    %89 = arith.addf %84, %88 : vector<128x48xf32>
    %c3_i32 = arith.constant 3 : i32
    %90 = tpu.dynamic_rotate %30 by %c3_i32 dim 0 : vector<128x48xf32>, i32 -> vector<128x48xf32>
    %c11 = arith.constant 11 : index
    %c0_45 = arith.constant 0 : index
    %c0_46 = arith.constant 0 : index
    %91 = vector.load %arg7[%c11, %c0_45, %c0_46] : memref<27x128x48xf32, #tpu.memory_space<vmem>>, vector<1x128x48xf32>
    %92 = vector.shape_cast %91 : vector<1x128x48xf32> to vector<128x48xf32>
    %93 = arith.mulf %90, %92 : vector<128x48xf32>
    %94 = arith.addf %89, %93 : vector<128x48xf32>
    %c1_i32 = arith.constant 1 : i32
    %95 = tpu.dynamic_rotate %30 by %c1_i32 dim 0 : vector<128x48xf32>, i32 -> vector<128x48xf32>
    %c12 = arith.constant 12 : index
    %c0_47 = arith.constant 0 : index
    %c0_48 = arith.constant 0 : index
    %96 = vector.load %arg7[%c12, %c0_47, %c0_48] : memref<27x128x48xf32, #tpu.memory_space<vmem>>, vector<1x128x48xf32>
    %97 = vector.shape_cast %96 : vector<1x128x48xf32> to vector<128x48xf32>
    %98 = arith.mulf %95, %97 : vector<128x48xf32>
    %99 = arith.addf %94, %98 : vector<128x48xf32>
    %c13 = arith.constant 13 : index
    %c0_49 = arith.constant 0 : index
    %c0_50 = arith.constant 0 : index
    %100 = vector.load %arg7[%c13, %c0_49, %c0_50] : memref<27x128x48xf32, #tpu.memory_space<vmem>>, vector<1x128x48xf32>
    %101 = vector.shape_cast %100 : vector<1x128x48xf32> to vector<128x48xf32>
    %102 = arith.mulf %30, %101 : vector<128x48xf32>
    %103 = arith.addf %99, %102 : vector<128x48xf32>
    %c127_i32 = arith.constant 127 : i32
    %104 = tpu.dynamic_rotate %30 by %c127_i32 dim 0 : vector<128x48xf32>, i32 -> vector<128x48xf32>
    %c14 = arith.constant 14 : index
    %c0_51 = arith.constant 0 : index
    %c0_52 = arith.constant 0 : index
    %105 = vector.load %arg7[%c14, %c0_51, %c0_52] : memref<27x128x48xf32, #tpu.memory_space<vmem>>, vector<1x128x48xf32>
    %106 = vector.shape_cast %105 : vector<1x128x48xf32> to vector<128x48xf32>
    %107 = arith.mulf %104, %106 : vector<128x48xf32>
    %108 = arith.addf %103, %107 : vector<128x48xf32>
    %c125_i32 = arith.constant 125 : i32
    %109 = tpu.dynamic_rotate %30 by %c125_i32 dim 0 : vector<128x48xf32>, i32 -> vector<128x48xf32>
    %c15 = arith.constant 15 : index
    %c0_53 = arith.constant 0 : index
    %c0_54 = arith.constant 0 : index
    %110 = vector.load %arg7[%c15, %c0_53, %c0_54] : memref<27x128x48xf32, #tpu.memory_space<vmem>>, vector<1x128x48xf32>
    %111 = vector.shape_cast %110 : vector<1x128x48xf32> to vector<128x48xf32>
    %112 = arith.mulf %109, %111 : vector<128x48xf32>
    %113 = arith.addf %108, %112 : vector<128x48xf32>
    %c124_i32 = arith.constant 124 : i32
    %114 = tpu.dynamic_rotate %30 by %c124_i32 dim 0 : vector<128x48xf32>, i32 -> vector<128x48xf32>
    %c16 = arith.constant 16 : index
    %c0_55 = arith.constant 0 : index
    %c0_56 = arith.constant 0 : index
    %115 = vector.load %arg7[%c16, %c0_55, %c0_56] : memref<27x128x48xf32, #tpu.memory_space<vmem>>, vector<1x128x48xf32>
    %116 = vector.shape_cast %115 : vector<1x128x48xf32> to vector<128x48xf32>
    %117 = arith.mulf %114, %116 : vector<128x48xf32>
    %118 = arith.addf %113, %117 : vector<128x48xf32>
    %c123_i32 = arith.constant 123 : i32
    %119 = tpu.dynamic_rotate %30 by %c123_i32 dim 0 : vector<128x48xf32>, i32 -> vector<128x48xf32>
    %c17 = arith.constant 17 : index
    %c0_57 = arith.constant 0 : index
    %c0_58 = arith.constant 0 : index
    %120 = vector.load %arg7[%c17, %c0_57, %c0_58] : memref<27x128x48xf32, #tpu.memory_space<vmem>>, vector<1x128x48xf32>
    %121 = vector.shape_cast %120 : vector<1x128x48xf32> to vector<128x48xf32>
    %122 = arith.mulf %119, %121 : vector<128x48xf32>
    %123 = arith.addf %118, %122 : vector<128x48xf32>
    %c117_i32 = arith.constant 117 : i32
    %124 = tpu.dynamic_rotate %30 by %c117_i32 dim 0 : vector<128x48xf32>, i32 -> vector<128x48xf32>
    %c18 = arith.constant 18 : index
    %c0_59 = arith.constant 0 : index
    %c0_60 = arith.constant 0 : index
    %125 = vector.load %arg7[%c18, %c0_59, %c0_60] : memref<27x128x48xf32, #tpu.memory_space<vmem>>, vector<1x128x48xf32>
    %126 = vector.shape_cast %125 : vector<1x128x48xf32> to vector<128x48xf32>
    %127 = arith.mulf %124, %126 : vector<128x48xf32>
    %128 = arith.addf %123, %127 : vector<128x48xf32>
    %c116_i32 = arith.constant 116 : i32
    %129 = tpu.dynamic_rotate %30 by %c116_i32 dim 0 : vector<128x48xf32>, i32 -> vector<128x48xf32>
    %c19 = arith.constant 19 : index
    %c0_61 = arith.constant 0 : index
    %c0_62 = arith.constant 0 : index
    %130 = vector.load %arg7[%c19, %c0_61, %c0_62] : memref<27x128x48xf32, #tpu.memory_space<vmem>>, vector<1x128x48xf32>
    %131 = vector.shape_cast %130 : vector<1x128x48xf32> to vector<128x48xf32>
    %132 = arith.mulf %129, %131 : vector<128x48xf32>
    %133 = arith.addf %128, %132 : vector<128x48xf32>
    %c115_i32 = arith.constant 115 : i32
    %134 = tpu.dynamic_rotate %30 by %c115_i32 dim 0 : vector<128x48xf32>, i32 -> vector<128x48xf32>
    %c20 = arith.constant 20 : index
    %c0_63 = arith.constant 0 : index
    %c0_64 = arith.constant 0 : index
    %135 = vector.load %arg7[%c20, %c0_63, %c0_64] : memref<27x128x48xf32, #tpu.memory_space<vmem>>, vector<1x128x48xf32>
    %136 = vector.shape_cast %135 : vector<1x128x48xf32> to vector<128x48xf32>
    %137 = arith.mulf %134, %136 : vector<128x48xf32>
    %138 = arith.addf %133, %137 : vector<128x48xf32>
    %c113_i32 = arith.constant 113 : i32
    %139 = tpu.dynamic_rotate %30 by %c113_i32 dim 0 : vector<128x48xf32>, i32 -> vector<128x48xf32>
    %c21 = arith.constant 21 : index
    %c0_65 = arith.constant 0 : index
    %c0_66 = arith.constant 0 : index
    %140 = vector.load %arg7[%c21, %c0_65, %c0_66] : memref<27x128x48xf32, #tpu.memory_space<vmem>>, vector<1x128x48xf32>
    %141 = vector.shape_cast %140 : vector<1x128x48xf32> to vector<128x48xf32>
    %142 = arith.mulf %139, %141 : vector<128x48xf32>
    %143 = arith.addf %138, %142 : vector<128x48xf32>
    %c112_i32 = arith.constant 112 : i32
    %144 = tpu.dynamic_rotate %30 by %c112_i32 dim 0 : vector<128x48xf32>, i32 -> vector<128x48xf32>
    %c22 = arith.constant 22 : index
    %c0_67 = arith.constant 0 : index
    %c0_68 = arith.constant 0 : index
    %145 = vector.load %arg7[%c22, %c0_67, %c0_68] : memref<27x128x48xf32, #tpu.memory_space<vmem>>, vector<1x128x48xf32>
    %146 = vector.shape_cast %145 : vector<1x128x48xf32> to vector<128x48xf32>
    %147 = arith.mulf %144, %146 : vector<128x48xf32>
    %148 = arith.addf %143, %147 : vector<128x48xf32>
    %c111_i32 = arith.constant 111 : i32
    %149 = tpu.dynamic_rotate %30 by %c111_i32 dim 0 : vector<128x48xf32>, i32 -> vector<128x48xf32>
    %c23 = arith.constant 23 : index
    %c0_69 = arith.constant 0 : index
    %c0_70 = arith.constant 0 : index
    %150 = vector.load %arg7[%c23, %c0_69, %c0_70] : memref<27x128x48xf32, #tpu.memory_space<vmem>>, vector<1x128x48xf32>
    %151 = vector.shape_cast %150 : vector<1x128x48xf32> to vector<128x48xf32>
    %152 = arith.mulf %149, %151 : vector<128x48xf32>
    %153 = arith.addf %148, %152 : vector<128x48xf32>
    %c109_i32 = arith.constant 109 : i32
    %154 = tpu.dynamic_rotate %30 by %c109_i32 dim 0 : vector<128x48xf32>, i32 -> vector<128x48xf32>
    %c24 = arith.constant 24 : index
    %c0_71 = arith.constant 0 : index
    %c0_72 = arith.constant 0 : index
    %155 = vector.load %arg7[%c24, %c0_71, %c0_72] : memref<27x128x48xf32, #tpu.memory_space<vmem>>, vector<1x128x48xf32>
    %156 = vector.shape_cast %155 : vector<1x128x48xf32> to vector<128x48xf32>
    %157 = arith.mulf %154, %156 : vector<128x48xf32>
    %158 = arith.addf %153, %157 : vector<128x48xf32>
    %c108_i32 = arith.constant 108 : i32
    %159 = tpu.dynamic_rotate %30 by %c108_i32 dim 0 : vector<128x48xf32>, i32 -> vector<128x48xf32>
    %c25 = arith.constant 25 : index
    %c0_73 = arith.constant 0 : index
    %c0_74 = arith.constant 0 : index
    %160 = vector.load %arg7[%c25, %c0_73, %c0_74] : memref<27x128x48xf32, #tpu.memory_space<vmem>>, vector<1x128x48xf32>
    %161 = vector.shape_cast %160 : vector<1x128x48xf32> to vector<128x48xf32>
    %162 = arith.mulf %159, %161 : vector<128x48xf32>
    %163 = arith.addf %158, %162 : vector<128x48xf32>
    %c107_i32 = arith.constant 107 : i32
    %164 = tpu.dynamic_rotate %30 by %c107_i32 dim 0 : vector<128x48xf32>, i32 -> vector<128x48xf32>
    %c26 = arith.constant 26 : index
    %c0_75 = arith.constant 0 : index
    %c0_76 = arith.constant 0 : index
    %165 = vector.load %arg7[%c26, %c0_75, %c0_76] : memref<27x128x48xf32, #tpu.memory_space<vmem>>, vector<1x128x48xf32>
    %166 = vector.shape_cast %165 : vector<1x128x48xf32> to vector<128x48xf32>
    %167 = arith.mulf %164, %166 : vector<128x48xf32>
    %168 = arith.addf %163, %167 : vector<128x48xf32>
    %c0_77 = arith.constant 0 : index
    %c0_78 = arith.constant 0 : index
    %169 = vector.load %arg9[%c0_77, %c0_78] : memref<12x48xf32, #tpu.memory_space<vmem>>, vector<12x48xf32>
    %170 = vector.shape_cast %169 : vector<12x48xf32> to vector<12x1x48xf32>
    %171 = vector.shape_cast %170 : vector<12x1x48xf32> to vector<12x1x48xf32>
    %172 = vector.broadcast %171 : vector<12x1x48xf32> to vector<12x64x48xf32>
    %173 = arith.truncf %28 : vector<128x48xf32> to vector<128x48xbf16>
    %174 = arith.truncf %30 : vector<128x48xf32> to vector<128x48xbf16>
    %175 = vector.extract_strided_slice %26 {offsets = [0, 0], sizes = [64, 48], strides = [1, 1]} : vector<128x48xf32> to vector<64x48xf32>
    %176 = vector.shape_cast %175 : vector<64x48xf32> to vector<1x64x48xf32>
    %177 = vector.broadcast %176 : vector<1x64x48xf32> to vector<12x64x48xf32>
    %178 = arith.mulf %177, %172 : vector<12x64x48xf32>
    %179 = vector.shape_cast %178 : vector<12x64x48xf32> to vector<768x48xf32>
    %180 = arith.truncf %179 : vector<768x48xf32> to vector<768x48xbf16>
    %181 = vector.extract_strided_slice %173 {offsets = [0, 0], sizes = [64, 48], strides = [1, 1]} : vector<128x48xbf16> to vector<64x48xbf16>
    %cst_79 = arith.constant dense<0.000000e+00> : vector<768x64xf32>
    %182 = tpu.matmul %180, %181, %cst_79 {dimension_numbers = #tpu.dot_dimension_numbers<[1], [1], [0], [0], [0, 0, 1, 0], [], []>} : vector<768x48xbf16>, vector<64x48xbf16>, vector<768x64xf32> -> vector<768x64xf32>
    %cst_80 = arith.constant dense<0xFF800000> : vector<768xf32>
    %183 = vector.multi_reduction <maximumf>, %182, %cst_80 [1] : vector<768x64xf32> to vector<768xf32>
    %184 = vector.shape_cast %183 : vector<768xf32> to vector<768x1xf32>
    %185 = vector.broadcast %184 : vector<768x1xf32> to vector<768x64xf32>
    %186 = arith.subf %182, %185 : vector<768x64xf32>
    %187 = math.exp %186 : vector<768x64xf32>
    %cst_81 = arith.constant dense<0.000000e+00> : vector<768xf32>
    %188 = vector.multi_reduction <add>, %187, %cst_81 [1] : vector<768x64xf32> to vector<768xf32>
    %189 = vector.shape_cast %188 : vector<768xf32> to vector<768x1xf32>
    %190 = tpu.reciprocal %189 {approx = true} : vector<768x1xf32> -> vector<768x1xf32>
    %191 = vector.broadcast %190 : vector<768x1xf32> to vector<768x64xf32>
    %192 = arith.mulf %187, %191 : vector<768x64xf32>
    %193 = arith.truncf %192 : vector<768x64xf32> to vector<768x64xbf16>
    %194 = vector.extract_strided_slice %174 {offsets = [0, 0], sizes = [64, 48], strides = [1, 1]} : vector<128x48xbf16> to vector<64x48xbf16>
    %cst_82 = arith.constant dense<0.000000e+00> : vector<768x48xf32>
    %195 = tpu.matmul %193, %194, %cst_82 {dimension_numbers = #tpu.dot_dimension_numbers<[1], [0], [0], [1], [0, 0, 1, 1], [], []>} : vector<768x64xbf16>, vector<64x48xbf16>, vector<768x48xf32> -> vector<768x48xf32>
    %196 = vector.shape_cast %195 : vector<768x48xf32> to vector<12x64x48xf32>
    %197 = arith.mulf %196, %172 : vector<12x64x48xf32>
    %cst_83 = arith.constant dense<0.000000e+00> : vector<64x48xf32>
    %198 = vector.multi_reduction <add>, %197, %cst_83 [0] : vector<12x64x48xf32> to vector<64x48xf32>
    %199 = vector.extract_strided_slice %26 {offsets = [64, 0], sizes = [64, 48], strides = [1, 1]} : vector<128x48xf32> to vector<64x48xf32>
    %200 = vector.shape_cast %199 : vector<64x48xf32> to vector<1x64x48xf32>
    %201 = vector.broadcast %200 : vector<1x64x48xf32> to vector<12x64x48xf32>
    %202 = arith.mulf %201, %172 : vector<12x64x48xf32>
    %203 = vector.shape_cast %202 : vector<12x64x48xf32> to vector<768x48xf32>
    %204 = arith.truncf %203 : vector<768x48xf32> to vector<768x48xbf16>
    %205 = vector.extract_strided_slice %173 {offsets = [64, 0], sizes = [64, 48], strides = [1, 1]} : vector<128x48xbf16> to vector<64x48xbf16>
    %cst_84 = arith.constant dense<0.000000e+00> : vector<768x64xf32>
    %206 = tpu.matmul %204, %205, %cst_84 {dimension_numbers = #tpu.dot_dimension_numbers<[1], [1], [0], [0], [0, 0, 1, 0], [], []>} : vector<768x48xbf16>, vector<64x48xbf16>, vector<768x64xf32> -> vector<768x64xf32>
    %cst_85 = arith.constant dense<0xFF800000> : vector<768xf32>
    %207 = vector.multi_reduction <maximumf>, %206, %cst_85 [1] : vector<768x64xf32> to vector<768xf32>
    %208 = vector.shape_cast %207 : vector<768xf32> to vector<768x1xf32>
    %209 = vector.broadcast %208 : vector<768x1xf32> to vector<768x64xf32>
    %210 = arith.subf %206, %209 : vector<768x64xf32>
    %211 = math.exp %210 : vector<768x64xf32>
    %cst_86 = arith.constant dense<0.000000e+00> : vector<768xf32>
    %212 = vector.multi_reduction <add>, %211, %cst_86 [1] : vector<768x64xf32> to vector<768xf32>
    %213 = vector.shape_cast %212 : vector<768xf32> to vector<768x1xf32>
    %214 = tpu.reciprocal %213 {approx = true} : vector<768x1xf32> -> vector<768x1xf32>
    %215 = vector.broadcast %214 : vector<768x1xf32> to vector<768x64xf32>
    %216 = arith.mulf %211, %215 : vector<768x64xf32>
    %217 = arith.truncf %216 : vector<768x64xf32> to vector<768x64xbf16>
    %218 = vector.extract_strided_slice %174 {offsets = [64, 0], sizes = [64, 48], strides = [1, 1]} : vector<128x48xbf16> to vector<64x48xbf16>
    %cst_87 = arith.constant dense<0.000000e+00> : vector<768x48xf32>
    %219 = tpu.matmul %217, %218, %cst_87 {dimension_numbers = #tpu.dot_dimension_numbers<[1], [0], [0], [1], [0, 0, 1, 1], [], []>} : vector<768x64xbf16>, vector<64x48xbf16>, vector<768x48xf32> -> vector<768x48xf32>
    %220 = vector.shape_cast %219 : vector<768x48xf32> to vector<12x64x48xf32>
    %221 = arith.mulf %220, %172 : vector<12x64x48xf32>
    %cst_88 = arith.constant dense<0.000000e+00> : vector<64x48xf32>
    %222 = vector.multi_reduction <add>, %221, %cst_88 [0] : vector<12x64x48xf32> to vector<64x48xf32>
    %223 = tpu.concatenate %198, %222 in 0 : vector<64x48xf32>, vector<64x48xf32> -> vector<128x48xf32>
    %224 = arith.addf %223, %168 : vector<128x48xf32>
    %225 = arith.truncf %224 : vector<128x48xf32> to vector<128x48xbf16>
    %c0_89 = arith.constant 0 : index
    %c0_90 = arith.constant 0 : index
    %226 = vector.load %arg10[%c0_89, %c0_90] : memref<48x48xbf16, #tpu.memory_space<vmem>>, vector<48x48xbf16>
    %cst_91 = arith.constant dense<0.000000e+00> : vector<128x48xf32>
    %227 = tpu.matmul %225, %226, %cst_91 {dimension_numbers = #tpu.dot_dimension_numbers<[1], [0], [0], [1], [0, 0, 1, 1], [], []>} : vector<128x48xbf16>, vector<48x48xbf16>, vector<128x48xf32> -> vector<128x48xf32>
    %c0_92 = arith.constant 0 : index
    %c0_93 = arith.constant 0 : index
    %228 = vector.load %arg11[%c0_92, %c0_93] : memref<1x48xf32, #tpu.memory_space<vmem>>, vector<1x48xf32>
    %229 = vector.broadcast %228 : vector<1x48xf32> to vector<128x48xf32>
    %230 = arith.addf %227, %229 : vector<128x48xf32>
    %231 = arith.addf %1, %230 : vector<128x48xf32>
    %c0_94 = arith.constant 0 : index
    %c0_95 = arith.constant 0 : index
    %232 = vector.load %arg12[%c0_94, %c0_95] : memref<1x48xf32, #tpu.memory_space<vmem>>, vector<1x48xf32>
    %c0_96 = arith.constant 0 : index
    %c0_97 = arith.constant 0 : index
    %233 = vector.load %arg13[%c0_96, %c0_97] : memref<1x48xf32, #tpu.memory_space<vmem>>, vector<1x48xf32>
    %cst_98 = arith.constant dense<0.000000e+00> : vector<128xf32>
    %234 = vector.multi_reduction <add>, %231, %cst_98 [1] : vector<128x48xf32> to vector<128xf32>
    %235 = vector.shape_cast %234 : vector<128xf32> to vector<128x1xf32>
    %cst_99 = arith.constant 4.800000e+01 : f32
    %236 = vector.broadcast %cst_99 : f32 to vector<128x1xf32>
    %237 = arith.divf %235, %236 : vector<128x1xf32>
    %238 = vector.broadcast %237 : vector<128x1xf32> to vector<128x48xf32>
    %239 = arith.subf %231, %238 : vector<128x48xf32>
    %240 = arith.mulf %239, %239 : vector<128x48xf32>
    %cst_100 = arith.constant dense<0.000000e+00> : vector<128xf32>
    %241 = vector.multi_reduction <add>, %240, %cst_100 [1] : vector<128x48xf32> to vector<128xf32>
    %242 = vector.shape_cast %241 : vector<128xf32> to vector<128x1xf32>
    %cst_101 = arith.constant 4.800000e+01 : f32
    %243 = vector.broadcast %cst_101 : f32 to vector<128x1xf32>
    %244 = arith.divf %242, %243 : vector<128x1xf32>
    %cst_102 = arith.constant 9.99999974E-6 : f32
    %245 = vector.broadcast %cst_102 : f32 to vector<128x1xf32>
    %246 = arith.addf %244, %245 : vector<128x1xf32>
    %247 = math.rsqrt %246 : vector<128x1xf32>
    %248 = vector.broadcast %247 : vector<128x1xf32> to vector<128x48xf32>
    %249 = arith.mulf %239, %248 : vector<128x48xf32>
    %250 = vector.broadcast %232 : vector<1x48xf32> to vector<128x48xf32>
    %251 = arith.mulf %249, %250 : vector<128x48xf32>
    %252 = vector.broadcast %233 : vector<1x48xf32> to vector<128x48xf32>
    %253 = arith.addf %251, %252 : vector<128x48xf32>
    %254 = arith.truncf %253 : vector<128x48xf32> to vector<128x48xbf16>
    %c0_103 = arith.constant 0 : index
    %c0_104 = arith.constant 0 : index
    %255 = vector.load %arg14[%c0_103, %c0_104] : memref<48x192xbf16, #tpu.memory_space<vmem>>, vector<48x192xbf16>
    %cst_105 = arith.constant dense<0.000000e+00> : vector<128x192xf32>
    %256 = tpu.matmul %254, %255, %cst_105 {dimension_numbers = #tpu.dot_dimension_numbers<[1], [0], [0], [1], [0, 0, 1, 1], [], []>} : vector<128x48xbf16>, vector<48x192xbf16>, vector<128x192xf32> -> vector<128x192xf32>
    %c0_106 = arith.constant 0 : index
    %c0_107 = arith.constant 0 : index
    %257 = vector.load %arg15[%c0_106, %c0_107] : memref<1x192xf32, #tpu.memory_space<vmem>>, vector<1x192xf32>
    %258 = vector.broadcast %257 : vector<1x192xf32> to vector<128x192xf32>
    %259 = arith.addf %256, %258 : vector<128x192xf32>
    %cst_108 = arith.constant 5.000000e-01 : f32
    %260 = vector.broadcast %cst_108 : f32 to vector<128x192xf32>
    %261 = arith.mulf %260, %259 : vector<128x192xf32>
    %cst_109 = arith.constant 0.707106769 : f32
    %262 = vector.broadcast %cst_109 : f32 to vector<128x192xf32>
    %263 = arith.mulf %259, %262 : vector<128x192xf32>
    %264 = math.erf %263 : vector<128x192xf32>
    %cst_110 = arith.constant 1.000000e+00 : f32
    %265 = vector.broadcast %cst_110 : f32 to vector<128x192xf32>
    %266 = arith.addf %265, %264 : vector<128x192xf32>
    %267 = arith.mulf %261, %266 : vector<128x192xf32>
    %268 = arith.truncf %267 : vector<128x192xf32> to vector<128x192xbf16>
    %c0_111 = arith.constant 0 : index
    %c0_112 = arith.constant 0 : index
    %269 = vector.load %arg16[%c0_111, %c0_112] : memref<192x48xbf16, #tpu.memory_space<vmem>>, vector<192x48xbf16>
    %cst_113 = arith.constant dense<0.000000e+00> : vector<128x48xf32>
    %270 = tpu.matmul %268, %269, %cst_113 {dimension_numbers = #tpu.dot_dimension_numbers<[1], [0], [0], [1], [0, 0, 1, 1], [], []>} : vector<128x192xbf16>, vector<192x48xbf16>, vector<128x48xf32> -> vector<128x48xf32>
    %c0_114 = arith.constant 0 : index
    %c0_115 = arith.constant 0 : index
    %271 = vector.load %arg17[%c0_114, %c0_115] : memref<1x48xf32, #tpu.memory_space<vmem>>, vector<1x48xf32>
    %272 = vector.broadcast %271 : vector<1x48xf32> to vector<128x48xf32>
    %273 = arith.addf %270, %272 : vector<128x48xf32>
    %274 = arith.addf %231, %273 : vector<128x48xf32>
    %275 = vector.shape_cast %274 : vector<128x48xf32> to vector<2x64x48xf32>
    %c0_116 = arith.constant 0 : index
    %c0_117 = arith.constant 0 : index
    %c0_118 = arith.constant 0 : index
    %276 = vector.load %arg18[%c0_116, %c0_117, %c0_118] : memref<2x64x48xf32, #tpu.memory_space<vmem>>, vector<2x64x48xf32>
    tpu.vector_store %arg18[%c0_116, %c0_117, %c0_118], %275 {strides = array<i32>} : memref<2x64x48xf32, #tpu.memory_space<vmem>>, vector<2x64x48xf32>,
    return
  }
  func.func @transform_0(%arg0: i32) -> (i32, i32, i32) {
    %c0_i32 = arith.constant 0 : i32
    %c0_i32_0 = arith.constant 0 : i32
    %c0_i32_1 = arith.constant 0 : i32
    return %arg0, %c0_i32, %c0_i32_0 : i32, i32, i32
  }
  func.func @transform_1(%arg0: i32) -> (i32, i32) {
    %c0_i32 = arith.constant 0 : i32
    %c0_i32_0 = arith.constant 0 : i32
    %c0_i32_1 = arith.constant 0 : i32
    return %c0_i32, %c0_i32_0 : i32, i32
  }
  func.func @transform_2(%arg0: i32) -> (i32, i32) {
    %c0_i32 = arith.constant 0 : i32
    %c0_i32_0 = arith.constant 0 : i32
    %c0_i32_1 = arith.constant 0 : i32
    return %c0_i32, %c0_i32_0 : i32, i32
  }
  func.func @transform_3(%arg0: i32) -> (i32, i32) {
    %c0_i32 = arith.constant 0 : i32
    %c0_i32_0 = arith.constant 0 : i32
    %c0_i32_1 = arith.constant 0 : i32
    return %c0_i32, %c0_i32_0 : i32, i32
  }
  func.func @transform_4(%arg0: i32) -> (i32, i32) {
    %c0_i32 = arith.constant 0 : i32
    %c0_i32_0 = arith.constant 0 : i32
    %c0_i32_1 = arith.constant 0 : i32
    return %c0_i32, %c0_i32_0 : i32, i32
  }
  func.func @transform_5(%arg0: i32) -> (i32, i32) {
    %c0_i32 = arith.constant 0 : i32
    %c0_i32_0 = arith.constant 0 : i32
    %c0_i32_1 = arith.constant 0 : i32
    return %c0_i32, %c0_i32_0 : i32, i32
  }
  func.func @transform_6(%arg0: i32) -> (i32, i32, i32) {
    %c0_i32 = arith.constant 0 : i32
    %c0_i32_0 = arith.constant 0 : i32
    %c0_i32_1 = arith.constant 0 : i32
    %c0_i32_2 = arith.constant 0 : i32
    return %c0_i32, %c0_i32_0, %c0_i32_1 : i32, i32, i32
  }
  func.func @transform_7(%arg0: i32) -> (i32, i32) {
    %c0_i32 = arith.constant 0 : i32
    %c0_i32_0 = arith.constant 0 : i32
    %c0_i32_1 = arith.constant 0 : i32
    return %c0_i32, %c0_i32_0 : i32, i32
  }
  func.func @transform_8(%arg0: i32) -> (i32, i32) {
    %c0_i32 = arith.constant 0 : i32
    %c0_i32_0 = arith.constant 0 : i32
    %c0_i32_1 = arith.constant 0 : i32
    return %c0_i32, %c0_i32_0 : i32, i32
  }
  func.func @transform_9(%arg0: i32) -> (i32, i32) {
    %c0_i32 = arith.constant 0 : i32
    %c0_i32_0 = arith.constant 0 : i32
    %c0_i32_1 = arith.constant 0 : i32
    return %c0_i32, %c0_i32_0 : i32, i32
  }
  func.func @transform_10(%arg0: i32) -> (i32, i32) {
    %c0_i32 = arith.constant 0 : i32
    %c0_i32_0 = arith.constant 0 : i32
    %c0_i32_1 = arith.constant 0 : i32
    return %c0_i32, %c0_i32_0 : i32, i32
  }
  func.func @transform_11(%arg0: i32) -> (i32, i32) {
    %c0_i32 = arith.constant 0 : i32
    %c0_i32_0 = arith.constant 0 : i32
    %c0_i32_1 = arith.constant 0 : i32
    return %c0_i32, %c0_i32_0 : i32, i32
  }
  func.func @transform_12(%arg0: i32) -> (i32, i32) {
    %c0_i32 = arith.constant 0 : i32
    %c0_i32_0 = arith.constant 0 : i32
    %c0_i32_1 = arith.constant 0 : i32
    return %c0_i32, %c0_i32_0 : i32, i32
  }
  func.func @transform_13(%arg0: i32) -> (i32, i32) {
    %c0_i32 = arith.constant 0 : i32
    %c0_i32_0 = arith.constant 0 : i32
    %c0_i32_1 = arith.constant 0 : i32
    return %c0_i32, %c0_i32_0 : i32, i32
  }
  func.func @transform_14(%arg0: i32) -> (i32, i32) {
    %c0_i32 = arith.constant 0 : i32
    %c0_i32_0 = arith.constant 0 : i32
    %c0_i32_1 = arith.constant 0 : i32
    return %c0_i32, %c0_i32_0 : i32, i32
  }
  func.func @transform_15(%arg0: i32) -> (i32, i32) {
    %c0_i32 = arith.constant 0 : i32
    %c0_i32_0 = arith.constant 0 : i32
    %c0_i32_1 = arith.constant 0 : i32
    return %c0_i32, %c0_i32_0 : i32, i32
  }
  func.func @transform_16(%arg0: i32) -> (i32, i32) {
    %c0_i32 = arith.constant 0 : i32
    %c0_i32_0 = arith.constant 0 : i32
    %c0_i32_1 = arith.constant 0 : i32
    return %c0_i32, %c0_i32_0 : i32, i32
  }
  func.func @transform_17(%arg0: i32) -> (i32, i32, i32) {
    %c0_i32 = arith.constant 0 : i32
    %c0_i32_0 = arith.constant 0 : i32
    %c0_i32_1 = arith.constant 0 : i32
    return %arg0, %c0_i32, %c0_i32_0 : i32, i32, i32
  }
}

</mosaic_0001>

<llo_original>
// kernel: spw_trans_block_forward.1
$region0: #{spw_trans_block_forward.1}
  #allocation0 [shape = 'u32[]', space=smem, size = 0x4, offset = 0x4, fixed_abs, tag = 'smem constant byte address 0x4 - core index']
  #allocation1 [shape = 'u32[144,128]{1,0:T(1,128)}', space=vmem, size = 0x12000, scoped, tag = 'internal scratch']
  %s0 = inlined_call_operand.vmem [shape: f32[4,64,48], index: 0, kind: input, shape index: {}]
  %s1 = inlined_call_operand.vmem [shape: f32[1,48], index: 1, kind: input, shape index: {}]
  %s2 = inlined_call_operand.vmem [shape: f32[1,48], index: 2, kind: input, shape index: {}]
  %s3 = inlined_call_operand.vmem [shape: bf16[48,48], index: 3, kind: input, shape index: {}]
  %s4 = inlined_call_operand.vmem [shape: bf16[48,48], index: 4, kind: input, shape index: {}]
  %s5 = inlined_call_operand.vmem [shape: bf16[48,48], index: 5, kind: input, shape index: {}]
  %s6 = inlined_call_operand.vmem [shape: f32[27,128,48], index: 6, kind: input, shape index: {}]
  %s7 = inlined_call_operand.vmem [shape: f32[1,48], index: 7, kind: input, shape index: {}]
  %s8 = inlined_call_operand.vmem [shape: f32[12,48], index: 8, kind: input, shape index: {}]
  %s9 = inlined_call_operand.vmem [shape: bf16[48,48], index: 9, kind: input, shape index: {}]
  %s10 = inlined_call_operand.vmem [shape: f32[1,48], index: 10, kind: input, shape index: {}]
  %s11 = inlined_call_operand.vmem [shape: f32[1,48], index: 11, kind: input, shape index: {}]
  %s12 = inlined_call_operand.vmem [shape: f32[1,48], index: 12, kind: input, shape index: {}]
  %s13 = inlined_call_operand.vmem [shape: bf16[48,192], index: 13, kind: input, shape index: {}]
  %s14 = inlined_call_operand.vmem [shape: f32[1,192], index: 14, kind: input, shape index: {}]
  %s15 = inlined_call_operand.vmem [shape: bf16[192,48], index: 15, kind: input, shape index: {}]
  %s16 = inlined_call_operand.vmem [shape: f32[1,48], index: 16, kind: input, shape index: {}]
  %s17 = inlined_call_operand.vmem [shape: f32[4,64,48], index: 17, kind: output, shape index: {}]
  %s18 = sld [smem:[#allocation0]]
  $region101: #{spw_trans_block_forward.1} parent=0
    _
  %s20 = ssub.s32 1, %s18
  %s21 = scalar_select 0, %s20, %s18
  loop: start=0, step=1, limit=4
  $region2: #{spw_trans_block_forward.1} parent=0 // loop_pre_header
    _
  $region3: #{spw_trans_block_forward.1} parent=0 // loop_header
    %s23 = sphi 0, %s27
    %p24 = scmp.ge.s32.totalorder %s23, 4
    %s33 = sphi 0, %s35
    %s36 = sphi 0, %s33
    %s37 = sphi 0, %s36
    %s53 = sphi 0, %s37
    %s57 = sphi 0, %s57
    %s59 = sphi 0, %s57
    %s60 = sphi 0, %s59
    %s74 = sphi 0, %s60
    %s78 = sphi 0, %s78
    %s80 = sphi 0, %s78
    %s81 = sphi 0, %s80
    %s95 = sphi 0, %s81
    %s99 = sphi 0, %s99
    %s101 = sphi 0, %s99
    %s102 = sphi 0, %s101
    %s116 = sphi 0, %s102
    %s120 = sphi 0, %s120
    %s122 = sphi 0, %s120
    %s123 = sphi 0, %s122
    %s137 = sphi 0, %s123
    %s141 = sphi 0, %s141
    %s143 = sphi 0, %s141
    %s144 = sphi 0, %s143
    %s158 = sphi 0, %s144
    %s162 = sphi 0, %s162
    %s164 = sphi 0, %s162
    %s165 = sphi 0, %s164
    %s179 = sphi 0, %s165
    %s183 = sphi 0, %s183
    %s185 = sphi 0, %s183
    %s186 = sphi 0, %s185
    %s200 = sphi 0, %s186
    %s204 = sphi 0, %s204
    %s206 = sphi 0, %s204
    %s207 = sphi 0, %s206
    %s221 = sphi 0, %s207
    %s225 = sphi 0, %s225
    %s227 = sphi 0, %s225
    %s228 = sphi 0, %s227
    %s242 = sphi 0, %s228
    %s246 = sphi 0, %s246
    %s248 = sphi 0, %s246
    %s249 = sphi 0, %s248
    %s263 = sphi 0, %s249
    %s267 = sphi 0, %s267
    %s269 = sphi 0, %s267
    %s270 = sphi 0, %s269
    %s284 = sphi 0, %s270
    %s288 = sphi 0, %s288
    %s290 = sphi 0, %s288
    %s291 = sphi 0, %s290
    %s305 = sphi 0, %s291
    %s309 = sphi 0, %s309
    %s311 = sphi 0, %s309
    %s312 = sphi 0, %s311
    %s326 = sphi 0, %s312
    %s330 = sphi 0, %s330
    %s332 = sphi 0, %s330
    %s333 = sphi 0, %s332
    %s347 = sphi 0, %s333
    %s351 = sphi 0, %s351
    %s353 = sphi 0, %s351
    %s354 = sphi 0, %s353
    %s368 = sphi 0, %s354
    %s372 = sphi 0, %s372
    %s374 = sphi 0, %s372
    %s375 = sphi 0, %s374
    %s389 = sphi 0, %s375
    %s395 = sphi 0, %s397
    %s398 = sphi 0, %s395
    %s399 = sphi 0, %s398
    %s415 = sphi 0, %s399
  $region4: #{spw_trans_block_forward.1} parent=0 // loop_header_branch
    %26 = sbr.rel (%p24) target = $region8
  $region5: #{spw_trans_block_forward.1} parent=0 // loop_body
    %s28 = ssub.s32 %s23, 1
    %s29 = ssub.s32 %s23, 2
    %s30 = sadd.s32 %s23, 1
    %s31 = ssub.s32 %s23, %s30
    %p32 = scmp.eq.s32.totalorder %s31, 0
    %s34 = sadd.s32 %s33, 1
    %s35 = scalar_select %p32, %s33, %s34
    %p38 = pneg %p32
    %p39 = scmp.eq.s32.totalorder %s23, 1
    %p40 = por %p38, %p39
    %p41 = scmp.ne.s32.totalorder %s33, %s36
    %p42 = scmp.eq.s32.totalorder %s23, 0
    %p43 = por %p41, %p42
    %p44 = scmp.ne.s32.totalorder %s33, %s36
    %p45 = scmp.eq.s32.totalorder %s28, 1
    %p46 = por %p44, %p45
    %p47 = scmp.ne.s32.totalorder %s36, %s37
    %p48 = scmp.eq.s32.totalorder %s28, 0
    %p49 = por %p47, %p48
    %p50 = scmp.ne.s32.totalorder %s36, %s37
    %p51 = scmp.eq.s32.totalorder %s29, 1
    %p52 = por %p50, %p51
    %p54 = scmp.ne.s32.totalorder %s37, %s53
    %p55 = scmp.eq.s32.totalorder %s29, 0
    %p56 = por %p54, %p55
    %s58 = sadd.s32 %s57, 1
    %p61 = scmp.eq.s32.totalorder %s23, 1
    %p62 = scmp.ne.s32.totalorder %s57, %s59
    %p63 = scmp.eq.s32.totalorder %s23, 0
    %p64 = por %p62, %p63
    %p65 = scmp.ne.s32.totalorder %s57, %s59
    %p66 = scmp.eq.s32.totalorder %s28, 1
    %p67 = por %p65, %p66
    %p68 = scmp.ne.s32.totalorder %s59, %s60
    %p69 = scmp.eq.s32.totalorder %s28, 0
    %p70 = por %p68, %p69
    %p71 = scmp.ne.s32.totalorder %s59, %s60
    %p72 = scmp.eq.s32.totalorder %s29, 1
    %p73 = por %p71, %p72
    %p75 = scmp.ne.s32.totalorder %s60, %s74
    %p76 = scmp.eq.s32.totalorder %s29, 0
    %p77 = por %p75, %p76
    %s79 = sadd.s32 %s78, 1
    %p82 = scmp.eq.s32.totalorder %s23, 1
    %p83 = scmp.ne.s32.totalorder %s78, %s80
    %p84 = scmp.eq.s32.totalorder %s23, 0
    %p85 = por %p83, %p84
    %p86 = scmp.ne.s32.totalorder %s78, %s80
    %p87 = scmp.eq.s32.totalorder %s28, 1
    %p88 = por %p86, %p87
    %p89 = scmp.ne.s32.totalorder %s80, %s81
    %p90 = scmp.eq.s32.totalorder %s28, 0
    %p91 = por %p89, %p90
    %p92 = scmp.ne.s32.totalorder %s80, %s81
    %p93 = scmp.eq.s32.totalorder %s29, 1
    %p94 = por %p92, %p93
    %p96 = scmp.ne.s32.totalorder %s81, %s95
    %p97 = scmp.eq.s32.totalorder %s29, 0
    %p98 = por %p96, %p97
    %s100 = sadd.s32 %s99, 1
    %p103 = scmp.eq.s32.totalorder %s23, 1
    %p104 = scmp.ne.s32.totalorder %s99, %s101
    %p105 = scmp.eq.s32.totalorder %s23, 0
    %p106 = por %p104, %p105
    %p107 = scmp.ne.s32.totalorder %s99, %s101
    %p108 = scmp.eq.s32.totalorder %s28, 1
    %p109 = por %p107, %p108
    %p110 = scmp.ne.s32.totalorder %s101, %s102
    %p111 = scmp.eq.s32.totalorder %s28, 0
    %p112 = por %p110, %p111
    %p113 = scmp.ne.s32.totalorder %s101, %s102
    %p114 = scmp.eq.s32.totalorder %s29, 1
    %p115 = por %p113, %p114
    %p117 = scmp.ne.s32.totalorder %s102, %s116
    %p118 = scmp.eq.s32.totalorder %s29, 0
    %p119 = por %p117, %p118
    %s121 = sadd.s32 %s120, 1
    %p124 = scmp.eq.s32.totalorder %s23, 1
    %p125 = scmp.ne.s32.totalorder %s120, %s122
    %p126 = scmp.eq.s32.totalorder %s23, 0
    %p127 = por %p125, %p126
    %p128 = scmp.ne.s32.totalorder %s120, %s122
    %p129 = scmp.eq.s32.totalorder %s28, 1
    %p130 = por %p128, %p129
    %p131 = scmp.ne.s32.totalorder %s122, %s123
    %p132 = scmp.eq.s32.totalorder %s28, 0
    %p133 = por %p131, %p132
    %p134 = scmp.ne.s32.totalorder %s122, %s123
    %p135 = scmp.eq.s32.totalorder %s29, 1
    %p136 = por %p134, %p135
    %p138 = scmp.ne.s32.totalorder %s123, %s137
    %p139 = scmp.eq.s32.totalorder %s29, 0
    %p140 = por %p138, %p139
    %s142 = sadd.s32 %s141, 1
    %p145 = scmp.eq.s32.totalorder %s23, 1
    %p146 = scmp.ne.s32.totalorder %s141, %s143
    %p147 = scmp.eq.s32.totalorder %s23, 0
    %p148 = por %p146, %p147
    %p149 = scmp.ne.s32.totalorder %s141, %s143
    %p150 = scmp.eq.s32.totalorder %s28, 1
    %p151 = por %p149, %p150
    %p152 = scmp.ne.s32.totalorder %s143, %s144
    %p153 = scmp.eq.s32.totalorder %s28, 0
    %p154 = por %p152, %p153
    %p155 = scmp.ne.s32.totalorder %s143, %s144
    %p156 = scmp.eq.s32.totalorder %s29, 1
    %p157 = por %p155, %p156
    %p159 = scmp.ne.s32.totalorder %s144, %s158
    %p160 = scmp.eq.s32.totalorder %s29, 0
    %p161 = por %p159, %p160
    %s163 = sadd.s32 %s162, 1
    %p166 = scmp.eq.s32.totalorder %s23, 1
    %p167 = scmp.ne.s32.totalorder %s162, %s164
    %p168 = scmp.eq.s32.totalorder %s23, 0
    %p169 = por %p167, %p168
    %p170 = scmp.ne.s32.totalorder %s162, %s164
    %p171 = scmp.eq.s32.totalorder %s28, 1
    %p172 = por %p170, %p171
    %p173 = scmp.ne.s32.totalorder %s164, %s165
    %p174 = scmp.eq.s32.totalorder %s28, 0
    %p175 = por %p173, %p174
    %p176 = scmp.ne.s32.totalorder %s164, %s165
    %p177 = scmp.eq.s32.totalorder %s29, 1
    %p178 = por %p176, %p177
    %p180 = scmp.ne.s32.totalorder %s165, %s179
    %p181 = scmp.eq.s32.totalorder %s29, 0
    %p182 = por %p180, %p181
    %s184 = sadd.s32 %s183, 1
    %p187 = scmp.eq.s32.totalorder %s23, 1
    %p188 = scmp.ne.s32.totalorder %s183, %s185
    %p189 = scmp.eq.s32.totalorder %s23, 0
    %p190 = por %p188, %p189
    %p191 = scmp.ne.s32.totalorder %s183, %s185
    %p192 = scmp.eq.s32.totalorder %s28, 1
    %p193 = por %p191, %p192
    %p194 = scmp.ne.s32.totalorder %s185, %s186
    %p195 = scmp.eq.s32.totalorder %s28, 0
    %p196 = por %p194, %p195
    %p197 = scmp.ne.s32.totalorder %s185, %s186
    %p198 = scmp.eq.s32.totalorder %s29, 1
    %p199 = por %p197, %p198
    %p201 = scmp.ne.s32.totalorder %s186, %s200
    %p202 = scmp.eq.s32.totalorder %s29, 0
    %p203 = por %p201, %p202
    %s205 = sadd.s32 %s204, 1
    %p208 = scmp.eq.s32.totalorder %s23, 1
    %p209 = scmp.ne.s32.totalorder %s204, %s206
    %p210 = scmp.eq.s32.totalorder %s23, 0
    %p211 = por %p209, %p210
    %p212 = scmp.ne.s32.totalorder %s204, %s206
    %p213 = scmp.eq.s32.totalorder %s28, 1
    %p214 = por %p212, %p213
    %p215 = scmp.ne.s32.totalorder %s206, %s207
    %p216 = scmp.eq.s32.totalorder %s28, 0
    %p217 = por %p215, %p216
    %p218 = scmp.ne.s32.totalorder %s206, %s207
    %p219 = scmp.eq.s32.totalorder %s29, 1
    %p220 = por %p218, %p219
    %p222 = scmp.ne.s32.totalorder %s207, %s221
    %p223 = scmp.eq.s32.totalorder %s29, 0
    %p224 = por %p222, %p223
    %s226 = sadd.s32 %s225, 1
    %p229 = scmp.eq.s32.totalorder %s23, 1
    %p230 = scmp.ne.s32.totalorder %s225, %s227
    %p231 = scmp.eq.s32.totalorder %s23, 0
    %p232 = por %p230, %p231
    %p233 = scmp.ne.s32.totalorder %s225, %s227
    %p234 = scmp.eq.s32.totalorder %s28, 1
    %p235 = por %p233, %p234
    %p236 = scmp.ne.s32.totalorder %s227, %s228
    %p237 = scmp.eq.s32.totalorder %s28, 0
    %p238 = por %p236, %p237
    %p239 = scmp.ne.s32.totalorder %s227, %s228
    %p240 = scmp.eq.s32.totalorder %s29, 1
    %p241 = por %p239, %p240
    %p243 = scmp.ne.s32.totalorder %s228, %s242
    %p244 = scmp.eq.s32.totalorder %s29, 0
    %p245 = por %p243, %p244
    %s247 = sadd.s32 %s246, 1
    %p250 = scmp.eq.s32.totalorder %s23, 1
    %p251 = scmp.ne.s32.totalorder %s246, %s248
    %p252 = scmp.eq.s32.totalorder %s23, 0
    %p253 = por %p251, %p252
    %p254 = scmp.ne.s32.totalorder %s246, %s248
    %p255 = scmp.eq.s32.totalorder %s28, 1
    %p256 = por %p254, %p255
    %p257 = scmp.ne.s32.totalorder %s248, %s249
    %p258 = scmp.eq.s32.totalorder %s28, 0
    %p259 = por %p257, %p258
    %p260 = scmp.ne.s32.totalorder %s248, %s249
    %p261 = scmp.eq.s32.totalorder %s29, 1
    %p262 = por %p260, %p261
    %p264 = scmp.ne.s32.totalorder %s249, %s263
    %p265 = scmp.eq.s32.totalorder %s29, 0
    %p266 = por %p264, %p265
    %s268 = sadd.s32 %s267, 1
    %p271 = scmp.eq.s32.totalorder %s23, 1
    %p272 = scmp.ne.s32.totalorder %s267, %s269
    %p273 = scmp.eq.s32.totalorder %s23, 0
    %p274 = por %p272, %p273
    %p275 = scmp.ne.s32.totalorder %s267, %s269
    %p276 = scmp.eq.s32.totalorder %s28, 1
    %p277 = por %p275, %p276
    %p278 = scmp.ne.s32.totalorder %s269, %s270
    %p279 = scmp.eq.s32.totalorder %s28, 0
    %p280 = por %p278, %p279
    %p281 = scmp.ne.s32.totalorder %s269, %s270
    %p282 = scmp.eq.s32.totalorder %s29, 1
    %p283 = por %p281, %p282
    %p285 = scmp.ne.s32.totalorder %s270, %s284
    %p286 = scmp.eq.s32.totalorder %s29, 0
    %p287 = por %p285, %p286
    %s289 = sadd.s32 %s288, 1
    %p292 = scmp.eq.s32.totalorder %s23, 1
    %p293 = scmp.ne.s32.totalorder %s288, %s290
    %p294 = scmp.eq.s32.totalorder %s23, 0
    %p295 = por %p293, %p294
    %p296 = scmp.ne.s32.totalorder %s288, %s290
    %p297 = scmp.eq.s32.totalorder %s28, 1
    %p298 = por %p296, %p297
    %p299 = scmp.ne.s32.totalorder %s290, %s291
    %p300 = scmp.eq.s32.totalorder %s28, 0
    %p301 = por %p299, %p300
    %p302 = scmp.ne.s32.totalorder %s290, %s291
    %p303 = scmp.eq.s32.totalorder %s29, 1
    %p304 = por %p302, %p303
    %p306 = scmp.ne.s32.totalorder %s291, %s305
    %p307 = scmp.eq.s32.totalorder %s29, 0
    %p308 = por %p306, %p307
    %s310 = sadd.s32 %s309, 1
    %p313 = scmp.eq.s32.totalorder %s23, 1
    %p314 = scmp.ne.s32.totalorder %s309, %s311
    %p315 = scmp.eq.s32.totalorder %s23, 0
    %p316 = por %p314, %p315
    %p317 = scmp.ne.s32.totalorder %s309, %s311
    %p318 = scmp.eq.s32.totalorder %s28, 1
    %p319 = por %p317, %p318
    %p320 = scmp.ne.s32.totalorder %s311, %s312
    %p321 = scmp.eq.s32.totalorder %s28, 0
    %p322 = por %p320, %p321
    %p323 = scmp.ne.s32.totalorder %s311, %s312
    %p324 = scmp.eq.s32.totalorder %s29, 1
    %p325 = por %p323, %p324
    %p327 = scmp.ne.s32.totalorder %s312, %s326
    %p328 = scmp.eq.s32.totalorder %s29, 0
    %p329 = por %p327, %p328
    %s331 = sadd.s32 %s330, 1
    %p334 = scmp.eq.s32.totalorder %s23, 1
    %p335 = scmp.ne.s32.totalorder %s330, %s332
    %p336 = scmp.eq.s32.totalorder %s23, 0
    %p337 = por %p335, %p336
    %p338 = scmp.ne.s32.totalorder %s330, %s332
    %p339 = scmp.eq.s32.totalorder %s28, 1
    %p340 = por %p338, %p339
    %p341 = scmp.ne.s32.totalorder %s332, %s333
    %p342 = scmp.eq.s32.totalorder %s28, 0
    %p343 = por %p341, %p342
    %p344 = scmp.ne.s32.totalorder %s332, %s333
    %p345 = scmp.eq.s32.totalorder %s29, 1
    %p346 = por %p344, %p345
    %p348 = scmp.ne.s32.totalorder %s333, %s347
    %p349 = scmp.eq.s32.totalorder %s29, 0
    %p350 = por %p348, %p349
    %s352 = sadd.s32 %s351, 1
    %p355 = scmp.eq.s32.totalorder %s23, 1
    %p356 = scmp.ne.s32.totalorder %s351, %s353
    %p357 = scmp.eq.s32.totalorder %s23, 0
    %p358 = por %p356, %p357
    %p359 = scmp.ne.s32.totalorder %s351, %s353
    %p360 = scmp.eq.s32.totalorder %s28, 1
    %p361 = por %p359, %p360
    %p362 = scmp.ne.s32.totalorder %s353, %s354
    %p363 = scmp.eq.s32.totalorder %s28, 0
    %p364 = por %p362, %p363
    %p365 = scmp.ne.s32.totalorder %s353, %s354
    %p366 = scmp.eq.s32.totalorder %s29, 1
    %p367 = por %p365, %p366
    %p369 = scmp.ne.s32.totalorder %s354, %s368
    %p370 = scmp.eq.s32.totalorder %s29, 0
    %p371 = por %p369, %p370
    %s373 = sadd.s32 %s372, 1
    %p376 = scmp.eq.s32.totalorder %s23, 1
    %p377 = scmp.ne.s32.totalorder %s372, %s374
    %p378 = scmp.eq.s32.totalorder %s23, 0
    %p379 = por %p377, %p378
    %p380 = scmp.ne.s32.totalorder %s372, %s374
    %p381 = scmp.eq.s32.totalorder %s28, 1
    %p382 = por %p380, %p381
    %p383 = scmp.ne.s32.totalorder %s374, %s375
    %p384 = scmp.eq.s32.totalorder %s28, 0
    %p385 = por %p383, %p384
    %p386 = scmp.ne.s32.totalorder %s374, %s375
    %p387 = scmp.eq.s32.totalorder %s29, 1
    %p388 = por %p386, %p387
    %p390 = scmp.ne.s32.totalorder %s375, %s389
    %p391 = scmp.eq.s32.totalorder %s29, 0
    %p392 = por %p390, %p391
    %s393 = ssub.s32 %s23, %s30
    %p394 = scmp.eq.s32.totalorder %s393, 0
    %s396 = sadd.s32 %s395, 1
    %s397 = scalar_select %p394, %s395, %s396
    %p400 = pneg %p394
    %p401 = scmp.eq.s32.totalorder %s23, 1
    %p402 = por %p400, %p401
    %p403 = scmp.ne.s32.totalorder %s395, %s398
    %p404 = scmp.eq.s32.totalorder %s23, 0
    %p405 = por %p403, %p404
    %p406 = scmp.ne.s32.totalorder %s395, %s398
    %p407 = scmp.eq.s32.totalorder %s28, 1
    %p408 = por %p406, %p407
    %p409 = scmp.ne.s32.totalorder %s398, %s399
    %p410 = scmp.eq.s32.totalorder %s28, 0
    %p411 = por %p409, %p410
    %p412 = scmp.ne.s32.totalorder %s398, %s399
    %p413 = scmp.eq.s32.totalorder %s29, 1
    %p414 = por %p412, %p413
    %p416 = scmp.ne.s32.totalorder %s399, %s415
    %p417 = scmp.eq.s32.totalorder %s29, 0
    %p418 = por %p416, %p417
    %p419 = scmp.le.s32.totalorder 1, %s23
    %p420 = scmp.lt.s32.totalorder %s23, 3
    %p421 = pnand %p419, %p420
    %p422 = pneg %p421
    // Predicated region
    $region9: #{spw_trans_block_forward.1} parent=5 // pred_check
      _
    $region10: #{spw_trans_block_forward.1} parent=5 // pred_check_branch
      %424 = sbr.rel (%p421) target = $region12
    $region11: #{spw_trans_block_forward.1} parent=5 // pred_region
      %s425 = ssub.s32 %s23, 1
      // Predicated region
      $region13: #{spw_trans_block_forward.1} parent=11 // pred_check
        %p426 = pneg %p70
      $region14: #{spw_trans_block_forward.1} parent=11 // pred_check_branch
        %428 = sbr.rel (%p426) target = $region16
      $region15: #{spw_trans_block_forward.1} parent=11 // pred_region
        _
      $region16: #{spw_trans_block_forward.1} parent=11 // pred_fallthru
        _
      // Predicated region
      $region17: #{spw_trans_block_forward.1} parent=11 // pred_check
        %p429 = pneg %p91
      $region18: #{spw_trans_block_forward.1} parent=11 // pred_check_branch
        %431 = sbr.rel (%p429) target = $region20
      $region19: #{spw_trans_block_forward.1} parent=11 // pred_region
        _
      $region20: #{spw_trans_block_forward.1} parent=11 // pred_fallthru
        _
      // Predicated region
      $region21: #{spw_trans_block_forward.1} parent=11 // pred_check
        %p432 = pneg %p112
      $region22: #{spw_trans_block_forward.1} parent=11 // pred_check_branch
        %434 = sbr.rel (%p432) target = $region24
      $region23: #{spw_trans_block_forward.1} parent=11 // pred_region
        _
      $region24: #{spw_trans_block_forward.1} parent=11 // pred_fallthru
        _
      // Predicated region
      $region25: #{spw_trans_block_forward.1} parent=11 // pred_check
        %p435 = pneg %p133
      $region26: #{spw_trans_block_forward.1} parent=11 // pred_check_branch
        %437 = sbr.rel (%p435) target = $region28
      $region27: #{spw_trans_block_forward.1} parent=11 // pred_region
        _
      $region28: #{spw_trans_block_forward.1} parent=11 // pred_fallthru
        _
      // Predicated region
      $region29: #{spw_trans_block_forward.1} parent=11 // pred_check
        %p438 = pneg %p154
      $region30: #{spw_trans_block_forward.1} parent=11 // pred_check_branch
        %440 = sbr.rel (%p438) target = $region32
      $region31: #{spw_trans_block_forward.1} parent=11 // pred_region
        _
      $region32: #{spw_trans_block_forward.1} parent=11 // pred_fallthru
        _
      // Predicated region
      $region33: #{spw_trans_block_forward.1} parent=11 // pred_check
        %p441 = pneg %p175
      $region34: #{spw_trans_block_forward.1} parent=11 // pred_check_branch
        %443 = sbr.rel (%p441) target = $region36
      $region35: #{spw_trans_block_forward.1} parent=11 // pred_region
        _
      $region36: #{spw_trans_block_forward.1} parent=11 // pred_fallthru
        _
      // Predicated region
      $region37: #{spw_trans_block_forward.1} parent=11 // pred_check
        %p444 = pneg %p196
      $region38: #{spw_trans_block_forward.1} parent=11 // pred_check_branch
        %446 = sbr.rel (%p444) target = $region40
      $region39: #{spw_trans_block_forward.1} parent=11 // pred_region
        _
      $region40: #{spw_trans_block_forward.1} parent=11 // pred_fallthru
        _
      // Predicated region
      $region41: #{spw_trans_block_forward.1} parent=11 // pred_check
        %p447 = pneg %p217
      $region42: #{spw_trans_block_forward.1} parent=11 // pred_check_branch
        %449 = sbr.rel (%p447) target = $region44
      $region43: #{spw_trans_block_forward.1} parent=11 // pred_region
        _
      $region44: #{spw_trans_block_forward.1} parent=11 // pred_fallthru
        _
      // Predicated region
      $region45: #{spw_trans_block_forward.1} parent=11 // pred_check
        %p450 = pneg %p238
      $region46: #{spw_trans_block_forward.1} parent=11 // pred_check_branch
        %452 = sbr.rel (%p450) target = $region48
      $region47: #{spw_trans_block_forward.1} parent=11 // pred_region
        _
      $region48: #{spw_trans_block_forward.1} parent=11 // pred_fallthru
        _
      // Predicated region
      $region49: #{spw_trans_block_forward.1} parent=11 // pred_check
        %p453 = pneg %p259
      $region50: #{spw_trans_block_forward.1} parent=11 // pred_check_branch
        %455 = sbr.rel (%p453) target = $region52
      $region51: #{spw_trans_block_forward.1} parent=11 // pred_region
        _
      $region52: #{spw_trans_block_forward.1} parent=11 // pred_fallthru
        _
      // Predicated region
      $region53: #{spw_trans_block_forward.1} parent=11 // pred_check
        %p456 = pneg %p280
      $region54: #{spw_trans_block_forward.1} parent=11 // pred_check_branch
        %458 = sbr.rel (%p456) target = $region56
      $region55: #{spw_trans_block_forward.1} parent=11 // pred_region
        _
      $region56: #{spw_trans_block_forward.1} parent=11 // pred_fallthru
        _
      // Predicated region
      $region57: #{spw_trans_block_forward.1} parent=11 // pred_check
        %p459 = pneg %p301
      $region58: #{spw_trans_block_forward.1} parent=11 // pred_check_branch
        %461 = sbr.rel (%p459) target = $region60
      $region59: #{spw_trans_block_forward.1} parent=11 // pred_region
        _
      $region60: #{spw_trans_block_forward.1} parent=11 // pred_fallthru
        _
      // Predicated region
      $region61: #{spw_trans_block_forward.1} parent=11 // pred_check
        %p462 = pneg %p322
      $region62: #{spw_trans_block_forward.1} parent=11 // pred_check_branch
        %464 = sbr.rel (%p462) target = $region64
      $region63: #{spw_trans_block_forward.1} parent=11 // pred_region
        _
      $region64: #{spw_trans_block_forward.1} parent=11 // pred_fallthru
        _
      // Predicated region
      $region65: #{spw_trans_block_forward.1} parent=11 // pred_check
        %p465 = pneg %p343
      $region66: #{spw_trans_block_forward.1} parent=11 // pred_check_branch
        %467 = sbr.rel (%p465) target = $region68
      $region67: #{spw_trans_block_forward.1} parent=11 // pred_region
        _
      $region68: #{spw_trans_block_forward.1} parent=11 // pred_fallthru
        _
      // Predicated region
      $region69: #{spw_trans_block_forward.1} parent=11 // pred_check
        %p468 = pneg %p364
      $region70: #{spw_trans_block_forward.1} parent=11 // pred_check_branch
        %470 = sbr.rel (%p468) target = $region72
      $region71: #{spw_trans_block_forward.1} parent=11 // pred_region
        _
      $region72: #{spw_trans_block_forward.1} parent=11 // pred_fallthru
        _
      // Predicated region
      $region73: #{spw_trans_block_forward.1} parent=11 // pred_check
        %p471 = pneg %p385
      $region74: #{spw_trans_block_forward.1} parent=11 // pred_check_branch
        %473 = sbr.rel (%p471) target = $region76
      $region75: #{spw_trans_block_forward.1} parent=11 // pred_region
        _
      $region76: #{spw_trans_block_forward.1} parent=11 // pred_fallthru
        _
    $region12: #{spw_trans_block_forward.1} parent=5 // pred_fallthru
      _
    %p474 = scmp.lt.s32.totalorder %s23, 2
    // Predicated region
    $region77: #{spw_trans_block_forward.1} parent=5 // pred_check
      %p475 = pneg %p474
    $region78: #{spw_trans_block_forward.1} parent=5 // pred_check_branch
      %477 = sbr.rel (%p475) target = $region80
    $region79: #{spw_trans_block_forward.1} parent=5 // pred_region
      // Predicated region
      $region81: #{spw_trans_block_forward.1} parent=79 // pred_check
        %p478 = pneg %p43
      $region82: #{spw_trans_block_forward.1} parent=79 // pred_check_branch
        %480 = sbr.rel (%p478) target = $region84
      $region83: #{spw_trans_block_forward.1} parent=79 // pred_region
        %s481 = smul.u32 2, %s23
        %p482 = scmp.lt.s32.totalorder %s481, 3
        %s483 = scalar_select %p482, %s481, 3
        %s484 = smul.addr %s483, 8
        %s485 = smul.addr %s484, 8
        %s486 = scalar_lea.vmem %s0, %s485
        %s487 = smul.u32 2, %s23
      $region84: #{spw_trans_block_forward.1} parent=79 // pred_fallthru
        _
    $region80: #{spw_trans_block_forward.1} parent=5 // pred_fallthru
      _
    %p488 = scmp.le.s32.totalorder 1, %s23
    %p489 = scmp.lt.s32.totalorder %s23, 3
    %p490 = pnand %p488, %p489
    %p491 = pneg %p490
    // Predicated region
    $region85: #{spw_trans_block_forward.1} parent=5 // pred_check
      _
    $region86: #{spw_trans_block_forward.1} parent=5 // pred_check_branch
      %493 = sbr.rel (%p490) target = $region88
    $region87: #{spw_trans_block_forward.1} parent=5 // pred_region
      %s494 = ssub.s32 %s23, 1
      %s495 = smul.u32 2, %s28
      %p496 = scmp.lt.s32.totalorder %s495, 3
      %s497 = scalar_select %p496, %s495, 3
      %s498 = smul.addr %s497, 8
      %s499 = smul.addr %s498, 8
      %s500 = scalar_lea.vmem %s0, %s499
      %p501 = pneg %p49
      %p502 = pneg %p46
      %p503 = pneg %p70
      %p504 = pneg %p67
      %p505 = pneg %p91
      %p506 = pneg %p88
      %p507 = pneg %p112
      %p508 = pneg %p109
      %p509 = pneg %p133
      %p510 = pneg %p130
      %p511 = pneg %p154
      %p512 = pneg %p151
      %p513 = pneg %p175
      %p514 = pneg %p172
      %p515 = pneg %p196
      %p516 = pneg %p193
      %p517 = pneg %p217
      %p518 = pneg %p214
      %p519 = pneg %p238
      %p520 = pneg %p235
      %p521 = pneg %p259
      %p522 = pneg %p256
      %p523 = pneg %p280
      %p524 = pneg %p277
      %p525 = pneg %p301
      %p526 = pneg %p298
      %p527 = pneg %p322
      %p528 = pneg %p319
      %p529 = pneg %p343
      %p530 = pneg %p340
      %p531 = pneg %p364
      %p532 = pneg %p361
      %p533 = pneg %p385
      %p534 = pneg %p382
      %p535 = pneg %p411
      %p536 = pneg %p408
      %s537 = smul.u32 2, %s28
      %p538 = scmp.lt.s32.totalorder %s537, 3
      %s539 = scalar_select %p538, %s537, 3
      %s540 = smul.addr %s539, 8
      %s541 = smul.addr %s540, 8
      %s542 = scalar_lea.vmem %s17, %s541
      %s543 = smul.u32 2, %s28
      %p544 = scmp.lt.s32.totalorder %s543, 3
      %s545 = scalar_select %p544, %s543, 3
      %s546 = smul.addr %s545, 8
      %s547 = smul.addr %s546, 8
      %s548 = scalar_lea.vmem %s0, %s547
      %s549 = smul.u32 2, %s28
      %s550 = smul.u32 2, %s28
      %p551 = scmp.lt.s32.totalorder %s550, 3
      %s552 = scalar_select %p551, %s550, 3
      %s553 = smul.addr %s552, 8
      %s554 = smul.addr %s553, 8
      %s555 = scalar_lea.vmem %s17, %s554
      %s556 = smul.u32 2, %s28
      %v558 = vld [vmem:[%s548] sm:$0xff]
      %v559 = vld [vmem:[%s548 + $0x8] sm:$0xff]
      %v560 = vld [vmem:[%s548 + $0x10] sm:$0xff]
      %v561 = vld [vmem:[%s548 + $0x18] sm:$0xff]
      %v562 = vld [vmem:[%s548 + $0x20] sm:$0xff]
      %v563 = vld [vmem:[%s548 + $0x28] sm:$0xff]
      %v564 = vld [vmem:[%s548 + $0x30] sm:$0xff]
      %v565 = vld [vmem:[%s548 + $0x38] sm:$0xff]
      %v566 = vld [vmem:[%s548 + $0x40] sm:$0xff]
      %v567 = vld [vmem:[%s548 + $0x48] sm:$0xff]
      %v568 = vld [vmem:[%s548 + $0x50] sm:$0xff]
      %v569 = vld [vmem:[%s548 + $0x58] sm:$0xff]
      %v570 = vld [vmem:[%s548 + $0x60] sm:$0xff]
      %v571 = vld [vmem:[%s548 + $0x68] sm:$0xff]
      %v572 = vld [vmem:[%s548 + $0x70] sm:$0xff]
      %v573 = vld [vmem:[%s548 + $0x78] sm:$0xff]
      %v574 = vld [vmem:[%s1] sm:$0x1]
      %v575 = vld [vmem:[%s2] sm:$0x1]
      %vm576 = vcmask 392192
      %v577 = vsel %vm576, %v558, 0.0
      %578 = vadd.xlane.f32.xlu0 %v577
      %v579 = vpop.xlane.xlu0 %578
      %v580 = vsel %vm576, %v559, 0.0
      %581 = vadd.xlane.f32.xlu0 %v580
      %v582 = vpop.xlane.xlu0 %581
      %v583 = vsel %vm576, %v560, 0.0
      %584 = vadd.xlane.f32.xlu0 %v583
      %v585 = vpop.xlane.xlu0 %584
      %v586 = vsel %vm576, %v561, 0.0
      %587 = vadd.xlane.f32.xlu0 %v586
      %v588 = vpop.xlane.xlu0 %587
      %v589 = vsel %vm576, %v562, 0.0
      %590 = vadd.xlane.f32.xlu0 %v589
      %v591 = vpop.xlane.xlu0 %590
      %v592 = vsel %vm576, %v563, 0.0
      %593 = vadd.xlane.f32.xlu0 %v592
      %v594 = vpop.xlane.xlu0 %593
      %v595 = vsel %vm576, %v564, 0.0
      %596 = vadd.xlane.f32.xlu0 %v595
      %v597 = vpop.xlane.xlu0 %596
      %v598 = vsel %vm576, %v565, 0.0
      %599 = vadd.xlane.f32.xlu0 %v598
      %v600 = vpop.xlane.xlu0 %599
      %v601 = vsel %vm576, %v566, 0.0
      %602 = vadd.xlane.f32.xlu0 %v601
      %v603 = vpop.xlane.xlu0 %602
      %v604 = vsel %vm576, %v567, 0.0
      %605 = vadd.xlane.f32.xlu0 %v604
      %v606 = vpop.xlane.xlu0 %605
      %v607 = vsel %vm576, %v568, 0.0
      %608 = vadd.xlane.f32.xlu0 %v607
      %v609 = vpop.xlane.xlu0 %608
      %v610 = vsel %vm576, %v569, 0.0
      %611 = vadd.xlane.f32.xlu0 %v610
      %v612 = vpop.xlane.xlu0 %611
      %v613 = vsel %vm576, %v570, 0.0
      %614 = vadd.xlane.f32.xlu0 %v613
      %v615 = vpop.xlane.xlu0 %614
      %v616 = vsel %vm576, %v571, 0.0
      %617 = vadd.xlane.f32.xlu0 %v616
      %v618 = vpop.xlane.xlu0 %617
      %v619 = vsel %vm576, %v572, 0.0
      %620 = vadd.xlane.f32.xlu0 %v619
      %v621 = vpop.xlane.xlu0 %620
      %v622 = vsel %vm576, %v573, 0.0
      %623 = vadd.xlane.f32.xlu0 %v622
      %v624 = vpop.xlane.xlu0 %623
      %v625 = vrcp.pop 48.0
      %v626 = vmul.f32 %v579, %v625
      %v627 = vmul.f32 %v582, %v625
      %v628 = vmul.f32 %v585, %v625
      %v629 = vmul.f32 %v588, %v625
      %v630 = vmul.f32 %v591, %v625
      %v631 = vmul.f32 %v594, %v625
      %v632 = vmul.f32 %v597, %v625
      %v633 = vmul.f32 %v600, %v625
      %v634 = vmul.f32 %v603, %v625
      %v635 = vmul.f32 %v606, %v625
      %v636 = vmul.f32 %v609, %v625
      %v637 = vmul.f32 %v612, %v625
      %v638 = vmul.f32 %v615, %v625
      %v639 = vmul.f32 %v618, %v625
      %v640 = vmul.f32 %v621, %v625
      %v641 = vmul.f32 %v624, %v625
      %v642 = vsub.f32 %v558, %v626
      %v643 = vsub.f32 %v559, %v627
      %v644 = vsub.f32 %v560, %v628
      %v645 = vsub.f32 %v561, %v629
      %v646 = vsub.f32 %v562, %v630
      %v647 = vsub.f32 %v563, %v631
      %v648 = vsub.f32 %v564, %v632
      %v649 = vsub.f32 %v565, %v633
      %v650 = vsub.f32 %v566, %v634
      %v651 = vsub.f32 %v567, %v635
      %v652 = vsub.f32 %v568, %v636
      %v653 = vsub.f32 %v569, %v637
      %v654 = vsub.f32 %v570, %v638
      %v655 = vsub.f32 %v571, %v639
      %v656 = vsub.f32 %v572, %v640
      %v657 = vsub.f32 %v573, %v641
      %v658 = vmul.f32 %v642, %v642
      %v659 = vmul.f32 %v643, %v643
      %v660 = vmul.f32 %v644, %v644
      %v661 = vmul.f32 %v645, %v645
      %v662 = vmul.f32 %v646, %v646
      %v663 = vmul.f32 %v647, %v647
      %v664 = vmul.f32 %v648, %v648
      %v665 = vmul.f32 %v649, %v649
      %v666 = vmul.f32 %v650, %v650
      %v667 = vmul.f32 %v651, %v651
      %v668 = vmul.f32 %v652, %v652
      %v669 = vmul.f32 %v653, %v653
      %v670 = vmul.f32 %v654, %v654
      %v671 = vmul.f32 %v655, %v655
      %v672 = vmul.f32 %v656, %v656
      %v673 = vmul.f32 %v657, %v657
      %v674 = vsel %vm576, %v658, 0.0
      %675 = vadd.xlane.f32.xlu0 %v674
      %v676 = vpop.xlane.xlu0 %675
      %v677 = vsel %vm576, %v659, 0.0
      %678 = vadd.xlane.f32.xlu0 %v677
      %v679 = vpop.xlane.xlu0 %678
      %v680 = vsel %vm576, %v660, 0.0
      %681 = vadd.xlane.f32.xlu0 %v680
      %v682 = vpop.xlane.xlu0 %681
      %v683 = vsel %vm576, %v661, 0.0
      %684 = vadd.xlane.f32.xlu0 %v683
      %v685 = vpop.xlane.xlu0 %684
      %v686 = vsel %vm576, %v662, 0.0
      %687 = vadd.xlane.f32.xlu0 %v686
      %v688 = vpop.xlane.xlu0 %687
      %v689 = vsel %vm576, %v663, 0.0
      %690 = vadd.xlane.f32.xlu0 %v689
      %v691 = vpop.xlane.xlu0 %690
      %v692 = vsel %vm576, %v664, 0.0
      %693 = vadd.xlane.f32.xlu0 %v692
      %v694 = vpop.xlane.xlu0 %693
      %v695 = vsel %vm576, %v665, 0.0
      %696 = vadd.xlane.f32.xlu0 %v695
      %v697 = vpop.xlane.xlu0 %696
      %v698 = vsel %vm576, %v666, 0.0
      %699 = vadd.xlane.f32.xlu0 %v698
      %v700 = vpop.xlane.xlu0 %699
      %v701 = vsel %vm576, %v667, 0.0
      %702 = vadd.xlane.f32.xlu0 %v701
      %v703 = vpop.xlane.xlu0 %702
      %v704 = vsel %vm576, %v668, 0.0
      %705 = vadd.xlane.f32.xlu0 %v704
      %v706 = vpop.xlane.xlu0 %705
      %v707 = vsel %vm576, %v669, 0.0
      %708 = vadd.xlane.f32.xlu0 %v707
      %v709 = vpop.xlane.xlu0 %708
      %v710 = vsel %vm576, %v670, 0.0
      %711 = vadd.xlane.f32.xlu0 %v710
      %v712 = vpop.xlane.xlu0 %711
      %v713 = vsel %vm576, %v671, 0.0
      %714 = vadd.xlane.f32.xlu0 %v713
      %v715 = vpop.xlane.xlu0 %714
      %v716 = vsel %vm576, %v672, 0.0
      %717 = vadd.xlane.f32.xlu0 %v716
      %v718 = vpop.xlane.xlu0 %717
      %v719 = vsel %vm576, %v673, 0.0
      %720 = vadd.xlane.f32.xlu0 %v719
      %v721 = vpop.xlane.xlu0 %720
      %v722 = vmul.f32 %v676, %v625
      %v723 = vmul.f32 %v679, %v625
      %v724 = vmul.f32 %v682, %v625
      %v725 = vmul.f32 %v685, %v625
      %v726 = vmul.f32 %v688, %v625
      %v727 = vmul.f32 %v691, %v625
      %v728 = vmul.f32 %v694, %v625
      %v729 = vmul.f32 %v697, %v625
      %v730 = vmul.f32 %v700, %v625
      %v731 = vmul.f32 %v703, %v625
      %v732 = vmul.f32 %v706, %v625
      %v733 = vmul.f32 %v709, %v625
      %v734 = vmul.f32 %v712, %v625
      %v735 = vmul.f32 %v715, %v625
      %v736 = vmul.f32 %v718, %v625
      %v737 = vmul.f32 %v721, %v625
      %v738 = vadd.f32 %v722, 1e-05
      %v739 = vadd.f32 %v723, 1e-05
      %v740 = vadd.f32 %v724, 1e-05
      %v741 = vadd.f32 %v725, 1e-05
      %v742 = vadd.f32 %v726, 1e-05
      %v743 = vadd.f32 %v727, 1e-05
      %v744 = vadd.f32 %v728, 1e-05
      %v745 = vadd.f32 %v729, 1e-05
      %v746 = vadd.f32 %v730, 1e-05
      %v747 = vadd.f32 %v731, 1e-05
      %v748 = vadd.f32 %v732, 1e-05
      %v749 = vadd.f32 %v733, 1e-05
      %v750 = vadd.f32 %v734, 1e-05
      %v751 = vadd.f32 %v735, 1e-05
      %v752 = vadd.f32 %v736, 1e-05
      %v753 = vadd.f32 %v737, 1e-05
      %v754 = vrsqrt.pop %v738
      %v755 = vrsqrt.pop %v739
      %v756 = vrsqrt.pop %v740
      %v757 = vrsqrt.pop %v741
      %v758 = vrsqrt.pop %v742
      %v759 = vrsqrt.pop %v743
      %v760 = vrsqrt.pop %v744
      %v761 = vrsqrt.pop %v745
      %v762 = vrsqrt.pop %v746
      %v763 = vrsqrt.pop %v747
      %v764 = vrsqrt.pop %v748
      %v765 = vrsqrt.pop %v749
      %v766 = vrsqrt.pop %v750
      %v767 = vrsqrt.pop %v751
      %v768 = vrsqrt.pop %v752
      %v769 = vrsqrt.pop %v753
      %v770 = vmul.f32 %v642, %v754
      %v771 = vmul.f32 %v643, %v755
      %v772 = vmul.f32 %v644, %v756
      %v773 = vmul.f32 %v645, %v757
      %v774 = vmul.f32 %v646, %v758
      %v775 = vmul.f32 %v647, %v759
      %v776 = vmul.f32 %v648, %v760
      %v777 = vmul.f32 %v649, %v761
      %v778 = vmul.f32 %v650, %v762
      %v779 = vmul.f32 %v651, %v763
      %v780 = vmul.f32 %v652, %v764
      %v781 = vmul.f32 %v653, %v765
      %v782 = vmul.f32 %v654, %v766
      %v783 = vmul.f32 %v655, %v767
      %v784 = vmul.f32 %v656, %v768
      %v785 = vmul.f32 %v657, %v769
      %v787 = vlaneseq
      %v788 = vshrl.u32 %v787, 7
      %v789 = vsub.s32 0, %v788
      %v790 = vrot.slane %v574, %v789
      %v792 = vmul.f32 %v770, %v790
      %v793 = vmul.f32 %v771, %v790
      %v794 = vmul.f32 %v772, %v790
      %v795 = vmul.f32 %v773, %v790
      %v796 = vmul.f32 %v774, %v790
      %v797 = vmul.f32 %v775, %v790
      %v798 = vmul.f32 %v776, %v790
      %v799 = vmul.f32 %v777, %v790
      %v800 = vmul.f32 %v778, %v790
      %v801 = vmul.f32 %v779, %v790
      %v802 = vmul.f32 %v780, %v790
      %v803 = vmul.f32 %v781, %v790
      %v804 = vmul.f32 %v782, %v790
      %v805 = vmul.f32 %v783, %v790
      %v806 = vmul.f32 %v784, %v790
      %v807 = vmul.f32 %v785, %v790
      %v809 = vlaneseq
      %v810 = vshrl.u32 %v809, 7
      %v811 = vsub.s32 0, %v810
      %v812 = vrot.slane %v575, %v811
      %v814 = vadd.f32 %v792, %v812
      %v815 = vadd.f32 %v793, %v812
      %v816 = vadd.f32 %v794, %v812
      %v817 = vadd.f32 %v795, %v812
      %v818 = vadd.f32 %v796, %v812
      %v819 = vadd.f32 %v797, %v812
      %v820 = vadd.f32 %v798, %v812
      %v821 = vadd.f32 %v799, %v812
      %v822 = vadd.f32 %v800, %v812
      %v823 = vadd.f32 %v801, %v812
      %v824 = vadd.f32 %v802, %v812
      %v825 = vadd.f32 %v803, %v812
      %v826 = vadd.f32 %v804, %v812
      %v827 = vadd.f32 %v805, %v812
      %v828 = vadd.f32 %v806, %v812
      %v829 = vadd.f32 %v807, %v812
      %v830 = vpack.c.bf16 %v815, %v814
      %v831 = vpack.c.bf16 %v817, %v816
      %v832 = vpack.c.bf16 %v819, %v818
      %v833 = vpack.c.bf16 %v821, %v820
      %v834 = vpack.c.bf16 %v823, %v822
      %v835 = vpack.c.bf16 %v825, %v824
      %v836 = vpack.c.bf16 %v827, %v826
      %v837 = vpack.c.bf16 %v829, %v828
      %v838 = vld [vmem:[%s3] sm:$0xf]
      %v839 = vld [vmem:[%s3 + $0x4] sm:$0xf]
      %v840 = vld [vmem:[%s3 + $0x8] sm:$0xf]
      %v841 = vld [vmem:[%s3 + $0xc] sm:$0xf]
      %v842 = vld [vmem:[%s3 + $0x10] sm:$0xf]
      %v843 = vld [vmem:[%s3 + $0x14] sm:$0xf]
      %v850 = vunpack.c.l.b16 %v838
      %v851 = vunpack.c.l.b16 %v839
      %v852 = vunpack.c.l.b16 %v840
      %v853 = vunpack.c.l.b16 %v841
      %v854 = vunpack.c.l.b16 %v842
      %v855 = vunpack.c.l.b16 %v843
      %v856 = vpack.c.b16 %v851, %v850
      %v857 = vpack.c.b16 %v853, %v852
      %v858 = vpack.c.b16 %v855, %v854
      %v863 = vsel %vm576, %v830, 0
      %v866 = vsel %vm576, %v831, 0
      %v869 = vsel %vm576, %v832, 0
      %v872 = vsel %vm576, %v833, 0
      %v875 = vsel %vm576, %v834, 0
      %v878 = vsel %vm576, %v835, 0
      %v881 = vsel %vm576, %v836, 0
      %v884 = vsel %vm576, %v837, 0
      %886 = vmatprep.subr.bf16.mxu0 0
      %887 = vmatpush1.bf16.msra.mxu0 %v856
      %888 = vmatprep.subr.bf16.mxu0 0
      %889 = vmatpush1.bf16.msra.mxu0 %v857
      %890 = vmatprep.subr.bf16.mxu0 0
      %891 = vmatpush1.bf16.msra.mxu0 %v858
      %892 = vmatprep.subr.bf16.mxu0 0
      %893 = vmatpush1.bf16.msra.mxu0 0
      %894 = vmatprep.subr.bf16.mxu0 0
      %895 = vmatpush1.bf16.msra.mxu0 0
      %896 = vmatprep.subr.bf16.mxu0 0
      %897 = vmatpush1.bf16.msra.mxu0 0
      %898 = vmatprep.subr.bf16.mxu0 0
      %899 = vmatpush1.bf16.msra.mxu0 0
      %900 = vmatprep.subr.bf16.mxu0 0
      %901 = vmatpush1.bf16.msra.mxu0 0
      %902 = vmatprep.subr.bf16.mxu0 0
      %903 = vmatpush1.bf16.msra.mxu0 0
      %904 = vmatprep.subr.bf16.mxu0 0
      %905 = vmatpush1.bf16.msra.mxu0 0
      %906 = vmatprep.subr.bf16.mxu0 0
      %907 = vmatpush1.bf16.msra.mxu0 0
      %908 = vmatprep.subr.bf16.mxu0 0
      %909 = vmatpush1.bf16.msra.mxu0 0
      %910 = vmatprep.subr.bf16.mxu0 0
      %911 = vmatpush1.bf16.msra.mxu0 0
      %912 = vmatprep.subr.bf16.mxu0 0
      %913 = vmatpush1.bf16.msra.mxu0 0
      %914 = vmatprep.subr.bf16.mxu0 0
      %915 = vmatpush1.bf16.msra.mxu0 0
      %916 = vmatprep.subr.bf16.mxu0 0
      %917 = vmatpush1.bf16.msra.mxu0 0
      %918 = vmatprep.mubr.bf16.mxu0 0
      %919 = vmatmul.mubr.bf16.gmra.mrb[0].mxu0 %v863
      %v920 = vpop.f32.mrb[0].mxu0
      %v921 = vadd.f32 0.0, %v920
      %v922 = vpop.f32.mrb[0].mxu0
      %v923 = vpop.f32.mrb[0].mxu0
      %v924 = vadd.f32 0.0, %v923
      %v925 = vpop.f32.mrb[0].mxu0
      %926 = vmatprep.mubr.bf16.mxu0 0
      %927 = vmatmul.mubr.bf16.gmra.mrb[0].mxu0 %v866
      %v928 = vpop.f32.mrb[0].mxu0
      %v929 = vadd.f32 0.0, %v928
      %v930 = vpop.f32.mrb[0].mxu0
      %v931 = vpop.f32.mrb[0].mxu0
      %v932 = vadd.f32 0.0, %v931
      %v933 = vpop.f32.mrb[0].mxu0
      %934 = vmatprep.mubr.bf16.mxu0 0
      %935 = vmatmul.mubr.bf16.gmra.mrb[0].mxu0 %v869
      %v936 = vpop.f32.mrb[0].mxu0
      %v937 = vadd.f32 0.0, %v936
      %v938 = vpop.f32.mrb[0].mxu0
      %v939 = vpop.f32.mrb[0].mxu0
      %v940 = vadd.f32 0.0, %v939
      %v941 = vpop.f32.mrb[0].mxu0
      %942 = vmatprep.mubr.bf16.mxu0 0
      %943 = vmatmul.mubr.bf16.gmra.mrb[0].mxu0 %v872
      %v944 = vpop.f32.mrb[0].mxu0
      %v945 = vadd.f32 0.0, %v944
      %v946 = vpop.f32.mrb[0].mxu0
      %v947 = vpop.f32.mrb[0].mxu0
      %v948 = vadd.f32 0.0, %v947
      %v949 = vpop.f32.mrb[0].mxu0
      %950 = vmatprep.mubr.bf16.mxu0 0
      %951 = vmatmul.mubr.bf16.gmra.mrb[0].mxu0 %v875
      %v952 = vpop.f32.mrb[0].mxu0
      %v953 = vadd.f32 0.0, %v952
      %v954 = vpop.f32.mrb[0].mxu0
      %v955 = vpop.f32.mrb[0].mxu0
      %v956 = vadd.f32 0.0, %v955
      %v957 = vpop.f32.mrb[0].mxu0
      %958 = vmatprep.mubr.bf16.mxu0 0
      %959 = vmatmul.mubr.bf16.gmra.mrb[0].mxu0 %v878
      %v960 = vpop.f32.mrb[0].mxu0
      %v961 = vadd.f32 0.0, %v960
      %v962 = vpop.f32.mrb[0].mxu0
      %v963 = vpop.f32.mrb[0].mxu0
      %v964 = vadd.f32 0.0, %v963
      %v965 = vpop.f32.mrb[0].mxu0
      %966 = vmatprep.mubr.bf16.mxu0 0
      %967 = vmatmul.mubr.bf16.gmra.mrb[0].mxu0 %v881
      %v968 = vpop.f32.mrb[0].mxu0
      %v969 = vadd.f32 0.0, %v968
      %v970 = vpop.f32.mrb[0].mxu0
      %v971 = vpop.f32.mrb[0].mxu0
      %v972 = vadd.f32 0.0, %v971
      %v973 = vpop.f32.mrb[0].mxu0
      %974 = vmatprep.mubr.bf16.mxu0 0
      %975 = vmatmul.mubr.bf16.gmra.mrb[0].mxu0 %v884
      %v976 = vpop.f32.mrb[0].mxu0
      %v977 = vadd.f32 0.0, %v976
      %v978 = vpop.f32.mrb[0].mxu0
      %v979 = vpop.f32.mrb[0].mxu0
      %v980 = vadd.f32 0.0, %v979
      %v981 = vpop.f32.mrb[0].mxu0
      %982 = vdwg.mxu0
      %v983 = vld [vmem:[%s4] sm:$0xf]
      %v984 = vld [vmem:[%s4 + $0x4] sm:$0xf]
      %v985 = vld [vmem:[%s4 + $0x8] sm:$0xf]
      %v986 = vld [vmem:[%s4 + $0xc] sm:$0xf]
      %v987 = vld [vmem:[%s4 + $0x10] sm:$0xf]
      %v988 = vld [vmem:[%s4 + $0x14] sm:$0xf]
      %v995 = vunpack.c.l.b16 %v983
      %v996 = vunpack.c.l.b16 %v984
      %v997 = vunpack.c.l.b16 %v985
      %v998 = vunpack.c.l.b16 %v986
      %v999 = vunpack.c.l.b16 %v987
      %v1000 = vunpack.c.l.b16 %v988
      %v1001 = vpack.c.b16 %v996, %v995
      %v1002 = vpack.c.b16 %v998, %v997
      %v1003 = vpack.c.b16 %v1000, %v999
      %1007 = vmatprep.subr.bf16.mxu0 0
      %1008 = vmatpush1.bf16.msra.mxu0 %v1001
      %1009 = vmatprep.subr.bf16.mxu0 0
      %1010 = vmatpush1.bf16.msra.mxu0 %v1002
      %1011 = vmatprep.subr.bf16.mxu0 0
      %1012 = vmatpush1.bf16.msra.mxu0 %v1003
      %1013 = vmatprep.subr.bf16.mxu0 0
      %1014 = vmatpush1.bf16.msra.mxu0 0
      %1015 = vmatprep.subr.bf16.mxu0 0
      %1016 = vmatpush1.bf16.msra.mxu0 0
      %1017 = vmatprep.subr.bf16.mxu0 0
      %1018 = vmatpush1.bf16.msra.mxu0 0
      %1019 = vmatprep.subr.bf16.mxu0 0
      %1020 = vmatpush1.bf16.msra.mxu0 0
      %1021 = vmatprep.subr.bf16.mxu0 0
      %1022 = vmatpush1.bf16.msra.mxu0 0
      %1023 = vmatprep.subr.bf16.mxu0 0
      %1024 = vmatpush1.bf16.msra.mxu0 0
      %1025 = vmatprep.subr.bf16.mxu0 0
      %1026 = vmatpush1.bf16.msra.mxu0 0
      %1027 = vmatprep.subr.bf16.mxu0 0
      %1028 = vmatpush1.bf16.msra.mxu0 0
      %1029 = vmatprep.subr.bf16.mxu0 0
      %1030 = vmatpush1.bf16.msra.mxu0 0
      %1031 = vmatprep.subr.bf16.mxu0 0
      %1032 = vmatpush1.bf16.msra.mxu0 0
      %1033 = vmatprep.subr.bf16.mxu0 0
      %1034 = vmatpush1.bf16.msra.mxu0 0
      %1035 = vmatprep.subr.bf16.mxu0 0
      %1036 = vmatpush1.bf16.msra.mxu0 0
      %1037 = vmatprep.subr.bf16.mxu0 0
      %1038 = vmatpush1.bf16.msra.mxu0 0
      %1039 = vmatprep.mubr.bf16.mxu0 0
      %1040 = vmatmul.mubr.bf16.gmra.mrb[0].mxu0 %v863
      %v1041 = vpop.f32.mrb[0].mxu0
      %v1042 = vadd.f32 0.0, %v1041
      %v1043 = vpop.f32.mrb[0].mxu0
      %v1044 = vpop.f32.mrb[0].mxu0
      %v1045 = vadd.f32 0.0, %v1044
      %v1046 = vpop.f32.mrb[0].mxu0
      %1047 = vmatprep.mubr.bf16.mxu0 0
      %1048 = vmatmul.mubr.bf16.gmra.mrb[0].mxu0 %v866
      %v1049 = vpop.f32.mrb[0].mxu0
      %v1050 = vadd.f32 0.0, %v1049
      %v1051 = vpop.f32.mrb[0].mxu0
      %v1052 = vpop.f32.mrb[0].mxu0
      %v1053 = vadd.f32 0.0, %v1052
      %v1054 = vpop.f32.mrb[0].mxu0
      %1055 = vmatprep.mubr.bf16.mxu0 0
      %1056 = vmatmul.mubr.bf16.gmra.mrb[0].mxu0 %v869
      %v1057 = vpop.f32.mrb[0].mxu0
      %v1058 = vadd.f32 0.0, %v1057
      %v1059 = vpop.f32.mrb[0].mxu0
      %v1060 = vpop.f32.mrb[0].mxu0
      %v1061 = vadd.f32 0.0, %v1060
      %v1062 = vpop.f32.mrb[0].mxu0
      %1063 = vmatprep.mubr.bf16.mxu0 0
      %1064 = vmatmul.mubr.bf16.gmra.mrb[0].mxu0 %v872
      %v1065 = vpop.f32.mrb[0].mxu0
      %v1066 = vadd.f32 0.0, %v1065
      %v1067 = vpop.f32.mrb[0].mxu0
      %v1068 = vpop.f32.mrb[0].mxu0
      %v1069 = vadd.f32 0.0, %v1068
      %v1070 = vpop.f32.mrb[0].mxu0
      %1071 = vmatprep.mubr.bf16.mxu0 0
      %1072 = vmatmul.mubr.bf16.gmra.mrb[0].mxu0 %v875
      %v1073 = vpop.f32.mrb[0].mxu0
      %v1074 = vadd.f32 0.0, %v1073
      %v1075 = vpop.f32.mrb[0].mxu0
      %v1076 = vpop.f32.mrb[0].mxu0
      %v1077 = vadd.f32 0.0, %v1076
      %v1078 = vpop.f32.mrb[0].mxu0
      %1079 = vmatprep.mubr.bf16.mxu0 0
      %1080 = vmatmul.mubr.bf16.gmra.mrb[0].mxu0 %v878
      %v1081 = vpop.f32.mrb[0].mxu0
      %v1082 = vadd.f32 0.0, %v1081
      %v1083 = vpop.f32.mrb[0].mxu0
      %v1084 = vpop.f32.mrb[0].mxu0
      %v1085 = vadd.f32 0.0, %v1084
      %v1086 = vpop.f32.mrb[0].mxu0
      %1087 = vmatprep.mubr.bf16.mxu0 0
      %1088 = vmatmul.mubr.bf16.gmra.mrb[0].mxu0 %v881
      %v1089 = vpop.f32.mrb[0].mxu0
      %v1090 = vadd.f32 0.0, %v1089
      %v1091 = vpop.f32.mrb[0].mxu0
      %v1092 = vpop.f32.mrb[0].mxu0
      %v1093 = vadd.f32 0.0, %v1092
      %v1094 = vpop.f32.mrb[0].mxu0
      %1095 = vmatprep.mubr.bf16.mxu0 0
      %1096 = vmatmul.mubr.bf16.gmra.mrb[0].mxu0 %v884
      %v1097 = vpop.f32.mrb[0].mxu0
      %v1098 = vadd.f32 0.0, %v1097
      %v1099 = vpop.f32.mrb[0].mxu0
      %v1100 = vpop.f32.mrb[0].mxu0
      %v1101 = vadd.f32 0.0, %v1100
      %v1102 = vpop.f32.mrb[0].mxu0
      %1103 = vdwg.mxu0
      %v1104 = vld [vmem:[%s5] sm:$0xf]
      %v1105 = vld [vmem:[%s5 + $0x4] sm:$0xf]
      %v1106 = vld [vmem:[%s5 + $0x8] sm:$0xf]
      %v1107 = vld [vmem:[%s5 + $0xc] sm:$0xf]
      %v1108 = vld [vmem:[%s5 + $0x10] sm:$0xf]
      %v1109 = vld [vmem:[%s5 + $0x14] sm:$0xf]
      %v1116 = vunpack.c.l.b16 %v1104
      %v1117 = vunpack.c.l.b16 %v1105
      %v1118 = vunpack.c.l.b16 %v1106
      %v1119 = vunpack.c.l.b16 %v1107
      %v1120 = vunpack.c.l.b16 %v1108
      %v1121 = vunpack.c.l.b16 %v1109
      %v1122 = vpack.c.b16 %v1117, %v1116
      %v1123 = vpack.c.b16 %v1119, %v1118
      %v1124 = vpack.c.b16 %v1121, %v1120
      %1128 = vmatprep.subr.bf16.mxu0 0
      %1129 = vmatpush1.bf16.msra.mxu0 %v1122
      %1130 = vmatprep.subr.bf16.mxu0 0
      %1131 = vmatpush1.bf16.msra.mxu0 %v1123
      %1132 = vmatprep.subr.bf16.mxu0 0
      %1133 = vmatpush1.bf16.msra.mxu0 %v1124
      %1134 = vmatprep.subr.bf16.mxu0 0
      %1135 = vmatpush1.bf16.msra.mxu0 0
      %1136 = vmatprep.subr.bf16.mxu0 0
      %1137 = vmatpush1.bf16.msra.mxu0 0
      %1138 = vmatprep.subr.bf16.mxu0 0
      %1139 = vmatpush1.bf16.msra.mxu0 0
      %1140 = vmatprep.subr.bf16.mxu0 0
      %1141 = vmatpush1.bf16.msra.mxu0 0
      %1142 = vmatprep.subr.bf16.mxu0 0
      %1143 = vmatpush1.bf16.msra.mxu0 0
      %1144 = vmatprep.subr.bf16.mxu0 0
      %1145 = vmatpush1.bf16.msra.mxu0 0
      %1146 = vmatprep.subr.bf16.mxu0 0
      %1147 = vmatpush1.bf16.msra.mxu0 0
      %1148 = vmatprep.subr.bf16.mxu0 0
      %1149 = vmatpush1.bf16.msra.mxu0 0
      %1150 = vmatprep.subr.bf16.mxu0 0
      %1151 = vmatpush1.bf16.msra.mxu0 0
      %1152 = vmatprep.subr.bf16.mxu0 0
      %1153 = vmatpush1.bf16.msra.mxu0 0
      %1154 = vmatprep.subr.bf16.mxu0 0
      %1155 = vmatpush1.bf16.msra.mxu0 0
      %1156 = vmatprep.subr.bf16.mxu0 0
      %1157 = vmatpush1.bf16.msra.mxu0 0
      %1158 = vmatprep.subr.bf16.mxu0 0
      %1159 = vmatpush1.bf16.msra.mxu0 0
      %1160 = vmatprep.mubr.bf16.mxu0 0
      %1161 = vmatmul.mubr.bf16.gmra.mrb[0].mxu0 %v863
      %v1162 = vpop.f32.mrb[0].mxu0
      %v1163 = vadd.f32 0.0, %v1162
      %v1164 = vpop.f32.mrb[0].mxu0
      %v1165 = vpop.f32.mrb[0].mxu0
      %v1166 = vadd.f32 0.0, %v1165
      %v1167 = vpop.f32.mrb[0].mxu0
      %1168 = vmatprep.mubr.bf16.mxu0 0
      %1169 = vmatmul.mubr.bf16.gmra.mrb[0].mxu0 %v866
      %v1170 = vpop.f32.mrb[0].mxu0
      %v1171 = vadd.f32 0.0, %v1170
      %v1172 = vpop.f32.mrb[0].mxu0
      %v1173 = vpop.f32.mrb[0].mxu0
      %v1174 = vadd.f32 0.0, %v1173
      %v1175 = vpop.f32.mrb[0].mxu0
      %1176 = vmatprep.mubr.bf16.mxu0 0
      %1177 = vmatmul.mubr.bf16.gmra.mrb[0].mxu0 %v869
      %v1178 = vpop.f32.mrb[0].mxu0
      %v1179 = vadd.f32 0.0, %v1178
      %v1180 = vpop.f32.mrb[0].mxu0
      %v1181 = vpop.f32.mrb[0].mxu0
      %v1182 = vadd.f32 0.0, %v1181
      %v1183 = vpop.f32.mrb[0].mxu0
      %1184 = vmatprep.mubr.bf16.mxu0 0
      %1185 = vmatmul.mubr.bf16.gmra.mrb[0].mxu0 %v872
      %v1186 = vpop.f32.mrb[0].mxu0
      %v1187 = vadd.f32 0.0, %v1186
      %v1188 = vpop.f32.mrb[0].mxu0
      %v1189 = vpop.f32.mrb[0].mxu0
      %v1190 = vadd.f32 0.0, %v1189
      %v1191 = vpop.f32.mrb[0].mxu0
      %1192 = vmatprep.mubr.bf16.mxu0 0
      %1193 = vmatmul.mubr.bf16.gmra.mrb[0].mxu0 %v875
      %v1194 = vpop.f32.mrb[0].mxu0
      %v1195 = vadd.f32 0.0, %v1194
      %v1196 = vpop.f32.mrb[0].mxu0
      %v1197 = vpop.f32.mrb[0].mxu0
      %v1198 = vadd.f32 0.0, %v1197
      %v1199 = vpop.f32.mrb[0].mxu0
      %1200 = vmatprep.mubr.bf16.mxu0 0
      %1201 = vmatmul.mubr.bf16.gmra.mrb[0].mxu0 %v878
      %v1202 = vpop.f32.mrb[0].mxu0
      %v1203 = vadd.f32 0.0, %v1202
      %v1204 = vpop.f32.mrb[0].mxu0
      %v1205 = vpop.f32.mrb[0].mxu0
      %v1206 = vadd.f32 0.0, %v1205
      %v1207 = vpop.f32.mrb[0].mxu0
      %1208 = vmatprep.mubr.bf16.mxu0 0
      %1209 = vmatmul.mubr.bf16.gmra.mrb[0].mxu0 %v881
      %v1210 = vpop.f32.mrb[0].mxu0
      %v1211 = vadd.f32 0.0, %v1210
      %v1212 = vpop.f32.mrb[0].mxu0
      %v1213 = vpop.f32.mrb[0].mxu0
      %v1214 = vadd.f32 0.0, %v1213
      %v1215 = vpop.f32.mrb[0].mxu0
      %1216 = vmatprep.mubr.bf16.mxu0 0
      %1217 = vmatmul.mubr.bf16.gmra.mrb[0].mxu0 %v884
      %v1218 = vpop.f32.mrb[0].mxu0
      %v1219 = vadd.f32 0.0, %v1218
      %v1220 = vpop.f32.mrb[0].mxu0
      %v1221 = vpop.f32.mrb[0].mxu0
      %v1222 = vadd.f32 0.0, %v1221
      %v1223 = vpop.f32.mrb[0].mxu0
      %1224 = vdwg.mxu0
      %v1225 = vld [vmem:[%s7] sm:$0x1]
      %v1227 = vlaneseq
      %v1228 = vshrl.u32 %v1227, 7
      %v1229 = vsub.s32 0, %v1228
      %v1230 = vrot.slane %v1225, %v1229
      %v1232 = vadd.f32 %v1230, 0.0
      %v1233 = vrot.slane %v1163, 3
      %v1234 = vrot.slane %v1166, 3
      %v1235 = vrot.slane %v1171, 3
      %v1236 = vrot.slane %v1174, 3
      %v1237 = vrot.slane %v1179, 3
      %v1238 = vrot.slane %v1182, 3
      %v1239 = vrot.slane %v1187, 3
      %v1240 = vrot.slane %v1190, 3
      %v1241 = vrot.slane %v1195, 3
      %v1242 = vrot.slane %v1198, 3
      %v1243 = vrot.slane %v1203, 3
      %v1244 = vrot.slane %v1206, 3
      %v1245 = vrot.slane %v1211, 3
      %v1246 = vrot.slane %v1214, 3
      %v1247 = vrot.slane %v1219, 3
      %v1248 = vrot.slane %v1222, 3
      %v1249 = vlaneseq
      %v1250 = vshrl.u32 %v1249, 7
      %vm1251 = vcmp.lt.s32.totalorder %v1250, 5
      %v1252 = vsel %vm1251, %v1247, %v1248
      %v1253 = vsel %vm1251, %v1246, %v1247
      %v1254 = vsel %vm1251, %v1245, %v1246
      %v1255 = vsel %vm1251, %v1244, %v1245
      %v1256 = vsel %vm1251, %v1243, %v1244
      %v1257 = vsel %vm1251, %v1242, %v1243
      %v1258 = vsel %vm1251, %v1241, %v1242
      %v1259 = vsel %vm1251, %v1240, %v1241
      %v1260 = vsel %vm1251, %v1239, %v1240
      %v1261 = vsel %vm1251, %v1238, %v1239
      %v1262 = vsel %vm1251, %v1237, %v1238
      %v1263 = vsel %vm1251, %v1236, %v1237
      %v1264 = vsel %vm1251, %v1235, %v1236
      %v1265 = vsel %vm1251, %v1234, %v1235
      %v1266 = vsel %vm1251, %v1233, %v1234
      %v1267 = vsel %vm1251, %v1248, %v1233
      %v1268 = vld [vmem:[%s6] sm:$0xff]
      %v1269 = vld [vmem:[%s6 + $0x8] sm:$0xff]
      %v1270 = vld [vmem:[%s6 + $0x10] sm:$0xff]
      %v1271 = vld [vmem:[%s6 + $0x18] sm:$0xff]
      %v1272 = vld [vmem:[%s6 + $0x20] sm:$0xff]
      %v1273 = vld [vmem:[%s6 + $0x28] sm:$0xff]
      %v1274 = vld [vmem:[%s6 + $0x30] sm:$0xff]
      %v1275 = vld [vmem:[%s6 + $0x38] sm:$0xff]
      %v1276 = vld [vmem:[%s6 + $0x40] sm:$0xff]
      %v1277 = vld [vmem:[%s6 + $0x48] sm:$0xff]
      %v1278 = vld [vmem:[%s6 + $0x50] sm:$0xff]
      %v1279 = vld [vmem:[%s6 + $0x58] sm:$0xff]
      %v1280 = vld [vmem:[%s6 + $0x60] sm:$0xff]
      %v1281 = vld [vmem:[%s6 + $0x68] sm:$0xff]
      %v1282 = vld [vmem:[%s6 + $0x70] sm:$0xff]
      %v1283 = vld [vmem:[%s6 + $0x78] sm:$0xff]
      %v1284 = vmul.f32 %v1253, %v1268
      %v1285 = vmul.f32 %v1252, %v1269
      %v1286 = vmul.f32 %v1267, %v1270
      %v1287 = vmul.f32 %v1266, %v1271
      %v1288 = vmul.f32 %v1265, %v1272
      %v1289 = vmul.f32 %v1264, %v1273
      %v1290 = vmul.f32 %v1263, %v1274
      %v1291 = vmul.f32 %v1262, %v1275
      %v1292 = vmul.f32 %v1261, %v1276
      %v1293 = vmul.f32 %v1260, %v1277
      %v1294 = vmul.f32 %v1259, %v1278
      %v1295 = vmul.f32 %v1258, %v1279
      %v1296 = vmul.f32 %v1257, %v1280
      %v1297 = vmul.f32 %v1256, %v1281
      %v1298 = vmul.f32 %v1255, %v1282
      %v1299 = vmul.f32 %v1254, %v1283
      %v1300 = vadd.f32 %v1232, %v1284
      %v1301 = vadd.f32 %v1232, %v1285
      %v1302 = vadd.f32 %v1232, %v1286
      %v1303 = vadd.f32 %v1232, %v1287
      %v1304 = vadd.f32 %v1232, %v1288
      %v1305 = vadd.f32 %v1232, %v1289
      %v1306 = vadd.f32 %v1232, %v1290
      %v1307 = vadd.f32 %v1232, %v1291
      %v1308 = vadd.f32 %v1232, %v1292
      %v1309 = vadd.f32 %v1232, %v1293
      %v1310 = vadd.f32 %v1232, %v1294
      %v1311 = vadd.f32 %v1232, %v1295
      %v1312 = vadd.f32 %v1232, %v1296
      %v1313 = vadd.f32 %v1232, %v1297
      %v1314 = vadd.f32 %v1232, %v1298
      %v1315 = vadd.f32 %v1232, %v1299
      %v1316 = vrot.slane %v1163, 4
      %v1317 = vrot.slane %v1166, 4
      %v1318 = vrot.slane %v1171, 4
      %v1319 = vrot.slane %v1174, 4
      %v1320 = vrot.slane %v1179, 4
      %v1321 = vrot.slane %v1182, 4
      %v1322 = vrot.slane %v1187, 4
      %v1323 = vrot.slane %v1190, 4
      %v1324 = vrot.slane %v1195, 4
      %v1325 = vrot.slane %v1198, 4
      %v1326 = vrot.slane %v1203, 4
      %v1327 = vrot.slane %v1206, 4
      %v1328 = vrot.slane %v1211, 4
      %v1329 = vrot.slane %v1214, 4
      %v1330 = vrot.slane %v1219, 4
      %v1331 = vrot.slane %v1222, 4
      %vm1332 = vcmp.lt.s32.totalorder %v1250, 4
      %v1333 = vsel %vm1332, %v1330, %v1331
      %v1334 = vsel %vm1332, %v1329, %v1330
      %v1335 = vsel %vm1332, %v1328, %v1329
      %v1336 = vsel %vm1332, %v1327, %v1328
      %v1337 = vsel %vm1332, %v1326, %v1327
      %v1338 = vsel %vm1332, %v1325, %v1326
      %v1339 = vsel %vm1332, %v1324, %v1325
      %v1340 = vsel %vm1332, %v1323, %v1324
      %v1341 = vsel %vm1332, %v1322, %v1323
      %v1342 = vsel %vm1332, %v1321, %v1322
      %v1343 = vsel %vm1332, %v1320, %v1321
      %v1344 = vsel %vm1332, %v1319, %v1320
      %v1345 = vsel %vm1332, %v1318, %v1319
      %v1346 = vsel %vm1332, %v1317, %v1318
      %v1347 = vsel %vm1332, %v1316, %v1317
      %v1348 = vsel %vm1332, %v1331, %v1316
      %s1349 = scalar_lea.vmem %s6, 128
      %v1350 = vld [vmem:[%s1349] sm:$0xff]
      %v1351 = vld [vmem:[%s1349 + $0x8] sm:$0xff]
      %v1352 = vld [vmem:[%s1349 + $0x10] sm:$0xff]
      %v1353 = vld [vmem:[%s1349 + $0x18] sm:$0xff]
      %v1354 = vld [vmem:[%s1349 + $0x20] sm:$0xff]
      %v1355 = vld [vmem:[%s1349 + $0x28] sm:$0xff]
      %v1356 = vld [vmem:[%s1349 + $0x30] sm:$0xff]
      %v1357 = vld [vmem:[%s1349 + $0x38] sm:$0xff]
      %v1358 = vld [vmem:[%s1349 + $0x40] sm:$0xff]
      %v1359 = vld [vmem:[%s1349 + $0x48] sm:$0xff]
      %v1360 = vld [vmem:[%s1349 + $0x50] sm:$0xff]
      %v1361 = vld [vmem:[%s1349 + $0x58] sm:$0xff]
      %v1362 = vld [vmem:[%s1349 + $0x60] sm:$0xff]
      %v1363 = vld [vmem:[%s1349 + $0x68] sm:$0xff]
      %v1364 = vld [vmem:[%s1349 + $0x70] sm:$0xff]
      %v1365 = vld [vmem:[%s1349 + $0x78] sm:$0xff]
      %v1366 = vmul.f32 %v1334, %v1350
      %v1367 = vmul.f32 %v1333, %v1351
      %v1368 = vmul.f32 %v1348, %v1352
      %v1369 = vmul.f32 %v1347, %v1353
      %v1370 = vmul.f32 %v1346, %v1354
      %v1371 = vmul.f32 %v1345, %v1355
      %v1372 = vmul.f32 %v1344, %v1356
      %v1373 = vmul.f32 %v1343, %v1357
      %v1374 = vmul.f32 %v1342, %v1358
      %v1375 = vmul.f32 %v1341, %v1359
      %v1376 = vmul.f32 %v1340, %v1360
      %v1377 = vmul.f32 %v1339, %v1361
      %v1378 = vmul.f32 %v1338, %v1362
      %v1379 = vmul.f32 %v1337, %v1363
      %v1380 = vmul.f32 %v1336, %v1364
      %v1381 = vmul.f32 %v1335, %v1365
      %v1382 = vadd.f32 %v1300, %v1366
      %v1383 = vadd.f32 %v1301, %v1367
      %v1384 = vadd.f32 %v1302, %v1368
      %v1385 = vadd.f32 %v1303, %v1369
      %v1386 = vadd.f32 %v1304, %v1370
      %v1387 = vadd.f32 %v1305, %v1371
      %v1388 = vadd.f32 %v1306, %v1372
      %v1389 = vadd.f32 %v1307, %v1373
      %v1390 = vadd.f32 %v1308, %v1374
      %v1391 = vadd.f32 %v1309, %v1375
      %v1392 = vadd.f32 %v1310, %v1376
      %v1393 = vadd.f32 %v1311, %v1377
      %v1394 = vadd.f32 %v1312, %v1378
      %v1395 = vadd.f32 %v1313, %v1379
      %v1396 = vadd.f32 %v1314, %v1380
      %v1397 = vadd.f32 %v1315, %v1381
      %v1398 = vrot.slane %v1163, 5
      %v1399 = vrot.slane %v1166, 5
      %v1400 = vrot.slane %v1171, 5
      %v1401 = vrot.slane %v1174, 5
      %v1402 = vrot.slane %v1179, 5
      %v1403 = vrot.slane %v1182, 5
      %v1404 = vrot.slane %v1187, 5
      %v1405 = vrot.slane %v1190, 5
      %v1406 = vrot.slane %v1195, 5
      %v1407 = vrot.slane %v1198, 5
      %v1408 = vrot.slane %v1203, 5
      %v1409 = vrot.slane %v1206, 5
      %v1410 = vrot.slane %v1211, 5
      %v1411 = vrot.slane %v1214, 5
      %v1412 = vrot.slane %v1219, 5
      %v1413 = vrot.slane %v1222, 5
      %vm1414 = vcmp.lt.s32.totalorder %v1250, 3
      %v1415 = vsel %vm1414, %v1412, %v1413
      %v1416 = vsel %vm1414, %v1411, %v1412
      %v1417 = vsel %vm1414, %v1410, %v1411
      %v1418 = vsel %vm1414, %v1409, %v1410
      %v1419 = vsel %vm1414, %v1408, %v1409
      %v1420 = vsel %vm1414, %v1407, %v1408
      %v1421 = vsel %vm1414, %v1406, %v1407
      %v1422 = vsel %vm1414, %v1405, %v1406
      %v1423 = vsel %vm1414, %v1404, %v1405
      %v1424 = vsel %vm1414, %v1403, %v1404
      %v1425 = vsel %vm1414, %v1402, %v1403
      %v1426 = vsel %vm1414, %v1401, %v1402
      %v1427 = vsel %vm1414, %v1400, %v1401
      %v1428 = vsel %vm1414, %v1399, %v1400
      %v1429 = vsel %vm1414, %v1398, %v1399
      %v1430 = vsel %vm1414, %v1413, %v1398
      %s1431 = scalar_lea.vmem %s6, 256
      %v1432 = vld [vmem:[%s1431] sm:$0xff]
      %v1433 = vld [vmem:[%s1431 + $0x8] sm:$0xff]
      %v1434 = vld [vmem:[%s1431 + $0x10] sm:$0xff]
      %v1435 = vld [vmem:[%s1431 + $0x18] sm:$0xff]
      %v1436 = vld [vmem:[%s1431 + $0x20] sm:$0xff]
      %v1437 = vld [vmem:[%s1431 + $0x28] sm:$0xff]
      %v1438 = vld [vmem:[%s1431 + $0x30] sm:$0xff]
      %v1439 = vld [vmem:[%s1431 + $0x38] sm:$0xff]
      %v1440 = vld [vmem:[%s1431 + $0x40] sm:$0xff]
      %v1441 = vld [vmem:[%s1431 + $0x48] sm:$0xff]
      %v1442 = vld [vmem:[%s1431 + $0x50] sm:$0xff]
      %v1443 = vld [vmem:[%s1431 + $0x58] sm:$0xff]
      %v1444 = vld [vmem:[%s1431 + $0x60] sm:$0xff]
      %v1445 = vld [vmem:[%s1431 + $0x68] sm:$0xff]
      %v1446 = vld [vmem:[%s1431 + $0x70] sm:$0xff]
      %v1447 = vld [vmem:[%s1431 + $0x78] sm:$0xff]
      %v1448 = vmul.f32 %v1416, %v1432
      %v1449 = vmul.f32 %v1415, %v1433
      %v1450 = vmul.f32 %v1430, %v1434
      %v1451 = vmul.f32 %v1429, %v1435
      %v1452 = vmul.f32 %v1428, %v1436
      %v1453 = vmul.f32 %v1427, %v1437
      %v1454 = vmul.f32 %v1426, %v1438
      %v1455 = vmul.f32 %v1425, %v1439
      %v1456 = vmul.f32 %v1424, %v1440
      %v1457 = vmul.f32 %v1423, %v1441
      %v1458 = vmul.f32 %v1422, %v1442
      %v1459 = vmul.f32 %v1421, %v1443
      %v1460 = vmul.f32 %v1420, %v1444
      %v1461 = vmul.f32 %v1419, %v1445
      %v1462 = vmul.f32 %v1418, %v1446
      %v1463 = vmul.f32 %v1417, %v1447
      %v1464 = vadd.f32 %v1382, %v1448
      %v1465 = vadd.f32 %v1383, %v1449
      %v1466 = vadd.f32 %v1384, %v1450
      %v1467 = vadd.f32 %v1385, %v1451
      %v1468 = vadd.f32 %v1386, %v1452
      %v1469 = vadd.f32 %v1387, %v1453
      %v1470 = vadd.f32 %v1388, %v1454
      %v1471 = vadd.f32 %v1389, %v1455
      %v1472 = vadd.f32 %v1390, %v1456
      %v1473 = vadd.f32 %v1391, %v1457
      %v1474 = vadd.f32 %v1392, %v1458
      %v1475 = vadd.f32 %v1393, %v1459
      %v1476 = vadd.f32 %v1394, %v1460
      %v1477 = vadd.f32 %v1395, %v1461
      %v1478 = vadd.f32 %v1396, %v1462
      %v1479 = vadd.f32 %v1397, %v1463
      %v1480 = vrot.slane %v1163, 7
      %v1481 = vrot.slane %v1166, 7
      %v1482 = vrot.slane %v1171, 7
      %v1483 = vrot.slane %v1174, 7
      %v1484 = vrot.slane %v1179, 7
      %v1485 = vrot.slane %v1182, 7
      %v1486 = vrot.slane %v1187, 7
      %v1487 = vrot.slane %v1190, 7
      %v1488 = vrot.slane %v1195, 7
      %v1489 = vrot.slane %v1198, 7
      %v1490 = vrot.slane %v1203, 7
      %v1491 = vrot.slane %v1206, 7
      %v1492 = vrot.slane %v1211, 7
      %v1493 = vrot.slane %v1214, 7
      %v1494 = vrot.slane %v1219, 7
      %v1495 = vrot.slane %v1222, 7
      %vm1496 = vcmp.lt.s32.totalorder %v1250, 1
      %v1497 = vsel %vm1496, %v1494, %v1495
      %v1498 = vsel %vm1496, %v1493, %v1494
      %v1499 = vsel %vm1496, %v1492, %v1493
      %v1500 = vsel %vm1496, %v1491, %v1492
      %v1501 = vsel %vm1496, %v1490, %v1491
      %v1502 = vsel %vm1496, %v1489, %v1490
      %v1503 = vsel %vm1496, %v1488, %v1489
      %v1504 = vsel %vm1496, %v1487, %v1488
      %v1505 = vsel %vm1496, %v1486, %v1487
      %v1506 = vsel %vm1496, %v1485, %v1486
      %v1507 = vsel %vm1496, %v1484, %v1485
      %v1508 = vsel %vm1496, %v1483, %v1484
      %v1509 = vsel %vm1496, %v1482, %v1483
      %v1510 = vsel %vm1496, %v1481, %v1482
      %v1511 = vsel %vm1496, %v1480, %v1481
      %v1512 = vsel %vm1496, %v1495, %v1480
      %s1513 = scalar_lea.vmem %s6, 384
      %v1514 = vld [vmem:[%s1513] sm:$0xff]
      %v1515 = vld [vmem:[%s1513 + $0x8] sm:$0xff]
      %v1516 = vld [vmem:[%s1513 + $0x10] sm:$0xff]
      %v1517 = vld [vmem:[%s1513 + $0x18] sm:$0xff]
      %v1518 = vld [vmem:[%s1513 + $0x20] sm:$0xff]
      %v1519 = vld [vmem:[%s1513 + $0x28] sm:$0xff]
      %v1520 = vld [vmem:[%s1513 + $0x30] sm:$0xff]
      %v1521 = vld [vmem:[%s1513 + $0x38] sm:$0xff]
      %v1522 = vld [vmem:[%s1513 + $0x40] sm:$0xff]
      %v1523 = vld [vmem:[%s1513 + $0x48] sm:$0xff]
      %v1524 = vld [vmem:[%s1513 + $0x50] sm:$0xff]
      %v1525 = vld [vmem:[%s1513 + $0x58] sm:$0xff]
      %v1526 = vld [vmem:[%s1513 + $0x60] sm:$0xff]
      %v1527 = vld [vmem:[%s1513 + $0x68] sm:$0xff]
      %v1528 = vld [vmem:[%s1513 + $0x70] sm:$0xff]
      %v1529 = vld [vmem:[%s1513 + $0x78] sm:$0xff]
      %v1530 = vmul.f32 %v1498, %v1514
      %v1531 = vmul.f32 %v1497, %v1515
      %v1532 = vmul.f32 %v1512, %v1516
      %v1533 = vmul.f32 %v1511, %v1517
      %v1534 = vmul.f32 %v1510, %v1518
      %v1535 = vmul.f32 %v1509, %v1519
      %v1536 = vmul.f32 %v1508, %v1520
      %v1537 = vmul.f32 %v1507, %v1521
      %v1538 = vmul.f32 %v1506, %v1522
      %v1539 = vmul.f32 %v1505, %v1523
      %v1540 = vmul.f32 %v1504, %v1524
      %v1541 = vmul.f32 %v1503, %v1525
      %v1542 = vmul.f32 %v1502, %v1526
      %v1543 = vmul.f32 %v1501, %v1527
      %v1544 = vmul.f32 %v1500, %v1528
      %v1545 = vmul.f32 %v1499, %v1529
      %v1546 = vadd.f32 %v1464, %v1530
      %v1547 = vadd.f32 %v1465, %v1531
      %v1548 = vadd.f32 %v1466, %v1532
      %v1549 = vadd.f32 %v1467, %v1533
      %v1550 = vadd.f32 %v1468, %v1534
      %v1551 = vadd.f32 %v1469, %v1535
      %v1552 = vadd.f32 %v1470, %v1536
      %v1553 = vadd.f32 %v1471, %v1537
      %v1554 = vadd.f32 %v1472, %v1538
      %v1555 = vadd.f32 %v1473, %v1539
      %v1556 = vadd.f32 %v1474, %v1540
      %v1557 = vadd.f32 %v1475, %v1541
      %v1558 = vadd.f32 %v1476, %v1542
      %v1559 = vadd.f32 %v1477, %v1543
      %v1560 = vadd.f32 %v1478, %v1544
      %v1561 = vadd.f32 %v1479, %v1545
      %s1562 = scalar_lea.vmem %s6, 512
      %v1563 = vld [vmem:[%s1562] sm:$0xff]
      %v1564 = vld [vmem:[%s1562 + $0x8] sm:$0xff]
      %v1565 = vld [vmem:[%s1562 + $0x10] sm:$0xff]
      %v1566 = vld [vmem:[%s1562 + $0x18] sm:$0xff]
      %v1567 = vld [vmem:[%s1562 + $0x20] sm:$0xff]
      %v1568 = vld [vmem:[%s1562 + $0x28] sm:$0xff]
      %v1569 = vld [vmem:[%s1562 + $0x30] sm:$0xff]
      %v1570 = vld [vmem:[%s1562 + $0x38] sm:$0xff]
      %v1571 = vld [vmem:[%s1562 + $0x40] sm:$0xff]
      %v1572 = vld [vmem:[%s1562 + $0x48] sm:$0xff]
      %v1573 = vld [vmem:[%s1562 + $0x50] sm:$0xff]
      %v1574 = vld [vmem:[%s1562 + $0x58] sm:$0xff]
      %v1575 = vld [vmem:[%s1562 + $0x60] sm:$0xff]
      %v1576 = vld [vmem:[%s1562 + $0x68] sm:$0xff]
      %v1577 = vld [vmem:[%s1562 + $0x70] sm:$0xff]
      %v1578 = vld [vmem:[%s1562 + $0x78] sm:$0xff]
      %v1579 = vmul.f32 %v1219, %v1563
      %v1580 = vmul.f32 %v1222, %v1564
      %v1581 = vmul.f32 %v1163, %v1565
      %v1582 = vmul.f32 %v1166, %v1566
      %v1583 = vmul.f32 %v1171, %v1567
      %v1584 = vmul.f32 %v1174, %v1568
      %v1585 = vmul.f32 %v1179, %v1569
      %v1586 = vmul.f32 %v1182, %v1570
      %v1587 = vmul.f32 %v1187, %v1571
      %v1588 = vmul.f32 %v1190, %v1572
      %v1589 = vmul.f32 %v1195, %v1573
      %v1590 = vmul.f32 %v1198, %v1574
      %v1591 = vmul.f32 %v1203, %v1575
      %v1592 = vmul.f32 %v1206, %v1576
      %v1593 = vmul.f32 %v1211, %v1577
      %v1594 = vmul.f32 %v1214, %v1578
      %v1595 = vadd.f32 %v1546, %v1579
      %v1596 = vadd.f32 %v1547, %v1580
      %v1597 = vadd.f32 %v1548, %v1581
      %v1598 = vadd.f32 %v1549, %v1582
      %v1599 = vadd.f32 %v1550, %v1583
      %v1600 = vadd.f32 %v1551, %v1584
      %v1601 = vadd.f32 %v1552, %v1585
      %v1602 = vadd.f32 %v1553, %v1586
      %v1603 = vadd.f32 %v1554, %v1587
      %v1604 = vadd.f32 %v1555, %v1588
      %v1605 = vadd.f32 %v1556, %v1589
      %v1606 = vadd.f32 %v1557, %v1590
      %v1607 = vadd.f32 %v1558, %v1591
      %v1608 = vadd.f32 %v1559, %v1592
      %v1609 = vadd.f32 %v1560, %v1593
      %v1610 = vadd.f32 %v1561, %v1594
      %v1611 = vrot.slane %v1163, 1
      %v1612 = vrot.slane %v1166, 1
      %v1613 = vrot.slane %v1171, 1
      %v1614 = vrot.slane %v1174, 1
      %v1615 = vrot.slane %v1179, 1
      %v1616 = vrot.slane %v1182, 1
      %v1617 = vrot.slane %v1187, 1
      %v1618 = vrot.slane %v1190, 1
      %v1619 = vrot.slane %v1195, 1
      %v1620 = vrot.slane %v1198, 1
      %v1621 = vrot.slane %v1203, 1
      %v1622 = vrot.slane %v1206, 1
      %v1623 = vrot.slane %v1211, 1
      %v1624 = vrot.slane %v1214, 1
      %v1625 = vrot.slane %v1219, 1
      %v1626 = vrot.slane %v1222, 1
      %vm1627 = vcmp.lt.s32.totalorder %v1250, 7
      %v1628 = vsel %vm1627, %v1625, %v1626
      %v1629 = vsel %vm1627, %v1624, %v1625
      %v1630 = vsel %vm1627, %v1623, %v1624
      %v1631 = vsel %vm1627, %v1622, %v1623
      %v1632 = vsel %vm1627, %v1621, %v1622
      %v1633 = vsel %vm1627, %v1620, %v1621
      %v1634 = vsel %vm1627, %v1619, %v1620
      %v1635 = vsel %vm1627, %v1618, %v1619
      %v1636 = vsel %vm1627, %v1617, %v1618
      %v1637 = vsel %vm1627, %v1616, %v1617
      %v1638 = vsel %vm1627, %v1615, %v1616
      %v1639 = vsel %vm1627, %v1614, %v1615
      %v1640 = vsel %vm1627, %v1613, %v1614
      %v1641 = vsel %vm1627, %v1612, %v1613
      %v1642 = vsel %vm1627, %v1611, %v1612
      %v1643 = vsel %vm1627, %v1626, %v1611
      %s1644 = scalar_lea.vmem %s6, 640
      %v1645 = vld [vmem:[%s1644] sm:$0xff]
      %v1646 = vld [vmem:[%s1644 + $0x8] sm:$0xff]
      %v1647 = vld [vmem:[%s1644 + $0x10] sm:$0xff]
      %v1648 = vld [vmem:[%s1644 + $0x18] sm:$0xff]
      %v1649 = vld [vmem:[%s1644 + $0x20] sm:$0xff]
      %v1650 = vld [vmem:[%s1644 + $0x28] sm:$0xff]
      %v1651 = vld [vmem:[%s1644 + $0x30] sm:$0xff]
      %v1652 = vld [vmem:[%s1644 + $0x38] sm:$0xff]
      %v1653 = vld [vmem:[%s1644 + $0x40] sm:$0xff]
      %v1654 = vld [vmem:[%s1644 + $0x48] sm:$0xff]
      %v1655 = vld [vmem:[%s1644 + $0x50] sm:$0xff]
      %v1656 = vld [vmem:[%s1644 + $0x58] sm:$0xff]
      %v1657 = vld [vmem:[%s1644 + $0x60] sm:$0xff]
      %v1658 = vld [vmem:[%s1644 + $0x68] sm:$0xff]
      %v1659 = vld [vmem:[%s1644 + $0x70] sm:$0xff]
      %v1660 = vld [vmem:[%s1644 + $0x78] sm:$0xff]
      %v1661 = vmul.f32 %v1628, %v1645
      %v1662 = vmul.f32 %v1643, %v1646
      %v1663 = vmul.f32 %v1642, %v1647
      %v1664 = vmul.f32 %v1641, %v1648
      %v1665 = vmul.f32 %v1640, %v1649
      %v1666 = vmul.f32 %v1639, %v1650
      %v1667 = vmul.f32 %v1638, %v1651
      %v1668 = vmul.f32 %v1637, %v1652
      %v1669 = vmul.f32 %v1636, %v1653
      %v1670 = vmul.f32 %v1635, %v1654
      %v1671 = vmul.f32 %v1634, %v1655
      %v1672 = vmul.f32 %v1633, %v1656
      %v1673 = vmul.f32 %v1632, %v1657
      %v1674 = vmul.f32 %v1631, %v1658
      %v1675 = vmul.f32 %v1630, %v1659
      %v1676 = vmul.f32 %v1629, %v1660
      %v1677 = vadd.f32 %v1595, %v1661
      %v1678 = vadd.f32 %v1596, %v1662
      %v1679 = vadd.f32 %v1597, %v1663
      %v1680 = vadd.f32 %v1598, %v1664
      %v1681 = vadd.f32 %v1599, %v1665
      %v1682 = vadd.f32 %v1600, %v1666
      %v1683 = vadd.f32 %v1601, %v1667
      %v1684 = vadd.f32 %v1602, %v1668
      %v1685 = vadd.f32 %v1603, %v1669
      %v1686 = vadd.f32 %v1604, %v1670
      %v1687 = vadd.f32 %v1605, %v1671
      %v1688 = vadd.f32 %v1606, %v1672
      %v1689 = vadd.f32 %v1607, %v1673
      %v1690 = vadd.f32 %v1608, %v1674
      %v1691 = vadd.f32 %v1609, %v1675
      %v1692 = vadd.f32 %v1610, %v1676
      %s1693 = scalar_lea.vmem %s6, 768
      %v1694 = vld [vmem:[%s1693] sm:$0xff]
      %v1695 = vld [vmem:[%s1693 + $0x8] sm:$0xff]
      %v1696 = vld [vmem:[%s1693 + $0x10] sm:$0xff]
      %v1697 = vld [vmem:[%s1693 + $0x18] sm:$0xff]
      %v1698 = vld [vmem:[%s1693 + $0x20] sm:$0xff]
      %v1699 = vld [vmem:[%s1693 + $0x28] sm:$0xff]
      %v1700 = vld [vmem:[%s1693 + $0x30] sm:$0xff]
      %v1701 = vld [vmem:[%s1693 + $0x38] sm:$0xff]
      %v1702 = vld [vmem:[%s1693 + $0x40] sm:$0xff]
      %v1703 = vld [vmem:[%s1693 + $0x48] sm:$0xff]
      %v1704 = vld [vmem:[%s1693 + $0x50] sm:$0xff]
      %v1705 = vld [vmem:[%s1693 + $0x58] sm:$0xff]
      %v1706 = vld [vmem:[%s1693 + $0x60] sm:$0xff]
      %v1707 = vld [vmem:[%s1693 + $0x68] sm:$0xff]
      %v1708 = vld [vmem:[%s1693 + $0x70] sm:$0xff]
      %v1709 = vld [vmem:[%s1693 + $0x78] sm:$0xff]
      %v1710 = vmul.f32 %v1252, %v1694
      %v1711 = vmul.f32 %v1267, %v1695
      %v1712 = vmul.f32 %v1266, %v1696
      %v1713 = vmul.f32 %v1265, %v1697
      %v1714 = vmul.f32 %v1264, %v1698
      %v1715 = vmul.f32 %v1263, %v1699
      %v1716 = vmul.f32 %v1262, %v1700
      %v1717 = vmul.f32 %v1261, %v1701
      %v1718 = vmul.f32 %v1260, %v1702
      %v1719 = vmul.f32 %v1259, %v1703
      %v1720 = vmul.f32 %v1258, %v1704
      %v1721 = vmul.f32 %v1257, %v1705
      %v1722 = vmul.f32 %v1256, %v1706
      %v1723 = vmul.f32 %v1255, %v1707
      %v1724 = vmul.f32 %v1254, %v1708
      %v1725 = vmul.f32 %v1253, %v1709
      %v1726 = vadd.f32 %v1677, %v1710
      %v1727 = vadd.f32 %v1678, %v1711
      %v1728 = vadd.f32 %v1679, %v1712
      %v1729 = vadd.f32 %v1680, %v1713
      %v1730 = vadd.f32 %v1681, %v1714
      %v1731 = vadd.f32 %v1682, %v1715
      %v1732 = vadd.f32 %v1683, %v1716
      %v1733 = vadd.f32 %v1684, %v1717
      %v1734 = vadd.f32 %v1685, %v1718
      %v1735 = vadd.f32 %v1686, %v1719
      %v1736 = vadd.f32 %v1687, %v1720
      %v1737 = vadd.f32 %v1688, %v1721
      %v1738 = vadd.f32 %v1689, %v1722
      %v1739 = vadd.f32 %v1690, %v1723
      %v1740 = vadd.f32 %v1691, %v1724
      %v1741 = vadd.f32 %v1692, %v1725
      %s1742 = scalar_lea.vmem %s6, 896
      %v1743 = vld [vmem:[%s1742] sm:$0xff]
      %v1744 = vld [vmem:[%s1742 + $0x8] sm:$0xff]
      %v1745 = vld [vmem:[%s1742 + $0x10] sm:$0xff]
      %v1746 = vld [vmem:[%s1742 + $0x18] sm:$0xff]
      %v1747 = vld [vmem:[%s1742 + $0x20] sm:$0xff]
      %v1748 = vld [vmem:[%s1742 + $0x28] sm:$0xff]
      %v1749 = vld [vmem:[%s1742 + $0x30] sm:$0xff]
      %v1750 = vld [vmem:[%s1742 + $0x38] sm:$0xff]
      %v1751 = vld [vmem:[%s1742 + $0x40] sm:$0xff]
      %v1752 = vld [vmem:[%s1742 + $0x48] sm:$0xff]
      %v1753 = vld [vmem:[%s1742 + $0x50] sm:$0xff]
      %v1754 = vld [vmem:[%s1742 + $0x58] sm:$0xff]
      %v1755 = vld [vmem:[%s1742 + $0x60] sm:$0xff]
      %v1756 = vld [vmem:[%s1742 + $0x68] sm:$0xff]
      %v1757 = vld [vmem:[%s1742 + $0x70] sm:$0xff]
      %v1758 = vld [vmem:[%s1742 + $0x78] sm:$0xff]
      %v1759 = vmul.f32 %v1333, %v1743
      %v1760 = vmul.f32 %v1348, %v1744
      %v1761 = vmul.f32 %v1347, %v1745
      %v1762 = vmul.f32 %v1346, %v1746
      %v1763 = vmul.f32 %v1345, %v1747
      %v1764 = vmul.f32 %v1344, %v1748
      %v1765 = vmul.f32 %v1343, %v1749
      %v1766 = vmul.f32 %v1342, %v1750
      %v1767 = vmul.f32 %v1341, %v1751
      %v1768 = vmul.f32 %v1340, %v1752
      %v1769 = vmul.f32 %v1339, %v1753
      %v1770 = vmul.f32 %v1338, %v1754
      %v1771 = vmul.f32 %v1337, %v1755
      %v1772 = vmul.f32 %v1336, %v1756
      %v1773 = vmul.f32 %v1335, %v1757
      %v1774 = vmul.f32 %v1334, %v1758
      %v1775 = vadd.f32 %v1726, %v1759
      %v1776 = vadd.f32 %v1727, %v1760
      %v1777 = vadd.f32 %v1728, %v1761
      %v1778 = vadd.f32 %v1729, %v1762
      %v1779 = vadd.f32 %v1730, %v1763
      %v1780 = vadd.f32 %v1731, %v1764
      %v1781 = vadd.f32 %v1732, %v1765
      %v1782 = vadd.f32 %v1733, %v1766
      %v1783 = vadd.f32 %v1734, %v1767
      %v1784 = vadd.f32 %v1735, %v1768
      %v1785 = vadd.f32 %v1736, %v1769
      %v1786 = vadd.f32 %v1737, %v1770
      %v1787 = vadd.f32 %v1738, %v1771
      %v1788 = vadd.f32 %v1739, %v1772
      %v1789 = vadd.f32 %v1740, %v1773
      %v1790 = vadd.f32 %v1741, %v1774
      %s1791 = scalar_lea.vmem %s6, 1024
      %v1792 = vld [vmem:[%s1791] sm:$0xff]
      %v1793 = vld [vmem:[%s1791 + $0x8] sm:$0xff]
      %v1794 = vld [vmem:[%s1791 + $0x10] sm:$0xff]
      %v1795 = vld [vmem:[%s1791 + $0x18] sm:$0xff]
      %v1796 = vld [vmem:[%s1791 + $0x20] sm:$0xff]
      %v1797 = vld [vmem:[%s1791 + $0x28] sm:$0xff]
      %v1798 = vld [vmem:[%s1791 + $0x30] sm:$0xff]
      %v1799 = vld [vmem:[%s1791 + $0x38] sm:$0xff]
      %v1800 = vld [vmem:[%s1791 + $0x40] sm:$0xff]
      %v1801 = vld [vmem:[%s1791 + $0x48] sm:$0xff]
      %v1802 = vld [vmem:[%s1791 + $0x50] sm:$0xff]
      %v1803 = vld [vmem:[%s1791 + $0x58] sm:$0xff]
      %v1804 = vld [vmem:[%s1791 + $0x60] sm:$0xff]
      %v1805 = vld [vmem:[%s1791 + $0x68] sm:$0xff]
      %v1806 = vld [vmem:[%s1791 + $0x70] sm:$0xff]
      %v1807 = vld [vmem:[%s1791 + $0x78] sm:$0xff]
      %v1808 = vmul.f32 %v1415, %v1792
      %v1809 = vmul.f32 %v1430, %v1793
      %v1810 = vmul.f32 %v1429, %v1794
      %v1811 = vmul.f32 %v1428, %v1795
      %v1812 = vmul.f32 %v1427, %v1796
      %v1813 = vmul.f32 %v1426, %v1797
      %v1814 = vmul.f32 %v1425, %v1798
      %v1815 = vmul.f32 %v1424, %v1799
      %v1816 = vmul.f32 %v1423, %v1800
      %v1817 = vmul.f32 %v1422, %v1801
      %v1818 = vmul.f32 %v1421, %v1802
      %v1819 = vmul.f32 %v1420, %v1803
      %v1820 = vmul.f32 %v1419, %v1804
      %v1821 = vmul.f32 %v1418, %v1805
      %v1822 = vmul.f32 %v1417, %v1806
      %v1823 = vmul.f32 %v1416, %v1807
      %v1824 = vadd.f32 %v1775, %v1808
      %v1825 = vadd.f32 %v1776, %v1809
      %v1826 = vadd.f32 %v1777, %v1810
      %v1827 = vadd.f32 %v1778, %v1811
      %v1828 = vadd.f32 %v1779, %v1812
      %v1829 = vadd.f32 %v1780, %v1813
      %v1830 = vadd.f32 %v1781, %v1814
      %v1831 = vadd.f32 %v1782, %v1815
      %v1832 = vadd.f32 %v1783, %v1816
      %v1833 = vadd.f32 %v1784, %v1817
      %v1834 = vadd.f32 %v1785, %v1818
      %v1835 = vadd.f32 %v1786, %v1819
      %v1836 = vadd.f32 %v1787, %v1820
      %v1837 = vadd.f32 %v1788, %v1821
      %v1838 = vadd.f32 %v1789, %v1822
      %v1839 = vadd.f32 %v1790, %v1823
      %s1840 = scalar_lea.vmem %s6, 1152
      %v1841 = vld [vmem:[%s1840] sm:$0xff]
      %v1842 = vld [vmem:[%s1840 + $0x8] sm:$0xff]
      %v1843 = vld [vmem:[%s1840 + $0x10] sm:$0xff]
      %v1844 = vld [vmem:[%s1840 + $0x18] sm:$0xff]
      %v1845 = vld [vmem:[%s1840 + $0x20] sm:$0xff]
      %v1846 = vld [vmem:[%s1840 + $0x28] sm:$0xff]
      %v1847 = vld [vmem:[%s1840 + $0x30] sm:$0xff]
      %v1848 = vld [vmem:[%s1840 + $0x38] sm:$0xff]
      %v1849 = vld [vmem:[%s1840 + $0x40] sm:$0xff]
      %v1850 = vld [vmem:[%s1840 + $0x48] sm:$0xff]
      %v1851 = vld [vmem:[%s1840 + $0x50] sm:$0xff]
      %v1852 = vld [vmem:[%s1840 + $0x58] sm:$0xff]
      %v1853 = vld [vmem:[%s1840 + $0x60] sm:$0xff]
      %v1854 = vld [vmem:[%s1840 + $0x68] sm:$0xff]
      %v1855 = vld [vmem:[%s1840 + $0x70] sm:$0xff]
      %v1856 = vld [vmem:[%s1840 + $0x78] sm:$0xff]
      %v1857 = vmul.f32 %v1267, %v1841
      %v1858 = vmul.f32 %v1266, %v1842
      %v1859 = vmul.f32 %v1265, %v1843
      %v1860 = vmul.f32 %v1264, %v1844
      %v1861 = vmul.f32 %v1263, %v1845
      %v1862 = vmul.f32 %v1262, %v1846
      %v1863 = vmul.f32 %v1261, %v1847
      %v1864 = vmul.f32 %v1260, %v1848
      %v1865 = vmul.f32 %v1259, %v1849
      %v1866 = vmul.f32 %v1258, %v1850
      %v1867 = vmul.f32 %v1257, %v1851
      %v1868 = vmul.f32 %v1256, %v1852
      %v1869 = vmul.f32 %v1255, %v1853
      %v1870 = vmul.f32 %v1254, %v1854
      %v1871 = vmul.f32 %v1253, %v1855
      %v1872 = vmul.f32 %v1252, %v1856
      %v1873 = vadd.f32 %v1824, %v1857
      %v1874 = vadd.f32 %v1825, %v1858
      %v1875 = vadd.f32 %v1826, %v1859
      %v1876 = vadd.f32 %v1827, %v1860
      %v1877 = vadd.f32 %v1828, %v1861
      %v1878 = vadd.f32 %v1829, %v1862
      %v1879 = vadd.f32 %v1830, %v1863
      %v1880 = vadd.f32 %v1831, %v1864
      %v1881 = vadd.f32 %v1832, %v1865
      %v1882 = vadd.f32 %v1833, %v1866
      %v1883 = vadd.f32 %v1834, %v1867
      %v1884 = vadd.f32 %v1835, %v1868
      %v1885 = vadd.f32 %v1836, %v1869
      %v1886 = vadd.f32 %v1837, %v1870
      %v1887 = vadd.f32 %v1838, %v1871
      %v1888 = vadd.f32 %v1839, %v1872
      %s1889 = scalar_lea.vmem %s6, 1280
      %v1890 = vld [vmem:[%s1889] sm:$0xff]
      %v1891 = vld [vmem:[%s1889 + $0x8] sm:$0xff]
      %v1892 = vld [vmem:[%s1889 + $0x10] sm:$0xff]
      %v1893 = vld [vmem:[%s1889 + $0x18] sm:$0xff]
      %v1894 = vld [vmem:[%s1889 + $0x20] sm:$0xff]
      %v1895 = vld [vmem:[%s1889 + $0x28] sm:$0xff]
      %v1896 = vld [vmem:[%s1889 + $0x30] sm:$0xff]
      %v1897 = vld [vmem:[%s1889 + $0x38] sm:$0xff]
      %v1898 = vld [vmem:[%s1889 + $0x40] sm:$0xff]
      %v1899 = vld [vmem:[%s1889 + $0x48] sm:$0xff]
      %v1900 = vld [vmem:[%s1889 + $0x50] sm:$0xff]
      %v1901 = vld [vmem:[%s1889 + $0x58] sm:$0xff]
      %v1902 = vld [vmem:[%s1889 + $0x60] sm:$0xff]
      %v1903 = vld [vmem:[%s1889 + $0x68] sm:$0xff]
      %v1904 = vld [vmem:[%s1889 + $0x70] sm:$0xff]
      %v1905 = vld [vmem:[%s1889 + $0x78] sm:$0xff]
      %v1906 = vmul.f32 %v1348, %v1890
      %v1907 = vmul.f32 %v1347, %v1891
      %v1908 = vmul.f32 %v1346, %v1892
      %v1909 = vmul.f32 %v1345, %v1893
      %v1910 = vmul.f32 %v1344, %v1894
      %v1911 = vmul.f32 %v1343, %v1895
      %v1912 = vmul.f32 %v1342, %v1896
      %v1913 = vmul.f32 %v1341, %v1897
      %v1914 = vmul.f32 %v1340, %v1898
      %v1915 = vmul.f32 %v1339, %v1899
      %v1916 = vmul.f32 %v1338, %v1900
      %v1917 = vmul.f32 %v1337, %v1901
      %v1918 = vmul.f32 %v1336, %v1902
      %v1919 = vmul.f32 %v1335, %v1903
      %v1920 = vmul.f32 %v1334, %v1904
      %v1921 = vmul.f32 %v1333, %v1905
      %v1922 = vadd.f32 %v1873, %v1906
      %v1923 = vadd.f32 %v1874, %v1907
      %v1924 = vadd.f32 %v1875, %v1908
      %v1925 = vadd.f32 %v1876, %v1909
      %v1926 = vadd.f32 %v1877, %v1910
      %v1927 = vadd.f32 %v1878, %v1911
      %v1928 = vadd.f32 %v1879, %v1912
      %v1929 = vadd.f32 %v1880, %v1913
      %v1930 = vadd.f32 %v1881, %v1914
      %v1931 = vadd.f32 %v1882, %v1915
      %v1932 = vadd.f32 %v1883, %v1916
      %v1933 = vadd.f32 %v1884, %v1917
      %v1934 = vadd.f32 %v1885, %v1918
      %v1935 = vadd.f32 %v1886, %v1919
      %v1936 = vadd.f32 %v1887, %v1920
      %v1937 = vadd.f32 %v1888, %v1921
      %s1938 = scalar_lea.vmem %s6, 1408
      %v1939 = vld [vmem:[%s1938] sm:$0xff]
      %v1940 = vld [vmem:[%s1938 + $0x8] sm:$0xff]
      %v1941 = vld [vmem:[%s1938 + $0x10] sm:$0xff]
      %v1942 = vld [vmem:[%s1938 + $0x18] sm:$0xff]
      %v1943 = vld [vmem:[%s1938 + $0x20] sm:$0xff]
      %v1944 = vld [vmem:[%s1938 + $0x28] sm:$0xff]
      %v1945 = vld [vmem:[%s1938 + $0x30] sm:$0xff]
      %v1946 = vld [vmem:[%s1938 + $0x38] sm:$0xff]
      %v1947 = vld [vmem:[%s1938 + $0x40] sm:$0xff]
      %v1948 = vld [vmem:[%s1938 + $0x48] sm:$0xff]
      %v1949 = vld [vmem:[%s1938 + $0x50] sm:$0xff]
      %v1950 = vld [vmem:[%s1938 + $0x58] sm:$0xff]
      %v1951 = vld [vmem:[%s1938 + $0x60] sm:$0xff]
      %v1952 = vld [vmem:[%s1938 + $0x68] sm:$0xff]
      %v1953 = vld [vmem:[%s1938 + $0x70] sm:$0xff]
      %v1954 = vld [vmem:[%s1938 + $0x78] sm:$0xff]
      %v1955 = vmul.f32 %v1430, %v1939
      %v1956 = vmul.f32 %v1429, %v1940
      %v1957 = vmul.f32 %v1428, %v1941
      %v1958 = vmul.f32 %v1427, %v1942
      %v1959 = vmul.f32 %v1426, %v1943
      %v1960 = vmul.f32 %v1425, %v1944
      %v1961 = vmul.f32 %v1424, %v1945
      %v1962 = vmul.f32 %v1423, %v1946
      %v1963 = vmul.f32 %v1422, %v1947
      %v1964 = vmul.f32 %v1421, %v1948
      %v1965 = vmul.f32 %v1420, %v1949
      %v1966 = vmul.f32 %v1419, %v1950
      %v1967 = vmul.f32 %v1418, %v1951
      %v1968 = vmul.f32 %v1417, %v1952
      %v1969 = vmul.f32 %v1416, %v1953
      %v1970 = vmul.f32 %v1415, %v1954
      %v1971 = vadd.f32 %v1922, %v1955
      %v1972 = vadd.f32 %v1923, %v1956
      %v1973 = vadd.f32 %v1924, %v1957
      %v1974 = vadd.f32 %v1925, %v1958
      %v1975 = vadd.f32 %v1926, %v1959
      %v1976 = vadd.f32 %v1927, %v1960
      %v1977 = vadd.f32 %v1928, %v1961
      %v1978 = vadd.f32 %v1929, %v1962
      %v1979 = vadd.f32 %v1930, %v1963
      %v1980 = vadd.f32 %v1931, %v1964
      %v1981 = vadd.f32 %v1932, %v1965
      %v1982 = vadd.f32 %v1933, %v1966
      %v1983 = vadd.f32 %v1934, %v1967
      %v1984 = vadd.f32 %v1935, %v1968
      %v1985 = vadd.f32 %v1936, %v1969
      %v1986 = vadd.f32 %v1937, %v1970
      %s1987 = scalar_lea.vmem %s6, 1536
      %v1988 = vld [vmem:[%s1987] sm:$0xff]
      %v1989 = vld [vmem:[%s1987 + $0x8] sm:$0xff]
      %v1990 = vld [vmem:[%s1987 + $0x10] sm:$0xff]
      %v1991 = vld [vmem:[%s1987 + $0x18] sm:$0xff]
      %v1992 = vld [vmem:[%s1987 + $0x20] sm:$0xff]
      %v1993 = vld [vmem:[%s1987 + $0x28] sm:$0xff]
      %v1994 = vld [vmem:[%s1987 + $0x30] sm:$0xff]
      %v1995 = vld [vmem:[%s1987 + $0x38] sm:$0xff]
      %v1996 = vld [vmem:[%s1987 + $0x40] sm:$0xff]
      %v1997 = vld [vmem:[%s1987 + $0x48] sm:$0xff]
      %v1998 = vld [vmem:[%s1987 + $0x50] sm:$0xff]
      %v1999 = vld [vmem:[%s1987 + $0x58] sm:$0xff]
      %v2000 = vld [vmem:[%s1987 + $0x60] sm:$0xff]
      %v2001 = vld [vmem:[%s1987 + $0x68] sm:$0xff]
      %v2002 = vld [vmem:[%s1987 + $0x70] sm:$0xff]
      %v2003 = vld [vmem:[%s1987 + $0x78] sm:$0xff]
      %v2004 = vmul.f32 %v1512, %v1988
      %v2005 = vmul.f32 %v1511, %v1989
      %v2006 = vmul.f32 %v1510, %v1990
      %v2007 = vmul.f32 %v1509, %v1991
      %v2008 = vmul.f32 %v1508, %v1992
      %v2009 = vmul.f32 %v1507, %v1993
      %v2010 = vmul.f32 %v1506, %v1994
      %v2011 = vmul.f32 %v1505, %v1995
      %v2012 = vmul.f32 %v1504, %v1996
      %v2013 = vmul.f32 %v1503, %v1997
      %v2014 = vmul.f32 %v1502, %v1998
      %v2015 = vmul.f32 %v1501, %v1999
      %v2016 = vmul.f32 %v1500, %v2000
      %v2017 = vmul.f32 %v1499, %v2001
      %v2018 = vmul.f32 %v1498, %v2002
      %v2019 = vmul.f32 %v1497, %v2003
      %v2020 = vadd.f32 %v1971, %v2004
      %v2021 = vadd.f32 %v1972, %v2005
      %v2022 = vadd.f32 %v1973, %v2006
      %v2023 = vadd.f32 %v1974, %v2007
      %v2024 = vadd.f32 %v1975, %v2008
      %v2025 = vadd.f32 %v1976, %v2009
      %v2026 = vadd.f32 %v1977, %v2010
      %v2027 = vadd.f32 %v1978, %v2011
      %v2028 = vadd.f32 %v1979, %v2012
      %v2029 = vadd.f32 %v1980, %v2013
      %v2030 = vadd.f32 %v1981, %v2014
      %v2031 = vadd.f32 %v1982, %v2015
      %v2032 = vadd.f32 %v1983, %v2016
      %v2033 = vadd.f32 %v1984, %v2017
      %v2034 = vadd.f32 %v1985, %v2018
      %v2035 = vadd.f32 %v1986, %v2019
      %s2036 = scalar_lea.vmem %s6, 1664
      %v2037 = vld [vmem:[%s2036] sm:$0xff]
      %v2038 = vld [vmem:[%s2036 + $0x8] sm:$0xff]
      %v2039 = vld [vmem:[%s2036 + $0x10] sm:$0xff]
      %v2040 = vld [vmem:[%s2036 + $0x18] sm:$0xff]
      %v2041 = vld [vmem:[%s2036 + $0x20] sm:$0xff]
      %v2042 = vld [vmem:[%s2036 + $0x28] sm:$0xff]
      %v2043 = vld [vmem:[%s2036 + $0x30] sm:$0xff]
      %v2044 = vld [vmem:[%s2036 + $0x38] sm:$0xff]
      %v2045 = vld [vmem:[%s2036 + $0x40] sm:$0xff]
      %v2046 = vld [vmem:[%s2036 + $0x48] sm:$0xff]
      %v2047 = vld [vmem:[%s2036 + $0x50] sm:$0xff]
      %v2048 = vld [vmem:[%s2036 + $0x58] sm:$0xff]
      %v2049 = vld [vmem:[%s2036 + $0x60] sm:$0xff]
      %v2050 = vld [vmem:[%s2036 + $0x68] sm:$0xff]
      %v2051 = vld [vmem:[%s2036 + $0x70] sm:$0xff]
      %v2052 = vld [vmem:[%s2036 + $0x78] sm:$0xff]
      %v2053 = vmul.f32 %v1163, %v2037
      %v2054 = vmul.f32 %v1166, %v2038
      %v2055 = vmul.f32 %v1171, %v2039
      %v2056 = vmul.f32 %v1174, %v2040
      %v2057 = vmul.f32 %v1179, %v2041
      %v2058 = vmul.f32 %v1182, %v2042
      %v2059 = vmul.f32 %v1187, %v2043
      %v2060 = vmul.f32 %v1190, %v2044
      %v2061 = vmul.f32 %v1195, %v2045
      %v2062 = vmul.f32 %v1198, %v2046
      %v2063 = vmul.f32 %v1203, %v2047
      %v2064 = vmul.f32 %v1206, %v2048
      %v2065 = vmul.f32 %v1211, %v2049
      %v2066 = vmul.f32 %v1214, %v2050
      %v2067 = vmul.f32 %v1219, %v2051
      %v2068 = vmul.f32 %v1222, %v2052
      %v2069 = vadd.f32 %v2020, %v2053
      %v2070 = vadd.f32 %v2021, %v2054
      %v2071 = vadd.f32 %v2022, %v2055
      %v2072 = vadd.f32 %v2023, %v2056
      %v2073 = vadd.f32 %v2024, %v2057
      %v2074 = vadd.f32 %v2025, %v2058
      %v2075 = vadd.f32 %v2026, %v2059
      %v2076 = vadd.f32 %v2027, %v2060
      %v2077 = vadd.f32 %v2028, %v2061
      %v2078 = vadd.f32 %v2029, %v2062
      %v2079 = vadd.f32 %v2030, %v2063
      %v2080 = vadd.f32 %v2031, %v2064
      %v2081 = vadd.f32 %v2032, %v2065
      %v2082 = vadd.f32 %v2033, %v2066
      %v2083 = vadd.f32 %v2034, %v2067
      %v2084 = vadd.f32 %v2035, %v2068
      %s2085 = scalar_lea.vmem %s6, 1792
      %v2086 = vld [vmem:[%s2085] sm:$0xff]
      %v2087 = vld [vmem:[%s2085 + $0x8] sm:$0xff]
      %v2088 = vld [vmem:[%s2085 + $0x10] sm:$0xff]
      %v2089 = vld [vmem:[%s2085 + $0x18] sm:$0xff]
      %v2090 = vld [vmem:[%s2085 + $0x20] sm:$0xff]
      %v2091 = vld [vmem:[%s2085 + $0x28] sm:$0xff]
      %v2092 = vld [vmem:[%s2085 + $0x30] sm:$0xff]
      %v2093 = vld [vmem:[%s2085 + $0x38] sm:$0xff]
      %v2094 = vld [vmem:[%s2085 + $0x40] sm:$0xff]
      %v2095 = vld [vmem:[%s2085 + $0x48] sm:$0xff]
      %v2096 = vld [vmem:[%s2085 + $0x50] sm:$0xff]
      %v2097 = vld [vmem:[%s2085 + $0x58] sm:$0xff]
      %v2098 = vld [vmem:[%s2085 + $0x60] sm:$0xff]
      %v2099 = vld [vmem:[%s2085 + $0x68] sm:$0xff]
      %v2100 = vld [vmem:[%s2085 + $0x70] sm:$0xff]
      %v2101 = vld [vmem:[%s2085 + $0x78] sm:$0xff]
      %v2102 = vmul.f32 %v1642, %v2086
      %v2103 = vmul.f32 %v1641, %v2087
      %v2104 = vmul.f32 %v1640, %v2088
      %v2105 = vmul.f32 %v1639, %v2089
      %v2106 = vmul.f32 %v1638, %v2090
      %v2107 = vmul.f32 %v1637, %v2091
      %v2108 = vmul.f32 %v1636, %v2092
      %v2109 = vmul.f32 %v1635, %v2093
      %v2110 = vmul.f32 %v1634, %v2094
      %v2111 = vmul.f32 %v1633, %v2095
      %v2112 = vmul.f32 %v1632, %v2096
      %v2113 = vmul.f32 %v1631, %v2097
      %v2114 = vmul.f32 %v1630, %v2098
      %v2115 = vmul.f32 %v1629, %v2099
      %v2116 = vmul.f32 %v1628, %v2100
      %v2117 = vmul.f32 %v1643, %v2101
      %v2118 = vadd.f32 %v2069, %v2102
      %v2119 = vadd.f32 %v2070, %v2103
      %v2120 = vadd.f32 %v2071, %v2104
      %v2121 = vadd.f32 %v2072, %v2105
      %v2122 = vadd.f32 %v2073, %v2106
      %v2123 = vadd.f32 %v2074, %v2107
      %v2124 = vadd.f32 %v2075, %v2108
      %v2125 = vadd.f32 %v2076, %v2109
      %v2126 = vadd.f32 %v2077, %v2110
      %v2127 = vadd.f32 %v2078, %v2111
      %v2128 = vadd.f32 %v2079, %v2112
      %v2129 = vadd.f32 %v2080, %v2113
      %v2130 = vadd.f32 %v2081, %v2114
      %v2131 = vadd.f32 %v2082, %v2115
      %v2132 = vadd.f32 %v2083, %v2116
      %v2133 = vadd.f32 %v2084, %v2117
      %s2134 = scalar_lea.vmem %s6, 1920
      %v2135 = vld [vmem:[%s2134] sm:$0xff]
      %v2136 = vld [vmem:[%s2134 + $0x8] sm:$0xff]
      %v2137 = vld [vmem:[%s2134 + $0x10] sm:$0xff]
      %v2138 = vld [vmem:[%s2134 + $0x18] sm:$0xff]
      %v2139 = vld [vmem:[%s2134 + $0x20] sm:$0xff]
      %v2140 = vld [vmem:[%s2134 + $0x28] sm:$0xff]
      %v2141 = vld [vmem:[%s2134 + $0x30] sm:$0xff]
      %v2142 = vld [vmem:[%s2134 + $0x38] sm:$0xff]
      %v2143 = vld [vmem:[%s2134 + $0x40] sm:$0xff]
      %v2144 = vld [vmem:[%s2134 + $0x48] sm:$0xff]
      %v2145 = vld [vmem:[%s2134 + $0x50] sm:$0xff]
      %v2146 = vld [vmem:[%s2134 + $0x58] sm:$0xff]
      %v2147 = vld [vmem:[%s2134 + $0x60] sm:$0xff]
      %v2148 = vld [vmem:[%s2134 + $0x68] sm:$0xff]
      %v2149 = vld [vmem:[%s2134 + $0x70] sm:$0xff]
      %v2150 = vld [vmem:[%s2134 + $0x78] sm:$0xff]
      %v2151 = vmul.f32 %v1266, %v2135
      %v2152 = vmul.f32 %v1265, %v2136
      %v2153 = vmul.f32 %v1264, %v2137
      %v2154 = vmul.f32 %v1263, %v2138
      %v2155 = vmul.f32 %v1262, %v2139
      %v2156 = vmul.f32 %v1261, %v2140
      %v2157 = vmul.f32 %v1260, %v2141
      %v2158 = vmul.f32 %v1259, %v2142
      %v2159 = vmul.f32 %v1258, %v2143
      %v2160 = vmul.f32 %v1257, %v2144
      %v2161 = vmul.f32 %v1256, %v2145
      %v2162 = vmul.f32 %v1255, %v2146
      %v2163 = vmul.f32 %v1254, %v2147
      %v2164 = vmul.f32 %v1253, %v2148
      %v2165 = vmul.f32 %v1252, %v2149
      %v2166 = vmul.f32 %v1267, %v2150
      %v2167 = vadd.f32 %v2118, %v2151
      %v2168 = vadd.f32 %v2119, %v2152
      %v2169 = vadd.f32 %v2120, %v2153
      %v2170 = vadd.f32 %v2121, %v2154
      %v2171 = vadd.f32 %v2122, %v2155
      %v2172 = vadd.f32 %v2123, %v2156
      %v2173 = vadd.f32 %v2124, %v2157
      %v2174 = vadd.f32 %v2125, %v2158
      %v2175 = vadd.f32 %v2126, %v2159
      %v2176 = vadd.f32 %v2127, %v2160
      %v2177 = vadd.f32 %v2128, %v2161
      %v2178 = vadd.f32 %v2129, %v2162
      %v2179 = vadd.f32 %v2130, %v2163
      %v2180 = vadd.f32 %v2131, %v2164
      %v2181 = vadd.f32 %v2132, %v2165
      %v2182 = vadd.f32 %v2133, %v2166
      %s2183 = scalar_lea.vmem %s6, 2048
      %v2184 = vld [vmem:[%s2183] sm:$0xff]
      %v2185 = vld [vmem:[%s2183 + $0x8] sm:$0xff]
      %v2186 = vld [vmem:[%s2183 + $0x10] sm:$0xff]
      %v2187 = vld [vmem:[%s2183 + $0x18] sm:$0xff]
      %v2188 = vld [vmem:[%s2183 + $0x20] sm:$0xff]
      %v2189 = vld [vmem:[%s2183 + $0x28] sm:$0xff]
      %v2190 = vld [vmem:[%s2183 + $0x30] sm:$0xff]
      %v2191 = vld [vmem:[%s2183 + $0x38] sm:$0xff]
      %v2192 = vld [vmem:[%s2183 + $0x40] sm:$0xff]
      %v2193 = vld [vmem:[%s2183 + $0x48] sm:$0xff]
      %v2194 = vld [vmem:[%s2183 + $0x50] sm:$0xff]
      %v2195 = vld [vmem:[%s2183 + $0x58] sm:$0xff]
      %v2196 = vld [vmem:[%s2183 + $0x60] sm:$0xff]
      %v2197 = vld [vmem:[%s2183 + $0x68] sm:$0xff]
      %v2198 = vld [vmem:[%s2183 + $0x70] sm:$0xff]
      %v2199 = vld [vmem:[%s2183 + $0x78] sm:$0xff]
      %v2200 = vmul.f32 %v1347, %v2184
      %v2201 = vmul.f32 %v1346, %v2185
      %v2202 = vmul.f32 %v1345, %v2186
      %v2203 = vmul.f32 %v1344, %v2187
      %v2204 = vmul.f32 %v1343, %v2188
      %v2205 = vmul.f32 %v1342, %v2189
      %v2206 = vmul.f32 %v1341, %v2190
      %v2207 = vmul.f32 %v1340, %v2191
      %v2208 = vmul.f32 %v1339, %v2192
      %v2209 = vmul.f32 %v1338, %v2193
      %v2210 = vmul.f32 %v1337, %v2194
      %v2211 = vmul.f32 %v1336, %v2195
      %v2212 = vmul.f32 %v1335, %v2196
      %v2213 = vmul.f32 %v1334, %v2197
      %v2214 = vmul.f32 %v1333, %v2198
      %v2215 = vmul.f32 %v1348, %v2199
      %v2216 = vadd.f32 %v2167, %v2200
      %v2217 = vadd.f32 %v2168, %v2201
      %v2218 = vadd.f32 %v2169, %v2202
      %v2219 = vadd.f32 %v2170, %v2203
      %v2220 = vadd.f32 %v2171, %v2204
      %v2221 = vadd.f32 %v2172, %v2205
      %v2222 = vadd.f32 %v2173, %v2206
      %v2223 = vadd.f32 %v2174, %v2207
      %v2224 = vadd.f32 %v2175, %v2208
      %v2225 = vadd.f32 %v2176, %v2209
      %v2226 = vadd.f32 %v2177, %v2210
      %v2227 = vadd.f32 %v2178, %v2211
      %v2228 = vadd.f32 %v2179, %v2212
      %v2229 = vadd.f32 %v2180, %v2213
      %v2230 = vadd.f32 %v2181, %v2214
      %v2231 = vadd.f32 %v2182, %v2215
      %s2232 = scalar_lea.vmem %s6, 2176
      %v2233 = vld [vmem:[%s2232] sm:$0xff]
      %v2234 = vld [vmem:[%s2232 + $0x8] sm:$0xff]
      %v2235 = vld [vmem:[%s2232 + $0x10] sm:$0xff]
      %v2236 = vld [vmem:[%s2232 + $0x18] sm:$0xff]
      %v2237 = vld [vmem:[%s2232 + $0x20] sm:$0xff]
      %v2238 = vld [vmem:[%s2232 + $0x28] sm:$0xff]
      %v2239 = vld [vmem:[%s2232 + $0x30] sm:$0xff]
      %v2240 = vld [vmem:[%s2232 + $0x38] sm:$0xff]
      %v2241 = vld [vmem:[%s2232 + $0x40] sm:$0xff]
      %v2242 = vld [vmem:[%s2232 + $0x48] sm:$0xff]
      %v2243 = vld [vmem:[%s2232 + $0x50] sm:$0xff]
      %v2244 = vld [vmem:[%s2232 + $0x58] sm:$0xff]
      %v2245 = vld [vmem:[%s2232 + $0x60] sm:$0xff]
      %v2246 = vld [vmem:[%s2232 + $0x68] sm:$0xff]
      %v2247 = vld [vmem:[%s2232 + $0x70] sm:$0xff]
      %v2248 = vld [vmem:[%s2232 + $0x78] sm:$0xff]
      %v2249 = vmul.f32 %v1429, %v2233
      %v2250 = vmul.f32 %v1428, %v2234
      %v2251 = vmul.f32 %v1427, %v2235
      %v2252 = vmul.f32 %v1426, %v2236
      %v2253 = vmul.f32 %v1425, %v2237
      %v2254 = vmul.f32 %v1424, %v2238
      %v2255 = vmul.f32 %v1423, %v2239
      %v2256 = vmul.f32 %v1422, %v2240
      %v2257 = vmul.f32 %v1421, %v2241
      %v2258 = vmul.f32 %v1420, %v2242
      %v2259 = vmul.f32 %v1419, %v2243
      %v2260 = vmul.f32 %v1418, %v2244
      %v2261 = vmul.f32 %v1417, %v2245
      %v2262 = vmul.f32 %v1416, %v2246
      %v2263 = vmul.f32 %v1415, %v2247
      %v2264 = vmul.f32 %v1430, %v2248
      %v2265 = vadd.f32 %v2216, %v2249
      %v2266 = vadd.f32 %v2217, %v2250
      %v2267 = vadd.f32 %v2218, %v2251
      %v2268 = vadd.f32 %v2219, %v2252
      %v2269 = vadd.f32 %v2220, %v2253
      %v2270 = vadd.f32 %v2221, %v2254
      %v2271 = vadd.f32 %v2222, %v2255
      %v2272 = vadd.f32 %v2223, %v2256
      %v2273 = vadd.f32 %v2224, %v2257
      %v2274 = vadd.f32 %v2225, %v2258
      %v2275 = vadd.f32 %v2226, %v2259
      %v2276 = vadd.f32 %v2227, %v2260
      %v2277 = vadd.f32 %v2228, %v2261
      %v2278 = vadd.f32 %v2229, %v2262
      %v2279 = vadd.f32 %v2230, %v2263
      %v2280 = vadd.f32 %v2231, %v2264
      %s2281 = scalar_lea.vmem %s6, 2304
      %v2282 = vld [vmem:[%s2281] sm:$0xff]
      %v2283 = vld [vmem:[%s2281 + $0x8] sm:$0xff]
      %v2284 = vld [vmem:[%s2281 + $0x10] sm:$0xff]
      %v2285 = vld [vmem:[%s2281 + $0x18] sm:$0xff]
      %v2286 = vld [vmem:[%s2281 + $0x20] sm:$0xff]
      %v2287 = vld [vmem:[%s2281 + $0x28] sm:$0xff]
      %v2288 = vld [vmem:[%s2281 + $0x30] sm:$0xff]
      %v2289 = vld [vmem:[%s2281 + $0x38] sm:$0xff]
      %v2290 = vld [vmem:[%s2281 + $0x40] sm:$0xff]
      %v2291 = vld [vmem:[%s2281 + $0x48] sm:$0xff]
      %v2292 = vld [vmem:[%s2281 + $0x50] sm:$0xff]
      %v2293 = vld [vmem:[%s2281 + $0x58] sm:$0xff]
      %v2294 = vld [vmem:[%s2281 + $0x60] sm:$0xff]
      %v2295 = vld [vmem:[%s2281 + $0x68] sm:$0xff]
      %v2296 = vld [vmem:[%s2281 + $0x70] sm:$0xff]
      %v2297 = vld [vmem:[%s2281 + $0x78] sm:$0xff]
      %v2298 = vmul.f32 %v1265, %v2282
      %v2299 = vmul.f32 %v1264, %v2283
      %v2300 = vmul.f32 %v1263, %v2284
      %v2301 = vmul.f32 %v1262, %v2285
      %v2302 = vmul.f32 %v1261, %v2286
      %v2303 = vmul.f32 %v1260, %v2287
      %v2304 = vmul.f32 %v1259, %v2288
      %v2305 = vmul.f32 %v1258, %v2289
      %v2306 = vmul.f32 %v1257, %v2290
      %v2307 = vmul.f32 %v1256, %v2291
      %v2308 = vmul.f32 %v1255, %v2292
      %v2309 = vmul.f32 %v1254, %v2293
      %v2310 = vmul.f32 %v1253, %v2294
      %v2311 = vmul.f32 %v1252, %v2295
      %v2312 = vmul.f32 %v1267, %v2296
      %v2313 = vmul.f32 %v1266, %v2297
      %v2314 = vadd.f32 %v2265, %v2298
      %v2315 = vadd.f32 %v2266, %v2299
      %v2316 = vadd.f32 %v2267, %v2300
      %v2317 = vadd.f32 %v2268, %v2301
      %v2318 = vadd.f32 %v2269, %v2302
      %v2319 = vadd.f32 %v2270, %v2303
      %v2320 = vadd.f32 %v2271, %v2304
      %v2321 = vadd.f32 %v2272, %v2305
      %v2322 = vadd.f32 %v2273, %v2306
      %v2323 = vadd.f32 %v2274, %v2307
      %v2324 = vadd.f32 %v2275, %v2308
      %v2325 = vadd.f32 %v2276, %v2309
      %v2326 = vadd.f32 %v2277, %v2310
      %v2327 = vadd.f32 %v2278, %v2311
      %v2328 = vadd.f32 %v2279, %v2312
      %v2329 = vadd.f32 %v2280, %v2313
      %s2330 = scalar_lea.vmem %s6, 2432
      %v2331 = vld [vmem:[%s2330] sm:$0xff]
      %v2332 = vld [vmem:[%s2330 + $0x8] sm:$0xff]
      %v2333 = vld [vmem:[%s2330 + $0x10] sm:$0xff]
      %v2334 = vld [vmem:[%s2330 + $0x18] sm:$0xff]
      %v2335 = vld [vmem:[%s2330 + $0x20] sm:$0xff]
      %v2336 = vld [vmem:[%s2330 + $0x28] sm:$0xff]
      %v2337 = vld [vmem:[%s2330 + $0x30] sm:$0xff]
      %v2338 = vld [vmem:[%s2330 + $0x38] sm:$0xff]
      %v2339 = vld [vmem:[%s2330 + $0x40] sm:$0xff]
      %v2340 = vld [vmem:[%s2330 + $0x48] sm:$0xff]
      %v2341 = vld [vmem:[%s2330 + $0x50] sm:$0xff]
      %v2342 = vld [vmem:[%s2330 + $0x58] sm:$0xff]
      %v2343 = vld [vmem:[%s2330 + $0x60] sm:$0xff]
      %v2344 = vld [vmem:[%s2330 + $0x68] sm:$0xff]
      %v2345 = vld [vmem:[%s2330 + $0x70] sm:$0xff]
      %v2346 = vld [vmem:[%s2330 + $0x78] sm:$0xff]
      %v2347 = vmul.f32 %v1346, %v2331
      %v2348 = vmul.f32 %v1345, %v2332
      %v2349 = vmul.f32 %v1344, %v2333
      %v2350 = vmul.f32 %v1343, %v2334
      %v2351 = vmul.f32 %v1342, %v2335
      %v2352 = vmul.f32 %v1341, %v2336
      %v2353 = vmul.f32 %v1340, %v2337
      %v2354 = vmul.f32 %v1339, %v2338
      %v2355 = vmul.f32 %v1338, %v2339
      %v2356 = vmul.f32 %v1337, %v2340
      %v2357 = vmul.f32 %v1336, %v2341
      %v2358 = vmul.f32 %v1335, %v2342
      %v2359 = vmul.f32 %v1334, %v2343
      %v2360 = vmul.f32 %v1333, %v2344
      %v2361 = vmul.f32 %v1348, %v2345
      %v2362 = vmul.f32 %v1347, %v2346
      %v2363 = vadd.f32 %v2314, %v2347
      %v2364 = vadd.f32 %v2315, %v2348
      %v2365 = vadd.f32 %v2316, %v2349
      %v2366 = vadd.f32 %v2317, %v2350
      %v2367 = vadd.f32 %v2318, %v2351
      %v2368 = vadd.f32 %v2319, %v2352
      %v2369 = vadd.f32 %v2320, %v2353
      %v2370 = vadd.f32 %v2321, %v2354
      %v2371 = vadd.f32 %v2322, %v2355
      %v2372 = vadd.f32 %v2323, %v2356
      %v2373 = vadd.f32 %v2324, %v2357
      %v2374 = vadd.f32 %v2325, %v2358
      %v2375 = vadd.f32 %v2326, %v2359
      %v2376 = vadd.f32 %v2327, %v2360
      %v2377 = vadd.f32 %v2328, %v2361
      %v2378 = vadd.f32 %v2329, %v2362
      %s2379 = scalar_lea.vmem %s6, 2560
      %v2380 = vld [vmem:[%s2379] sm:$0xff]
      %v2381 = vld [vmem:[%s2379 + $0x8] sm:$0xff]
      %v2382 = vld [vmem:[%s2379 + $0x10] sm:$0xff]
      %v2383 = vld [vmem:[%s2379 + $0x18] sm:$0xff]
      %v2384 = vld [vmem:[%s2379 + $0x20] sm:$0xff]
      %v2385 = vld [vmem:[%s2379 + $0x28] sm:$0xff]
      %v2386 = vld [vmem:[%s2379 + $0x30] sm:$0xff]
      %v2387 = vld [vmem:[%s2379 + $0x38] sm:$0xff]
      %v2388 = vld [vmem:[%s2379 + $0x40] sm:$0xff]
      %v2389 = vld [vmem:[%s2379 + $0x48] sm:$0xff]
      %v2390 = vld [vmem:[%s2379 + $0x50] sm:$0xff]
      %v2391 = vld [vmem:[%s2379 + $0x58] sm:$0xff]
      %v2392 = vld [vmem:[%s2379 + $0x60] sm:$0xff]
      %v2393 = vld [vmem:[%s2379 + $0x68] sm:$0xff]
      %v2394 = vld [vmem:[%s2379 + $0x70] sm:$0xff]
      %v2395 = vld [vmem:[%s2379 + $0x78] sm:$0xff]
      %v2396 = vmul.f32 %v1428, %v2380
      %v2397 = vmul.f32 %v1427, %v2381
      %v2398 = vmul.f32 %v1426, %v2382
      %v2399 = vmul.f32 %v1425, %v2383
      %v2400 = vmul.f32 %v1424, %v2384
      %v2401 = vmul.f32 %v1423, %v2385
      %v2402 = vmul.f32 %v1422, %v2386
      %v2403 = vmul.f32 %v1421, %v2387
      %v2404 = vmul.f32 %v1420, %v2388
      %v2405 = vmul.f32 %v1419, %v2389
      %v2406 = vmul.f32 %v1418, %v2390
      %v2407 = vmul.f32 %v1417, %v2391
      %v2408 = vmul.f32 %v1416, %v2392
      %v2409 = vmul.f32 %v1415, %v2393
      %v2410 = vmul.f32 %v1430, %v2394
      %v2411 = vmul.f32 %v1429, %v2395
      %v2412 = vadd.f32 %v2363, %v2396
      %v2413 = vadd.f32 %v2364, %v2397
      %v2414 = vadd.f32 %v2365, %v2398
      %v2415 = vadd.f32 %v2366, %v2399
      %v2416 = vadd.f32 %v2367, %v2400
      %v2417 = vadd.f32 %v2368, %v2401
      %v2418 = vadd.f32 %v2369, %v2402
      %v2419 = vadd.f32 %v2370, %v2403
      %v2420 = vadd.f32 %v2371, %v2404
      %v2421 = vadd.f32 %v2372, %v2405
      %v2422 = vadd.f32 %v2373, %v2406
      %v2423 = vadd.f32 %v2374, %v2407
      %v2424 = vadd.f32 %v2375, %v2408
      %v2425 = vadd.f32 %v2376, %v2409
      %v2426 = vadd.f32 %v2377, %v2410
      %v2427 = vadd.f32 %v2378, %v2411
      %s2428 = scalar_lea.vmem %s6, 2688
      %v2429 = vld [vmem:[%s2428] sm:$0xff]
      %v2430 = vld [vmem:[%s2428 + $0x8] sm:$0xff]
      %v2431 = vld [vmem:[%s2428 + $0x10] sm:$0xff]
      %v2432 = vld [vmem:[%s2428 + $0x18] sm:$0xff]
      %v2433 = vld [vmem:[%s2428 + $0x20] sm:$0xff]
      %v2434 = vld [vmem:[%s2428 + $0x28] sm:$0xff]
      %v2435 = vld [vmem:[%s2428 + $0x30] sm:$0xff]
      %v2436 = vld [vmem:[%s2428 + $0x38] sm:$0xff]
      %v2437 = vld [vmem:[%s2428 + $0x40] sm:$0xff]
      %v2438 = vld [vmem:[%s2428 + $0x48] sm:$0xff]
      %v2439 = vld [vmem:[%s2428 + $0x50] sm:$0xff]
      %v2440 = vld [vmem:[%s2428 + $0x58] sm:$0xff]
      %v2441 = vld [vmem:[%s2428 + $0x60] sm:$0xff]
      %v2442 = vld [vmem:[%s2428 + $0x68] sm:$0xff]
      %v2443 = vld [vmem:[%s2428 + $0x70] sm:$0xff]
      %v2444 = vld [vmem:[%s2428 + $0x78] sm:$0xff]
      %v2445 = vmul.f32 %v1510, %v2429
      %v2446 = vmul.f32 %v1509, %v2430
      %v2447 = vmul.f32 %v1508, %v2431
      %v2448 = vmul.f32 %v1507, %v2432
      %v2449 = vmul.f32 %v1506, %v2433
      %v2450 = vmul.f32 %v1505, %v2434
      %v2451 = vmul.f32 %v1504, %v2435
      %v2452 = vmul.f32 %v1503, %v2436
      %v2453 = vmul.f32 %v1502, %v2437
      %v2454 = vmul.f32 %v1501, %v2438
      %v2455 = vmul.f32 %v1500, %v2439
      %v2456 = vmul.f32 %v1499, %v2440
      %v2457 = vmul.f32 %v1498, %v2441
      %v2458 = vmul.f32 %v1497, %v2442
      %v2459 = vmul.f32 %v1512, %v2443
      %v2460 = vmul.f32 %v1511, %v2444
      %v2461 = vadd.f32 %v2412, %v2445
      %v2462 = vadd.f32 %v2413, %v2446
      %v2463 = vadd.f32 %v2414, %v2447
      %v2464 = vadd.f32 %v2415, %v2448
      %v2465 = vadd.f32 %v2416, %v2449
      %v2466 = vadd.f32 %v2417, %v2450
      %v2467 = vadd.f32 %v2418, %v2451
      %v2468 = vadd.f32 %v2419, %v2452
      %v2469 = vadd.f32 %v2420, %v2453
      %v2470 = vadd.f32 %v2421, %v2454
      %v2471 = vadd.f32 %v2422, %v2455
      %v2472 = vadd.f32 %v2423, %v2456
      %v2473 = vadd.f32 %v2424, %v2457
      %v2474 = vadd.f32 %v2425, %v2458
      %v2475 = vadd.f32 %v2426, %v2459
      %v2476 = vadd.f32 %v2427, %v2460
      %s2477 = scalar_lea.vmem %s6, 2816
      %v2478 = vld [vmem:[%s2477] sm:$0xff]
      %v2479 = vld [vmem:[%s2477 + $0x8] sm:$0xff]
      %v2480 = vld [vmem:[%s2477 + $0x10] sm:$0xff]
      %v2481 = vld [vmem:[%s2477 + $0x18] sm:$0xff]
      %v2482 = vld [vmem:[%s2477 + $0x20] sm:$0xff]
      %v2483 = vld [vmem:[%s2477 + $0x28] sm:$0xff]
      %v2484 = vld [vmem:[%s2477 + $0x30] sm:$0xff]
      %v2485 = vld [vmem:[%s2477 + $0x38] sm:$0xff]
      %v2486 = vld [vmem:[%s2477 + $0x40] sm:$0xff]
      %v2487 = vld [vmem:[%s2477 + $0x48] sm:$0xff]
      %v2488 = vld [vmem:[%s2477 + $0x50] sm:$0xff]
      %v2489 = vld [vmem:[%s2477 + $0x58] sm:$0xff]
      %v2490 = vld [vmem:[%s2477 + $0x60] sm:$0xff]
      %v2491 = vld [vmem:[%s2477 + $0x68] sm:$0xff]
      %v2492 = vld [vmem:[%s2477 + $0x70] sm:$0xff]
      %v2493 = vld [vmem:[%s2477 + $0x78] sm:$0xff]
      %v2494 = vmul.f32 %v1171, %v2478
      %v2495 = vmul.f32 %v1174, %v2479
      %v2496 = vmul.f32 %v1179, %v2480
      %v2497 = vmul.f32 %v1182, %v2481
      %v2498 = vmul.f32 %v1187, %v2482
      %v2499 = vmul.f32 %v1190, %v2483
      %v2500 = vmul.f32 %v1195, %v2484
      %v2501 = vmul.f32 %v1198, %v2485
      %v2502 = vmul.f32 %v1203, %v2486
      %v2503 = vmul.f32 %v1206, %v2487
      %v2504 = vmul.f32 %v1211, %v2488
      %v2505 = vmul.f32 %v1214, %v2489
      %v2506 = vmul.f32 %v1219, %v2490
      %v2507 = vmul.f32 %v1222, %v2491
      %v2508 = vmul.f32 %v1163, %v2492
      %v2509 = vmul.f32 %v1166, %v2493
      %v2510 = vadd.f32 %v2461, %v2494
      %v2511 = vadd.f32 %v2462, %v2495
      %v2512 = vadd.f32 %v2463, %v2496
      %v2513 = vadd.f32 %v2464, %v2497
      %v2514 = vadd.f32 %v2465, %v2498
      %v2515 = vadd.f32 %v2466, %v2499
      %v2516 = vadd.f32 %v2467, %v2500
      %v2517 = vadd.f32 %v2468, %v2501
      %v2518 = vadd.f32 %v2469, %v2502
      %v2519 = vadd.f32 %v2470, %v2503
      %v2520 = vadd.f32 %v2471, %v2504
      %v2521 = vadd.f32 %v2472, %v2505
      %v2522 = vadd.f32 %v2473, %v2506
      %v2523 = vadd.f32 %v2474, %v2507
      %v2524 = vadd.f32 %v2475, %v2508
      %v2525 = vadd.f32 %v2476, %v2509
      %s2526 = scalar_lea.vmem %s6, 2944
      %v2527 = vld [vmem:[%s2526] sm:$0xff]
      %v2528 = vld [vmem:[%s2526 + $0x8] sm:$0xff]
      %v2529 = vld [vmem:[%s2526 + $0x10] sm:$0xff]
      %v2530 = vld [vmem:[%s2526 + $0x18] sm:$0xff]
      %v2531 = vld [vmem:[%s2526 + $0x20] sm:$0xff]
      %v2532 = vld [vmem:[%s2526 + $0x28] sm:$0xff]
      %v2533 = vld [vmem:[%s2526 + $0x30] sm:$0xff]
      %v2534 = vld [vmem:[%s2526 + $0x38] sm:$0xff]
      %v2535 = vld [vmem:[%s2526 + $0x40] sm:$0xff]
      %v2536 = vld [vmem:[%s2526 + $0x48] sm:$0xff]
      %v2537 = vld [vmem:[%s2526 + $0x50] sm:$0xff]
      %v2538 = vld [vmem:[%s2526 + $0x58] sm:$0xff]
      %v2539 = vld [vmem:[%s2526 + $0x60] sm:$0xff]
      %v2540 = vld [vmem:[%s2526 + $0x68] sm:$0xff]
      %v2541 = vld [vmem:[%s2526 + $0x70] sm:$0xff]
      %v2542 = vld [vmem:[%s2526 + $0x78] sm:$0xff]
      %v2543 = vmul.f32 %v1640, %v2527
      %v2544 = vmul.f32 %v1639, %v2528
      %v2545 = vmul.f32 %v1638, %v2529
      %v2546 = vmul.f32 %v1637, %v2530
      %v2547 = vmul.f32 %v1636, %v2531
      %v2548 = vmul.f32 %v1635, %v2532
      %v2549 = vmul.f32 %v1634, %v2533
      %v2550 = vmul.f32 %v1633, %v2534
      %v2551 = vmul.f32 %v1632, %v2535
      %v2552 = vmul.f32 %v1631, %v2536
      %v2553 = vmul.f32 %v1630, %v2537
      %v2554 = vmul.f32 %v1629, %v2538
      %v2555 = vmul.f32 %v1628, %v2539
      %v2556 = vmul.f32 %v1643, %v2540
      %v2557 = vmul.f32 %v1642, %v2541
      %v2558 = vmul.f32 %v1641, %v2542
      %v2559 = vadd.f32 %v2510, %v2543
      %v2560 = vadd.f32 %v2511, %v2544
      %v2561 = vadd.f32 %v2512, %v2545
      %v2562 = vadd.f32 %v2513, %v2546
      %v2563 = vadd.f32 %v2514, %v2547
      %v2564 = vadd.f32 %v2515, %v2548
      %v2565 = vadd.f32 %v2516, %v2549
      %v2566 = vadd.f32 %v2517, %v2550
      %v2567 = vadd.f32 %v2518, %v2551
      %v2568 = vadd.f32 %v2519, %v2552
      %v2569 = vadd.f32 %v2520, %v2553
      %v2570 = vadd.f32 %v2521, %v2554
      %v2571 = vadd.f32 %v2522, %v2555
      %v2572 = vadd.f32 %v2523, %v2556
      %v2573 = vadd.f32 %v2524, %v2557
      %v2574 = vadd.f32 %v2525, %v2558
      %s2575 = scalar_lea.vmem %s6, 3072
      %v2576 = vld [vmem:[%s2575] sm:$0xff]
      %v2577 = vld [vmem:[%s2575 + $0x8] sm:$0xff]
      %v2578 = vld [vmem:[%s2575 + $0x10] sm:$0xff]
      %v2579 = vld [vmem:[%s2575 + $0x18] sm:$0xff]
      %v2580 = vld [vmem:[%s2575 + $0x20] sm:$0xff]
      %v2581 = vld [vmem:[%s2575 + $0x28] sm:$0xff]
      %v2582 = vld [vmem:[%s2575 + $0x30] sm:$0xff]
      %v2583 = vld [vmem:[%s2575 + $0x38] sm:$0xff]
      %v2584 = vld [vmem:[%s2575 + $0x40] sm:$0xff]
      %v2585 = vld [vmem:[%s2575 + $0x48] sm:$0xff]
      %v2586 = vld [vmem:[%s2575 + $0x50] sm:$0xff]
      %v2587 = vld [vmem:[%s2575 + $0x58] sm:$0xff]
      %v2588 = vld [vmem:[%s2575 + $0x60] sm:$0xff]
      %v2589 = vld [vmem:[%s2575 + $0x68] sm:$0xff]
      %v2590 = vld [vmem:[%s2575 + $0x70] sm:$0xff]
      %v2591 = vld [vmem:[%s2575 + $0x78] sm:$0xff]
      %v2592 = vmul.f32 %v1264, %v2576
      %v2593 = vmul.f32 %v1263, %v2577
      %v2594 = vmul.f32 %v1262, %v2578
      %v2595 = vmul.f32 %v1261, %v2579
      %v2596 = vmul.f32 %v1260, %v2580
      %v2597 = vmul.f32 %v1259, %v2581
      %v2598 = vmul.f32 %v1258, %v2582
      %v2599 = vmul.f32 %v1257, %v2583
      %v2600 = vmul.f32 %v1256, %v2584
      %v2601 = vmul.f32 %v1255, %v2585
      %v2602 = vmul.f32 %v1254, %v2586
      %v2603 = vmul.f32 %v1253, %v2587
      %v2604 = vmul.f32 %v1252, %v2588
      %v2605 = vmul.f32 %v1267, %v2589
      %v2606 = vmul.f32 %v1266, %v2590
      %v2607 = vmul.f32 %v1265, %v2591
      %v2608 = vadd.f32 %v2559, %v2592
      %v2609 = vadd.f32 %v2560, %v2593
      %v2610 = vadd.f32 %v2561, %v2594
      %v2611 = vadd.f32 %v2562, %v2595
      %v2612 = vadd.f32 %v2563, %v2596
      %v2613 = vadd.f32 %v2564, %v2597
      %v2614 = vadd.f32 %v2565, %v2598
      %v2615 = vadd.f32 %v2566, %v2599
      %v2616 = vadd.f32 %v2567, %v2600
      %v2617 = vadd.f32 %v2568, %v2601
      %v2618 = vadd.f32 %v2569, %v2602
      %v2619 = vadd.f32 %v2570, %v2603
      %v2620 = vadd.f32 %v2571, %v2604
      %v2621 = vadd.f32 %v2572, %v2605
      %v2622 = vadd.f32 %v2573, %v2606
      %v2623 = vadd.f32 %v2574, %v2607
      %s2624 = scalar_lea.vmem %s6, 3200
      %v2625 = vld [vmem:[%s2624] sm:$0xff]
      %v2626 = vld [vmem:[%s2624 + $0x8] sm:$0xff]
      %v2627 = vld [vmem:[%s2624 + $0x10] sm:$0xff]
      %v2628 = vld [vmem:[%s2624 + $0x18] sm:$0xff]
      %v2629 = vld [vmem:[%s2624 + $0x20] sm:$0xff]
      %v2630 = vld [vmem:[%s2624 + $0x28] sm:$0xff]
      %v2631 = vld [vmem:[%s2624 + $0x30] sm:$0xff]
      %v2632 = vld [vmem:[%s2624 + $0x38] sm:$0xff]
      %v2633 = vld [vmem:[%s2624 + $0x40] sm:$0xff]
      %v2634 = vld [vmem:[%s2624 + $0x48] sm:$0xff]
      %v2635 = vld [vmem:[%s2624 + $0x50] sm:$0xff]
      %v2636 = vld [vmem:[%s2624 + $0x58] sm:$0xff]
      %v2637 = vld [vmem:[%s2624 + $0x60] sm:$0xff]
      %v2638 = vld [vmem:[%s2624 + $0x68] sm:$0xff]
      %v2639 = vld [vmem:[%s2624 + $0x70] sm:$0xff]
      %v2640 = vld [vmem:[%s2624 + $0x78] sm:$0xff]
      %v2641 = vmul.f32 %v1345, %v2625
      %v2642 = vmul.f32 %v1344, %v2626
      %v2643 = vmul.f32 %v1343, %v2627
      %v2644 = vmul.f32 %v1342, %v2628
      %v2645 = vmul.f32 %v1341, %v2629
      %v2646 = vmul.f32 %v1340, %v2630
      %v2647 = vmul.f32 %v1339, %v2631
      %v2648 = vmul.f32 %v1338, %v2632
      %v2649 = vmul.f32 %v1337, %v2633
      %v2650 = vmul.f32 %v1336, %v2634
      %v2651 = vmul.f32 %v1335, %v2635
      %v2652 = vmul.f32 %v1334, %v2636
      %v2653 = vmul.f32 %v1333, %v2637
      %v2654 = vmul.f32 %v1348, %v2638
      %v2655 = vmul.f32 %v1347, %v2639
      %v2656 = vmul.f32 %v1346, %v2640
      %v2657 = vadd.f32 %v2608, %v2641
      %v2658 = vadd.f32 %v2609, %v2642
      %v2659 = vadd.f32 %v2610, %v2643
      %v2660 = vadd.f32 %v2611, %v2644
      %v2661 = vadd.f32 %v2612, %v2645
      %v2662 = vadd.f32 %v2613, %v2646
      %v2663 = vadd.f32 %v2614, %v2647
      %v2664 = vadd.f32 %v2615, %v2648
      %v2665 = vadd.f32 %v2616, %v2649
      %v2666 = vadd.f32 %v2617, %v2650
      %v2667 = vadd.f32 %v2618, %v2651
      %v2668 = vadd.f32 %v2619, %v2652
      %v2669 = vadd.f32 %v2620, %v2653
      %v2670 = vadd.f32 %v2621, %v2654
      %v2671 = vadd.f32 %v2622, %v2655
      %v2672 = vadd.f32 %v2623, %v2656
      %s2673 = scalar_lea.vmem %s6, 3328
      %v2674 = vld [vmem:[%s2673] sm:$0xff]
      %v2675 = vld [vmem:[%s2673 + $0x8] sm:$0xff]
      %v2676 = vld [vmem:[%s2673 + $0x10] sm:$0xff]
      %v2677 = vld [vmem:[%s2673 + $0x18] sm:$0xff]
      %v2678 = vld [vmem:[%s2673 + $0x20] sm:$0xff]
      %v2679 = vld [vmem:[%s2673 + $0x28] sm:$0xff]
      %v2680 = vld [vmem:[%s2673 + $0x30] sm:$0xff]
      %v2681 = vld [vmem:[%s2673 + $0x38] sm:$0xff]
      %v2682 = vld [vmem:[%s2673 + $0x40] sm:$0xff]
      %v2683 = vld [vmem:[%s2673 + $0x48] sm:$0xff]
      %v2684 = vld [vmem:[%s2673 + $0x50] sm:$0xff]
      %v2685 = vld [vmem:[%s2673 + $0x58] sm:$0xff]
      %v2686 = vld [vmem:[%s2673 + $0x60] sm:$0xff]
      %v2687 = vld [vmem:[%s2673 + $0x68] sm:$0xff]
      %v2688 = vld [vmem:[%s2673 + $0x70] sm:$0xff]
      %v2689 = vld [vmem:[%s2673 + $0x78] sm:$0xff]
      %v2690 = vmul.f32 %v1427, %v2674
      %v2691 = vmul.f32 %v1426, %v2675
      %v2692 = vmul.f32 %v1425, %v2676
      %v2693 = vmul.f32 %v1424, %v2677
      %v2694 = vmul.f32 %v1423, %v2678
      %v2695 = vmul.f32 %v1422, %v2679
      %v2696 = vmul.f32 %v1421, %v2680
      %v2697 = vmul.f32 %v1420, %v2681
      %v2698 = vmul.f32 %v1419, %v2682
      %v2699 = vmul.f32 %v1418, %v2683
      %v2700 = vmul.f32 %v1417, %v2684
      %v2701 = vmul.f32 %v1416, %v2685
      %v2702 = vmul.f32 %v1415, %v2686
      %v2703 = vmul.f32 %v1430, %v2687
      %v2704 = vmul.f32 %v1429, %v2688
      %v2705 = vmul.f32 %v1428, %v2689
      %v2706 = vadd.f32 %v2657, %v2690
      %v2707 = vadd.f32 %v2658, %v2691
      %v2708 = vadd.f32 %v2659, %v2692
      %v2709 = vadd.f32 %v2660, %v2693
      %v2710 = vadd.f32 %v2661, %v2694
      %v2711 = vadd.f32 %v2662, %v2695
      %v2712 = vadd.f32 %v2663, %v2696
      %v2713 = vadd.f32 %v2664, %v2697
      %v2714 = vadd.f32 %v2665, %v2698
      %v2715 = vadd.f32 %v2666, %v2699
      %v2716 = vadd.f32 %v2667, %v2700
      %v2717 = vadd.f32 %v2668, %v2701
      %v2718 = vadd.f32 %v2669, %v2702
      %v2719 = vadd.f32 %v2670, %v2703
      %v2720 = vadd.f32 %v2671, %v2704
      %v2721 = vadd.f32 %v2672, %v2705
      %v2722 = vld [vmem:[%s8] sm:$0xff]
      %v2723 = vld [vmem:[%s8 + $0x8] sm:$0xf]
      %v2726 = vcombine.high %v2722, %v2722
      %v2728 = vunpack.c.l.s4 1966171168
      %v2729 = vunpack.c.0.s8 %v2728
      %v2730 = vlaneseq
      %v2731 = vshrl.u32 %v2730, 7
      %v2732 = vsub.s32 %v2729, %v2731
      %v2733 = vrot.slane %v2722, %v2732
      %v2735 = vunpack.c.l.s4 1966171168
      %v2736 = vunpack.c.0.s8 %v2735
      %v2737 = vlaneseq
      %v2738 = vshrl.u32 %v2737, 7
      %v2739 = vsub.s32 %v2736, %v2738
      %v2740 = vrot.slane %v2726, %v2739
      %v2741 = vcombine.high %v2733, %v2733
      %v2742 = vcombine.high %v2740, %v2740
      %v2744 = vunpack.c.l.s4 1966171168
      %v2745 = vunpack.c.0.s8 %v2744
      %v2746 = vlaneseq
      %v2747 = vshrl.u32 %v2746, 7
      %v2748 = vsub.s32 %v2745, %v2747
      %v2749 = vrot.slane %v2733, %v2748
      %v2751 = vunpack.c.l.s4 1966171168
      %v2752 = vunpack.c.0.s8 %v2751
      %v2753 = vlaneseq
      %v2754 = vshrl.u32 %v2753, 7
      %v2755 = vsub.s32 %v2752, %v2754
      %v2756 = vrot.slane %v2740, %v2755
      %v2758 = vunpack.c.l.s4 1966171168
      %v2759 = vunpack.c.0.s8 %v2758
      %v2760 = vlaneseq
      %v2761 = vshrl.u32 %v2760, 7
      %v2762 = vsub.s32 %v2759, %v2761
      %v2763 = vrot.slane %v2741, %v2762
      %v2765 = vunpack.c.l.s4 1966171168
      %v2766 = vunpack.c.0.s8 %v2765
      %v2767 = vlaneseq
      %v2768 = vshrl.u32 %v2767, 7
      %v2769 = vsub.s32 %v2766, %v2768
      %v2770 = vrot.slane %v2742, %v2769
      %v2771 = vcombine.high %v2749, %v2749
      %v2772 = vcombine.high %v2756, %v2756
      %v2773 = vcombine.high %v2763, %v2763
      %v2774 = vcombine.high %v2770, %v2770
      %v2776 = vunpack.c.l.s4 1966171168
      %v2777 = vunpack.c.0.s8 %v2776
      %v2778 = vlaneseq
      %v2779 = vshrl.u32 %v2778, 7
      %v2780 = vsub.s32 %v2777, %v2779
      %v2781 = vrot.slane %v2723, %v2780
      %v2782 = vcombine.high %v2781, %v2781
      %v2784 = vunpack.c.l.s4 1966171168
      %v2785 = vunpack.c.0.s8 %v2784
      %v2786 = vlaneseq
      %v2787 = vshrl.u32 %v2786, 7
      %v2788 = vsub.s32 %v2785, %v2787
      %v2789 = vrot.slane %v2781, %v2788
      %v2791 = vunpack.c.l.s4 1966171168
      %v2792 = vunpack.c.0.s8 %v2791
      %v2793 = vlaneseq
      %v2794 = vshrl.u32 %v2793, 7
      %v2795 = vsub.s32 %v2792, %v2794
      %v2796 = vrot.slane %v2782, %v2795
      %v2797 = vcombine.high %v2789, %v2789
      %v2798 = vcombine.high %v2796, %v2796
      %v2799 = vlaneseq
      %v2800 = vshrl.u32 %v2799, 7
      %v2801 = vsub.s32 0, %v2800
      %v2802 = vrot.slane %v2749, %v2801
      %v2803 = vlaneseq
      %v2804 = vshrl.u32 %v2803, 7
      %v2805 = vsub.s32 0, %v2804
      %v2806 = vrot.slane %v2763, %v2805
      %v2807 = vlaneseq
      %v2808 = vshrl.u32 %v2807, 7
      %v2809 = vsub.s32 0, %v2808
      %v2810 = vrot.slane %v2771, %v2809
      %v2811 = vlaneseq
      %v2812 = vshrl.u32 %v2811, 7
      %v2813 = vsub.s32 0, %v2812
      %v2814 = vrot.slane %v2773, %v2813
      %v2815 = vlaneseq
      %v2816 = vshrl.u32 %v2815, 7
      %v2817 = vsub.s32 0, %v2816
      %v2818 = vrot.slane %v2756, %v2817
      %v2819 = vlaneseq
      %v2820 = vshrl.u32 %v2819, 7
      %v2821 = vsub.s32 0, %v2820
      %v2822 = vrot.slane %v2770, %v2821
      %v2823 = vlaneseq
      %v2824 = vshrl.u32 %v2823, 7
      %v2825 = vsub.s32 0, %v2824
      %v2826 = vrot.slane %v2772, %v2825
      %v2827 = vlaneseq
      %v2828 = vshrl.u32 %v2827, 7
      %v2829 = vsub.s32 0, %v2828
      %v2830 = vrot.slane %v2774, %v2829
      %v2831 = vlaneseq
      %v2832 = vshrl.u32 %v2831, 7
      %v2833 = vsub.s32 0, %v2832
      %v2834 = vrot.slane %v2789, %v2833
      %v2835 = vlaneseq
      %v2836 = vshrl.u32 %v2835, 7
      %v2837 = vsub.s32 0, %v2836
      %v2838 = vrot.slane %v2796, %v2837
      %v2839 = vlaneseq
      %v2840 = vshrl.u32 %v2839, 7
      %v2841 = vsub.s32 0, %v2840
      %v2842 = vrot.slane %v2797, %v2841
      %v2843 = vlaneseq
      %v2844 = vshrl.u32 %v2843, 7
      %v2845 = vsub.s32 0, %v2844
      %v2846 = vrot.slane %v2798, %v2845
      %v2859 = vpack.c.bf16 %v1045, %v1042
      %v2860 = vpack.c.bf16 %v1053, %v1050
      %v2861 = vpack.c.bf16 %v1061, %v1058
      %v2862 = vpack.c.bf16 %v1069, %v1066
      %v2863 = vpack.c.bf16 %v1077, %v1074
      %v2864 = vpack.c.bf16 %v1085, %v1082
      %v2865 = vpack.c.bf16 %v1093, %v1090
      %v2866 = vpack.c.bf16 %v1101, %v1098
      %v2867 = vpack.c.bf16 %v1166, %v1163
      %v2868 = vpack.c.bf16 %v1174, %v1171
      %v2869 = vpack.c.bf16 %v1182, %v1179
      %v2870 = vpack.c.bf16 %v1190, %v1187
      %v2871 = vpack.c.bf16 %v1198, %v1195
      %v2872 = vpack.c.bf16 %v1206, %v1203
      %v2873 = vpack.c.bf16 %v1214, %v1211
      %v2874 = vpack.c.bf16 %v1222, %v1219
      %v2875 = vmul.f32 %v921, %v2802
      %v2876 = vmul.f32 %v924, %v2802
      %v2877 = vmul.f32 %v929, %v2802
      %v2878 = vmul.f32 %v932, %v2802
      %v2879 = vmul.f32 %v937, %v2802
      %v2880 = vmul.f32 %v940, %v2802
      %v2881 = vmul.f32 %v945, %v2802
      %v2882 = vmul.f32 %v948, %v2802
      %v2883 = vmul.f32 %v921, %v2806
      %v2884 = vmul.f32 %v924, %v2806
      %v2885 = vmul.f32 %v929, %v2806
      %v2886 = vmul.f32 %v932, %v2806
      %v2887 = vmul.f32 %v937, %v2806
      %v2888 = vmul.f32 %v940, %v2806
      %v2889 = vmul.f32 %v945, %v2806
      %v2890 = vmul.f32 %v948, %v2806
      %v2891 = vmul.f32 %v921, %v2810
      %v2892 = vmul.f32 %v924, %v2810
      %v2893 = vmul.f32 %v929, %v2810
      %v2894 = vmul.f32 %v932, %v2810
      %v2895 = vmul.f32 %v937, %v2810
      %v2896 = vmul.f32 %v940, %v2810
      %v2897 = vmul.f32 %v945, %v2810
      %v2898 = vmul.f32 %v948, %v2810
      %v2899 = vmul.f32 %v921, %v2814
      %v2900 = vmul.f32 %v924, %v2814
      %v2901 = vmul.f32 %v929, %v2814
      %v2902 = vmul.f32 %v932, %v2814
      %v2903 = vmul.f32 %v937, %v2814
      %v2904 = vmul.f32 %v940, %v2814
      %v2905 = vmul.f32 %v945, %v2814
      %v2906 = vmul.f32 %v948, %v2814
      %v2907 = vmul.f32 %v921, %v2818
      %v2908 = vmul.f32 %v924, %v2818
      %v2909 = vmul.f32 %v929, %v2818
      %v2910 = vmul.f32 %v932, %v2818
      %v2911 = vmul.f32 %v937, %v2818
      %v2912 = vmul.f32 %v940, %v2818
      %v2913 = vmul.f32 %v945, %v2818
      %v2914 = vmul.f32 %v948, %v2818
      %v2915 = vmul.f32 %v921, %v2822
      %v2916 = vmul.f32 %v924, %v2822
      %v2917 = vmul.f32 %v929, %v2822
      %v2918 = vmul.f32 %v932, %v2822
      %v2919 = vmul.f32 %v937, %v2822
      %v2920 = vmul.f32 %v940, %v2822
      %v2921 = vmul.f32 %v945, %v2822
      %v2922 = vmul.f32 %v948, %v2822
      %v2923 = vmul.f32 %v921, %v2826
      %v2924 = vmul.f32 %v924, %v2826
      %v2925 = vmul.f32 %v929, %v2826
      %v2926 = vmul.f32 %v932, %v2826
      %v2927 = vmul.f32 %v937, %v2826
      %v2928 = vmul.f32 %v940, %v2826
      %v2929 = vmul.f32 %v945, %v2826
      %v2930 = vmul.f32 %v948, %v2826
      %v2931 = vmul.f32 %v921, %v2830
      %v2932 = vmul.f32 %v924, %v2830
      %v2933 = vmul.f32 %v929, %v2830
      %v2934 = vmul.f32 %v932, %v2830
      %v2935 = vmul.f32 %v937, %v2830
      %v2936 = vmul.f32 %v940, %v2830
      %v2937 = vmul.f32 %v945, %v2830
      %v2938 = vmul.f32 %v948, %v2830
      %v2939 = vmul.f32 %v921, %v2834
      %v2940 = vmul.f32 %v924, %v2834
      %v2941 = vmul.f32 %v929, %v2834
      %v2942 = vmul.f32 %v932, %v2834
      %v2943 = vmul.f32 %v937, %v2834
      %v2944 = vmul.f32 %v940, %v2834
      %v2945 = vmul.f32 %v945, %v2834
      %v2946 = vmul.f32 %v948, %v2834
      %v2947 = vmul.f32 %v921, %v2838
      %v2948 = vmul.f32 %v924, %v2838
      %v2949 = vmul.f32 %v929, %v2838
      %v2950 = vmul.f32 %v932, %v2838
      %v2951 = vmul.f32 %v937, %v2838
      %v2952 = vmul.f32 %v940, %v2838
      %v2953 = vmul.f32 %v945, %v2838
      %v2954 = vmul.f32 %v948, %v2838
      %v2955 = vmul.f32 %v921, %v2842
      %v2956 = vmul.f32 %v924, %v2842
      %v2957 = vmul.f32 %v929, %v2842
      %v2958 = vmul.f32 %v932, %v2842
      %v2959 = vmul.f32 %v937, %v2842
      %v2960 = vmul.f32 %v940, %v2842
      %v2961 = vmul.f32 %v945, %v2842
      %v2962 = vmul.f32 %v948, %v2842
      %v2963 = vmul.f32 %v921, %v2846
      %v2964 = vmul.f32 %v924, %v2846
      %v2965 = vmul.f32 %v929, %v2846
      %v2966 = vmul.f32 %v932, %v2846
      %v2967 = vmul.f32 %v937, %v2846
      %v2968 = vmul.f32 %v940, %v2846
      %v2969 = vmul.f32 %v945, %v2846
      %v2970 = vmul.f32 %v948, %v2846
      %v2971 = vpack.c.bf16 %v2876, %v2875
      %v2972 = vpack.c.bf16 %v2878, %v2877
      %v2973 = vpack.c.bf16 %v2880, %v2879
      %v2974 = vpack.c.bf16 %v2882, %v2881
      %v2975 = vpack.c.bf16 %v2884, %v2883
      %v2976 = vpack.c.bf16 %v2886, %v2885
      %v2977 = vpack.c.bf16 %v2888, %v2887
      %v2978 = vpack.c.bf16 %v2890, %v2889
      %v2979 = vpack.c.bf16 %v2892, %v2891
      %v2980 = vpack.c.bf16 %v2894, %v2893
      %v2981 = vpack.c.bf16 %v2896, %v2895
      %v2982 = vpack.c.bf16 %v2898, %v2897
      %v2983 = vpack.c.bf16 %v2900, %v2899
      %v2984 = vpack.c.bf16 %v2902, %v2901
      %v2985 = vpack.c.bf16 %v2904, %v2903
      %v2986 = vpack.c.bf16 %v2906, %v2905
      %v2987 = vpack.c.bf16 %v2908, %v2907
      %v2988 = vpack.c.bf16 %v2910, %v2909
      %v2989 = vpack.c.bf16 %v2912, %v2911
      %v2990 = vpack.c.bf16 %v2914, %v2913
      %v2991 = vpack.c.bf16 %v2916, %v2915
      %v2992 = vpack.c.bf16 %v2918, %v2917
      %v2993 = vpack.c.bf16 %v2920, %v2919
      %v2994 = vpack.c.bf16 %v2922, %v2921
      %v2995 = vpack.c.bf16 %v2924, %v2923
      %v2996 = vpack.c.bf16 %v2926, %v2925
      %v2997 = vpack.c.bf16 %v2928, %v2927
      %v2998 = vpack.c.bf16 %v2930, %v2929
      %v2999 = vpack.c.bf16 %v2932, %v2931
      %v3000 = vpack.c.bf16 %v2934, %v2933
      %v3001 = vpack.c.bf16 %v2936, %v2935
      %v3002 = vpack.c.bf16 %v2938, %v2937
      %v3003 = vpack.c.bf16 %v2940, %v2939
      %v3004 = vpack.c.bf16 %v2942, %v2941
      %v3005 = vpack.c.bf16 %v2944, %v2943
      %v3006 = vpack.c.bf16 %v2946, %v2945
      %v3007 = vpack.c.bf16 %v2948, %v2947
      %v3008 = vpack.c.bf16 %v2950, %v2949
      %v3009 = vpack.c.bf16 %v2952, %v2951
      %v3010 = vpack.c.bf16 %v2954, %v2953
      %v3011 = vpack.c.bf16 %v2956, %v2955
      %v3012 = vpack.c.bf16 %v2958, %v2957
      %v3013 = vpack.c.bf16 %v2960, %v2959
      %v3014 = vpack.c.bf16 %v2962, %v2961
      %v3015 = vpack.c.bf16 %v2964, %v2963
      %v3016 = vpack.c.bf16 %v2966, %v2965
      %v3017 = vpack.c.bf16 %v2968, %v2967
      %v3018 = vpack.c.bf16 %v2970, %v2969
      %v3020 = vsel %vm576, %v2971, 0
      %v3023 = vsel %vm576, %v2972, 0
      %v3026 = vsel %vm576, %v2973, 0
      %v3029 = vsel %vm576, %v2974, 0
      %v3032 = vsel %vm576, %v2975, 0
      %v3035 = vsel %vm576, %v2976, 0
      %v3038 = vsel %vm576, %v2977, 0
      %v3041 = vsel %vm576, %v2978, 0
      %v3044 = vsel %vm576, %v2979, 0
      %v3047 = vsel %vm576, %v2980, 0
      %v3050 = vsel %vm576, %v2981, 0
      %v3053 = vsel %vm576, %v2982, 0
      %v3056 = vsel %vm576, %v2983, 0
      %v3059 = vsel %vm576, %v2984, 0
      %v3062 = vsel %vm576, %v2985, 0
      %v3065 = vsel %vm576, %v2986, 0
      %v3068 = vsel %vm576, %v2987, 0
      %v3071 = vsel %vm576, %v2988, 0
      %v3074 = vsel %vm576, %v2989, 0
      %v3077 = vsel %vm576, %v2990, 0
      %v3080 = vsel %vm576, %v2991, 0
      %v3083 = vsel %vm576, %v2992, 0
      %v3086 = vsel %vm576, %v2993, 0
      %v3089 = vsel %vm576, %v2994, 0
      %v3092 = vsel %vm576, %v2995, 0
      %v3095 = vsel %vm576, %v2996, 0
      %v3098 = vsel %vm576, %v2997, 0
      %v3101 = vsel %vm576, %v2998, 0
      %v3104 = vsel %vm576, %v2999, 0
      %v3107 = vsel %vm576, %v3000, 0
      %v3110 = vsel %vm576, %v3001, 0
      %v3113 = vsel %vm576, %v3002, 0
      %v3116 = vsel %vm576, %v3003, 0
      %v3119 = vsel %vm576, %v3004, 0
      %v3122 = vsel %vm576, %v3005, 0
      %v3125 = vsel %vm576, %v3006, 0
      %v3128 = vsel %vm576, %v3007, 0
      %v3131 = vsel %vm576, %v3008, 0
      %v3134 = vsel %vm576, %v3009, 0
      %v3137 = vsel %vm576, %v3010, 0
      %v3140 = vsel %vm576, %v3011, 0
      %v3143 = vsel %vm576, %v3012, 0
      %v3146 = vsel %vm576, %v3013, 0
      %v3149 = vsel %vm576, %v3014, 0
      %v3152 = vsel %vm576, %v3015, 0
      %v3155 = vsel %vm576, %v3016, 0
      %v3158 = vsel %vm576, %v3017, 0
      %v3161 = vsel %vm576, %v3018, 0
      %v3164 = vsel %vm576, %v2859, 0
      %v3167 = vsel %vm576, %v2860, 0
      %v3170 = vsel %vm576, %v2861, 0
      %v3173 = vsel %vm576, %v2862, 0
      %3175 = vmatprep.subr.bf16.mxu0 0
      %3176 = vmatpush1.bf16.xpose.msra.mxu0 %v3164
      %3177 = vmatprep.subr.bf16.mxu0 0
      %3178 = vmatpush1.bf16.xpose.msra.mxu0 %v3167
      %3179 = vmatprep.subr.bf16.mxu0 0
      %3180 = vmatpush1.bf16.xpose.msra.mxu0 %v3170
      %3181 = vmatprep.subr.bf16.mxu0 0
      %3182 = vmatpush1.bf16.xpose.msra.mxu0 %v3173
      %3183 = vmatprep.subr.bf16.mxu0 0
      %3184 = vmatpush1.bf16.xpose.msra.mxu0 0
      %3185 = vmatprep.subr.bf16.mxu0 0
      %3186 = vmatpush1.bf16.xpose.msra.mxu0 0
      %3187 = vmatprep.subr.bf16.mxu0 0
      %3188 = vmatpush1.bf16.xpose.msra.mxu0 0
      %3189 = vmatprep.subr.bf16.mxu0 0
      %3190 = vmatpush1.bf16.xpose.msra.mxu0 0
      %3191 = vmatprep.subr.bf16.mxu0 0
      %3192 = vmatpush1.bf16.xpose.msra.mxu0 0
      %3193 = vmatprep.subr.bf16.mxu0 0
      %3194 = vmatpush1.bf16.xpose.msra.mxu0 0
      %3195 = vmatprep.subr.bf16.mxu0 0
      %3196 = vmatpush1.bf16.xpose.msra.mxu0 0
      %3197 = vmatprep.subr.bf16.mxu0 0
      %3198 = vmatpush1.bf16.xpose.msra.mxu0 0
      %3199 = vmatprep.subr.bf16.mxu0 0
      %3200 = vmatpush1.bf16.xpose.msra.mxu0 0
      %3201 = vmatprep.subr.bf16.mxu0 0
      %3202 = vmatpush1.bf16.xpose.msra.mxu0 0
      %3203 = vmatprep.subr.bf16.mxu0 0
      %3204 = vmatpush1.bf16.xpose.msra.mxu0 0
      %3205 = vmatprep.subr.bf16.mxu0 0
      %3206 = vmatpush1.bf16.xpose.msra.mxu0 0
      %3207 = vmatprep.mubr.bf16.mxu0 0
      %3208 = vmatmul.mubr.bf16.gmra.mrb[0].mxu0 %v3020
      %v3209 = vpop.f32.mrb[0].mxu0
      %v3210 = vadd.f32 0.0, %v3209
      %v3211 = vpop.f32.mrb[0].mxu0
      %v3212 = vpop.f32.mrb[0].mxu0
      %v3213 = vadd.f32 0.0, %v3212
      %v3214 = vpop.f32.mrb[0].mxu0
      %3215 = vmatprep.mubr.bf16.mxu0 0
      %3216 = vmatmul.mubr.bf16.gmra.mrb[0].mxu0 %v3023
      %v3217 = vpop.f32.mrb[0].mxu0
      %v3218 = vadd.f32 0.0, %v3217
      %v3219 = vpop.f32.mrb[0].mxu0
      %v3220 = vpop.f32.mrb[0].mxu0
      %v3221 = vadd.f32 0.0, %v3220
      %v3222 = vpop.f32.mrb[0].mxu0
      %3223 = vmatprep.mubr.bf16.mxu0 0
      %3224 = vmatmul.mubr.bf16.gmra.mrb[0].mxu0 %v3026
      %v3225 = vpop.f32.mrb[0].mxu0
      %v3226 = vadd.f32 0.0, %v3225
      %v3227 = vpop.f32.mrb[0].mxu0
      %v3228 = vpop.f32.mrb[0].mxu0
      %v3229 = vadd.f32 0.0, %v3228
      %v3230 = vpop.f32.mrb[0].mxu0
      %3231 = vmatprep.mubr.bf16.mxu0 0
      %3232 = vmatmul.mubr.bf16.gmra.mrb[0].mxu0 %v3029
      %v3233 = vpop.f32.mrb[0].mxu0
      %v3234 = vadd.f32 0.0, %v3233
      %v3235 = vpop.f32.mrb[0].mxu0
      %v3236 = vpop.f32.mrb[0].mxu0
      %v3237 = vadd.f32 0.0, %v3236
      %v3238 = vpop.f32.mrb[0].mxu0
      %3239 = vmatprep.mubr.bf16.mxu0 0
      %3240 = vmatmul.mubr.bf16.gmra.mrb[0].mxu0 %v3032
      %v3241 = vpop.f32.mrb[0].mxu0
      %v3242 = vadd.f32 0.0, %v3241
      %v3243 = vpop.f32.mrb[0].mxu0
      %v3244 = vpop.f32.mrb[0].mxu0
      %v3245 = vadd.f32 0.0, %v3244
      %v3246 = vpop.f32.mrb[0].mxu0
      %3247 = vmatprep.mubr.bf16.mxu0 0
      %3248 = vmatmul.mubr.bf16.gmra.mrb[0].mxu0 %v3035
      %v3249 = vpop.f32.mrb[0].mxu0
      %v3250 = vadd.f32 0.0, %v3249
      %v3251 = vpop.f32.mrb[0].mxu0
      %v3252 = vpop.f32.mrb[0].mxu0
      %v3253 = vadd.f32 0.0, %v3252
      %v3254 = vpop.f32.mrb[0].mxu0
      %3255 = vmatprep.mubr.bf16.mxu0 0
      %3256 = vmatmul.mubr.bf16.gmra.mrb[0].mxu0 %v3038
      %v3257 = vpop.f32.mrb[0].mxu0
      %v3258 = vadd.f32 0.0, %v3257
      %v3259 = vpop.f32.mrb[0].mxu0
      %v3260 = vpop.f32.mrb[0].mxu0
      %v3261 = vadd.f32 0.0, %v3260
      %v3262 = vpop.f32.mrb[0].mxu0
      %3263 = vmatprep.mubr.bf16.mxu0 0
      %3264 = vmatmul.mubr.bf16.gmra.mrb[0].mxu0 %v3041
      %v3265 = vpop.f32.mrb[0].mxu0
      %v3266 = vadd.f32 0.0, %v3265
      %v3267 = vpop.f32.mrb[0].mxu0
      %v3268 = vpop.f32.mrb[0].mxu0
      %v3269 = vadd.f32 0.0, %v3268
      %v3270 = vpop.f32.mrb[0].mxu0
      %3271 = vmatprep.mubr.bf16.mxu0 0
      %3272 = vmatmul.mubr.bf16.gmra.mrb[0].mxu0 %v3044
      %v3273 = vpop.f32.mrb[0].mxu0
      %v3274 = vadd.f32 0.0, %v3273
      %v3275 = vpop.f32.mrb[0].mxu0
      %v3276 = vpop.f32.mrb[0].mxu0
      %v3277 = vadd.f32 0.0, %v3276
      %v3278 = vpop.f32.mrb[0].mxu0
      %3279 = vmatprep.mubr.bf16.mxu0 0
      %3280 = vmatmul.mubr.bf16.gmra.mrb[0].mxu0 %v3047
      %v3281 = vpop.f32.mrb[0].mxu0
      %v3282 = vadd.f32 0.0, %v3281
      %v3283 = vpop.f32.mrb[0].mxu0
      %v3284 = vpop.f32.mrb[0].mxu0
      %v3285 = vadd.f32 0.0, %v3284
      %v3286 = vpop.f32.mrb[0].mxu0
      %3287 = vmatprep.mubr.bf16.mxu0 0
      %3288 = vmatmul.mubr.bf16.gmra.mrb[0].mxu0 %v3050
      %v3289 = vpop.f32.mrb[0].mxu0
      %v3290 = vadd.f32 0.0, %v3289
      %v3291 = vpop.f32.mrb[0].mxu0
      %v3292 = vpop.f32.mrb[0].mxu0
      %v3293 = vadd.f32 0.0, %v3292
      %v3294 = vpop.f32.mrb[0].mxu0
      %3295 = vmatprep.mubr.bf16.mxu0 0
      %3296 = vmatmul.mubr.bf16.gmra.mrb[0].mxu0 %v3053
      %v3297 = vpop.f32.mrb[0].mxu0
      %v3298 = vadd.f32 0.0, %v3297
      %v3299 = vpop.f32.mrb[0].mxu0
      %v3300 = vpop.f32.mrb[0].mxu0
      %v3301 = vadd.f32 0.0, %v3300
      %v3302 = vpop.f32.mrb[0].mxu0
      %3303 = vmatprep.mubr.bf16.mxu0 0
      %3304 = vmatmul.mubr.bf16.gmra.mrb[0].mxu0 %v3056
      %v3305 = vpop.f32.mrb[0].mxu0
      %v3306 = vadd.f32 0.0, %v3305
      %v3307 = vpop.f32.mrb[0].mxu0
      %v3308 = vpop.f32.mrb[0].mxu0
      %v3309 = vadd.f32 0.0, %v3308
      %v3310 = vpop.f32.mrb[0].mxu0
      %3311 = vmatprep.mubr.bf16.mxu0 0
      %3312 = vmatmul.mubr.bf16.gmra.mrb[0].mxu0 %v3059
      %v3313 = vpop.f32.mrb[0].mxu0
      %v3314 = vadd.f32 0.0, %v3313
      %v3315 = vpop.f32.mrb[0].mxu0
      %v3316 = vpop.f32.mrb[0].mxu0
      %v3317 = vadd.f32 0.0, %v3316
      %v3318 = vpop.f32.mrb[0].mxu0
      %3319 = vmatprep.mubr.bf16.mxu0 0
      %3320 = vmatmul.mubr.bf16.gmra.mrb[0].mxu0 %v3062
      %v3321 = vpop.f32.mrb[0].mxu0
      %v3322 = vadd.f32 0.0, %v3321
      %v3323 = vpop.f32.mrb[0].mxu0
      %v3324 = vpop.f32.mrb[0].mxu0
      %v3325 = vadd.f32 0.0, %v3324
      %v3326 = vpop.f32.mrb[0].mxu0
      %3327 = vmatprep.mubr.bf16.mxu0 0
      %3328 = vmatmul.mubr.bf16.gmra.mrb[0].mxu0 %v3065
      %v3329 = vpop.f32.mrb[0].mxu0
      %v3330 = vadd.f32 0.0, %v3329
      %v3331 = vpop.f32.mrb[0].mxu0
      %v3332 = vpop.f32.mrb[0].mxu0
      %v3333 = vadd.f32 0.0, %v3332
      %v3334 = vpop.f32.mrb[0].mxu0
      %3335 = vmatprep.mubr.bf16.mxu0 0
      %3336 = vmatmul.mubr.bf16.gmra.mrb[0].mxu0 %v3068
      %v3337 = vpop.f32.mrb[0].mxu0
      %v3338 = vadd.f32 0.0, %v3337
      %v3339 = vpop.f32.mrb[0].mxu0
      %v3340 = vpop.f32.mrb[0].mxu0
      %v3341 = vadd.f32 0.0, %v3340
      %v3342 = vpop.f32.mrb[0].mxu0
      %3343 = vmatprep.mubr.bf16.mxu0 0
      %3344 = vmatmul.mubr.bf16.gmra.mrb[0].mxu0 %v3071
      %v3345 = vpop.f32.mrb[0].mxu0
      %v3346 = vadd.f32 0.0, %v3345
      %v3347 = vpop.f32.mrb[0].mxu0
      %v3348 = vpop.f32.mrb[0].mxu0
      %v3349 = vadd.f32 0.0, %v3348
      %v3350 = vpop.f32.mrb[0].mxu0
      %3351 = vmatprep.mubr.bf16.mxu0 0
      %3352 = vmatmul.mubr.bf16.gmra.mrb[0].mxu0 %v3074
      %v3353 = vpop.f32.mrb[0].mxu0
      %v3354 = vadd.f32 0.0, %v3353
      %v3355 = vpop.f32.mrb[0].mxu0
      %v3356 = vpop.f32.mrb[0].mxu0
      %v3357 = vadd.f32 0.0, %v3356
      %v3358 = vpop.f32.mrb[0].mxu0
      %3359 = vmatprep.mubr.bf16.mxu0 0
      %3360 = vmatmul.mubr.bf16.gmra.mrb[0].mxu0 %v3077
      %v3361 = vpop.f32.mrb[0].mxu0
      %v3362 = vadd.f32 0.0, %v3361
      %v3363 = vpop.f32.mrb[0].mxu0
      %v3364 = vpop.f32.mrb[0].mxu0
      %v3365 = vadd.f32 0.0, %v3364
      %v3366 = vpop.f32.mrb[0].mxu0
      %3367 = vmatprep.mubr.bf16.mxu0 0
      %3368 = vmatmul.mubr.bf16.gmra.mrb[0].mxu0 %v3080
      %v3369 = vpop.f32.mrb[0].mxu0
      %v3370 = vadd.f32 0.0, %v3369
      %v3371 = vpop.f32.mrb[0].mxu0
      %v3372 = vpop.f32.mrb[0].mxu0
      %v3373 = vadd.f32 0.0, %v3372
      %v3374 = vpop.f32.mrb[0].mxu0
      %3375 = vmatprep.mubr.bf16.mxu0 0
      %3376 = vmatmul.mubr.bf16.gmra.mrb[0].mxu0 %v3083
      %v3377 = vpop.f32.mrb[0].mxu0
      %v3378 = vadd.f32 0.0, %v3377
      %v3379 = vpop.f32.mrb[0].mxu0
      %v3380 = vpop.f32.mrb[0].mxu0
      %v3381 = vadd.f32 0.0, %v3380
      %v3382 = vpop.f32.mrb[0].mxu0
      %3383 = vmatprep.mubr.bf16.mxu0 0
      %3384 = vmatmul.mubr.bf16.gmra.mrb[0].mxu0 %v3086
      %v3385 = vpop.f32.mrb[0].mxu0
      %v3386 = vadd.f32 0.0, %v3385
      %v3387 = vpop.f32.mrb[0].mxu0
      %v3388 = vpop.f32.mrb[0].mxu0
      %v3389 = vadd.f32 0.0, %v3388
      %v3390 = vpop.f32.mrb[0].mxu0
      %3391 = vmatprep.mubr.bf16.mxu0 0
      %3392 = vmatmul.mubr.bf16.gmra.mrb[0].mxu0 %v3089
      %v3393 = vpop.f32.mrb[0].mxu0
      %v3394 = vadd.f32 0.0, %v3393
      %v3395 = vpop.f32.mrb[0].mxu0
      %v3396 = vpop.f32.mrb[0].mxu0
      %v3397 = vadd.f32 0.0, %v3396
      %v3398 = vpop.f32.mrb[0].mxu0
      %3399 = vmatprep.mubr.bf16.mxu0 0
      %3400 = vmatmul.mubr.bf16.gmra.mrb[0].mxu0 %v3092
      %v3401 = vpop.f32.mrb[0].mxu0
      %v3402 = vadd.f32 0.0, %v3401
      %v3403 = vpop.f32.mrb[0].mxu0
      %v3404 = vpop.f32.mrb[0].mxu0
      %v3405 = vadd.f32 0.0, %v3404
      %v3406 = vpop.f32.mrb[0].mxu0
      %3407 = vmatprep.mubr.bf16.mxu0 0
      %3408 = vmatmul.mubr.bf16.gmra.mrb[0].mxu0 %v3095
      %v3409 = vpop.f32.mrb[0].mxu0
      %v3410 = vadd.f32 0.0, %v3409
      %v3411 = vpop.f32.mrb[0].mxu0
      %v3412 = vpop.f32.mrb[0].mxu0
      %v3413 = vadd.f32 0.0, %v3412
      %v3414 = vpop.f32.mrb[0].mxu0
      %3415 = vmatprep.mubr.bf16.mxu0 0
      %3416 = vmatmul.mubr.bf16.gmra.mrb[0].mxu0 %v3098
      %v3417 = vpop.f32.mrb[0].mxu0
      %v3418 = vadd.f32 0.0, %v3417
      %v3419 = vpop.f32.mrb[0].mxu0
      %v3420 = vpop.f32.mrb[0].mxu0
      %v3421 = vadd.f32 0.0, %v3420
      %v3422 = vpop.f32.mrb[0].mxu0
      %3423 = vmatprep.mubr.bf16.mxu0 0
      %3424 = vmatmul.mubr.bf16.gmra.mrb[0].mxu0 %v3101
      %v3425 = vpop.f32.mrb[0].mxu0
      %v3426 = vadd.f32 0.0, %v3425
      %v3427 = vpop.f32.mrb[0].mxu0
      %v3428 = vpop.f32.mrb[0].mxu0
      %v3429 = vadd.f32 0.0, %v3428
      %v3430 = vpop.f32.mrb[0].mxu0
      %3431 = vmatprep.mubr.bf16.mxu0 0
      %3432 = vmatmul.mubr.bf16.gmra.mrb[0].mxu0 %v3104
      %v3433 = vpop.f32.mrb[0].mxu0
      %v3434 = vadd.f32 0.0, %v3433
      %v3435 = vpop.f32.mrb[0].mxu0
      %v3436 = vpop.f32.mrb[0].mxu0
      %v3437 = vadd.f32 0.0, %v3436
      %v3438 = vpop.f32.mrb[0].mxu0
      %3439 = vmatprep.mubr.bf16.mxu0 0
      %3440 = vmatmul.mubr.bf16.gmra.mrb[0].mxu0 %v3107
      %v3441 = vpop.f32.mrb[0].mxu0
      %v3442 = vadd.f32 0.0, %v3441
      %v3443 = vpop.f32.mrb[0].mxu0
      %v3444 = vpop.f32.mrb[0].mxu0
      %v3445 = vadd.f32 0.0, %v3444
      %v3446 = vpop.f32.mrb[0].mxu0
      %3447 = vmatprep.mubr.bf16.mxu0 0
      %3448 = vmatmul.mubr.bf16.gmra.mrb[0].mxu0 %v3110
      %v3449 = vpop.f32.mrb[0].mxu0
      %v3450 = vadd.f32 0.0, %v3449
      %v3451 = vpop.f32.mrb[0].mxu0
      %v3452 = vpop.f32.mrb[0].mxu0
      %v3453 = vadd.f32 0.0, %v3452
      %v3454 = vpop.f32.mrb[0].mxu0
      %3455 = vmatprep.mubr.bf16.mxu0 0
      %3456 = vmatmul.mubr.bf16.gmra.mrb[0].mxu0 %v3113
      %v3457 = vpop.f32.mrb[0].mxu0
      %v3458 = vadd.f32 0.0, %v3457
      %v3459 = vpop.f32.mrb[0].mxu0
      %v3460 = vpop.f32.mrb[0].mxu0
      %v3461 = vadd.f32 0.0, %v3460
      %v3462 = vpop.f32.mrb[0].mxu0
      %3463 = vmatprep.mubr.bf16.mxu0 0
      %3464 = vmatmul.mubr.bf16.gmra.mrb[0].mxu0 %v3116
      %v3465 = vpop.f32.mrb[0].mxu0
      %v3466 = vadd.f32 0.0, %v3465
      %v3467 = vpop.f32.mrb[0].mxu0
      %v3468 = vpop.f32.mrb[0].mxu0
      %v3469 = vadd.f32 0.0, %v3468
      %v3470 = vpop.f32.mrb[0].mxu0
      %3471 = vmatprep.mubr.bf16.mxu0 0
      %3472 = vmatmul.mubr.bf16.gmra.mrb[0].mxu0 %v3119
      %v3473 = vpop.f32.mrb[0].mxu0
      %v3474 = vadd.f32 0.0, %v3473
      %v3475 = vpop.f32.mrb[0].mxu0
      %v3476 = vpop.f32.mrb[0].mxu0
      %v3477 = vadd.f32 0.0, %v3476
      %v3478 = vpop.f32.mrb[0].mxu0
      %3479 = vmatprep.mubr.bf16.mxu0 0
      %3480 = vmatmul.mubr.bf16.gmra.mrb[0].mxu0 %v3122
      %v3481 = vpop.f32.mrb[0].mxu0
      %v3482 = vadd.f32 0.0, %v3481
      %v3483 = vpop.f32.mrb[0].mxu0
      %v3484 = vpop.f32.mrb[0].mxu0
      %v3485 = vadd.f32 0.0, %v3484
      %v3486 = vpop.f32.mrb[0].mxu0
      %3487 = vmatprep.mubr.bf16.mxu0 0
      %3488 = vmatmul.mubr.bf16.gmra.mrb[0].mxu0 %v3125
      %v3489 = vpop.f32.mrb[0].mxu0
      %v3490 = vadd.f32 0.0, %v3489
      %v3491 = vpop.f32.mrb[0].mxu0
      %v3492 = vpop.f32.mrb[0].mxu0
      %v3493 = vadd.f32 0.0, %v3492
      %v3494 = vpop.f32.mrb[0].mxu0
      %3495 = vmatprep.mubr.bf16.mxu0 0
      %3496 = vmatmul.mubr.bf16.gmra.mrb[0].mxu0 %v3128
      %v3497 = vpop.f32.mrb[0].mxu0
      %v3498 = vadd.f32 0.0, %v3497
      %v3499 = vpop.f32.mrb[0].mxu0
      %v3500 = vpop.f32.mrb[0].mxu0
      %v3501 = vadd.f32 0.0, %v3500
      %v3502 = vpop.f32.mrb[0].mxu0
      %3503 = vmatprep.mubr.bf16.mxu0 0
      %3504 = vmatmul.mubr.bf16.gmra.mrb[0].mxu0 %v3131
      %v3505 = vpop.f32.mrb[0].mxu0
      %v3506 = vadd.f32 0.0, %v3505
      %v3507 = vpop.f32.mrb[0].mxu0
      %v3508 = vpop.f32.mrb[0].mxu0
      %v3509 = vadd.f32 0.0, %v3508
      %v3510 = vpop.f32.mrb[0].mxu0
      %3511 = vmatprep.mubr.bf16.mxu0 0
      %3512 = vmatmul.mubr.bf16.gmra.mrb[0].mxu0 %v3134
      %v3513 = vpop.f32.mrb[0].mxu0
      %v3514 = vadd.f32 0.0, %v3513
      %v3515 = vpop.f32.mrb[0].mxu0
      %v3516 = vpop.f32.mrb[0].mxu0
      %v3517 = vadd.f32 0.0, %v3516
      %v3518 = vpop.f32.mrb[0].mxu0
      %3519 = vmatprep.mubr.bf16.mxu0 0
      %3520 = vmatmul.mubr.bf16.gmra.mrb[0].mxu0 %v3137
      %v3521 = vpop.f32.mrb[0].mxu0
      %v3522 = vadd.f32 0.0, %v3521
      %v3523 = vpop.f32.mrb[0].mxu0
      %v3524 = vpop.f32.mrb[0].mxu0
      %v3525 = vadd.f32 0.0, %v3524
      %v3526 = vpop.f32.mrb[0].mxu0
      %3527 = vmatprep.mubr.bf16.mxu0 0
      %3528 = vmatmul.mubr.bf16.gmra.mrb[0].mxu0 %v3140
      %v3529 = vpop.f32.mrb[0].mxu0
      %v3530 = vadd.f32 0.0, %v3529
      %v3531 = vpop.f32.mrb[0].mxu0
      %v3532 = vpop.f32.mrb[0].mxu0
      %v3533 = vadd.f32 0.0, %v3532
      %v3534 = vpop.f32.mrb[0].mxu0
      %3535 = vmatprep.mubr.bf16.mxu0 0
      %3536 = vmatmul.mubr.bf16.gmra.mrb[0].mxu0 %v3143
      %v3537 = vpop.f32.mrb[0].mxu0
      %v3538 = vadd.f32 0.0, %v3537
      %v3539 = vpop.f32.mrb[0].mxu0
      %v3540 = vpop.f32.mrb[0].mxu0
      %v3541 = vadd.f32 0.0, %v3540
      %v3542 = vpop.f32.mrb[0].mxu0
      %3543 = vmatprep.mubr.bf16.mxu0 0
      %3544 = vmatmul.mubr.bf16.gmra.mrb[0].mxu0 %v3146
      %v3545 = vpop.f32.mrb[0].mxu0
      %v3546 = vadd.f32 0.0, %v3545
      %v3547 = vpop.f32.mrb[0].mxu0
      %v3548 = vpop.f32.mrb[0].mxu0
      %v3549 = vadd.f32 0.0, %v3548
      %v3550 = vpop.f32.mrb[0].mxu0
      %3551 = vmatprep.mubr.bf16.mxu0 0
      %3552 = vmatmul.mubr.bf16.gmra.mrb[0].mxu0 %v3149
      %v3553 = vpop.f32.mrb[0].mxu0
      %v3554 = vadd.f32 0.0, %v3553
      %v3555 = vpop.f32.mrb[0].mxu0
      %v3556 = vpop.f32.mrb[0].mxu0
      %v3557 = vadd.f32 0.0, %v3556
      %v3558 = vpop.f32.mrb[0].mxu0
      %3559 = vmatprep.mubr.bf16.mxu0 0
      %3560 = vmatmul.mubr.bf16.gmra.mrb[0].mxu0 %v3152
      %v3561 = vpop.f32.mrb[0].mxu0
      %v3562 = vadd.f32 0.0, %v3561
      %v3563 = vpop.f32.mrb[0].mxu0
      %v3564 = vpop.f32.mrb[0].mxu0
      %v3565 = vadd.f32 0.0, %v3564
      %v3566 = vpop.f32.mrb[0].mxu0
      %3567 = vmatprep.mubr.bf16.mxu0 0
      %3568 = vmatmul.mubr.bf16.gmra.mrb[0].mxu0 %v3155
      %v3569 = vpop.f32.mrb[0].mxu0
      %v3570 = vadd.f32 0.0, %v3569
      %v3571 = vpop.f32.mrb[0].mxu0
      %v3572 = vpop.f32.mrb[0].mxu0
      %v3573 = vadd.f32 0.0, %v3572
      %v3574 = vpop.f32.mrb[0].mxu0
      %3575 = vmatprep.mubr.bf16.mxu0 0
      %3576 = vmatmul.mubr.bf16.gmra.mrb[0].mxu0 %v3158
      %v3577 = vpop.f32.mrb[0].mxu0
      %v3578 = vadd.f32 0.0, %v3577
      %v3579 = vpop.f32.mrb[0].mxu0
      %v3580 = vpop.f32.mrb[0].mxu0
      %v3581 = vadd.f32 0.0, %v3580
      %v3582 = vpop.f32.mrb[0].mxu0
      %3583 = vmatprep.mubr.bf16.mxu0 0
      %3584 = vmatmul.mubr.bf16.gmra.mrb[0].mxu0 %v3161
      %v3585 = vpop.f32.mrb[0].mxu0
      %v3586 = vadd.f32 0.0, %v3585
      %v3587 = vpop.f32.mrb[0].mxu0
      %v3588 = vpop.f32.mrb[0].mxu0
      %v3589 = vadd.f32 0.0, %v3588
      %v3590 = vpop.f32.mrb[0].mxu0
      %3591 = vdwg.mxu0
      %vm3592 = vcmask 523264
      %v3593 = vsel %vm3592, %v3210, -inf
      %3594 = vmax.xlane.f32.xlu0 %v3593
      %v3595 = vpop.xlane.xlu0 %3594
      %v3596 = vsel %vm3592, %v3213, -inf
      %3597 = vmax.xlane.f32.xlu0 %v3596
      %v3598 = vpop.xlane.xlu0 %3597
      %v3599 = vsel %vm3592, %v3218, -inf
      %3600 = vmax.xlane.f32.xlu0 %v3599
      %v3601 = vpop.xlane.xlu0 %3600
      %v3602 = vsel %vm3592, %v3221, -inf
      %3603 = vmax.xlane.f32.xlu0 %v3602
      %v3604 = vpop.xlane.xlu0 %3603
      %v3605 = vsel %vm3592, %v3226, -inf
      %3606 = vmax.xlane.f32.xlu0 %v3605
      %v3607 = vpop.xlane.xlu0 %3606
      %v3608 = vsel %vm3592, %v3229, -inf
      %3609 = vmax.xlane.f32.xlu0 %v3608
      %v3610 = vpop.xlane.xlu0 %3609
      %v3611 = vsel %vm3592, %v3234, -inf
      %3612 = vmax.xlane.f32.xlu0 %v3611
      %v3613 = vpop.xlane.xlu0 %3612
      %v3614 = vsel %vm3592, %v3237, -inf
      %3615 = vmax.xlane.f32.xlu0 %v3614
      %v3616 = vpop.xlane.xlu0 %3615
      %v3617 = vsel %vm3592, %v3242, -inf
      %3618 = vmax.xlane.f32.xlu0 %v3617
      %v3619 = vpop.xlane.xlu0 %3618
      %v3620 = vsel %vm3592, %v3245, -inf
      %3621 = vmax.xlane.f32.xlu0 %v3620
      %v3622 = vpop.xlane.xlu0 %3621
      %v3623 = vsel %vm3592, %v3250, -inf
      %3624 = vmax.xlane.f32.xlu0 %v3623
      %v3625 = vpop.xlane.xlu0 %3624
      %v3626 = vsel %vm3592, %v3253, -inf
      %3627 = vmax.xlane.f32.xlu0 %v3626
      %v3628 = vpop.xlane.xlu0 %3627
      %v3629 = vsel %vm3592, %v3258, -inf
      %3630 = vmax.xlane.f32.xlu0 %v3629
      %v3631 = vpop.xlane.xlu0 %3630
      %v3632 = vsel %vm3592, %v3261, -inf
      %3633 = vmax.xlane.f32.xlu0 %v3632
      %v3634 = vpop.xlane.xlu0 %3633
      %v3635 = vsel %vm3592, %v3266, -inf
      %3636 = vmax.xlane.f32.xlu0 %v3635
      %v3637 = vpop.xlane.xlu0 %3636
      %v3638 = vsel %vm3592, %v3269, -inf
      %3639 = vmax.xlane.f32.xlu0 %v3638
      %v3640 = vpop.xlane.xlu0 %3639
      %v3641 = vsel %vm3592, %v3274, -inf
      %3642 = vmax.xlane.f32.xlu0 %v3641
      %v3643 = vpop.xlane.xlu0 %3642
      %v3644 = vsel %vm3592, %v3277, -inf
      %3645 = vmax.xlane.f32.xlu0 %v3644
      %v3646 = vpop.xlane.xlu0 %3645
      %v3647 = vsel %vm3592, %v3282, -inf
      %3648 = vmax.xlane.f32.xlu0 %v3647
      %v3649 = vpop.xlane.xlu0 %3648
      %v3650 = vsel %vm3592, %v3285, -inf
      %3651 = vmax.xlane.f32.xlu0 %v3650
      %v3652 = vpop.xlane.xlu0 %3651
      %v3653 = vsel %vm3592, %v3290, -inf
      %3654 = vmax.xlane.f32.xlu0 %v3653
      %v3655 = vpop.xlane.xlu0 %3654
      %v3656 = vsel %vm3592, %v3293, -inf
      %3657 = vmax.xlane.f32.xlu0 %v3656
      %v3658 = vpop.xlane.xlu0 %3657
      %v3659 = vsel %vm3592, %v3298, -inf
      %3660 = vmax.xlane.f32.xlu0 %v3659
      %v3661 = vpop.xlane.xlu0 %3660
      %v3662 = vsel %vm3592, %v3301, -inf
      %3663 = vmax.xlane.f32.xlu0 %v3662
      %v3664 = vpop.xlane.xlu0 %3663
      %v3665 = vsel %vm3592, %v3306, -inf
      %3666 = vmax.xlane.f32.xlu0 %v3665
      %v3667 = vpop.xlane.xlu0 %3666
      %v3668 = vsel %vm3592, %v3309, -inf
      %3669 = vmax.xlane.f32.xlu0 %v3668
      %v3670 = vpop.xlane.xlu0 %3669
      %v3671 = vsel %vm3592, %v3314, -inf
      %3672 = vmax.xlane.f32.xlu0 %v3671
      %v3673 = vpop.xlane.xlu0 %3672
      %v3674 = vsel %vm3592, %v3317, -inf
      %3675 = vmax.xlane.f32.xlu0 %v3674
      %v3676 = vpop.xlane.xlu0 %3675
      %v3677 = vsel %vm3592, %v3322, -inf
      %3678 = vmax.xlane.f32.xlu0 %v3677
      %v3679 = vpop.xlane.xlu0 %3678
      %v3680 = vsel %vm3592, %v3325, -inf
      %3681 = vmax.xlane.f32.xlu0 %v3680
      %v3682 = vpop.xlane.xlu0 %3681
      %v3683 = vsel %vm3592, %v3330, -inf
      %3684 = vmax.xlane.f32.xlu0 %v3683
      %v3685 = vpop.xlane.xlu0 %3684
      %v3686 = vsel %vm3592, %v3333, -inf
      %3687 = vmax.xlane.f32.xlu0 %v3686
      %v3688 = vpop.xlane.xlu0 %3687
      %v3689 = vsel %vm3592, %v3338, -inf
      %3690 = vmax.xlane.f32.xlu0 %v3689
      %v3691 = vpop.xlane.xlu0 %3690
      %v3692 = vsel %vm3592, %v3341, -inf
      %3693 = vmax.xlane.f32.xlu0 %v3692
      %v3694 = vpop.xlane.xlu0 %3693
      %v3695 = vsel %vm3592, %v3346, -inf
      %3696 = vmax.xlane.f32.xlu0 %v3695
      %v3697 = vpop.xlane.xlu0 %3696
      %v3698 = vsel %vm3592, %v3349, -inf
      %3699 = vmax.xlane.f32.xlu0 %v3698
      %v3700 = vpop.xlane.xlu0 %3699
      %v3701 = vsel %vm3592, %v3354, -inf
      %3702 = vmax.xlane.f32.xlu0 %v3701
      %v3703 = vpop.xlane.xlu0 %3702
      %v3704 = vsel %vm3592, %v3357, -inf
      %3705 = vmax.xlane.f32.xlu0 %v3704
      %v3706 = vpop.xlane.xlu0 %3705
      %v3707 = vsel %vm3592, %v3362, -inf
      %3708 = vmax.xlane.f32.xlu0 %v3707
      %v3709 = vpop.xlane.xlu0 %3708
      %v3710 = vsel %vm3592, %v3365, -inf
      %3711 = vmax.xlane.f32.xlu0 %v3710
      %v3712 = vpop.xlane.xlu0 %3711
      %v3713 = vsel %vm3592, %v3370, -inf
      %3714 = vmax.xlane.f32.xlu0 %v3713
      %v3715 = vpop.xlane.xlu0 %3714
      %v3716 = vsel %vm3592, %v3373, -inf
      %3717 = vmax.xlane.f32.xlu0 %v3716
      %v3718 = vpop.xlane.xlu0 %3717
      %v3719 = vsel %vm3592, %v3378, -inf
      %3720 = vmax.xlane.f32.xlu0 %v3719
      %v3721 = vpop.xlane.xlu0 %3720
      %v3722 = vsel %vm3592, %v3381, -inf
      %3723 = vmax.xlane.f32.xlu0 %v3722
      %v3724 = vpop.xlane.xlu0 %3723
      %v3725 = vsel %vm3592, %v3386, -inf
      %3726 = vmax.xlane.f32.xlu0 %v3725
      %v3727 = vpop.xlane.xlu0 %3726
      %v3728 = vsel %vm3592, %v3389, -inf
      %3729 = vmax.xlane.f32.xlu0 %v3728
      %v3730 = vpop.xlane.xlu0 %3729
      %v3731 = vsel %vm3592, %v3394, -inf
      %3732 = vmax.xlane.f32.xlu0 %v3731
      %v3733 = vpop.xlane.xlu0 %3732
      %v3734 = vsel %vm3592, %v3397, -inf
      %3735 = vmax.xlane.f32.xlu0 %v3734
      %v3736 = vpop.xlane.xlu0 %3735
      %v3737 = vsel %vm3592, %v3402, -inf
      %3738 = vmax.xlane.f32.xlu0 %v3737
      %v3739 = vpop.xlane.xlu0 %3738
      %v3740 = vsel %vm3592, %v3405, -inf
      %3741 = vmax.xlane.f32.xlu0 %v3740
      %v3742 = vpop.xlane.xlu0 %3741
      %v3743 = vsel %vm3592, %v3410, -inf
      %3744 = vmax.xlane.f32.xlu0 %v3743
      %v3745 = vpop.xlane.xlu0 %3744
      %v3746 = vsel %vm3592, %v3413, -inf
      %3747 = vmax.xlane.f32.xlu0 %v3746
      %v3748 = vpop.xlane.xlu0 %3747
      %v3749 = vsel %vm3592, %v3418, -inf
      %3750 = vmax.xlane.f32.xlu0 %v3749
      %v3751 = vpop.xlane.xlu0 %3750
      %v3752 = vsel %vm3592, %v3421, -inf
      %3753 = vmax.xlane.f32.xlu0 %v3752
      %v3754 = vpop.xlane.xlu0 %3753
      %v3755 = vsel %vm3592, %v3426, -inf
      %3756 = vmax.xlane.f32.xlu0 %v3755
      %v3757 = vpop.xlane.xlu0 %3756
      %v3758 = vsel %vm3592, %v3429, -inf
      %3759 = vmax.xlane.f32.xlu0 %v3758
      %v3760 = vpop.xlane.xlu0 %3759
      %v3761 = vsel %vm3592, %v3434, -inf
      %3762 = vmax.xlane.f32.xlu0 %v3761
      %v3763 = vpop.xlane.xlu0 %3762
      %v3764 = vsel %vm3592, %v3437, -inf
      %3765 = vmax.xlane.f32.xlu0 %v3764
      %v3766 = vpop.xlane.xlu0 %3765
      %v3767 = vsel %vm3592, %v3442, -inf
      %3768 = vmax.xlane.f32.xlu0 %v3767
      %v3769 = vpop.xlane.xlu0 %3768
      %v3770 = vsel %vm3592, %v3445, -inf
      %3771 = vmax.xlane.f32.xlu0 %v3770
      %v3772 = vpop.xlane.xlu0 %3771
      %v3773 = vsel %vm3592, %v3450, -inf
      %3774 = vmax.xlane.f32.xlu0 %v3773
      %v3775 = vpop.xlane.xlu0 %3774
      %v3776 = vsel %vm3592, %v3453, -inf
      %3777 = vmax.xlane.f32.xlu0 %v3776
      %v3778 = vpop.xlane.xlu0 %3777
      %v3779 = vsel %vm3592, %v3458, -inf
      %3780 = vmax.xlane.f32.xlu0 %v3779
      %v3781 = vpop.xlane.xlu0 %3780
      %v3782 = vsel %vm3592, %v3461, -inf
      %3783 = vmax.xlane.f32.xlu0 %v3782
      %v3784 = vpop.xlane.xlu0 %3783
      %v3785 = vsel %vm3592, %v3466, -inf
      %3786 = vmax.xlane.f32.xlu0 %v3785
      %v3787 = vpop.xlane.xlu0 %3786
      %v3788 = vsel %vm3592, %v3469, -inf
      %3789 = vmax.xlane.f32.xlu0 %v3788
      %v3790 = vpop.xlane.xlu0 %3789
      %v3791 = vsel %vm3592, %v3474, -inf
      %3792 = vmax.xlane.f32.xlu0 %v3791
      %v3793 = vpop.xlane.xlu0 %3792
      %v3794 = vsel %vm3592, %v3477, -inf
      %3795 = vmax.xlane.f32.xlu0 %v3794
      %v3796 = vpop.xlane.xlu0 %3795
      %v3797 = vsel %vm3592, %v3482, -inf
      %3798 = vmax.xlane.f32.xlu0 %v3797
      %v3799 = vpop.xlane.xlu0 %3798
      %v3800 = vsel %vm3592, %v3485, -inf
      %3801 = vmax.xlane.f32.xlu0 %v3800
      %v3802 = vpop.xlane.xlu0 %3801
      %v3803 = vsel %vm3592, %v3490, -inf
      %3804 = vmax.xlane.f32.xlu0 %v3803
      %v3805 = vpop.xlane.xlu0 %3804
      %v3806 = vsel %vm3592, %v3493, -inf
      %3807 = vmax.xlane.f32.xlu0 %v3806
      %v3808 = vpop.xlane.xlu0 %3807
      %v3809 = vsel %vm3592, %v3498, -inf
      %3810 = vmax.xlane.f32.xlu0 %v3809
      %v3811 = vpop.xlane.xlu0 %3810
      %v3812 = vsel %vm3592, %v3501, -inf
      %3813 = vmax.xlane.f32.xlu0 %v3812
      %v3814 = vpop.xlane.xlu0 %3813
      %v3815 = vsel %vm3592, %v3506, -inf
      %3816 = vmax.xlane.f32.xlu0 %v3815
      %v3817 = vpop.xlane.xlu0 %3816
      %v3818 = vsel %vm3592, %v3509, -inf
      %3819 = vmax.xlane.f32.xlu0 %v3818
      %v3820 = vpop.xlane.xlu0 %3819
      %v3821 = vsel %vm3592, %v3514, -inf
      %3822 = vmax.xlane.f32.xlu0 %v3821
      %v3823 = vpop.xlane.xlu0 %3822
      %v3824 = vsel %vm3592, %v3517, -inf
      %3825 = vmax.xlane.f32.xlu0 %v3824
      %v3826 = vpop.xlane.xlu0 %3825
      %v3827 = vsel %vm3592, %v3522, -inf
      %3828 = vmax.xlane.f32.xlu0 %v3827
      %v3829 = vpop.xlane.xlu0 %3828
      %v3830 = vsel %vm3592, %v3525, -inf
      %3831 = vmax.xlane.f32.xlu0 %v3830
      %v3832 = vpop.xlane.xlu0 %3831
      %v3833 = vsel %vm3592, %v3530, -inf
      %3834 = vmax.xlane.f32.xlu0 %v3833
      %v3835 = vpop.xlane.xlu0 %3834
      %v3836 = vsel %vm3592, %v3533, -inf
      %3837 = vmax.xlane.f32.xlu0 %v3836
      %v3838 = vpop.xlane.xlu0 %3837
      %v3839 = vsel %vm3592, %v3538, -inf
      %3840 = vmax.xlane.f32.xlu0 %v3839
      %v3841 = vpop.xlane.xlu0 %3840
      %v3842 = vsel %vm3592, %v3541, -inf
      %3843 = vmax.xlane.f32.xlu0 %v3842
      %v3844 = vpop.xlane.xlu0 %3843
      %v3845 = vsel %vm3592, %v3546, -inf
      %3846 = vmax.xlane.f32.xlu0 %v3845
      %v3847 = vpop.xlane.xlu0 %3846
      %v3848 = vsel %vm3592, %v3549, -inf
      %3849 = vmax.xlane.f32.xlu0 %v3848
      %v3850 = vpop.xlane.xlu0 %3849
      %v3851 = vsel %vm3592, %v3554, -inf
      %3852 = vmax.xlane.f32.xlu0 %v3851
      %v3853 = vpop.xlane.xlu0 %3852
      %v3854 = vsel %vm3592, %v3557, -inf
      %3855 = vmax.xlane.f32.xlu0 %v3854
      %v3856 = vpop.xlane.xlu0 %3855
      %v3857 = vsel %vm3592, %v3562, -inf
      %3858 = vmax.xlane.f32.xlu0 %v3857
      %v3859 = vpop.xlane.xlu0 %3858
      %v3860 = vsel %vm3592, %v3565, -inf
      %3861 = vmax.xlane.f32.xlu0 %v3860
      %v3862 = vpop.xlane.xlu0 %3861
      %v3863 = vsel %vm3592, %v3570, -inf
      %3864 = vmax.xlane.f32.xlu0 %v3863
      %v3865 = vpop.xlane.xlu0 %3864
      %v3866 = vsel %vm3592, %v3573, -inf
      %3867 = vmax.xlane.f32.xlu0 %v3866
      %v3868 = vpop.xlane.xlu0 %3867
      %v3869 = vsel %vm3592, %v3578, -inf
      %3870 = vmax.xlane.f32.xlu0 %v3869
      %v3871 = vpop.xlane.xlu0 %3870
      %v3872 = vsel %vm3592, %v3581, -inf
      %3873 = vmax.xlane.f32.xlu0 %v3872
      %v3874 = vpop.xlane.xlu0 %3873
      %v3875 = vsel %vm3592, %v3586, -inf
      %3876 = vmax.xlane.f32.xlu0 %v3875
      %v3877 = vpop.xlane.xlu0 %3876
      %v3878 = vsel %vm3592, %v3589, -inf
      %3879 = vmax.xlane.f32.xlu0 %v3878
      %v3880 = vpop.xlane.xlu0 %3879
      %v3881 = vsub.f32 %v3210, %v3595
      %v3882 = vsub.f32 %v3213, %v3598
      %v3883 = vsub.f32 %v3218, %v3601
      %v3884 = vsub.f32 %v3221, %v3604
      %v3885 = vsub.f32 %v3226, %v3607
      %v3886 = vsub.f32 %v3229, %v3610
      %v3887 = vsub.f32 %v3234, %v3613
      %v3888 = vsub.f32 %v3237, %v3616
      %v3889 = vsub.f32 %v3242, %v3619
      %v3890 = vsub.f32 %v3245, %v3622
      %v3891 = vsub.f32 %v3250, %v3625
      %v3892 = vsub.f32 %v3253, %v3628
      %v3893 = vsub.f32 %v3258, %v3631
      %v3894 = vsub.f32 %v3261, %v3634
      %v3895 = vsub.f32 %v3266, %v3637
      %v3896 = vsub.f32 %v3269, %v3640
      %v3897 = vsub.f32 %v3274, %v3643
      %v3898 = vsub.f32 %v3277, %v3646
      %v3899 = vsub.f32 %v3282, %v3649
      %v3900 = vsub.f32 %v3285, %v3652
      %v3901 = vsub.f32 %v3290, %v3655
      %v3902 = vsub.f32 %v3293, %v3658
      %v3903 = vsub.f32 %v3298, %v3661
      %v3904 = vsub.f32 %v3301, %v3664
      %v3905 = vsub.f32 %v3306, %v3667
      %v3906 = vsub.f32 %v3309, %v3670
      %v3907 = vsub.f32 %v3314, %v3673
      %v3908 = vsub.f32 %v3317, %v3676
      %v3909 = vsub.f32 %v3322, %v3679
      %v3910 = vsub.f32 %v3325, %v3682
      %v3911 = vsub.f32 %v3330, %v3685
      %v3912 = vsub.f32 %v3333, %v3688
      %v3913 = vsub.f32 %v3338, %v3691
      %v3914 = vsub.f32 %v3341, %v3694
      %v3915 = vsub.f32 %v3346, %v3697
      %v3916 = vsub.f32 %v3349, %v3700
      %v3917 = vsub.f32 %v3354, %v3703
      %v3918 = vsub.f32 %v3357, %v3706
      %v3919 = vsub.f32 %v3362, %v3709
      %v3920 = vsub.f32 %v3365, %v3712
      %v3921 = vsub.f32 %v3370, %v3715
      %v3922 = vsub.f32 %v3373, %v3718
      %v3923 = vsub.f32 %v3378, %v3721
      %v3924 = vsub.f32 %v3381, %v3724
      %v3925 = vsub.f32 %v3386, %v3727
      %v3926 = vsub.f32 %v3389, %v3730
      %v3927 = vsub.f32 %v3394, %v3733
      %v3928 = vsub.f32 %v3397, %v3736
      %v3929 = vsub.f32 %v3402, %v3739
      %v3930 = vsub.f32 %v3405, %v3742
      %v3931 = vsub.f32 %v3410, %v3745
      %v3932 = vsub.f32 %v3413, %v3748
      %v3933 = vsub.f32 %v3418, %v3751
      %v3934 = vsub.f32 %v3421, %v3754
      %v3935 = vsub.f32 %v3426, %v3757
      %v3936 = vsub.f32 %v3429, %v3760
      %v3937 = vsub.f32 %v3434, %v3763
      %v3938 = vsub.f32 %v3437, %v3766
      %v3939 = vsub.f32 %v3442, %v3769
      %v3940 = vsub.f32 %v3445, %v3772
      %v3941 = vsub.f32 %v3450, %v3775
      %v3942 = vsub.f32 %v3453, %v3778
      %v3943 = vsub.f32 %v3458, %v3781
      %v3944 = vsub.f32 %v3461, %v3784
      %v3945 = vsub.f32 %v3466, %v3787
      %v3946 = vsub.f32 %v3469, %v3790
      %v3947 = vsub.f32 %v3474, %v3793
      %v3948 = vsub.f32 %v3477, %v3796
      %v3949 = vsub.f32 %v3482, %v3799
      %v3950 = vsub.f32 %v3485, %v3802
      %v3951 = vsub.f32 %v3490, %v3805
      %v3952 = vsub.f32 %v3493, %v3808
      %v3953 = vsub.f32 %v3498, %v3811
      %v3954 = vsub.f32 %v3501, %v3814
      %v3955 = vsub.f32 %v3506, %v3817
      %v3956 = vsub.f32 %v3509, %v3820
      %v3957 = vsub.f32 %v3514, %v3823
      %v3958 = vsub.f32 %v3517, %v3826
      %v3959 = vsub.f32 %v3522, %v3829
      %v3960 = vsub.f32 %v3525, %v3832
      %v3961 = vsub.f32 %v3530, %v3835
      %v3962 = vsub.f32 %v3533, %v3838
      %v3963 = vsub.f32 %v3538, %v3841
      %v3964 = vsub.f32 %v3541, %v3844
      %v3965 = vsub.f32 %v3546, %v3847
      %v3966 = vsub.f32 %v3549, %v3850
      %v3967 = vsub.f32 %v3554, %v3853
      %v3968 = vsub.f32 %v3557, %v3856
      %v3969 = vsub.f32 %v3562, %v3859
      %v3970 = vsub.f32 %v3565, %v3862
      %v3971 = vsub.f32 %v3570, %v3865
      %v3972 = vsub.f32 %v3573, %v3868
      %v3973 = vsub.f32 %v3578, %v3871
      %v3974 = vsub.f32 %v3581, %v3874
      %v3975 = vsub.f32 %v3586, %v3877
      %v3976 = vsub.f32 %v3589, %v3880
      %v3977 = vmul.f32 %v3881, 1.442695
      %v3978 = vpow.pop %v3977
      %v3979 = vmul.f32 %v3882, 1.442695
      %v3980 = vpow.pop %v3979
      %v3981 = vmul.f32 %v3883, 1.442695
      %v3982 = vpow.pop %v3981
      %v3983 = vmul.f32 %v3884, 1.442695
      %v3984 = vpow.pop %v3983
      %v3985 = vmul.f32 %v3885, 1.442695
      %v3986 = vpow.pop %v3985
      %v3987 = vmul.f32 %v3886, 1.442695
      %v3988 = vpow.pop %v3987
      %v3989 = vmul.f32 %v3887, 1.442695
      %v3990 = vpow.pop %v3989
      %v3991 = vmul.f32 %v3888, 1.442695
      %v3992 = vpow.pop %v3991
      %v3993 = vmul.f32 %v3889, 1.442695
      %v3994 = vpow.pop %v3993
      %v3995 = vmul.f32 %v3890, 1.442695
      %v3996 = vpow.pop %v3995
      %v3997 = vmul.f32 %v3891, 1.442695
      %v3998 = vpow.pop %v3997
      %v3999 = vmul.f32 %v3892, 1.442695
      %v4000 = vpow.pop %v3999
      %v4001 = vmul.f32 %v3893, 1.442695
      %v4002 = vpow.pop %v4001
      %v4003 = vmul.f32 %v3894, 1.442695
      %v4004 = vpow.pop %v4003
      %v4005 = vmul.f32 %v3895, 1.442695
      %v4006 = vpow.pop %v4005
      %v4007 = vmul.f32 %v3896, 1.442695
      %v4008 = vpow.pop %v4007
      %v4009 = vmul.f32 %v3897, 1.442695
      %v4010 = vpow.pop %v4009
      %v4011 = vmul.f32 %v3898, 1.442695
      %v4012 = vpow.pop %v4011
      %v4013 = vmul.f32 %v3899, 1.442695
      %v4014 = vpow.pop %v4013
      %v4015 = vmul.f32 %v3900, 1.442695
      %v4016 = vpow.pop %v4015
      %v4017 = vmul.f32 %v3901, 1.442695
      %v4018 = vpow.pop %v4017
      %v4019 = vmul.f32 %v3902, 1.442695
      %v4020 = vpow.pop %v4019
      %v4021 = vmul.f32 %v3903, 1.442695
      %v4022 = vpow.pop %v4021
      %v4023 = vmul.f32 %v3904, 1.442695
      %v4024 = vpow.pop %v4023
      %v4025 = vmul.f32 %v3905, 1.442695
      %v4026 = vpow.pop %v4025
      %v4027 = vmul.f32 %v3906, 1.442695
      %v4028 = vpow.pop %v4027
      %v4029 = vmul.f32 %v3907, 1.442695
      %v4030 = vpow.pop %v4029
      %v4031 = vmul.f32 %v3908, 1.442695
      %v4032 = vpow.pop %v4031
      %v4033 = vmul.f32 %v3909, 1.442695
      %v4034 = vpow.pop %v4033
      %v4035 = vmul.f32 %v3910, 1.442695
      %v4036 = vpow.pop %v4035
      %v4037 = vmul.f32 %v3911, 1.442695
      %v4038 = vpow.pop %v4037
      %v4039 = vmul.f32 %v3912, 1.442695
      %v4040 = vpow.pop %v4039
      %v4041 = vmul.f32 %v3913, 1.442695
      %v4042 = vpow.pop %v4041
      %v4043 = vmul.f32 %v3914, 1.442695
      %v4044 = vpow.pop %v4043
      %v4045 = vmul.f32 %v3915, 1.442695
      %v4046 = vpow.pop %v4045
      %v4047 = vmul.f32 %v3916, 1.442695
      %v4048 = vpow.pop %v4047
      %v4049 = vmul.f32 %v3917, 1.442695
      %v4050 = vpow.pop %v4049
      %v4051 = vmul.f32 %v3918, 1.442695
      %v4052 = vpow.pop %v4051
      %v4053 = vmul.f32 %v3919, 1.442695
      %v4054 = vpow.pop %v4053
      %v4055 = vmul.f32 %v3920, 1.442695
      %v4056 = vpow.pop %v4055
      %v4057 = vmul.f32 %v3921, 1.442695
      %v4058 = vpow.pop %v4057
      %v4059 = vmul.f32 %v3922, 1.442695
      %v4060 = vpow.pop %v4059
      %v4061 = vmul.f32 %v3923, 1.442695
      %v4062 = vpow.pop %v4061
      %v4063 = vmul.f32 %v3924, 1.442695
      %v4064 = vpow.pop %v4063
      %v4065 = vmul.f32 %v3925, 1.442695
      %v4066 = vpow.pop %v4065
      %v4067 = vmul.f32 %v3926, 1.442695
      %v4068 = vpow.pop %v4067
      %v4069 = vmul.f32 %v3927, 1.442695
      %v4070 = vpow.pop %v4069
      %v4071 = vmul.f32 %v3928, 1.442695
      %v4072 = vpow.pop %v4071
      %v4073 = vmul.f32 %v3929, 1.442695
      %v4074 = vpow.pop %v4073
      %v4075 = vmul.f32 %v3930, 1.442695
      %v4076 = vpow.pop %v4075
      %v4077 = vmul.f32 %v3931, 1.442695
      %v4078 = vpow.pop %v4077
      %v4079 = vmul.f32 %v3932, 1.442695
      %v4080 = vpow.pop %v4079
      %v4081 = vmul.f32 %v3933, 1.442695
      %v4082 = vpow.pop %v4081
      %v4083 = vmul.f32 %v3934, 1.442695
      %v4084 = vpow.pop %v4083
      %v4085 = vmul.f32 %v3935, 1.442695
      %v4086 = vpow.pop %v4085
      %v4087 = vmul.f32 %v3936, 1.442695
      %v4088 = vpow.pop %v4087
      %v4089 = vmul.f32 %v3937, 1.442695
      %v4090 = vpow.pop %v4089
      %v4091 = vmul.f32 %v3938, 1.442695
      %v4092 = vpow.pop %v4091
      %v4093 = vmul.f32 %v3939, 1.442695
      %v4094 = vpow.pop %v4093
      %v4095 = vmul.f32 %v3940, 1.442695
      %v4096 = vpow.pop %v4095
      %v4097 = vmul.f32 %v3941, 1.442695
      %v4098 = vpow.pop %v4097
      %v4099 = vmul.f32 %v3942, 1.442695
      %v4100 = vpow.pop %v4099
      %v4101 = vmul.f32 %v3943, 1.442695
      %v4102 = vpow.pop %v4101
      %v4103 = vmul.f32 %v3944, 1.442695
      %v4104 = vpow.pop %v4103
      %v4105 = vmul.f32 %v3945, 1.442695
      %v4106 = vpow.pop %v4105
      %v4107 = vmul.f32 %v3946, 1.442695
      %v4108 = vpow.pop %v4107
      %v4109 = vmul.f32 %v3947, 1.442695
      %v4110 = vpow.pop %v4109
      %v4111 = vmul.f32 %v3948, 1.442695
      %v4112 = vpow.pop %v4111
      %v4113 = vmul.f32 %v3949, 1.442695
      %v4114 = vpow.pop %v4113
      %v4115 = vmul.f32 %v3950, 1.442695
      %v4116 = vpow.pop %v4115
      %v4117 = vmul.f32 %v3951, 1.442695
      %v4118 = vpow.pop %v4117
      %v4119 = vmul.f32 %v3952, 1.442695
      %v4120 = vpow.pop %v4119
      %v4121 = vmul.f32 %v3953, 1.442695
      %v4122 = vpow.pop %v4121
      %v4123 = vmul.f32 %v3954, 1.442695
      %v4124 = vpow.pop %v4123
      %v4125 = vmul.f32 %v3955, 1.442695
      %v4126 = vpow.pop %v4125
      %v4127 = vmul.f32 %v3956, 1.442695
      %v4128 = vpow.pop %v4127
      %v4129 = vmul.f32 %v3957, 1.442695
      %v4130 = vpow.pop %v4129
      %v4131 = vmul.f32 %v3958, 1.442695
      %v4132 = vpow.pop %v4131
      %v4133 = vmul.f32 %v3959, 1.442695
      %v4134 = vpow.pop %v4133
      %v4135 = vmul.f32 %v3960, 1.442695
      %v4136 = vpow.pop %v4135
      %v4137 = vmul.f32 %v3961, 1.442695
      %v4138 = vpow.pop %v4137
      %v4139 = vmul.f32 %v3962, 1.442695
      %v4140 = vpow.pop %v4139
      %v4141 = vmul.f32 %v3963, 1.442695
      %v4142 = vpow.pop %v4141
      %v4143 = vmul.f32 %v3964, 1.442695
      %v4144 = vpow.pop %v4143
      %v4145 = vmul.f32 %v3965, 1.442695
      %v4146 = vpow.pop %v4145
      %v4147 = vmul.f32 %v3966, 1.442695
      %v4148 = vpow.pop %v4147
      %v4149 = vmul.f32 %v3967, 1.442695
      %v4150 = vpow.pop %v4149
      %v4151 = vmul.f32 %v3968, 1.442695
      %v4152 = vpow.pop %v4151
      %v4153 = vmul.f32 %v3969, 1.442695
      %v4154 = vpow.pop %v4153
      %v4155 = vmul.f32 %v3970, 1.442695
      %v4156 = vpow.pop %v4155
      %v4157 = vmul.f32 %v3971, 1.442695
      %v4158 = vpow.pop %v4157
      %v4159 = vmul.f32 %v3972, 1.442695
      %v4160 = vpow.pop %v4159
      %v4161 = vmul.f32 %v3973, 1.442695
      %v4162 = vpow.pop %v4161
      %v4163 = vmul.f32 %v3974, 1.442695
      %v4164 = vpow.pop %v4163
      %v4165 = vmul.f32 %v3975, 1.442695
      %v4166 = vpow.pop %v4165
      %v4167 = vmul.f32 %v3976, 1.442695
      %v4168 = vpow.pop %v4167
      %v4169 = vsel %vm3592, %v3978, 0.0
      %4170 = vadd.xlane.f32.xlu0 %v4169
      %v4171 = vpop.xlane.xlu0 %4170
      %v4172 = vsel %vm3592, %v3980, 0.0
      %4173 = vadd.xlane.f32.xlu0 %v4172
      %v4174 = vpop.xlane.xlu0 %4173
      %v4175 = vsel %vm3592, %v3982, 0.0
      %4176 = vadd.xlane.f32.xlu0 %v4175
      %v4177 = vpop.xlane.xlu0 %4176
      %v4178 = vsel %vm3592, %v3984, 0.0
      %4179 = vadd.xlane.f32.xlu0 %v4178
      %v4180 = vpop.xlane.xlu0 %4179
      %v4181 = vsel %vm3592, %v3986, 0.0
      %4182 = vadd.xlane.f32.xlu0 %v4181
      %v4183 = vpop.xlane.xlu0 %4182
      %v4184 = vsel %vm3592, %v3988, 0.0
      %4185 = vadd.xlane.f32.xlu0 %v4184
      %v4186 = vpop.xlane.xlu0 %4185
      %v4187 = vsel %vm3592, %v3990, 0.0
      %4188 = vadd.xlane.f32.xlu0 %v4187
      %v4189 = vpop.xlane.xlu0 %4188
      %v4190 = vsel %vm3592, %v3992, 0.0
      %4191 = vadd.xlane.f32.xlu0 %v4190
      %v4192 = vpop.xlane.xlu0 %4191
      %v4193 = vsel %vm3592, %v3994, 0.0
      %4194 = vadd.xlane.f32.xlu0 %v4193
      %v4195 = vpop.xlane.xlu0 %4194
      %v4196 = vsel %vm3592, %v3996, 0.0
      %4197 = vadd.xlane.f32.xlu0 %v4196
      %v4198 = vpop.xlane.xlu0 %4197
      %v4199 = vsel %vm3592, %v3998, 0.0
      %4200 = vadd.xlane.f32.xlu0 %v4199
      %v4201 = vpop.xlane.xlu0 %4200
      %v4202 = vsel %vm3592, %v4000, 0.0
      %4203 = vadd.xlane.f32.xlu0 %v4202
      %v4204 = vpop.xlane.xlu0 %4203
      %v4205 = vsel %vm3592, %v4002, 0.0
      %4206 = vadd.xlane.f32.xlu0 %v4205
      %v4207 = vpop.xlane.xlu0 %4206
      %v4208 = vsel %vm3592, %v4004, 0.0
      %4209 = vadd.xlane.f32.xlu0 %v4208
      %v4210 = vpop.xlane.xlu0 %4209
      %v4211 = vsel %vm3592, %v4006, 0.0
      %4212 = vadd.xlane.f32.xlu0 %v4211
      %v4213 = vpop.xlane.xlu0 %4212
      %v4214 = vsel %vm3592, %v4008, 0.0
      %4215 = vadd.xlane.f32.xlu0 %v4214
      %v4216 = vpop.xlane.xlu0 %4215
      %v4217 = vsel %vm3592, %v4010, 0.0
      %4218 = vadd.xlane.f32.xlu0 %v4217
      %v4219 = vpop.xlane.xlu0 %4218
      %v4220 = vsel %vm3592, %v4012, 0.0
      %4221 = vadd.xlane.f32.xlu0 %v4220
      %v4222 = vpop.xlane.xlu0 %4221
      %v4223 = vsel %vm3592, %v4014, 0.0
      %4224 = vadd.xlane.f32.xlu0 %v4223
      %v4225 = vpop.xlane.xlu0 %4224
      %v4226 = vsel %vm3592, %v4016, 0.0
      %4227 = vadd.xlane.f32.xlu0 %v4226
      %v4228 = vpop.xlane.xlu0 %4227
      %v4229 = vsel %vm3592, %v4018, 0.0
      %4230 = vadd.xlane.f32.xlu0 %v4229
      %v4231 = vpop.xlane.xlu0 %4230
      %v4232 = vsel %vm3592, %v4020, 0.0
      %4233 = vadd.xlane.f32.xlu0 %v4232
      %v4234 = vpop.xlane.xlu0 %4233
      %v4235 = vsel %vm3592, %v4022, 0.0
      %4236 = vadd.xlane.f32.xlu0 %v4235
      %v4237 = vpop.xlane.xlu0 %4236
      %v4238 = vsel %vm3592, %v4024, 0.0
      %4239 = vadd.xlane.f32.xlu0 %v4238
      %v4240 = vpop.xlane.xlu0 %4239
      %v4241 = vsel %vm3592, %v4026, 0.0
      %4242 = vadd.xlane.f32.xlu0 %v4241
      %v4243 = vpop.xlane.xlu0 %4242
      %v4244 = vsel %vm3592, %v4028, 0.0
      %4245 = vadd.xlane.f32.xlu0 %v4244
      %v4246 = vpop.xlane.xlu0 %4245
      %v4247 = vsel %vm3592, %v4030, 0.0
      %4248 = vadd.xlane.f32.xlu0 %v4247
      %v4249 = vpop.xlane.xlu0 %4248
      %v4250 = vsel %vm3592, %v4032, 0.0
      %4251 = vadd.xlane.f32.xlu0 %v4250
      %v4252 = vpop.xlane.xlu0 %4251
      %v4253 = vsel %vm3592, %v4034, 0.0
      %4254 = vadd.xlane.f32.xlu0 %v4253
      %v4255 = vpop.xlane.xlu0 %4254
      %v4256 = vsel %vm3592, %v4036, 0.0
      %4257 = vadd.xlane.f32.xlu0 %v4256
      %v4258 = vpop.xlane.xlu0 %4257
      %v4259 = vsel %vm3592, %v4038, 0.0
      %4260 = vadd.xlane.f32.xlu0 %v4259
      %v4261 = vpop.xlane.xlu0 %4260
      %v4262 = vsel %vm3592, %v4040, 0.0
      %4263 = vadd.xlane.f32.xlu0 %v4262
      %v4264 = vpop.xlane.xlu0 %4263
      %v4265 = vsel %vm3592, %v4042, 0.0
      %4266 = vadd.xlane.f32.xlu0 %v4265
      %v4267 = vpop.xlane.xlu0 %4266
      %v4268 = vsel %vm3592, %v4044, 0.0
      %4269 = vadd.xlane.f32.xlu0 %v4268
      %v4270 = vpop.xlane.xlu0 %4269
      %v4271 = vsel %vm3592, %v4046, 0.0
      %4272 = vadd.xlane.f32.xlu0 %v4271
      %v4273 = vpop.xlane.xlu0 %4272
      %v4274 = vsel %vm3592, %v4048, 0.0
      %4275 = vadd.xlane.f32.xlu0 %v4274
      %v4276 = vpop.xlane.xlu0 %4275
      %v4277 = vsel %vm3592, %v4050, 0.0
      %4278 = vadd.xlane.f32.xlu0 %v4277
      %v4279 = vpop.xlane.xlu0 %4278
      %v4280 = vsel %vm3592, %v4052, 0.0
      %4281 = vadd.xlane.f32.xlu0 %v4280
      %v4282 = vpop.xlane.xlu0 %4281
      %v4283 = vsel %vm3592, %v4054, 0.0
      %4284 = vadd.xlane.f32.xlu0 %v4283
      %v4285 = vpop.xlane.xlu0 %4284
      %v4286 = vsel %vm3592, %v4056, 0.0
      %4287 = vadd.xlane.f32.xlu0 %v4286
      %v4288 = vpop.xlane.xlu0 %4287
      %v4289 = vsel %vm3592, %v4058, 0.0
      %4290 = vadd.xlane.f32.xlu0 %v4289
      %v4291 = vpop.xlane.xlu0 %4290
      %v4292 = vsel %vm3592, %v4060, 0.0
      %4293 = vadd.xlane.f32.xlu0 %v4292
      %v4294 = vpop.xlane.xlu0 %4293
      %v4295 = vsel %vm3592, %v4062, 0.0
      %4296 = vadd.xlane.f32.xlu0 %v4295
      %v4297 = vpop.xlane.xlu0 %4296
      %v4298 = vsel %vm3592, %v4064, 0.0
      %4299 = vadd.xlane.f32.xlu0 %v4298
      %v4300 = vpop.xlane.xlu0 %4299
      %v4301 = vsel %vm3592, %v4066, 0.0
      %4302 = vadd.xlane.f32.xlu0 %v4301
      %v4303 = vpop.xlane.xlu0 %4302
      %v4304 = vsel %vm3592, %v4068, 0.0
      %4305 = vadd.xlane.f32.xlu0 %v4304
      %v4306 = vpop.xlane.xlu0 %4305
      %v4307 = vsel %vm3592, %v4070, 0.0
      %4308 = vadd.xlane.f32.xlu0 %v4307
      %v4309 = vpop.xlane.xlu0 %4308
      %v4310 = vsel %vm3592, %v4072, 0.0
      %4311 = vadd.xlane.f32.xlu0 %v4310
      %v4312 = vpop.xlane.xlu0 %4311
      %v4313 = vsel %vm3592, %v4074, 0.0
      %4314 = vadd.xlane.f32.xlu0 %v4313
      %v4315 = vpop.xlane.xlu0 %4314
      %v4316 = vsel %vm3592, %v4076, 0.0
      %4317 = vadd.xlane.f32.xlu0 %v4316
      %v4318 = vpop.xlane.xlu0 %4317
      %v4319 = vsel %vm3592, %v4078, 0.0
      %4320 = vadd.xlane.f32.xlu0 %v4319
      %v4321 = vpop.xlane.xlu0 %4320
      %v4322 = vsel %vm3592, %v4080, 0.0
      %4323 = vadd.xlane.f32.xlu0 %v4322
      %v4324 = vpop.xlane.xlu0 %4323
      %v4325 = vsel %vm3592, %v4082, 0.0
      %4326 = vadd.xlane.f32.xlu0 %v4325
      %v4327 = vpop.xlane.xlu0 %4326
      %v4328 = vsel %vm3592, %v4084, 0.0
      %4329 = vadd.xlane.f32.xlu0 %v4328
      %v4330 = vpop.xlane.xlu0 %4329
      %v4331 = vsel %vm3592, %v4086, 0.0
      %4332 = vadd.xlane.f32.xlu0 %v4331
      %v4333 = vpop.xlane.xlu0 %4332
      %v4334 = vsel %vm3592, %v4088, 0.0
      %4335 = vadd.xlane.f32.xlu0 %v4334
      %v4336 = vpop.xlane.xlu0 %4335
      %v4337 = vsel %vm3592, %v4090, 0.0
      %4338 = vadd.xlane.f32.xlu0 %v4337
      %v4339 = vpop.xlane.xlu0 %4338
      %v4340 = vsel %vm3592, %v4092, 0.0
      %4341 = vadd.xlane.f32.xlu0 %v4340
      %v4342 = vpop.xlane.xlu0 %4341
      %v4343 = vsel %vm3592, %v4094, 0.0
      %4344 = vadd.xlane.f32.xlu0 %v4343
      %v4345 = vpop.xlane.xlu0 %4344
      %v4346 = vsel %vm3592, %v4096, 0.0
      %4347 = vadd.xlane.f32.xlu0 %v4346
      %v4348 = vpop.xlane.xlu0 %4347
      %v4349 = vsel %vm3592, %v4098, 0.0
      %4350 = vadd.xlane.f32.xlu0 %v4349
      %v4351 = vpop.xlane.xlu0 %4350
      %v4352 = vsel %vm3592, %v4100, 0.0
      %4353 = vadd.xlane.f32.xlu0 %v4352
      %v4354 = vpop.xlane.xlu0 %4353
      %v4355 = vsel %vm3592, %v4102, 0.0
      %4356 = vadd.xlane.f32.xlu0 %v4355
      %v4357 = vpop.xlane.xlu0 %4356
      %v4358 = vsel %vm3592, %v4104, 0.0
      %4359 = vadd.xlane.f32.xlu0 %v4358
      %v4360 = vpop.xlane.xlu0 %4359
      %v4361 = vsel %vm3592, %v4106, 0.0
      %4362 = vadd.xlane.f32.xlu0 %v4361
      %v4363 = vpop.xlane.xlu0 %4362
      %v4364 = vsel %vm3592, %v4108, 0.0
      %4365 = vadd.xlane.f32.xlu0 %v4364
      %v4366 = vpop.xlane.xlu0 %4365
      %v4367 = vsel %vm3592, %v4110, 0.0
      %4368 = vadd.xlane.f32.xlu0 %v4367
      %v4369 = vpop.xlane.xlu0 %4368
      %v4370 = vsel %vm3592, %v4112, 0.0
      %4371 = vadd.xlane.f32.xlu0 %v4370
      %v4372 = vpop.xlane.xlu0 %4371
      %v4373 = vsel %vm3592, %v4114, 0.0
      %4374 = vadd.xlane.f32.xlu0 %v4373
      %v4375 = vpop.xlane.xlu0 %4374
      %v4376 = vsel %vm3592, %v4116, 0.0
      %4377 = vadd.xlane.f32.xlu0 %v4376
      %v4378 = vpop.xlane.xlu0 %4377
      %v4379 = vsel %vm3592, %v4118, 0.0
      %4380 = vadd.xlane.f32.xlu0 %v4379
      %v4381 = vpop.xlane.xlu0 %4380
      %v4382 = vsel %vm3592, %v4120, 0.0
      %4383 = vadd.xlane.f32.xlu0 %v4382
      %v4384 = vpop.xlane.xlu0 %4383
      %v4385 = vsel %vm3592, %v4122, 0.0
      %4386 = vadd.xlane.f32.xlu0 %v4385
      %v4387 = vpop.xlane.xlu0 %4386
      %v4388 = vsel %vm3592, %v4124, 0.0
      %4389 = vadd.xlane.f32.xlu0 %v4388
      %v4390 = vpop.xlane.xlu0 %4389
      %v4391 = vsel %vm3592, %v4126, 0.0
      %4392 = vadd.xlane.f32.xlu0 %v4391
      %v4393 = vpop.xlane.xlu0 %4392
      %v4394 = vsel %vm3592, %v4128, 0.0
      %4395 = vadd.xlane.f32.xlu0 %v4394
      %v4396 = vpop.xlane.xlu0 %4395
      %v4397 = vsel %vm3592, %v4130, 0.0
      %4398 = vadd.xlane.f32.xlu0 %v4397
      %v4399 = vpop.xlane.xlu0 %4398
      %v4400 = vsel %vm3592, %v4132, 0.0
      %4401 = vadd.xlane.f32.xlu0 %v4400
      %v4402 = vpop.xlane.xlu0 %4401
      %v4403 = vsel %vm3592, %v4134, 0.0
      %4404 = vadd.xlane.f32.xlu0 %v4403
      %v4405 = vpop.xlane.xlu0 %4404
      %v4406 = vsel %vm3592, %v4136, 0.0
      %4407 = vadd.xlane.f32.xlu0 %v4406
      %v4408 = vpop.xlane.xlu0 %4407
      %v4409 = vsel %vm3592, %v4138, 0.0
      %4410 = vadd.xlane.f32.xlu0 %v4409
      %v4411 = vpop.xlane.xlu0 %4410
      %v4412 = vsel %vm3592, %v4140, 0.0
      %4413 = vadd.xlane.f32.xlu0 %v4412
      %v4414 = vpop.xlane.xlu0 %4413
      %v4415 = vsel %vm3592, %v4142, 0.0
      %4416 = vadd.xlane.f32.xlu0 %v4415
      %v4417 = vpop.xlane.xlu0 %4416
      %v4418 = vsel %vm3592, %v4144, 0.0
      %4419 = vadd.xlane.f32.xlu0 %v4418
      %v4420 = vpop.xlane.xlu0 %4419
      %v4421 = vsel %vm3592, %v4146, 0.0
      %4422 = vadd.xlane.f32.xlu0 %v4421
      %v4423 = vpop.xlane.xlu0 %4422
      %v4424 = vsel %vm3592, %v4148, 0.0
      %4425 = vadd.xlane.f32.xlu0 %v4424
      %v4426 = vpop.xlane.xlu0 %4425
      %v4427 = vsel %vm3592, %v4150, 0.0
      %4428 = vadd.xlane.f32.xlu0 %v4427
      %v4429 = vpop.xlane.xlu0 %4428
      %v4430 = vsel %vm3592, %v4152, 0.0
      %4431 = vadd.xlane.f32.xlu0 %v4430
      %v4432 = vpop.xlane.xlu0 %4431
      %v4433 = vsel %vm3592, %v4154, 0.0
      %4434 = vadd.xlane.f32.xlu0 %v4433
      %v4435 = vpop.xlane.xlu0 %4434
      %v4436 = vsel %vm3592, %v4156, 0.0
      %4437 = vadd.xlane.f32.xlu0 %v4436
      %v4438 = vpop.xlane.xlu0 %4437
      %v4439 = vsel %vm3592, %v4158, 0.0
      %4440 = vadd.xlane.f32.xlu0 %v4439
      %v4441 = vpop.xlane.xlu0 %4440
      %v4442 = vsel %vm3592, %v4160, 0.0
      %4443 = vadd.xlane.f32.xlu0 %v4442
      %v4444 = vpop.xlane.xlu0 %4443
      %v4445 = vsel %vm3592, %v4162, 0.0
      %4446 = vadd.xlane.f32.xlu0 %v4445
      %v4447 = vpop.xlane.xlu0 %4446
      %v4448 = vsel %vm3592, %v4164, 0.0
      %4449 = vadd.xlane.f32.xlu0 %v4448
      %v4450 = vpop.xlane.xlu0 %4449
      %v4451 = vsel %vm3592, %v4166, 0.0
      %4452 = vadd.xlane.f32.xlu0 %v4451
      %v4453 = vpop.xlane.xlu0 %4452
      %v4454 = vsel %vm3592, %v4168, 0.0
      %4455 = vadd.xlane.f32.xlu0 %v4454
      %v4456 = vpop.xlane.xlu0 %4455
      %v4457 = vrcp.pop %v4171
      %v4458 = vrcp.pop %v4174
      %v4459 = vrcp.pop %v4177
      %v4460 = vrcp.pop %v4180
      %v4461 = vrcp.pop %v4183
      %v4462 = vrcp.pop %v4186
      %v4463 = vrcp.pop %v4189
      %v4464 = vrcp.pop %v4192
      %v4465 = vrcp.pop %v4195
      %v4466 = vrcp.pop %v4198
      %v4467 = vrcp.pop %v4201
      %v4468 = vrcp.pop %v4204
      %v4469 = vrcp.pop %v4207
      %v4470 = vrcp.pop %v4210
      %v4471 = vrcp.pop %v4213
      %v4472 = vrcp.pop %v4216
      %v4473 = vrcp.pop %v4219
      %v4474 = vrcp.pop %v4222
      %v4475 = vrcp.pop %v4225
      %v4476 = vrcp.pop %v4228
      %v4477 = vrcp.pop %v4231
      %v4478 = vrcp.pop %v4234
      %v4479 = vrcp.pop %v4237
      %v4480 = vrcp.pop %v4240
      %v4481 = vrcp.pop %v4243
      %v4482 = vrcp.pop %v4246
      %v4483 = vrcp.pop %v4249
      %v4484 = vrcp.pop %v4252
      %v4485 = vrcp.pop %v4255
      %v4486 = vrcp.pop %v4258
      %v4487 = vrcp.pop %v4261
      %v4488 = vrcp.pop %v4264
      %v4489 = vrcp.pop %v4267
      %v4490 = vrcp.pop %v4270
      %v4491 = vrcp.pop %v4273
      %v4492 = vrcp.pop %v4276
      %v4493 = vrcp.pop %v4279
      %v4494 = vrcp.pop %v4282
      %v4495 = vrcp.pop %v4285
      %v4496 = vrcp.pop %v4288
      %v4497 = vrcp.pop %v4291
      %v4498 = vrcp.pop %v4294
      %v4499 = vrcp.pop %v4297
      %v4500 = vrcp.pop %v4300
      %v4501 = vrcp.pop %v4303
      %v4502 = vrcp.pop %v4306
      %v4503 = vrcp.pop %v4309
      %v4504 = vrcp.pop %v4312
      %v4505 = vrcp.pop %v4315
      %v4506 = vrcp.pop %v4318
      %v4507 = vrcp.pop %v4321
      %v4508 = vrcp.pop %v4324
      %v4509 = vrcp.pop %v4327
      %v4510 = vrcp.pop %v4330
      %v4511 = vrcp.pop %v4333
      %v4512 = vrcp.pop %v4336
      %v4513 = vrcp.pop %v4339
      %v4514 = vrcp.pop %v4342
      %v4515 = vrcp.pop %v4345
      %v4516 = vrcp.pop %v4348
      %v4517 = vrcp.pop %v4351
      %v4518 = vrcp.pop %v4354
      %v4519 = vrcp.pop %v4357
      %v4520 = vrcp.pop %v4360
      %v4521 = vrcp.pop %v4363
      %v4522 = vrcp.pop %v4366
      %v4523 = vrcp.pop %v4369
      %v4524 = vrcp.pop %v4372
      %v4525 = vrcp.pop %v4375
      %v4526 = vrcp.pop %v4378
      %v4527 = vrcp.pop %v4381
      %v4528 = vrcp.pop %v4384
      %v4529 = vrcp.pop %v4387
      %v4530 = vrcp.pop %v4390
      %v4531 = vrcp.pop %v4393
      %v4532 = vrcp.pop %v4396
      %v4533 = vrcp.pop %v4399
      %v4534 = vrcp.pop %v4402
      %v4535 = vrcp.pop %v4405
      %v4536 = vrcp.pop %v4408
      %v4537 = vrcp.pop %v4411
      %v4538 = vrcp.pop %v4414
      %v4539 = vrcp.pop %v4417
      %v4540 = vrcp.pop %v4420
      %v4541 = vrcp.pop %v4423
      %v4542 = vrcp.pop %v4426
      %v4543 = vrcp.pop %v4429
      %v4544 = vrcp.pop %v4432
      %v4545 = vrcp.pop %v4435
      %v4546 = vrcp.pop %v4438
      %v4547 = vrcp.pop %v4441
      %v4548 = vrcp.pop %v4444
      %v4549 = vrcp.pop %v4447
      %v4550 = vrcp.pop %v4450
      %v4551 = vrcp.pop %v4453
      %v4552 = vrcp.pop %v4456
      %v4553 = vmul.f32 %v3978, %v4457
      %v4554 = vmul.f32 %v3980, %v4458
      %v4555 = vmul.f32 %v3982, %v4459
      %v4556 = vmul.f32 %v3984, %v4460
      %v4557 = vmul.f32 %v3986, %v4461
      %v4558 = vmul.f32 %v3988, %v4462
      %v4559 = vmul.f32 %v3990, %v4463
      %v4560 = vmul.f32 %v3992, %v4464
      %v4561 = vmul.f32 %v3994, %v4465
      %v4562 = vmul.f32 %v3996, %v4466
      %v4563 = vmul.f32 %v3998, %v4467
      %v4564 = vmul.f32 %v4000, %v4468
      %v4565 = vmul.f32 %v4002, %v4469
      %v4566 = vmul.f32 %v4004, %v4470
      %v4567 = vmul.f32 %v4006, %v4471
      %v4568 = vmul.f32 %v4008, %v4472
      %v4569 = vmul.f32 %v4010, %v4473
      %v4570 = vmul.f32 %v4012, %v4474
      %v4571 = vmul.f32 %v4014, %v4475
      %v4572 = vmul.f32 %v4016, %v4476
      %v4573 = vmul.f32 %v4018, %v4477
      %v4574 = vmul.f32 %v4020, %v4478
      %v4575 = vmul.f32 %v4022, %v4479
      %v4576 = vmul.f32 %v4024, %v4480
      %v4577 = vmul.f32 %v4026, %v4481
      %v4578 = vmul.f32 %v4028, %v4482
      %v4579 = vmul.f32 %v4030, %v4483
      %v4580 = vmul.f32 %v4032, %v4484
      %v4581 = vmul.f32 %v4034, %v4485
      %v4582 = vmul.f32 %v4036, %v4486
      %v4583 = vmul.f32 %v4038, %v4487
      %v4584 = vmul.f32 %v4040, %v4488
      %v4585 = vmul.f32 %v4042, %v4489
      %v4586 = vmul.f32 %v4044, %v4490
      %v4587 = vmul.f32 %v4046, %v4491
      %v4588 = vmul.f32 %v4048, %v4492
      %v4589 = vmul.f32 %v4050, %v4493
      %v4590 = vmul.f32 %v4052, %v4494
      %v4591 = vmul.f32 %v4054, %v4495
      %v4592 = vmul.f32 %v4056, %v4496
      %v4593 = vmul.f32 %v4058, %v4497
      %v4594 = vmul.f32 %v4060, %v4498
      %v4595 = vmul.f32 %v4062, %v4499
      %v4596 = vmul.f32 %v4064, %v4500
      %v4597 = vmul.f32 %v4066, %v4501
      %v4598 = vmul.f32 %v4068, %v4502
      %v4599 = vmul.f32 %v4070, %v4503
      %v4600 = vmul.f32 %v4072, %v4504
      %v4601 = vmul.f32 %v4074, %v4505
      %v4602 = vmul.f32 %v4076, %v4506
      %v4603 = vmul.f32 %v4078, %v4507
      %v4604 = vmul.f32 %v4080, %v4508
      %v4605 = vmul.f32 %v4082, %v4509
      %v4606 = vmul.f32 %v4084, %v4510
      %v4607 = vmul.f32 %v4086, %v4511
      %v4608 = vmul.f32 %v4088, %v4512
      %v4609 = vmul.f32 %v4090, %v4513
      %v4610 = vmul.f32 %v4092, %v4514
      %v4611 = vmul.f32 %v4094, %v4515
      %v4612 = vmul.f32 %v4096, %v4516
      %v4613 = vmul.f32 %v4098, %v4517
      %v4614 = vmul.f32 %v4100, %v4518
      %v4615 = vmul.f32 %v4102, %v4519
      %v4616 = vmul.f32 %v4104, %v4520
      %v4617 = vmul.f32 %v4106, %v4521
      %v4618 = vmul.f32 %v4108, %v4522
      %v4619 = vmul.f32 %v4110, %v4523
      %v4620 = vmul.f32 %v4112, %v4524
      %v4621 = vmul.f32 %v4114, %v4525
      %v4622 = vmul.f32 %v4116, %v4526
      %v4623 = vmul.f32 %v4118, %v4527
      %v4624 = vmul.f32 %v4120, %v4528
      %v4625 = vmul.f32 %v4122, %v4529
      %v4626 = vmul.f32 %v4124, %v4530
      %v4627 = vmul.f32 %v4126, %v4531
      %v4628 = vmul.f32 %v4128, %v4532
      %v4629 = vmul.f32 %v4130, %v4533
      %v4630 = vmul.f32 %v4132, %v4534
      %v4631 = vmul.f32 %v4134, %v4535
      %v4632 = vmul.f32 %v4136, %v4536
      %v4633 = vmul.f32 %v4138, %v4537
      %v4634 = vmul.f32 %v4140, %v4538
      %v4635 = vmul.f32 %v4142, %v4539
      %v4636 = vmul.f32 %v4144, %v4540
      %v4637 = vmul.f32 %v4146, %v4541
      %v4638 = vmul.f32 %v4148, %v4542
      %v4639 = vmul.f32 %v4150, %v4543
      %v4640 = vmul.f32 %v4152, %v4544
      %v4641 = vmul.f32 %v4154, %v4545
      %v4642 = vmul.f32 %v4156, %v4546
      %v4643 = vmul.f32 %v4158, %v4547
      %v4644 = vmul.f32 %v4160, %v4548
      %v4645 = vmul.f32 %v4162, %v4549
      %v4646 = vmul.f32 %v4164, %v4550
      %v4647 = vmul.f32 %v4166, %v4551
      %v4648 = vmul.f32 %v4168, %v4552
      %v4649 = vpack.c.bf16 %v4554, %v4553
      %v4650 = vpack.c.bf16 %v4556, %v4555
      %v4651 = vpack.c.bf16 %v4558, %v4557
      %v4652 = vpack.c.bf16 %v4560, %v4559
      %v4653 = vpack.c.bf16 %v4562, %v4561
      %v4654 = vpack.c.bf16 %v4564, %v4563
      %v4655 = vpack.c.bf16 %v4566, %v4565
      %v4656 = vpack.c.bf16 %v4568, %v4567
      %v4657 = vpack.c.bf16 %v4570, %v4569
      %v4658 = vpack.c.bf16 %v4572, %v4571
      %v4659 = vpack.c.bf16 %v4574, %v4573
      %v4660 = vpack.c.bf16 %v4576, %v4575
      %v4661 = vpack.c.bf16 %v4578, %v4577
      %v4662 = vpack.c.bf16 %v4580, %v4579
      %v4663 = vpack.c.bf16 %v4582, %v4581
      %v4664 = vpack.c.bf16 %v4584, %v4583
      %v4665 = vpack.c.bf16 %v4586, %v4585
      %v4666 = vpack.c.bf16 %v4588, %v4587
      %v4667 = vpack.c.bf16 %v4590, %v4589
      %v4668 = vpack.c.bf16 %v4592, %v4591
      %v4669 = vpack.c.bf16 %v4594, %v4593
      %v4670 = vpack.c.bf16 %v4596, %v4595
      %v4671 = vpack.c.bf16 %v4598, %v4597
      %v4672 = vpack.c.bf16 %v4600, %v4599
      %v4673 = vpack.c.bf16 %v4602, %v4601
      %v4674 = vpack.c.bf16 %v4604, %v4603
      %v4675 = vpack.c.bf16 %v4606, %v4605
      %v4676 = vpack.c.bf16 %v4608, %v4607
      %v4677 = vpack.c.bf16 %v4610, %v4609
      %v4678 = vpack.c.bf16 %v4612, %v4611
      %v4679 = vpack.c.bf16 %v4614, %v4613
      %v4680 = vpack.c.bf16 %v4616, %v4615
      %v4681 = vpack.c.bf16 %v4618, %v4617
      %v4682 = vpack.c.bf16 %v4620, %v4619
      %v4683 = vpack.c.bf16 %v4622, %v4621
      %v4684 = vpack.c.bf16 %v4624, %v4623
      %v4685 = vpack.c.bf16 %v4626, %v4625
      %v4686 = vpack.c.bf16 %v4628, %v4627
      %v4687 = vpack.c.bf16 %v4630, %v4629
      %v4688 = vpack.c.bf16 %v4632, %v4631
      %v4689 = vpack.c.bf16 %v4634, %v4633
      %v4690 = vpack.c.bf16 %v4636, %v4635
      %v4691 = vpack.c.bf16 %v4638, %v4637
      %v4692 = vpack.c.bf16 %v4640, %v4639
      %v4693 = vpack.c.bf16 %v4642, %v4641
      %v4694 = vpack.c.bf16 %v4644, %v4643
      %v4695 = vpack.c.bf16 %v4646, %v4645
      %v4696 = vpack.c.bf16 %v4648, %v4647
      %v4698 = vsel %vm3592, %v4649, 0
      %v4701 = vsel %vm3592, %v4650, 0
      %v4704 = vsel %vm3592, %v4651, 0
      %v4707 = vsel %vm3592, %v4652, 0
      %v4710 = vsel %vm3592, %v4653, 0
      %v4713 = vsel %vm3592, %v4654, 0
      %v4716 = vsel %vm3592, %v4655, 0
      %v4719 = vsel %vm3592, %v4656, 0
      %v4722 = vsel %vm3592, %v4657, 0
      %v4725 = vsel %vm3592, %v4658, 0
      %v4728 = vsel %vm3592, %v4659, 0
      %v4731 = vsel %vm3592, %v4660, 0
      %v4734 = vsel %vm3592, %v4661, 0
      %v4737 = vsel %vm3592, %v4662, 0
      %v4740 = vsel %vm3592, %v4663, 0
      %v4743 = vsel %vm3592, %v4664, 0
      %v4746 = vsel %vm3592, %v4665, 0
      %v4749 = vsel %vm3592, %v4666, 0
      %v4752 = vsel %vm3592, %v4667, 0
      %v4755 = vsel %vm3592, %v4668, 0
      %v4758 = vsel %vm3592, %v4669, 0
      %v4761 = vsel %vm3592, %v4670, 0
      %v4764 = vsel %vm3592, %v4671, 0
      %v4767 = vsel %vm3592, %v4672, 0
      %v4770 = vsel %vm3592, %v4673, 0
      %v4773 = vsel %vm3592, %v4674, 0
      %v4776 = vsel %vm3592, %v4675, 0
      %v4779 = vsel %vm3592, %v4676, 0
      %v4782 = vsel %vm3592, %v4677, 0
      %v4785 = vsel %vm3592, %v4678, 0
      %v4788 = vsel %vm3592, %v4679, 0
      %v4791 = vsel %vm3592, %v4680, 0
      %v4794 = vsel %vm3592, %v4681, 0
      %v4797 = vsel %vm3592, %v4682, 0
      %v4800 = vsel %vm3592, %v4683, 0
      %v4803 = vsel %vm3592, %v4684, 0
      %v4806 = vsel %vm3592, %v4685, 0
      %v4809 = vsel %vm3592, %v4686, 0
      %v4812 = vsel %vm3592, %v4687, 0
      %v4815 = vsel %vm3592, %v4688, 0
      %v4818 = vsel %vm3592, %v4689, 0
      %v4821 = vsel %vm3592, %v4690, 0
      %v4824 = vsel %vm3592, %v4691, 0
      %v4827 = vsel %vm3592, %v4692, 0
      %v4830 = vsel %vm3592, %v4693, 0
      %v4833 = vsel %vm3592, %v4694, 0
      %v4836 = vsel %vm3592, %v4695, 0
      %v4839 = vsel %vm3592, %v4696, 0
      %4841 = vmatprep.subr.bf16.mxu0 0
      %4842 = vmatpush1.bf16.msra.mxu0 %v2867
      %4843 = vmatprep.subr.bf16.mxu0 0
      %4844 = vmatpush1.bf16.msra.mxu0 %v2868
      %4845 = vmatprep.subr.bf16.mxu0 0
      %4846 = vmatpush1.bf16.msra.mxu0 %v2869
      %4847 = vmatprep.subr.bf16.mxu0 0
      %4848 = vmatpush1.bf16.msra.mxu0 %v2870
      %4849 = vmatprep.subr.bf16.mxu0 0
      %4850 = vmatpush1.bf16.msra.mxu0 0
      %4851 = vmatprep.subr.bf16.mxu0 0
      %4852 = vmatpush1.bf16.msra.mxu0 0
      %4853 = vmatprep.subr.bf16.mxu0 0
      %4854 = vmatpush1.bf16.msra.mxu0 0
      %4855 = vmatprep.subr.bf16.mxu0 0
      %4856 = vmatpush1.bf16.msra.mxu0 0
      %4857 = vmatprep.subr.bf16.mxu0 0
      %4858 = vmatpush1.bf16.msra.mxu0 0
      %4859 = vmatprep.subr.bf16.mxu0 0
      %4860 = vmatpush1.bf16.msra.mxu0 0
      %4861 = vmatprep.subr.bf16.mxu0 0
      %4862 = vmatpush1.bf16.msra.mxu0 0
      %4863 = vmatprep.subr.bf16.mxu0 0
      %4864 = vmatpush1.bf16.msra.mxu0 0
      %4865 = vmatprep.subr.bf16.mxu0 0
      %4866 = vmatpush1.bf16.msra.mxu0 0
      %4867 = vmatprep.subr.bf16.mxu0 0
      %4868 = vmatpush1.bf16.msra.mxu0 0
      %4869 = vmatprep.subr.bf16.mxu0 0
      %4870 = vmatpush1.bf16.msra.mxu0 0
      %4871 = vmatprep.subr.bf16.mxu0 0
      %4872 = vmatpush1.bf16.msra.mxu0 0
      %4873 = vmatprep.mubr.bf16.mxu0 0
      %4874 = vmatmul.mubr.bf16.gmra.mrb[0].mxu0 %v4698
      %v4875 = vpop.f32.mrb[0].mxu0
      %v4876 = vadd.f32 0.0, %v4875
      %v4877 = vpop.f32.mrb[0].mxu0
      %v4878 = vpop.f32.mrb[0].mxu0
      %v4879 = vadd.f32 0.0, %v4878
      %v4880 = vpop.f32.mrb[0].mxu0
      %4881 = vmatprep.mubr.bf16.mxu0 0
      %4882 = vmatmul.mubr.bf16.gmra.mrb[0].mxu0 %v4701
      %v4883 = vpop.f32.mrb[0].mxu0
      %v4884 = vadd.f32 0.0, %v4883
      %v4885 = vpop.f32.mrb[0].mxu0
      %v4886 = vpop.f32.mrb[0].mxu0
      %v4887 = vadd.f32 0.0, %v4886
      %v4888 = vpop.f32.mrb[0].mxu0
      %4889 = vmatprep.mubr.bf16.mxu0 0
      %4890 = vmatmul.mubr.bf16.gmra.mrb[0].mxu0 %v4704
      %v4891 = vpop.f32.mrb[0].mxu0
      %v4892 = vadd.f32 0.0, %v4891
      %v4893 = vpop.f32.mrb[0].mxu0
      %v4894 = vpop.f32.mrb[0].mxu0
      %v4895 = vadd.f32 0.0, %v4894
      %v4896 = vpop.f32.mrb[0].mxu0
      %4897 = vmatprep.mubr.bf16.mxu0 0
      %4898 = vmatmul.mubr.bf16.gmra.mrb[0].mxu0 %v4707
      %v4899 = vpop.f32.mrb[0].mxu0
      %v4900 = vadd.f32 0.0, %v4899
      %v4901 = vpop.f32.mrb[0].mxu0
      %v4902 = vpop.f32.mrb[0].mxu0
      %v4903 = vadd.f32 0.0, %v4902
      %v4904 = vpop.f32.mrb[0].mxu0
      %4905 = vmatprep.mubr.bf16.mxu0 0
      %4906 = vmatmul.mubr.bf16.gmra.mrb[0].mxu0 %v4710
      %v4907 = vpop.f32.mrb[0].mxu0
      %v4908 = vadd.f32 0.0, %v4907
      %v4909 = vpop.f32.mrb[0].mxu0
      %v4910 = vpop.f32.mrb[0].mxu0
      %v4911 = vadd.f32 0.0, %v4910
      %v4912 = vpop.f32.mrb[0].mxu0
      %4913 = vmatprep.mubr.bf16.mxu0 0
      %4914 = vmatmul.mubr.bf16.gmra.mrb[0].mxu0 %v4713
      %v4915 = vpop.f32.mrb[0].mxu0
      %v4916 = vadd.f32 0.0, %v4915
      %v4917 = vpop.f32.mrb[0].mxu0
      %v4918 = vpop.f32.mrb[0].mxu0
      %v4919 = vadd.f32 0.0, %v4918
      %v4920 = vpop.f32.mrb[0].mxu0
      %4921 = vmatprep.mubr.bf16.mxu0 0
      %4922 = vmatmul.mubr.bf16.gmra.mrb[0].mxu0 %v4716
      %v4923 = vpop.f32.mrb[0].mxu0
      %v4924 = vadd.f32 0.0, %v4923
      %v4925 = vpop.f32.mrb[0].mxu0
      %v4926 = vpop.f32.mrb[0].mxu0
      %v4927 = vadd.f32 0.0, %v4926
      %v4928 = vpop.f32.mrb[0].mxu0
      %4929 = vmatprep.mubr.bf16.mxu0 0
      %4930 = vmatmul.mubr.bf16.gmra.mrb[0].mxu0 %v4719
      %v4931 = vpop.f32.mrb[0].mxu0
      %v4932 = vadd.f32 0.0, %v4931
      %v4933 = vpop.f32.mrb[0].mxu0
      %v4934 = vpop.f32.mrb[0].mxu0
      %v4935 = vadd.f32 0.0, %v4934
      %v4936 = vpop.f32.mrb[0].mxu0
      %4937 = vmatprep.mubr.bf16.mxu0 0
      %4938 = vmatmul.mubr.bf16.gmra.mrb[0].mxu0 %v4722
      %v4939 = vpop.f32.mrb[0].mxu0
      %v4940 = vadd.f32 0.0, %v4939
      %v4941 = vpop.f32.mrb[0].mxu0
      %v4942 = vpop.f32.mrb[0].mxu0
      %v4943 = vadd.f32 0.0, %v4942
      %v4944 = vpop.f32.mrb[0].mxu0
      %4945 = vmatprep.mubr.bf16.mxu0 0
      %4946 = vmatmul.mubr.bf16.gmra.mrb[0].mxu0 %v4725
      %v4947 = vpop.f32.mrb[0].mxu0
      %v4948 = vadd.f32 0.0, %v4947
      %v4949 = vpop.f32.mrb[0].mxu0
      %v4950 = vpop.f32.mrb[0].mxu0
      %v4951 = vadd.f32 0.0, %v4950
      %v4952 = vpop.f32.mrb[0].mxu0
      %4953 = vmatprep.mubr.bf16.mxu0 0
      %4954 = vmatmul.mubr.bf16.gmra.mrb[0].mxu0 %v4728
      %v4955 = vpop.f32.mrb[0].mxu0
      %v4956 = vadd.f32 0.0, %v4955
      %v4957 = vpop.f32.mrb[0].mxu0
      %v4958 = vpop.f32.mrb[0].mxu0
      %v4959 = vadd.f32 0.0, %v4958
      %v4960 = vpop.f32.mrb[0].mxu0
      %4961 = vmatprep.mubr.bf16.mxu0 0
      %4962 = vmatmul.mubr.bf16.gmra.mrb[0].mxu0 %v4731
      %v4963 = vpop.f32.mrb[0].mxu0
      %v4964 = vadd.f32 0.0, %v4963
      %v4965 = vpop.f32.mrb[0].mxu0
      %v4966 = vpop.f32.mrb[0].mxu0
      %v4967 = vadd.f32 0.0, %v4966
      %v4968 = vpop.f32.mrb[0].mxu0
      %4969 = vmatprep.mubr.bf16.mxu0 0
      %4970 = vmatmul.mubr.bf16.gmra.mrb[0].mxu0 %v4734
      %v4971 = vpop.f32.mrb[0].mxu0
      %v4972 = vadd.f32 0.0, %v4971
      %v4973 = vpop.f32.mrb[0].mxu0
      %v4974 = vpop.f32.mrb[0].mxu0
      %v4975 = vadd.f32 0.0, %v4974
      %v4976 = vpop.f32.mrb[0].mxu0
      %4977 = vmatprep.mubr.bf16.mxu0 0
      %4978 = vmatmul.mubr.bf16.gmra.mrb[0].mxu0 %v4737
      %v4979 = vpop.f32.mrb[0].mxu0
      %v4980 = vadd.f32 0.0, %v4979
      %v4981 = vpop.f32.mrb[0].mxu0
      %v4982 = vpop.f32.mrb[0].mxu0
      %v4983 = vadd.f32 0.0, %v4982
      %v4984 = vpop.f32.mrb[0].mxu0
      %4985 = vmatprep.mubr.bf16.mxu0 0
      %4986 = vmatmul.mubr.bf16.gmra.mrb[0].mxu0 %v4740
      %v4987 = vpop.f32.mrb[0].mxu0
      %v4988 = vadd.f32 0.0, %v4987
      %v4989 = vpop.f32.mrb[0].mxu0
      %v4990 = vpop.f32.mrb[0].mxu0
      %v4991 = vadd.f32 0.0, %v4990
      %v4992 = vpop.f32.mrb[0].mxu0
      %4993 = vmatprep.mubr.bf16.mxu0 0
      %4994 = vmatmul.mubr.bf16.gmra.mrb[0].mxu0 %v4743
      %v4995 = vpop.f32.mrb[0].mxu0
      %v4996 = vadd.f32 0.0, %v4995
      %v4997 = vpop.f32.mrb[0].mxu0
      %v4998 = vpop.f32.mrb[0].mxu0
      %v4999 = vadd.f32 0.0, %v4998
      %v5000 = vpop.f32.mrb[0].mxu0
      %5001 = vmatprep.mubr.bf16.mxu0 0
      %5002 = vmatmul.mubr.bf16.gmra.mrb[0].mxu0 %v4746
      %v5003 = vpop.f32.mrb[0].mxu0
      %v5004 = vadd.f32 0.0, %v5003
      %v5005 = vpop.f32.mrb[0].mxu0
      %v5006 = vpop.f32.mrb[0].mxu0
      %v5007 = vadd.f32 0.0, %v5006
      %v5008 = vpop.f32.mrb[0].mxu0
      %5009 = vmatprep.mubr.bf16.mxu0 0
      %5010 = vmatmul.mubr.bf16.gmra.mrb[0].mxu0 %v4749
      %v5011 = vpop.f32.mrb[0].mxu0
      %v5012 = vadd.f32 0.0, %v5011
      %v5013 = vpop.f32.mrb[0].mxu0
      %v5014 = vpop.f32.mrb[0].mxu0
      %v5015 = vadd.f32 0.0, %v5014
      %v5016 = vpop.f32.mrb[0].mxu0
      %5017 = vmatprep.mubr.bf16.mxu0 0
      %5018 = vmatmul.mubr.bf16.gmra.mrb[0].mxu0 %v4752
      %v5019 = vpop.f32.mrb[0].mxu0
      %v5020 = vadd.f32 0.0, %v5019
      %v5021 = vpop.f32.mrb[0].mxu0
      %v5022 = vpop.f32.mrb[0].mxu0
      %v5023 = vadd.f32 0.0, %v5022
      %v5024 = vpop.f32.mrb[0].mxu0
      %5025 = vmatprep.mubr.bf16.mxu0 0
      %5026 = vmatmul.mubr.bf16.gmra.mrb[0].mxu0 %v4755
      %v5027 = vpop.f32.mrb[0].mxu0
      %v5028 = vadd.f32 0.0, %v5027
      %v5029 = vpop.f32.mrb[0].mxu0
      %v5030 = vpop.f32.mrb[0].mxu0
      %v5031 = vadd.f32 0.0, %v5030
      %v5032 = vpop.f32.mrb[0].mxu0
      %5033 = vmatprep.mubr.bf16.mxu0 0
      %5034 = vmatmul.mubr.bf16.gmra.mrb[0].mxu0 %v4758
      %v5035 = vpop.f32.mrb[0].mxu0
      %v5036 = vadd.f32 0.0, %v5035
      %v5037 = vpop.f32.mrb[0].mxu0
      %v5038 = vpop.f32.mrb[0].mxu0
      %v5039 = vadd.f32 0.0, %v5038
      %v5040 = vpop.f32.mrb[0].mxu0
      %5041 = vmatprep.mubr.bf16.mxu0 0
      %5042 = vmatmul.mubr.bf16.gmra.mrb[0].mxu0 %v4761
      %v5043 = vpop.f32.mrb[0].mxu0
      %v5044 = vadd.f32 0.0, %v5043
      %v5045 = vpop.f32.mrb[0].mxu0
      %v5046 = vpop.f32.mrb[0].mxu0
      %v5047 = vadd.f32 0.0, %v5046
      %v5048 = vpop.f32.mrb[0].mxu0
      %5049 = vmatprep.mubr.bf16.mxu0 0
      %5050 = vmatmul.mubr.bf16.gmra.mrb[0].mxu0 %v4764
      %v5051 = vpop.f32.mrb[0].mxu0
      %v5052 = vadd.f32 0.0, %v5051
      %v5053 = vpop.f32.mrb[0].mxu0
      %v5054 = vpop.f32.mrb[0].mxu0
      %v5055 = vadd.f32 0.0, %v5054
      %v5056 = vpop.f32.mrb[0].mxu0
      %5057 = vmatprep.mubr.bf16.mxu0 0
      %5058 = vmatmul.mubr.bf16.gmra.mrb[0].mxu0 %v4767
      %v5059 = vpop.f32.mrb[0].mxu0
      %v5060 = vadd.f32 0.0, %v5059
      %v5061 = vpop.f32.mrb[0].mxu0
      %v5062 = vpop.f32.mrb[0].mxu0
      %v5063 = vadd.f32 0.0, %v5062
      %v5064 = vpop.f32.mrb[0].mxu0
      %5065 = vmatprep.mubr.bf16.mxu0 0
      %5066 = vmatmul.mubr.bf16.gmra.mrb[0].mxu0 %v4770
      %v5067 = vpop.f32.mrb[0].mxu0
      %v5068 = vadd.f32 0.0, %v5067
      %v5069 = vpop.f32.mrb[0].mxu0
      %v5070 = vpop.f32.mrb[0].mxu0
      %v5071 = vadd.f32 0.0, %v5070
      %v5072 = vpop.f32.mrb[0].mxu0
      %5073 = vmatprep.mubr.bf16.mxu0 0
      %5074 = vmatmul.mubr.bf16.gmra.mrb[0].mxu0 %v4773
      %v5075 = vpop.f32.mrb[0].mxu0
      %v5076 = vadd.f32 0.0, %v5075
      %v5077 = vpop.f32.mrb[0].mxu0
      %v5078 = vpop.f32.mrb[0].mxu0
      %v5079 = vadd.f32 0.0, %v5078
      %v5080 = vpop.f32.mrb[0].mxu0
      %5081 = vmatprep.mubr.bf16.mxu0 0
      %5082 = vmatmul.mubr.bf16.gmra.mrb[0].mxu0 %v4776
      %v5083 = vpop.f32.mrb[0].mxu0
      %v5084 = vadd.f32 0.0, %v5083
      %v5085 = vpop.f32.mrb[0].mxu0
      %v5086 = vpop.f32.mrb[0].mxu0
      %v5087 = vadd.f32 0.0, %v5086
      %v5088 = vpop.f32.mrb[0].mxu0
      %5089 = vmatprep.mubr.bf16.mxu0 0
      %5090 = vmatmul.mubr.bf16.gmra.mrb[0].mxu0 %v4779
      %v5091 = vpop.f32.mrb[0].mxu0
      %v5092 = vadd.f32 0.0, %v5091
      %v5093 = vpop.f32.mrb[0].mxu0
      %v5094 = vpop.f32.mrb[0].mxu0
      %v5095 = vadd.f32 0.0, %v5094
      %v5096 = vpop.f32.mrb[0].mxu0
      %5097 = vmatprep.mubr.bf16.mxu0 0
      %5098 = vmatmul.mubr.bf16.gmra.mrb[0].mxu0 %v4782
      %v5099 = vpop.f32.mrb[0].mxu0
      %v5100 = vadd.f32 0.0, %v5099
      %v5101 = vpop.f32.mrb[0].mxu0
      %v5102 = vpop.f32.mrb[0].mxu0
      %v5103 = vadd.f32 0.0, %v5102
      %v5104 = vpop.f32.mrb[0].mxu0
      %5105 = vmatprep.mubr.bf16.mxu0 0
      %5106 = vmatmul.mubr.bf16.gmra.mrb[0].mxu0 %v4785
      %v5107 = vpop.f32.mrb[0].mxu0
      %v5108 = vadd.f32 0.0, %v5107
      %v5109 = vpop.f32.mrb[0].mxu0
      %v5110 = vpop.f32.mrb[0].mxu0
      %v5111 = vadd.f32 0.0, %v5110
      %v5112 = vpop.f32.mrb[0].mxu0
      %5113 = vmatprep.mubr.bf16.mxu0 0
      %5114 = vmatmul.mubr.bf16.gmra.mrb[0].mxu0 %v4788
      %v5115 = vpop.f32.mrb[0].mxu0
      %v5116 = vadd.f32 0.0, %v5115
      %v5117 = vpop.f32.mrb[0].mxu0
      %v5118 = vpop.f32.mrb[0].mxu0
      %v5119 = vadd.f32 0.0, %v5118
      %v5120 = vpop.f32.mrb[0].mxu0
      %5121 = vmatprep.mubr.bf16.mxu0 0
      %5122 = vmatmul.mubr.bf16.gmra.mrb[0].mxu0 %v4791
      %v5123 = vpop.f32.mrb[0].mxu0
      %v5124 = vadd.f32 0.0, %v5123
      %v5125 = vpop.f32.mrb[0].mxu0
      %v5126 = vpop.f32.mrb[0].mxu0
      %v5127 = vadd.f32 0.0, %v5126
      %v5128 = vpop.f32.mrb[0].mxu0
      %5129 = vmatprep.mubr.bf16.mxu0 0
      %5130 = vmatmul.mubr.bf16.gmra.mrb[0].mxu0 %v4794
      %v5131 = vpop.f32.mrb[0].mxu0
      %v5132 = vadd.f32 0.0, %v5131
      %v5133 = vpop.f32.mrb[0].mxu0
      %v5134 = vpop.f32.mrb[0].mxu0
      %v5135 = vadd.f32 0.0, %v5134
      %v5136 = vpop.f32.mrb[0].mxu0
      %5137 = vmatprep.mubr.bf16.mxu0 0
      %5138 = vmatmul.mubr.bf16.gmra.mrb[0].mxu0 %v4797
      %v5139 = vpop.f32.mrb[0].mxu0
      %v5140 = vadd.f32 0.0, %v5139
      %v5141 = vpop.f32.mrb[0].mxu0
      %v5142 = vpop.f32.mrb[0].mxu0
      %v5143 = vadd.f32 0.0, %v5142
      %v5144 = vpop.f32.mrb[0].mxu0
      %5145 = vmatprep.mubr.bf16.mxu0 0
      %5146 = vmatmul.mubr.bf16.gmra.mrb[0].mxu0 %v4800
      %v5147 = vpop.f32.mrb[0].mxu0
      %v5148 = vadd.f32 0.0, %v5147
      %v5149 = vpop.f32.mrb[0].mxu0
      %v5150 = vpop.f32.mrb[0].mxu0
      %v5151 = vadd.f32 0.0, %v5150
      %v5152 = vpop.f32.mrb[0].mxu0
      %5153 = vmatprep.mubr.bf16.mxu0 0
      %5154 = vmatmul.mubr.bf16.gmra.mrb[0].mxu0 %v4803
      %v5155 = vpop.f32.mrb[0].mxu0
      %v5156 = vadd.f32 0.0, %v5155
      %v5157 = vpop.f32.mrb[0].mxu0
      %v5158 = vpop.f32.mrb[0].mxu0
      %v5159 = vadd.f32 0.0, %v5158
      %v5160 = vpop.f32.mrb[0].mxu0
      %5161 = vmatprep.mubr.bf16.mxu0 0
      %5162 = vmatmul.mubr.bf16.gmra.mrb[0].mxu0 %v4806
      %v5163 = vpop.f32.mrb[0].mxu0
      %v5164 = vadd.f32 0.0, %v5163
      %v5165 = vpop.f32.mrb[0].mxu0
      %v5166 = vpop.f32.mrb[0].mxu0
      %v5167 = vadd.f32 0.0, %v5166
      %v5168 = vpop.f32.mrb[0].mxu0
      %5169 = vmatprep.mubr.bf16.mxu0 0
      %5170 = vmatmul.mubr.bf16.gmra.mrb[0].mxu0 %v4809
      %v5171 = vpop.f32.mrb[0].mxu0
      %v5172 = vadd.f32 0.0, %v5171
      %v5173 = vpop.f32.mrb[0].mxu0
      %v5174 = vpop.f32.mrb[0].mxu0
      %v5175 = vadd.f32 0.0, %v5174
      %v5176 = vpop.f32.mrb[0].mxu0
      %5177 = vmatprep.mubr.bf16.mxu0 0
      %5178 = vmatmul.mubr.bf16.gmra.mrb[0].mxu0 %v4812
      %v5179 = vpop.f32.mrb[0].mxu0
      %v5180 = vadd.f32 0.0, %v5179
      %v5181 = vpop.f32.mrb[0].mxu0
      %v5182 = vpop.f32.mrb[0].mxu0
      %v5183 = vadd.f32 0.0, %v5182
      %v5184 = vpop.f32.mrb[0].mxu0
      %5185 = vmatprep.mubr.bf16.mxu0 0
      %5186 = vmatmul.mubr.bf16.gmra.mrb[0].mxu0 %v4815
      %v5187 = vpop.f32.mrb[0].mxu0
      %v5188 = vadd.f32 0.0, %v5187
      %v5189 = vpop.f32.mrb[0].mxu0
      %v5190 = vpop.f32.mrb[0].mxu0
      %v5191 = vadd.f32 0.0, %v5190
      %v5192 = vpop.f32.mrb[0].mxu0
      %5193 = vmatprep.mubr.bf16.mxu0 0
      %5194 = vmatmul.mubr.bf16.gmra.mrb[0].mxu0 %v4818
      %v5195 = vpop.f32.mrb[0].mxu0
      %v5196 = vadd.f32 0.0, %v5195
      %v5197 = vpop.f32.mrb[0].mxu0
      %v5198 = vpop.f32.mrb[0].mxu0
      %v5199 = vadd.f32 0.0, %v5198
      %v5200 = vpop.f32.mrb[0].mxu0
      %5201 = vmatprep.mubr.bf16.mxu0 0
      %5202 = vmatmul.mubr.bf16.gmra.mrb[0].mxu0 %v4821
      %v5203 = vpop.f32.mrb[0].mxu0
      %v5204 = vadd.f32 0.0, %v5203
      %v5205 = vpop.f32.mrb[0].mxu0
      %v5206 = vpop.f32.mrb[0].mxu0
      %v5207 = vadd.f32 0.0, %v5206
      %v5208 = vpop.f32.mrb[0].mxu0
      %5209 = vmatprep.mubr.bf16.mxu0 0
      %5210 = vmatmul.mubr.bf16.gmra.mrb[0].mxu0 %v4824
      %v5211 = vpop.f32.mrb[0].mxu0
      %v5212 = vadd.f32 0.0, %v5211
      %v5213 = vpop.f32.mrb[0].mxu0
      %v5214 = vpop.f32.mrb[0].mxu0
      %v5215 = vadd.f32 0.0, %v5214
      %v5216 = vpop.f32.mrb[0].mxu0
      %5217 = vmatprep.mubr.bf16.mxu0 0
      %5218 = vmatmul.mubr.bf16.gmra.mrb[0].mxu0 %v4827
      %v5219 = vpop.f32.mrb[0].mxu0
      %v5220 = vadd.f32 0.0, %v5219
      %v5221 = vpop.f32.mrb[0].mxu0
      %v5222 = vpop.f32.mrb[0].mxu0
      %v5223 = vadd.f32 0.0, %v5222
      %v5224 = vpop.f32.mrb[0].mxu0
      %5225 = vmatprep.mubr.bf16.mxu0 0
      %5226 = vmatmul.mubr.bf16.gmra.mrb[0].mxu0 %v4830
      %v5227 = vpop.f32.mrb[0].mxu0
      %v5228 = vadd.f32 0.0, %v5227
      %v5229 = vpop.f32.mrb[0].mxu0
      %v5230 = vpop.f32.mrb[0].mxu0
      %v5231 = vadd.f32 0.0, %v5230
      %v5232 = vpop.f32.mrb[0].mxu0
      %5233 = vmatprep.mubr.bf16.mxu0 0
      %5234 = vmatmul.mubr.bf16.gmra.mrb[0].mxu0 %v4833
      %v5235 = vpop.f32.mrb[0].mxu0
      %v5236 = vadd.f32 0.0, %v5235
      %v5237 = vpop.f32.mrb[0].mxu0
      %v5238 = vpop.f32.mrb[0].mxu0
      %v5239 = vadd.f32 0.0, %v5238
      %v5240 = vpop.f32.mrb[0].mxu0
      %5241 = vmatprep.mubr.bf16.mxu0 0
      %5242 = vmatmul.mubr.bf16.gmra.mrb[0].mxu0 %v4836
      %v5243 = vpop.f32.mrb[0].mxu0
      %v5244 = vadd.f32 0.0, %v5243
      %v5245 = vpop.f32.mrb[0].mxu0
      %v5246 = vpop.f32.mrb[0].mxu0
      %v5247 = vadd.f32 0.0, %v5246
      %v5248 = vpop.f32.mrb[0].mxu0
      %5249 = vmatprep.mubr.bf16.mxu0 0
      %5250 = vmatmul.mubr.bf16.gmra.mrb[0].mxu0 %v4839
      %v5251 = vpop.f32.mrb[0].mxu0
      %v5252 = vadd.f32 0.0, %v5251
      %v5253 = vpop.f32.mrb[0].mxu0
      %v5254 = vpop.f32.mrb[0].mxu0
      %v5255 = vadd.f32 0.0, %v5254
      %v5256 = vpop.f32.mrb[0].mxu0
      %5257 = vdwg.mxu0
      %v5258 = vmul.f32 %v4876, %v2802
      %v5259 = vmul.f32 %v4879, %v2802
      %v5260 = vmul.f32 %v4884, %v2802
      %v5261 = vmul.f32 %v4887, %v2802
      %v5262 = vmul.f32 %v4892, %v2802
      %v5263 = vmul.f32 %v4895, %v2802
      %v5264 = vmul.f32 %v4900, %v2802
      %v5265 = vmul.f32 %v4903, %v2802
      %v5266 = vmul.f32 %v4908, %v2806
      %v5267 = vmul.f32 %v4911, %v2806
      %v5268 = vmul.f32 %v4916, %v2806
      %v5269 = vmul.f32 %v4919, %v2806
      %v5270 = vmul.f32 %v4924, %v2806
      %v5271 = vmul.f32 %v4927, %v2806
      %v5272 = vmul.f32 %v4932, %v2806
      %v5273 = vmul.f32 %v4935, %v2806
      %v5274 = vmul.f32 %v4940, %v2810
      %v5275 = vmul.f32 %v4943, %v2810
      %v5276 = vmul.f32 %v4948, %v2810
      %v5277 = vmul.f32 %v4951, %v2810
      %v5278 = vmul.f32 %v4956, %v2810
      %v5279 = vmul.f32 %v4959, %v2810
      %v5280 = vmul.f32 %v4964, %v2810
      %v5281 = vmul.f32 %v4967, %v2810
      %v5282 = vmul.f32 %v4972, %v2814
      %v5283 = vmul.f32 %v4975, %v2814
      %v5284 = vmul.f32 %v4980, %v2814
      %v5285 = vmul.f32 %v4983, %v2814
      %v5286 = vmul.f32 %v4988, %v2814
      %v5287 = vmul.f32 %v4991, %v2814
      %v5288 = vmul.f32 %v4996, %v2814
      %v5289 = vmul.f32 %v4999, %v2814
      %v5290 = vmul.f32 %v5004, %v2818
      %v5291 = vmul.f32 %v5007, %v2818
      %v5292 = vmul.f32 %v5012, %v2818
      %v5293 = vmul.f32 %v5015, %v2818
      %v5294 = vmul.f32 %v5020, %v2818
      %v5295 = vmul.f32 %v5023, %v2818
      %v5296 = vmul.f32 %v5028, %v2818
      %v5297 = vmul.f32 %v5031, %v2818
      %v5298 = vmul.f32 %v5036, %v2822
      %v5299 = vmul.f32 %v5039, %v2822
      %v5300 = vmul.f32 %v5044, %v2822
      %v5301 = vmul.f32 %v5047, %v2822
      %v5302 = vmul.f32 %v5052, %v2822
      %v5303 = vmul.f32 %v5055, %v2822
      %v5304 = vmul.f32 %v5060, %v2822
      %v5305 = vmul.f32 %v5063, %v2822
      %v5306 = vmul.f32 %v5068, %v2826
      %v5307 = vmul.f32 %v5071, %v2826
      %v5308 = vmul.f32 %v5076, %v2826
      %v5309 = vmul.f32 %v5079, %v2826
      %v5310 = vmul.f32 %v5084, %v2826
      %v5311 = vmul.f32 %v5087, %v2826
      %v5312 = vmul.f32 %v5092, %v2826
      %v5313 = vmul.f32 %v5095, %v2826
      %v5314 = vmul.f32 %v5100, %v2830
      %v5315 = vmul.f32 %v5103, %v2830
      %v5316 = vmul.f32 %v5108, %v2830
      %v5317 = vmul.f32 %v5111, %v2830
      %v5318 = vmul.f32 %v5116, %v2830
      %v5319 = vmul.f32 %v5119, %v2830
      %v5320 = vmul.f32 %v5124, %v2830
      %v5321 = vmul.f32 %v5127, %v2830
      %v5322 = vmul.f32 %v5132, %v2834
      %v5323 = vmul.f32 %v5135, %v2834
      %v5324 = vmul.f32 %v5140, %v2834
      %v5325 = vmul.f32 %v5143, %v2834
      %v5326 = vmul.f32 %v5148, %v2834
      %v5327 = vmul.f32 %v5151, %v2834
      %v5328 = vmul.f32 %v5156, %v2834
      %v5329 = vmul.f32 %v5159, %v2834
      %v5330 = vmul.f32 %v5164, %v2838
      %v5331 = vmul.f32 %v5167, %v2838
      %v5332 = vmul.f32 %v5172, %v2838
      %v5333 = vmul.f32 %v5175, %v2838
      %v5334 = vmul.f32 %v5180, %v2838
      %v5335 = vmul.f32 %v5183, %v2838
      %v5336 = vmul.f32 %v5188, %v2838
      %v5337 = vmul.f32 %v5191, %v2838
      %v5338 = vmul.f32 %v5196, %v2842
      %v5339 = vmul.f32 %v5199, %v2842
      %v5340 = vmul.f32 %v5204, %v2842
      %v5341 = vmul.f32 %v5207, %v2842
      %v5342 = vmul.f32 %v5212, %v2842
      %v5343 = vmul.f32 %v5215, %v2842
      %v5344 = vmul.f32 %v5220, %v2842
      %v5345 = vmul.f32 %v5223, %v2842
      %v5346 = vmul.f32 %v5228, %v2846
      %v5347 = vmul.f32 %v5231, %v2846
      %v5348 = vmul.f32 %v5236, %v2846
      %v5349 = vmul.f32 %v5239, %v2846
      %v5350 = vmul.f32 %v5244, %v2846
      %v5351 = vmul.f32 %v5247, %v2846
      %v5352 = vmul.f32 %v5252, %v2846
      %v5353 = vmul.f32 %v5255, %v2846
      %v5354 = vsel %vm576, %v5258, 0.0
      %v5355 = vsel %vm576, %v5266, 0.0
      %v5356 = vadd.f32 %v5354, %v5355
      %v5357 = vsel %vm576, %v5274, 0.0
      %v5358 = vadd.f32 %v5356, %v5357
      %v5359 = vsel %vm576, %v5282, 0.0
      %v5360 = vadd.f32 %v5358, %v5359
      %v5361 = vsel %vm576, %v5290, 0.0
      %v5362 = vadd.f32 %v5360, %v5361
      %v5363 = vsel %vm576, %v5298, 0.0
      %v5364 = vadd.f32 %v5362, %v5363
      %v5365 = vsel %vm576, %v5306, 0.0
      %v5366 = vadd.f32 %v5364, %v5365
      %v5367 = vsel %vm576, %v5314, 0.0
      %v5368 = vadd.f32 %v5366, %v5367
      %v5369 = vsel %vm576, %v5322, 0.0
      %v5370 = vadd.f32 %v5368, %v5369
      %v5371 = vsel %vm576, %v5330, 0.0
      %v5372 = vadd.f32 %v5370, %v5371
      %v5373 = vsel %vm576, %v5338, 0.0
      %v5374 = vadd.f32 %v5372, %v5373
      %v5375 = vsel %vm576, %v5346, 0.0
      %v5376 = vadd.f32 %v5374, %v5375
      %v5377 = vsel %vm576, %v5259, 0.0
      %v5378 = vsel %vm576, %v5267, 0.0
      %v5379 = vadd.f32 %v5377, %v5378
      %v5380 = vsel %vm576, %v5275, 0.0
      %v5381 = vadd.f32 %v5379, %v5380
      %v5382 = vsel %vm576, %v5283, 0.0
      %v5383 = vadd.f32 %v5381, %v5382
      %v5384 = vsel %vm576, %v5291, 0.0
      %v5385 = vadd.f32 %v5383, %v5384
      %v5386 = vsel %vm576, %v5299, 0.0
      %v5387 = vadd.f32 %v5385, %v5386
      %v5388 = vsel %vm576, %v5307, 0.0
      %v5389 = vadd.f32 %v5387, %v5388
      %v5390 = vsel %vm576, %v5315, 0.0
      %v5391 = vadd.f32 %v5389, %v5390
      %v5392 = vsel %vm576, %v5323, 0.0
      %v5393 = vadd.f32 %v5391, %v5392
      %v5394 = vsel %vm576, %v5331, 0.0
      %v5395 = vadd.f32 %v5393, %v5394
      %v5396 = vsel %vm576, %v5339, 0.0
      %v5397 = vadd.f32 %v5395, %v5396
      %v5398 = vsel %vm576, %v5347, 0.0
      %v5399 = vadd.f32 %v5397, %v5398
      %v5400 = vsel %vm576, %v5260, 0.0
      %v5401 = vsel %vm576, %v5268, 0.0
      %v5402 = vadd.f32 %v5400, %v5401
      %v5403 = vsel %vm576, %v5276, 0.0
      %v5404 = vadd.f32 %v5402, %v5403
      %v5405 = vsel %vm576, %v5284, 0.0
      %v5406 = vadd.f32 %v5404, %v5405
      %v5407 = vsel %vm576, %v5292, 0.0
      %v5408 = vadd.f32 %v5406, %v5407
      %v5409 = vsel %vm576, %v5300, 0.0
      %v5410 = vadd.f32 %v5408, %v5409
      %v5411 = vsel %vm576, %v5308, 0.0
      %v5412 = vadd.f32 %v5410, %v5411
      %v5413 = vsel %vm576, %v5316, 0.0
      %v5414 = vadd.f32 %v5412, %v5413
      %v5415 = vsel %vm576, %v5324, 0.0
      %v5416 = vadd.f32 %v5414, %v5415
      %v5417 = vsel %vm576, %v5332, 0.0
      %v5418 = vadd.f32 %v5416, %v5417
      %v5419 = vsel %vm576, %v5340, 0.0
      %v5420 = vadd.f32 %v5418, %v5419
      %v5421 = vsel %vm576, %v5348, 0.0
      %v5422 = vadd.f32 %v5420, %v5421
      %v5423 = vsel %vm576, %v5261, 0.0
      %v5424 = vsel %vm576, %v5269, 0.0
      %v5425 = vadd.f32 %v5423, %v5424
      %v5426 = vsel %vm576, %v5277, 0.0
      %v5427 = vadd.f32 %v5425, %v5426
      %v5428 = vsel %vm576, %v5285, 0.0
      %v5429 = vadd.f32 %v5427, %v5428
      %v5430 = vsel %vm576, %v5293, 0.0
      %v5431 = vadd.f32 %v5429, %v5430
      %v5432 = vsel %vm576, %v5301, 0.0
      %v5433 = vadd.f32 %v5431, %v5432
      %v5434 = vsel %vm576, %v5309, 0.0
      %v5435 = vadd.f32 %v5433, %v5434
      %v5436 = vsel %vm576, %v5317, 0.0
      %v5437 = vadd.f32 %v5435, %v5436
      %v5438 = vsel %vm576, %v5325, 0.0
      %v5439 = vadd.f32 %v5437, %v5438
      %v5440 = vsel %vm576, %v5333, 0.0
      %v5441 = vadd.f32 %v5439, %v5440
      %v5442 = vsel %vm576, %v5341, 0.0
      %v5443 = vadd.f32 %v5441, %v5442
      %v5444 = vsel %vm576, %v5349, 0.0
      %v5445 = vadd.f32 %v5443, %v5444
      %v5446 = vsel %vm576, %v5262, 0.0
      %v5447 = vsel %vm576, %v5270, 0.0
      %v5448 = vadd.f32 %v5446, %v5447
      %v5449 = vsel %vm576, %v5278, 0.0
      %v5450 = vadd.f32 %v5448, %v5449
      %v5451 = vsel %vm576, %v5286, 0.0
      %v5452 = vadd.f32 %v5450, %v5451
      %v5453 = vsel %vm576, %v5294, 0.0
      %v5454 = vadd.f32 %v5452, %v5453
      %v5455 = vsel %vm576, %v5302, 0.0
      %v5456 = vadd.f32 %v5454, %v5455
      %v5457 = vsel %vm576, %v5310, 0.0
      %v5458 = vadd.f32 %v5456, %v5457
      %v5459 = vsel %vm576, %v5318, 0.0
      %v5460 = vadd.f32 %v5458, %v5459
      %v5461 = vsel %vm576, %v5326, 0.0
      %v5462 = vadd.f32 %v5460, %v5461
      %v5463 = vsel %vm576, %v5334, 0.0
      %v5464 = vadd.f32 %v5462, %v5463
      %v5465 = vsel %vm576, %v5342, 0.0
      %v5466 = vadd.f32 %v5464, %v5465
      %v5467 = vsel %vm576, %v5350, 0.0
      %v5468 = vadd.f32 %v5466, %v5467
      %v5469 = vsel %vm576, %v5263, 0.0
      %v5470 = vsel %vm576, %v5271, 0.0
      %v5471 = vadd.f32 %v5469, %v5470
      %v5472 = vsel %vm576, %v5279, 0.0
      %v5473 = vadd.f32 %v5471, %v5472
      %v5474 = vsel %vm576, %v5287, 0.0
      %v5475 = vadd.f32 %v5473, %v5474
      %v5476 = vsel %vm576, %v5295, 0.0
      %v5477 = vadd.f32 %v5475, %v5476
      %v5478 = vsel %vm576, %v5303, 0.0
      %v5479 = vadd.f32 %v5477, %v5478
      %v5480 = vsel %vm576, %v5311, 0.0
      %v5481 = vadd.f32 %v5479, %v5480
      %v5482 = vsel %vm576, %v5319, 0.0
      %v5483 = vadd.f32 %v5481, %v5482
      %v5484 = vsel %vm576, %v5327, 0.0
      %v5485 = vadd.f32 %v5483, %v5484
      %v5486 = vsel %vm576, %v5335, 0.0
      %v5487 = vadd.f32 %v5485, %v5486
      %v5488 = vsel %vm576, %v5343, 0.0
      %v5489 = vadd.f32 %v5487, %v5488
      %v5490 = vsel %vm576, %v5351, 0.0
      %v5491 = vadd.f32 %v5489, %v5490
      %v5492 = vsel %vm576, %v5264, 0.0
      %v5493 = vsel %vm576, %v5272, 0.0
      %v5494 = vadd.f32 %v5492, %v5493
      %v5495 = vsel %vm576, %v5280, 0.0
      %v5496 = vadd.f32 %v5494, %v5495
      %v5497 = vsel %vm576, %v5288, 0.0
      %v5498 = vadd.f32 %v5496, %v5497
      %v5499 = vsel %vm576, %v5296, 0.0
      %v5500 = vadd.f32 %v5498, %v5499
      %v5501 = vsel %vm576, %v5304, 0.0
      %v5502 = vadd.f32 %v5500, %v5501
      %v5503 = vsel %vm576, %v5312, 0.0
      %v5504 = vadd.f32 %v5502, %v5503
      %v5505 = vsel %vm576, %v5320, 0.0
      %v5506 = vadd.f32 %v5504, %v5505
      %v5507 = vsel %vm576, %v5328, 0.0
      %v5508 = vadd.f32 %v5506, %v5507
      %v5509 = vsel %vm576, %v5336, 0.0
      %v5510 = vadd.f32 %v5508, %v5509
      %v5511 = vsel %vm576, %v5344, 0.0
      %v5512 = vadd.f32 %v5510, %v5511
      %v5513 = vsel %vm576, %v5352, 0.0
      %v5514 = vadd.f32 %v5512, %v5513
      %v5515 = vsel %vm576, %v5265, 0.0
      %v5516 = vsel %vm576, %v5273, 0.0
      %v5517 = vadd.f32 %v5515, %v5516
      %v5518 = vsel %vm576, %v5281, 0.0
      %v5519 = vadd.f32 %v5517, %v5518
      %v5520 = vsel %vm576, %v5289, 0.0
      %v5521 = vadd.f32 %v5519, %v5520
      %v5522 = vsel %vm576, %v5297, 0.0
      %v5523 = vadd.f32 %v5521, %v5522
      %v5524 = vsel %vm576, %v5305, 0.0
      %v5525 = vadd.f32 %v5523, %v5524
      %v5526 = vsel %vm576, %v5313, 0.0
      %v5527 = vadd.f32 %v5525, %v5526
      %v5528 = vsel %vm576, %v5321, 0.0
      %v5529 = vadd.f32 %v5527, %v5528
      %v5530 = vsel %vm576, %v5329, 0.0
      %v5531 = vadd.f32 %v5529, %v5530
      %v5532 = vsel %vm576, %v5337, 0.0
      %v5533 = vadd.f32 %v5531, %v5532
      %v5534 = vsel %vm576, %v5345, 0.0
      %v5535 = vadd.f32 %v5533, %v5534
      %v5536 = vsel %vm576, %v5353, 0.0
      %v5537 = vadd.f32 %v5535, %v5536
      %v5538 = vmul.f32 %v953, %v2802
      %v5539 = vmul.f32 %v956, %v2802
      %v5540 = vmul.f32 %v961, %v2802
      %v5541 = vmul.f32 %v964, %v2802
      %v5542 = vmul.f32 %v969, %v2802
      %v5543 = vmul.f32 %v972, %v2802
      %v5544 = vmul.f32 %v977, %v2802
      %v5545 = vmul.f32 %v980, %v2802
      %v5546 = vmul.f32 %v953, %v2806
      %v5547 = vmul.f32 %v956, %v2806
      %v5548 = vmul.f32 %v961, %v2806
      %v5549 = vmul.f32 %v964, %v2806
      %v5550 = vmul.f32 %v969, %v2806
      %v5551 = vmul.f32 %v972, %v2806
      %v5552 = vmul.f32 %v977, %v2806
      %v5553 = vmul.f32 %v980, %v2806
      %v5554 = vmul.f32 %v953, %v2810
      %v5555 = vmul.f32 %v956, %v2810
      %v5556 = vmul.f32 %v961, %v2810
      %v5557 = vmul.f32 %v964, %v2810
      %v5558 = vmul.f32 %v969, %v2810
      %v5559 = vmul.f32 %v972, %v2810
      %v5560 = vmul.f32 %v977, %v2810
      %v5561 = vmul.f32 %v980, %v2810
      %v5562 = vmul.f32 %v953, %v2814
      %v5563 = vmul.f32 %v956, %v2814
      %v5564 = vmul.f32 %v961, %v2814
      %v5565 = vmul.f32 %v964, %v2814
      %v5566 = vmul.f32 %v969, %v2814
      %v5567 = vmul.f32 %v972, %v2814
      %v5568 = vmul.f32 %v977, %v2814
      %v5569 = vmul.f32 %v980, %v2814
      %v5570 = vmul.f32 %v953, %v2818
      %v5571 = vmul.f32 %v956, %v2818
      %v5572 = vmul.f32 %v961, %v2818
      %v5573 = vmul.f32 %v964, %v2818
      %v5574 = vmul.f32 %v969, %v2818
      %v5575 = vmul.f32 %v972, %v2818
      %v5576 = vmul.f32 %v977, %v2818
      %v5577 = vmul.f32 %v980, %v2818
      %v5578 = vmul.f32 %v953, %v2822
      %v5579 = vmul.f32 %v956, %v2822
      %v5580 = vmul.f32 %v961, %v2822
      %v5581 = vmul.f32 %v964, %v2822
      %v5582 = vmul.f32 %v969, %v2822
      %v5583 = vmul.f32 %v972, %v2822
      %v5584 = vmul.f32 %v977, %v2822
      %v5585 = vmul.f32 %v980, %v2822
      %v5586 = vmul.f32 %v953, %v2826
      %v5587 = vmul.f32 %v956, %v2826
      %v5588 = vmul.f32 %v961, %v2826
      %v5589 = vmul.f32 %v964, %v2826
      %v5590 = vmul.f32 %v969, %v2826
      %v5591 = vmul.f32 %v972, %v2826
      %v5592 = vmul.f32 %v977, %v2826
      %v5593 = vmul.f32 %v980, %v2826
      %v5594 = vmul.f32 %v953, %v2830
      %v5595 = vmul.f32 %v956, %v2830
      %v5596 = vmul.f32 %v961, %v2830
      %v5597 = vmul.f32 %v964, %v2830
      %v5598 = vmul.f32 %v969, %v2830
      %v5599 = vmul.f32 %v972, %v2830
      %v5600 = vmul.f32 %v977, %v2830
      %v5601 = vmul.f32 %v980, %v2830
      %v5602 = vmul.f32 %v953, %v2834
      %v5603 = vmul.f32 %v956, %v2834
      %v5604 = vmul.f32 %v961, %v2834
      %v5605 = vmul.f32 %v964, %v2834
      %v5606 = vmul.f32 %v969, %v2834
      %v5607 = vmul.f32 %v972, %v2834
      %v5608 = vmul.f32 %v977, %v2834
      %v5609 = vmul.f32 %v980, %v2834
      %v5610 = vmul.f32 %v953, %v2838
      %v5611 = vmul.f32 %v956, %v2838
      %v5612 = vmul.f32 %v961, %v2838
      %v5613 = vmul.f32 %v964, %v2838
      %v5614 = vmul.f32 %v969, %v2838
      %v5615 = vmul.f32 %v972, %v2838
      %v5616 = vmul.f32 %v977, %v2838
      %v5617 = vmul.f32 %v980, %v2838
      %v5618 = vmul.f32 %v953, %v2842
      %v5619 = vmul.f32 %v956, %v2842
      %v5620 = vmul.f32 %v961, %v2842
      %v5621 = vmul.f32 %v964, %v2842
      %v5622 = vmul.f32 %v969, %v2842
      %v5623 = vmul.f32 %v972, %v2842
      %v5624 = vmul.f32 %v977, %v2842
      %v5625 = vmul.f32 %v980, %v2842
      %v5626 = vmul.f32 %v953, %v2846
      %v5627 = vmul.f32 %v956, %v2846
      %v5628 = vmul.f32 %v961, %v2846
      %v5629 = vmul.f32 %v964, %v2846
      %v5630 = vmul.f32 %v969, %v2846
      %v5631 = vmul.f32 %v972, %v2846
      %v5632 = vmul.f32 %v977, %v2846
      %v5633 = vmul.f32 %v980, %v2846
      %v5634 = vpack.c.bf16 %v5539, %v5538
      %v5635 = vpack.c.bf16 %v5541, %v5540
      %v5636 = vpack.c.bf16 %v5543, %v5542
      %v5637 = vpack.c.bf16 %v5545, %v5544
      %v5638 = vpack.c.bf16 %v5547, %v5546
      %v5639 = vpack.c.bf16 %v5549, %v5548
      %v5640 = vpack.c.bf16 %v5551, %v5550
      %v5641 = vpack.c.bf16 %v5553, %v5552
      %v5642 = vpack.c.bf16 %v5555, %v5554
      %v5643 = vpack.c.bf16 %v5557, %v5556
      %v5644 = vpack.c.bf16 %v5559, %v5558
      %v5645 = vpack.c.bf16 %v5561, %v5560
      %v5646 = vpack.c.bf16 %v5563, %v5562
      %v5647 = vpack.c.bf16 %v5565, %v5564
      %v5648 = vpack.c.bf16 %v5567, %v5566
      %v5649 = vpack.c.bf16 %v5569, %v5568
      %v5650 = vpack.c.bf16 %v5571, %v5570
      %v5651 = vpack.c.bf16 %v5573, %v5572
      %v5652 = vpack.c.bf16 %v5575, %v5574
      %v5653 = vpack.c.bf16 %v5577, %v5576
      %v5654 = vpack.c.bf16 %v5579, %v5578
      %v5655 = vpack.c.bf16 %v5581, %v5580
      %v5656 = vpack.c.bf16 %v5583, %v5582
      %v5657 = vpack.c.bf16 %v5585, %v5584
      %v5658 = vpack.c.bf16 %v5587, %v5586
      %v5659 = vpack.c.bf16 %v5589, %v5588
      %v5660 = vpack.c.bf16 %v5591, %v5590
      %v5661 = vpack.c.bf16 %v5593, %v5592
      %v5662 = vpack.c.bf16 %v5595, %v5594
      %v5663 = vpack.c.bf16 %v5597, %v5596
      %v5664 = vpack.c.bf16 %v5599, %v5598
      %v5665 = vpack.c.bf16 %v5601, %v5600
      %v5666 = vpack.c.bf16 %v5603, %v5602
      %v5667 = vpack.c.bf16 %v5605, %v5604
      %v5668 = vpack.c.bf16 %v5607, %v5606
      %v5669 = vpack.c.bf16 %v5609, %v5608
      %v5670 = vpack.c.bf16 %v5611, %v5610
      %v5671 = vpack.c.bf16 %v5613, %v5612
      %v5672 = vpack.c.bf16 %v5615, %v5614
      %v5673 = vpack.c.bf16 %v5617, %v5616
      %v5674 = vpack.c.bf16 %v5619, %v5618
      %v5675 = vpack.c.bf16 %v5621, %v5620
      %v5676 = vpack.c.bf16 %v5623, %v5622
      %v5677 = vpack.c.bf16 %v5625, %v5624
      %v5678 = vpack.c.bf16 %v5627, %v5626
      %v5679 = vpack.c.bf16 %v5629, %v5628
      %v5680 = vpack.c.bf16 %v5631, %v5630
      %v5681 = vpack.c.bf16 %v5633, %v5632
      %v5683 = vsel %vm576, %v5634, 0
      %v5686 = vsel %vm576, %v5635, 0
      %v5689 = vsel %vm576, %v5636, 0
      %v5692 = vsel %vm576, %v5637, 0
      %v5695 = vsel %vm576, %v5638, 0
      %v5698 = vsel %vm576, %v5639, 0
      %v5701 = vsel %vm576, %v5640, 0
      %v5704 = vsel %vm576, %v5641, 0
      %v5707 = vsel %vm576, %v5642, 0
      %v5710 = vsel %vm576, %v5643, 0
      %v5713 = vsel %vm576, %v5644, 0
      %v5716 = vsel %vm576, %v5645, 0
      %v5719 = vsel %vm576, %v5646, 0
      %v5722 = vsel %vm576, %v5647, 0
      %v5725 = vsel %vm576, %v5648, 0
      %v5728 = vsel %vm576, %v5649, 0
      %v5731 = vsel %vm576, %v5650, 0
      %v5734 = vsel %vm576, %v5651, 0
      %v5737 = vsel %vm576, %v5652, 0
      %v5740 = vsel %vm576, %v5653, 0
      %v5743 = vsel %vm576, %v5654, 0
      %v5746 = vsel %vm576, %v5655, 0
      %v5749 = vsel %vm576, %v5656, 0
      %v5752 = vsel %vm576, %v5657, 0
      %v5755 = vsel %vm576, %v5658, 0
      %v5758 = vsel %vm576, %v5659, 0
      %v5761 = vsel %vm576, %v5660, 0
      %v5764 = vsel %vm576, %v5661, 0
      %v5767 = vsel %vm576, %v5662, 0
      %v5770 = vsel %vm576, %v5663, 0
      %v5773 = vsel %vm576, %v5664, 0
      %v5776 = vsel %vm576, %v5665, 0
      %v5779 = vsel %vm576, %v5666, 0
      %v5782 = vsel %vm576, %v5667, 0
      %v5785 = vsel %vm576, %v5668, 0
      %v5788 = vsel %vm576, %v5669, 0
      %v5791 = vsel %vm576, %v5670, 0
      %v5794 = vsel %vm576, %v5671, 0
      %v5797 = vsel %vm576, %v5672, 0
      %v5800 = vsel %vm576, %v5673, 0
      %v5803 = vsel %vm576, %v5674, 0
      %v5806 = vsel %vm576, %v5675, 0
      %v5809 = vsel %vm576, %v5676, 0
      %v5812 = vsel %vm576, %v5677, 0
      %v5815 = vsel %vm576, %v5678, 0
      %v5818 = vsel %vm576, %v5679, 0
      %v5821 = vsel %vm576, %v5680, 0
      %v5824 = vsel %vm576, %v5681, 0
      %v5827 = vsel %vm576, %v2863, 0
      %v5830 = vsel %vm576, %v2864, 0
      %v5833 = vsel %vm576, %v2865, 0
      %v5836 = vsel %vm576, %v2866, 0
      %5838 = vmatprep.subr.bf16.mxu0 0
      %5839 = vmatpush1.bf16.xpose.msra.mxu0 %v5827
      %5840 = vmatprep.subr.bf16.mxu0 0
      %5841 = vmatpush1.bf16.xpose.msra.mxu0 %v5830
      %5842 = vmatprep.subr.bf16.mxu0 0
      %5843 = vmatpush1.bf16.xpose.msra.mxu0 %v5833
      %5844 = vmatprep.subr.bf16.mxu0 0
      %5845 = vmatpush1.bf16.xpose.msra.mxu0 %v5836
      %5846 = vmatprep.subr.bf16.mxu0 0
      %5847 = vmatpush1.bf16.xpose.msra.mxu0 0
      %5848 = vmatprep.subr.bf16.mxu0 0
      %5849 = vmatpush1.bf16.xpose.msra.mxu0 0
      %5850 = vmatprep.subr.bf16.mxu0 0
      %5851 = vmatpush1.bf16.xpose.msra.mxu0 0
      %5852 = vmatprep.subr.bf16.mxu0 0
      %5853 = vmatpush1.bf16.xpose.msra.mxu0 0
      %5854 = vmatprep.subr.bf16.mxu0 0
      %5855 = vmatpush1.bf16.xpose.msra.mxu0 0
      %5856 = vmatprep.subr.bf16.mxu0 0
      %5857 = vmatpush1.bf16.xpose.msra.mxu0 0
      %5858 = vmatprep.subr.bf16.mxu0 0
      %5859 = vmatpush1.bf16.xpose.msra.mxu0 0
      %5860 = vmatprep.subr.bf16.mxu0 0
      %5861 = vmatpush1.bf16.xpose.msra.mxu0 0
      %5862 = vmatprep.subr.bf16.mxu0 0
      %5863 = vmatpush1.bf16.xpose.msra.mxu0 0
      %5864 = vmatprep.subr.bf16.mxu0 0
      %5865 = vmatpush1.bf16.xpose.msra.mxu0 0
      %5866 = vmatprep.subr.bf16.mxu0 0
      %5867 = vmatpush1.bf16.xpose.msra.mxu0 0
      %5868 = vmatprep.subr.bf16.mxu0 0
      %5869 = vmatpush1.bf16.xpose.msra.mxu0 0
      %5870 = vmatprep.mubr.bf16.mxu0 0
      %5871 = vmatmul.mubr.bf16.gmra.mrb[0].mxu0 %v5683
      %v5872 = vpop.f32.mrb[0].mxu0
      %v5873 = vadd.f32 0.0, %v5872
      %v5874 = vpop.f32.mrb[0].mxu0
      %v5875 = vpop.f32.mrb[0].mxu0
      %v5876 = vadd.f32 0.0, %v5875
      %v5877 = vpop.f32.mrb[0].mxu0
      %5878 = vmatprep.mubr.bf16.mxu0 0
      %5879 = vmatmul.mubr.bf16.gmra.mrb[0].mxu0 %v5686
      %v5880 = vpop.f32.mrb[0].mxu0
      %v5881 = vadd.f32 0.0, %v5880
      %v5882 = vpop.f32.mrb[0].mxu0
      %v5883 = vpop.f32.mrb[0].mxu0
      %v5884 = vadd.f32 0.0, %v5883
      %v5885 = vpop.f32.mrb[0].mxu0
      %5886 = vmatprep.mubr.bf16.mxu0 0
      %5887 = vmatmul.mubr.bf16.gmra.mrb[0].mxu0 %v5689
      %v5888 = vpop.f32.mrb[0].mxu0
      %v5889 = vadd.f32 0.0, %v5888
      %v5890 = vpop.f32.mrb[0].mxu0
      %v5891 = vpop.f32.mrb[0].mxu0
      %v5892 = vadd.f32 0.0, %v5891
      %v5893 = vpop.f32.mrb[0].mxu0
      %5894 = vmatprep.mubr.bf16.mxu0 0
      %5895 = vmatmul.mubr.bf16.gmra.mrb[0].mxu0 %v5692
      %v5896 = vpop.f32.mrb[0].mxu0
      %v5897 = vadd.f32 0.0, %v5896
      %v5898 = vpop.f32.mrb[0].mxu0
      %v5899 = vpop.f32.mrb[0].mxu0
      %v5900 = vadd.f32 0.0, %v5899
      %v5901 = vpop.f32.mrb[0].mxu0
      %5902 = vmatprep.mubr.bf16.mxu0 0
      %5903 = vmatmul.mubr.bf16.gmra.mrb[0].mxu0 %v5695
      %v5904 = vpop.f32.mrb[0].mxu0
      %v5905 = vadd.f32 0.0, %v5904
      %v5906 = vpop.f32.mrb[0].mxu0
      %v5907 = vpop.f32.mrb[0].mxu0
      %v5908 = vadd.f32 0.0, %v5907
      %v5909 = vpop.f32.mrb[0].mxu0
      %5910 = vmatprep.mubr.bf16.mxu0 0
      %5911 = vmatmul.mubr.bf16.gmra.mrb[0].mxu0 %v5698
      %v5912 = vpop.f32.mrb[0].mxu0
      %v5913 = vadd.f32 0.0, %v5912
      %v5914 = vpop.f32.mrb[0].mxu0
      %v5915 = vpop.f32.mrb[0].mxu0
      %v5916 = vadd.f32 0.0, %v5915
      %v5917 = vpop.f32.mrb[0].mxu0
      %5918 = vmatprep.mubr.bf16.mxu0 0
      %5919 = vmatmul.mubr.bf16.gmra.mrb[0].mxu0 %v5701
      %v5920 = vpop.f32.mrb[0].mxu0
      %v5921 = vadd.f32 0.0, %v5920
      %v5922 = vpop.f32.mrb[0].mxu0
      %v5923 = vpop.f32.mrb[0].mxu0
      %v5924 = vadd.f32 0.0, %v5923
      %v5925 = vpop.f32.mrb[0].mxu0
      %5926 = vmatprep.mubr.bf16.mxu0 0
      %5927 = vmatmul.mubr.bf16.gmra.mrb[0].mxu0 %v5704
      %v5928 = vpop.f32.mrb[0].mxu0
      %v5929 = vadd.f32 0.0, %v5928
      %v5930 = vpop.f32.mrb[0].mxu0
      %v5931 = vpop.f32.mrb[0].mxu0
      %v5932 = vadd.f32 0.0, %v5931
      %v5933 = vpop.f32.mrb[0].mxu0
      %5934 = vmatprep.mubr.bf16.mxu0 0
      %5935 = vmatmul.mubr.bf16.gmra.mrb[0].mxu0 %v5707
      %v5936 = vpop.f32.mrb[0].mxu0
      %v5937 = vadd.f32 0.0, %v5936
      %v5938 = vpop.f32.mrb[0].mxu0
      %v5939 = vpop.f32.mrb[0].mxu0
      %v5940 = vadd.f32 0.0, %v5939
      %v5941 = vpop.f32.mrb[0].mxu0
      %5942 = vmatprep.mubr.bf16.mxu0 0
      %5943 = vmatmul.mubr.bf16.gmra.mrb[0].mxu0 %v5710
      %v5944 = vpop.f32.mrb[0].mxu0
      %v5945 = vadd.f32 0.0, %v5944
      %v5946 = vpop.f32.mrb[0].mxu0
      %v5947 = vpop.f32.mrb[0].mxu0
      %v5948 = vadd.f32 0.0, %v5947
      %v5949 = vpop.f32.mrb[0].mxu0
      %5950 = vmatprep.mubr.bf16.mxu0 0
      %5951 = vmatmul.mubr.bf16.gmra.mrb[0].mxu0 %v5713
      %v5952 = vpop.f32.mrb[0].mxu0
      %v5953 = vadd.f32 0.0, %v5952
      %v5954 = vpop.f32.mrb[0].mxu0
      %v5955 = vpop.f32.mrb[0].mxu0
      %v5956 = vadd.f32 0.0, %v5955
      %v5957 = vpop.f32.mrb[0].mxu0
      %5958 = vmatprep.mubr.bf16.mxu0 0
      %5959 = vmatmul.mubr.bf16.gmra.mrb[0].mxu0 %v5716
      %v5960 = vpop.f32.mrb[0].mxu0
      %v5961 = vadd.f32 0.0, %v5960
      %v5962 = vpop.f32.mrb[0].mxu0
      %v5963 = vpop.f32.mrb[0].mxu0
      %v5964 = vadd.f32 0.0, %v5963
      %v5965 = vpop.f32.mrb[0].mxu0
      %5966 = vmatprep.mubr.bf16.mxu0 0
      %5967 = vmatmul.mubr.bf16.gmra.mrb[0].mxu0 %v5719
      %v5968 = vpop.f32.mrb[0].mxu0
      %v5969 = vadd.f32 0.0, %v5968
      %v5970 = vpop.f32.mrb[0].mxu0
      %v5971 = vpop.f32.mrb[0].mxu0
      %v5972 = vadd.f32 0.0, %v5971
      %v5973 = vpop.f32.mrb[0].mxu0
      %5974 = vmatprep.mubr.bf16.mxu0 0
      %5975 = vmatmul.mubr.bf16.gmra.mrb[0].mxu0 %v5722
      %v5976 = vpop.f32.mrb[0].mxu0
      %v5977 = vadd.f32 0.0, %v5976
      %v5978 = vpop.f32.mrb[0].mxu0
      %v5979 = vpop.f32.mrb[0].mxu0
      %v5980 = vadd.f32 0.0, %v5979
      %v5981 = vpop.f32.mrb[0].mxu0
      %5982 = vmatprep.mubr.bf16.mxu0 0
      %5983 = vmatmul.mubr.bf16.gmra.mrb[0].mxu0 %v5725
      %v5984 = vpop.f32.mrb[0].mxu0
      %v5985 = vadd.f32 0.0, %v5984
      %v5986 = vpop.f32.mrb[0].mxu0
      %v5987 = vpop.f32.mrb[0].mxu0
      %v5988 = vadd.f32 0.0, %v5987
      %v5989 = vpop.f32.mrb[0].mxu0
      %5990 = vmatprep.mubr.bf16.mxu0 0
      %5991 = vmatmul.mubr.bf16.gmra.mrb[0].mxu0 %v5728
      %v5992 = vpop.f32.mrb[0].mxu0
      %v5993 = vadd.f32 0.0, %v5992
      %v5994 = vpop.f32.mrb[0].mxu0
      %v5995 = vpop.f32.mrb[0].mxu0
      %v5996 = vadd.f32 0.0, %v5995
      %v5997 = vpop.f32.mrb[0].mxu0
      %5998 = vmatprep.mubr.bf16.mxu0 0
      %5999 = vmatmul.mubr.bf16.gmra.mrb[0].mxu0 %v5731
      %v6000 = vpop.f32.mrb[0].mxu0
      %v6001 = vadd.f32 0.0, %v6000
      %v6002 = vpop.f32.mrb[0].mxu0
      %v6003 = vpop.f32.mrb[0].mxu0
      %v6004 = vadd.f32 0.0, %v6003
      %v6005 = vpop.f32.mrb[0].mxu0
      %6006 = vmatprep.mubr.bf16.mxu0 0
      %6007 = vmatmul.mubr.bf16.gmra.mrb[0].mxu0 %v5734
      %v6008 = vpop.f32.mrb[0].mxu0
      %v6009 = vadd.f32 0.0, %v6008
      %v6010 = vpop.f32.mrb[0].mxu0
      %v6011 = vpop.f32.mrb[0].mxu0
      %v6012 = vadd.f32 0.0, %v6011
      %v6013 = vpop.f32.mrb[0].mxu0
      %6014 = vmatprep.mubr.bf16.mxu0 0
      %6015 = vmatmul.mubr.bf16.gmra.mrb[0].mxu0 %v5737
      %v6016 = vpop.f32.mrb[0].mxu0
      %v6017 = vadd.f32 0.0, %v6016
      %v6018 = vpop.f32.mrb[0].mxu0
      %v6019 = vpop.f32.mrb[0].mxu0
      %v6020 = vadd.f32 0.0, %v6019
      %v6021 = vpop.f32.mrb[0].mxu0
      %6022 = vmatprep.mubr.bf16.mxu0 0
      %6023 = vmatmul.mubr.bf16.gmra.mrb[0].mxu0 %v5740
      %v6024 = vpop.f32.mrb[0].mxu0
      %v6025 = vadd.f32 0.0, %v6024
      %v6026 = vpop.f32.mrb[0].mxu0
      %v6027 = vpop.f32.mrb[0].mxu0
      %v6028 = vadd.f32 0.0, %v6027
      %v6029 = vpop.f32.mrb[0].mxu0
      %6030 = vmatprep.mubr.bf16.mxu0 0
      %6031 = vmatmul.mubr.bf16.gmra.mrb[0].mxu0 %v5743
      %v6032 = vpop.f32.mrb[0].mxu0
      %v6033 = vadd.f32 0.0, %v6032
      %v6034 = vpop.f32.mrb[0].mxu0
      %v6035 = vpop.f32.mrb[0].mxu0
      %v6036 = vadd.f32 0.0, %v6035
      %v6037 = vpop.f32.mrb[0].mxu0
      %6038 = vmatprep.mubr.bf16.mxu0 0
      %6039 = vmatmul.mubr.bf16.gmra.mrb[0].mxu0 %v5746
      %v6040 = vpop.f32.mrb[0].mxu0
      %v6041 = vadd.f32 0.0, %v6040
      %v6042 = vpop.f32.mrb[0].mxu0
      %v6043 = vpop.f32.mrb[0].mxu0
      %v6044 = vadd.f32 0.0, %v6043
      %v6045 = vpop.f32.mrb[0].mxu0
      %6046 = vmatprep.mubr.bf16.mxu0 0
      %6047 = vmatmul.mubr.bf16.gmra.mrb[0].mxu0 %v5749
      %v6048 = vpop.f32.mrb[0].mxu0
      %v6049 = vadd.f32 0.0, %v6048
      %v6050 = vpop.f32.mrb[0].mxu0
      %v6051 = vpop.f32.mrb[0].mxu0
      %v6052 = vadd.f32 0.0, %v6051
      %v6053 = vpop.f32.mrb[0].mxu0
      %6054 = vmatprep.mubr.bf16.mxu0 0
      %6055 = vmatmul.mubr.bf16.gmra.mrb[0].mxu0 %v5752
      %v6056 = vpop.f32.mrb[0].mxu0
      %v6057 = vadd.f32 0.0, %v6056
      %v6058 = vpop.f32.mrb[0].mxu0
      %v6059 = vpop.f32.mrb[0].mxu0
      %v6060 = vadd.f32 0.0, %v6059
      %v6061 = vpop.f32.mrb[0].mxu0
      %6062 = vmatprep.mubr.bf16.mxu0 0
      %6063 = vmatmul.mubr.bf16.gmra.mrb[0].mxu0 %v5755
      %v6064 = vpop.f32.mrb[0].mxu0
      %v6065 = vadd.f32 0.0, %v6064
      %v6066 = vpop.f32.mrb[0].mxu0
      %v6067 = vpop.f32.mrb[0].mxu0
      %v6068 = vadd.f32 0.0, %v6067
      %v6069 = vpop.f32.mrb[0].mxu0
      %6070 = vmatprep.mubr.bf16.mxu0 0
      %6071 = vmatmul.mubr.bf16.gmra.mrb[0].mxu0 %v5758
      %v6072 = vpop.f32.mrb[0].mxu0
      %v6073 = vadd.f32 0.0, %v6072
      %v6074 = vpop.f32.mrb[0].mxu0
      %v6075 = vpop.f32.mrb[0].mxu0
      %v6076 = vadd.f32 0.0, %v6075
      %v6077 = vpop.f32.mrb[0].mxu0
      %6078 = vmatprep.mubr.bf16.mxu0 0
      %6079 = vmatmul.mubr.bf16.gmra.mrb[0].mxu0 %v5761
      %v6080 = vpop.f32.mrb[0].mxu0
      %v6081 = vadd.f32 0.0, %v6080
      %v6082 = vpop.f32.mrb[0].mxu0
      %v6083 = vpop.f32.mrb[0].mxu0
      %v6084 = vadd.f32 0.0, %v6083
      %v6085 = vpop.f32.mrb[0].mxu0
      %6086 = vmatprep.mubr.bf16.mxu0 0
      %6087 = vmatmul.mubr.bf16.gmra.mrb[0].mxu0 %v5764
      %v6088 = vpop.f32.mrb[0].mxu0
      %v6089 = vadd.f32 0.0, %v6088
      %v6090 = vpop.f32.mrb[0].mxu0
      %v6091 = vpop.f32.mrb[0].mxu0
      %v6092 = vadd.f32 0.0, %v6091
      %v6093 = vpop.f32.mrb[0].mxu0
      %6094 = vmatprep.mubr.bf16.mxu0 0
      %6095 = vmatmul.mubr.bf16.gmra.mrb[0].mxu0 %v5767
      %v6096 = vpop.f32.mrb[0].mxu0
      %v6097 = vadd.f32 0.0, %v6096
      %v6098 = vpop.f32.mrb[0].mxu0
      %v6099 = vpop.f32.mrb[0].mxu0
      %v6100 = vadd.f32 0.0, %v6099
      %v6101 = vpop.f32.mrb[0].mxu0
      %6102 = vmatprep.mubr.bf16.mxu0 0
      %6103 = vmatmul.mubr.bf16.gmra.mrb[0].mxu0 %v5770
      %v6104 = vpop.f32.mrb[0].mxu0
      %v6105 = vadd.f32 0.0, %v6104
      %v6106 = vpop.f32.mrb[0].mxu0
      %v6107 = vpop.f32.mrb[0].mxu0
      %v6108 = vadd.f32 0.0, %v6107
      %v6109 = vpop.f32.mrb[0].mxu0
      %6110 = vmatprep.mubr.bf16.mxu0 0
      %6111 = vmatmul.mubr.bf16.gmra.mrb[0].mxu0 %v5773
      %v6112 = vpop.f32.mrb[0].mxu0
      %v6113 = vadd.f32 0.0, %v6112
      %v6114 = vpop.f32.mrb[0].mxu0
      %v6115 = vpop.f32.mrb[0].mxu0
      %v6116 = vadd.f32 0.0, %v6115
      %v6117 = vpop.f32.mrb[0].mxu0
      %6118 = vmatprep.mubr.bf16.mxu0 0
      %6119 = vmatmul.mubr.bf16.gmra.mrb[0].mxu0 %v5776
      %v6120 = vpop.f32.mrb[0].mxu0
      %v6121 = vadd.f32 0.0, %v6120
      %v6122 = vpop.f32.mrb[0].mxu0
      %v6123 = vpop.f32.mrb[0].mxu0
      %v6124 = vadd.f32 0.0, %v6123
      %v6125 = vpop.f32.mrb[0].mxu0
      %6126 = vmatprep.mubr.bf16.mxu0 0
      %6127 = vmatmul.mubr.bf16.gmra.mrb[0].mxu0 %v5779
      %v6128 = vpop.f32.mrb[0].mxu0
      %v6129 = vadd.f32 0.0, %v6128
      %v6130 = vpop.f32.mrb[0].mxu0
      %v6131 = vpop.f32.mrb[0].mxu0
      %v6132 = vadd.f32 0.0, %v6131
      %v6133 = vpop.f32.mrb[0].mxu0
      %6134 = vmatprep.mubr.bf16.mxu0 0
      %6135 = vmatmul.mubr.bf16.gmra.mrb[0].mxu0 %v5782
      %v6136 = vpop.f32.mrb[0].mxu0
      %v6137 = vadd.f32 0.0, %v6136
      %v6138 = vpop.f32.mrb[0].mxu0
      %v6139 = vpop.f32.mrb[0].mxu0
      %v6140 = vadd.f32 0.0, %v6139
      %v6141 = vpop.f32.mrb[0].mxu0
      %6142 = vmatprep.mubr.bf16.mxu0 0
      %6143 = vmatmul.mubr.bf16.gmra.mrb[0].mxu0 %v5785
      %v6144 = vpop.f32.mrb[0].mxu0
      %v6145 = vadd.f32 0.0, %v6144
      %v6146 = vpop.f32.mrb[0].mxu0
      %v6147 = vpop.f32.mrb[0].mxu0
      %v6148 = vadd.f32 0.0, %v6147
      %v6149 = vpop.f32.mrb[0].mxu0
      %6150 = vmatprep.mubr.bf16.mxu0 0
      %6151 = vmatmul.mubr.bf16.gmra.mrb[0].mxu0 %v5788
      %v6152 = vpop.f32.mrb[0].mxu0
      %v6153 = vadd.f32 0.0, %v6152
      %v6154 = vpop.f32.mrb[0].mxu0
      %v6155 = vpop.f32.mrb[0].mxu0
      %v6156 = vadd.f32 0.0, %v6155
      %v6157 = vpop.f32.mrb[0].mxu0
      %6158 = vmatprep.mubr.bf16.mxu0 0
      %6159 = vmatmul.mubr.bf16.gmra.mrb[0].mxu0 %v5791
      %v6160 = vpop.f32.mrb[0].mxu0
      %v6161 = vadd.f32 0.0, %v6160
      %v6162 = vpop.f32.mrb[0].mxu0
      %v6163 = vpop.f32.mrb[0].mxu0
      %v6164 = vadd.f32 0.0, %v6163
      %v6165 = vpop.f32.mrb[0].mxu0
      %6166 = vmatprep.mubr.bf16.mxu0 0
      %6167 = vmatmul.mubr.bf16.gmra.mrb[0].mxu0 %v5794
      %v6168 = vpop.f32.mrb[0].mxu0
      %v6169 = vadd.f32 0.0, %v6168
      %v6170 = vpop.f32.mrb[0].mxu0
      %v6171 = vpop.f32.mrb[0].mxu0
      %v6172 = vadd.f32 0.0, %v6171
      %v6173 = vpop.f32.mrb[0].mxu0
      %6174 = vmatprep.mubr.bf16.mxu0 0
      %6175 = vmatmul.mubr.bf16.gmra.mrb[0].mxu0 %v5797
      %v6176 = vpop.f32.mrb[0].mxu0
      %v6177 = vadd.f32 0.0, %v6176
      %v6178 = vpop.f32.mrb[0].mxu0
      %v6179 = vpop.f32.mrb[0].mxu0
      %v6180 = vadd.f32 0.0, %v6179
      %v6181 = vpop.f32.mrb[0].mxu0
      %6182 = vmatprep.mubr.bf16.mxu0 0
      %6183 = vmatmul.mubr.bf16.gmra.mrb[0].mxu0 %v5800
      %v6184 = vpop.f32.mrb[0].mxu0
      %v6185 = vadd.f32 0.0, %v6184
      %v6186 = vpop.f32.mrb[0].mxu0
      %v6187 = vpop.f32.mrb[0].mxu0
      %v6188 = vadd.f32 0.0, %v6187
      %v6189 = vpop.f32.mrb[0].mxu0
      %6190 = vmatprep.mubr.bf16.mxu0 0
      %6191 = vmatmul.mubr.bf16.gmra.mrb[0].mxu0 %v5803
      %v6192 = vpop.f32.mrb[0].mxu0
      %v6193 = vadd.f32 0.0, %v6192
      %v6194 = vpop.f32.mrb[0].mxu0
      %v6195 = vpop.f32.mrb[0].mxu0
      %v6196 = vadd.f32 0.0, %v6195
      %v6197 = vpop.f32.mrb[0].mxu0
      %6198 = vmatprep.mubr.bf16.mxu0 0
      %6199 = vmatmul.mubr.bf16.gmra.mrb[0].mxu0 %v5806
      %v6200 = vpop.f32.mrb[0].mxu0
      %v6201 = vadd.f32 0.0, %v6200
      %v6202 = vpop.f32.mrb[0].mxu0
      %v6203 = vpop.f32.mrb[0].mxu0
      %v6204 = vadd.f32 0.0, %v6203
      %v6205 = vpop.f32.mrb[0].mxu0
      %6206 = vmatprep.mubr.bf16.mxu0 0
      %6207 = vmatmul.mubr.bf16.gmra.mrb[0].mxu0 %v5809
      %v6208 = vpop.f32.mrb[0].mxu0
      %v6209 = vadd.f32 0.0, %v6208
      %v6210 = vpop.f32.mrb[0].mxu0
      %v6211 = vpop.f32.mrb[0].mxu0
      %v6212 = vadd.f32 0.0, %v6211
      %v6213 = vpop.f32.mrb[0].mxu0
      %6214 = vmatprep.mubr.bf16.mxu0 0
      %6215 = vmatmul.mubr.bf16.gmra.mrb[0].mxu0 %v5812
      %v6216 = vpop.f32.mrb[0].mxu0
      %v6217 = vadd.f32 0.0, %v6216
      %v6218 = vpop.f32.mrb[0].mxu0
      %v6219 = vpop.f32.mrb[0].mxu0
      %v6220 = vadd.f32 0.0, %v6219
      %v6221 = vpop.f32.mrb[0].mxu0
      %6222 = vmatprep.mubr.bf16.mxu0 0
      %6223 = vmatmul.mubr.bf16.gmra.mrb[0].mxu0 %v5815
      %v6224 = vpop.f32.mrb[0].mxu0
      %v6225 = vadd.f32 0.0, %v6224
      %v6226 = vpop.f32.mrb[0].mxu0
      %v6227 = vpop.f32.mrb[0].mxu0
      %v6228 = vadd.f32 0.0, %v6227
      %v6229 = vpop.f32.mrb[0].mxu0
      %6230 = vmatprep.mubr.bf16.mxu0 0
      %6231 = vmatmul.mubr.bf16.gmra.mrb[0].mxu0 %v5818
      %v6232 = vpop.f32.mrb[0].mxu0
      %v6233 = vadd.f32 0.0, %v6232
      %v6234 = vpop.f32.mrb[0].mxu0
      %v6235 = vpop.f32.mrb[0].mxu0
      %v6236 = vadd.f32 0.0, %v6235
      %v6237 = vpop.f32.mrb[0].mxu0
      %6238 = vmatprep.mubr.bf16.mxu0 0
      %6239 = vmatmul.mubr.bf16.gmra.mrb[0].mxu0 %v5821
      %v6240 = vpop.f32.mrb[0].mxu0
      %v6241 = vadd.f32 0.0, %v6240
      %v6242 = vpop.f32.mrb[0].mxu0
      %v6243 = vpop.f32.mrb[0].mxu0
      %v6244 = vadd.f32 0.0, %v6243
      %v6245 = vpop.f32.mrb[0].mxu0
      %6246 = vmatprep.mubr.bf16.mxu0 0
      %6247 = vmatmul.mubr.bf16.gmra.mrb[0].mxu0 %v5824
      %v6248 = vpop.f32.mrb[0].mxu0
      %v6249 = vadd.f32 0.0, %v6248
      %v6250 = vpop.f32.mrb[0].mxu0
      %v6251 = vpop.f32.mrb[0].mxu0
      %v6252 = vadd.f32 0.0, %v6251
      %v6253 = vpop.f32.mrb[0].mxu0
      %6254 = vdwg.mxu0
      %v6255 = vsel %vm3592, %v5873, -inf
      %6256 = vmax.xlane.f32.xlu0 %v6255
      %v6257 = vpop.xlane.xlu0 %6256
      %v6258 = vsel %vm3592, %v5876, -inf
      %6259 = vmax.xlane.f32.xlu0 %v6258
      %v6260 = vpop.xlane.xlu0 %6259
      %v6261 = vsel %vm3592, %v5881, -inf
      %6262 = vmax.xlane.f32.xlu0 %v6261
      %v6263 = vpop.xlane.xlu0 %6262
      %v6264 = vsel %vm3592, %v5884, -inf
      %6265 = vmax.xlane.f32.xlu0 %v6264
      %v6266 = vpop.xlane.xlu0 %6265
      %v6267 = vsel %vm3592, %v5889, -inf
      %6268 = vmax.xlane.f32.xlu0 %v6267
      %v6269 = vpop.xlane.xlu0 %6268
      %v6270 = vsel %vm3592, %v5892, -inf
      %6271 = vmax.xlane.f32.xlu0 %v6270
      %v6272 = vpop.xlane.xlu0 %6271
      %v6273 = vsel %vm3592, %v5897, -inf
      %6274 = vmax.xlane.f32.xlu0 %v6273
      %v6275 = vpop.xlane.xlu0 %6274
      %v6276 = vsel %vm3592, %v5900, -inf
      %6277 = vmax.xlane.f32.xlu0 %v6276
      %v6278 = vpop.xlane.xlu0 %6277
      %v6279 = vsel %vm3592, %v5905, -inf
      %6280 = vmax.xlane.f32.xlu0 %v6279
      %v6281 = vpop.xlane.xlu0 %6280
      %v6282 = vsel %vm3592, %v5908, -inf
      %6283 = vmax.xlane.f32.xlu0 %v6282
      %v6284 = vpop.xlane.xlu0 %6283
      %v6285 = vsel %vm3592, %v5913, -inf
      %6286 = vmax.xlane.f32.xlu0 %v6285
      %v6287 = vpop.xlane.xlu0 %6286
      %v6288 = vsel %vm3592, %v5916, -inf
      %6289 = vmax.xlane.f32.xlu0 %v6288
      %v6290 = vpop.xlane.xlu0 %6289
      %v6291 = vsel %vm3592, %v5921, -inf
      %6292 = vmax.xlane.f32.xlu0 %v6291
      %v6293 = vpop.xlane.xlu0 %6292
      %v6294 = vsel %vm3592, %v5924, -inf
      %6295 = vmax.xlane.f32.xlu0 %v6294
      %v6296 = vpop.xlane.xlu0 %6295
      %v6297 = vsel %vm3592, %v5929, -inf
      %6298 = vmax.xlane.f32.xlu0 %v6297
      %v6299 = vpop.xlane.xlu0 %6298
      %v6300 = vsel %vm3592, %v5932, -inf
      %6301 = vmax.xlane.f32.xlu0 %v6300
      %v6302 = vpop.xlane.xlu0 %6301
      %v6303 = vsel %vm3592, %v5937, -inf
      %6304 = vmax.xlane.f32.xlu0 %v6303
      %v6305 = vpop.xlane.xlu0 %6304
      %v6306 = vsel %vm3592, %v5940, -inf
      %6307 = vmax.xlane.f32.xlu0 %v6306
      %v6308 = vpop.xlane.xlu0 %6307
      %v6309 = vsel %vm3592, %v5945, -inf
      %6310 = vmax.xlane.f32.xlu0 %v6309
      %v6311 = vpop.xlane.xlu0 %6310
      %v6312 = vsel %vm3592, %v5948, -inf
      %6313 = vmax.xlane.f32.xlu0 %v6312
      %v6314 = vpop.xlane.xlu0 %6313
      %v6315 = vsel %vm3592, %v5953, -inf
      %6316 = vmax.xlane.f32.xlu0 %v6315
      %v6317 = vpop.xlane.xlu0 %6316
      %v6318 = vsel %vm3592, %v5956, -inf
      %6319 = vmax.xlane.f32.xlu0 %v6318
      %v6320 = vpop.xlane.xlu0 %6319
      %v6321 = vsel %vm3592, %v5961, -inf
      %6322 = vmax.xlane.f32.xlu0 %v6321
      %v6323 = vpop.xlane.xlu0 %6322
      %v6324 = vsel %vm3592, %v5964, -inf
      %6325 = vmax.xlane.f32.xlu0 %v6324
      %v6326 = vpop.xlane.xlu0 %6325
      %v6327 = vsel %vm3592, %v5969, -inf
      %6328 = vmax.xlane.f32.xlu0 %v6327
      %v6329 = vpop.xlane.xlu0 %6328
      %v6330 = vsel %vm3592, %v5972, -inf
      %6331 = vmax.xlane.f32.xlu0 %v6330
      %v6332 = vpop.xlane.xlu0 %6331
      %v6333 = vsel %vm3592, %v5977, -inf
      %6334 = vmax.xlane.f32.xlu0 %v6333
      %v6335 = vpop.xlane.xlu0 %6334
      %v6336 = vsel %vm3592, %v5980, -inf
      %6337 = vmax.xlane.f32.xlu0 %v6336
      %v6338 = vpop.xlane.xlu0 %6337
      %v6339 = vsel %vm3592, %v5985, -inf
      %6340 = vmax.xlane.f32.xlu0 %v6339
      %v6341 = vpop.xlane.xlu0 %6340
      %v6342 = vsel %vm3592, %v5988, -inf
      %6343 = vmax.xlane.f32.xlu0 %v6342
      %v6344 = vpop.xlane.xlu0 %6343
      %v6345 = vsel %vm3592, %v5993, -inf
      %6346 = vmax.xlane.f32.xlu0 %v6345
      %v6347 = vpop.xlane.xlu0 %6346
      %v6348 = vsel %vm3592, %v5996, -inf
      %6349 = vmax.xlane.f32.xlu0 %v6348
      %v6350 = vpop.xlane.xlu0 %6349
      %v6351 = vsel %vm3592, %v6001, -inf
      %6352 = vmax.xlane.f32.xlu0 %v6351
      %v6353 = vpop.xlane.xlu0 %6352
      %v6354 = vsel %vm3592, %v6004, -inf
      %6355 = vmax.xlane.f32.xlu0 %v6354
      %v6356 = vpop.xlane.xlu0 %6355
      %v6357 = vsel %vm3592, %v6009, -inf
      %6358 = vmax.xlane.f32.xlu0 %v6357
      %v6359 = vpop.xlane.xlu0 %6358
      %v6360 = vsel %vm3592, %v6012, -inf
      %6361 = vmax.xlane.f32.xlu0 %v6360
      %v6362 = vpop.xlane.xlu0 %6361
      %v6363 = vsel %vm3592, %v6017, -inf
      %6364 = vmax.xlane.f32.xlu0 %v6363
      %v6365 = vpop.xlane.xlu0 %6364
      %v6366 = vsel %vm3592, %v6020, -inf
      %6367 = vmax.xlane.f32.xlu0 %v6366
      %v6368 = vpop.xlane.xlu0 %6367
      %v6369 = vsel %vm3592, %v6025, -inf
      %6370 = vmax.xlane.f32.xlu0 %v6369
      %v6371 = vpop.xlane.xlu0 %6370
      %v6372 = vsel %vm3592, %v6028, -inf
      %6373 = vmax.xlane.f32.xlu0 %v6372
      %v6374 = vpop.xlane.xlu0 %6373
      %v6375 = vsel %vm3592, %v6033, -inf
      %6376 = vmax.xlane.f32.xlu0 %v6375
      %v6377 = vpop.xlane.xlu0 %6376
      %v6378 = vsel %vm3592, %v6036, -inf
      %6379 = vmax.xlane.f32.xlu0 %v6378
      %v6380 = vpop.xlane.xlu0 %6379
      %v6381 = vsel %vm3592, %v6041, -inf
      %6382 = vmax.xlane.f32.xlu0 %v6381
      %v6383 = vpop.xlane.xlu0 %6382
      %v6384 = vsel %vm3592, %v6044, -inf
      %6385 = vmax.xlane.f32.xlu0 %v6384
      %v6386 = vpop.xlane.xlu0 %6385
      %v6387 = vsel %vm3592, %v6049, -inf
      %6388 = vmax.xlane.f32.xlu0 %v6387
      %v6389 = vpop.xlane.xlu0 %6388
      %v6390 = vsel %vm3592, %v6052, -inf
      %6391 = vmax.xlane.f32.xlu0 %v6390
      %v6392 = vpop.xlane.xlu0 %6391
      %v6393 = vsel %vm3592, %v6057, -inf
      %6394 = vmax.xlane.f32.xlu0 %v6393
      %v6395 = vpop.xlane.xlu0 %6394
      %v6396 = vsel %vm3592, %v6060, -inf
      %6397 = vmax.xlane.f32.xlu0 %v6396
      %v6398 = vpop.xlane.xlu0 %6397
      %v6399 = vsel %vm3592, %v6065, -inf
      %6400 = vmax.xlane.f32.xlu0 %v6399
      %v6401 = vpop.xlane.xlu0 %6400
      %v6402 = vsel %vm3592, %v6068, -inf
      %6403 = vmax.xlane.f32.xlu0 %v6402
      %v6404 = vpop.xlane.xlu0 %6403
      %v6405 = vsel %vm3592, %v6073, -inf
      %6406 = vmax.xlane.f32.xlu0 %v6405
      %v6407 = vpop.xlane.xlu0 %6406
      %v6408 = vsel %vm3592, %v6076, -inf
      %6409 = vmax.xlane.f32.xlu0 %v6408
      %v6410 = vpop.xlane.xlu0 %6409
      %v6411 = vsel %vm3592, %v6081, -inf
      %6412 = vmax.xlane.f32.xlu0 %v6411
      %v6413 = vpop.xlane.xlu0 %6412
      %v6414 = vsel %vm3592, %v6084, -inf
      %6415 = vmax.xlane.f32.xlu0 %v6414
      %v6416 = vpop.xlane.xlu0 %6415
      %v6417 = vsel %vm3592, %v6089, -inf
      %6418 = vmax.xlane.f32.xlu0 %v6417
      %v6419 = vpop.xlane.xlu0 %6418
      %v6420 = vsel %vm3592, %v6092, -inf
      %6421 = vmax.xlane.f32.xlu0 %v6420
      %v6422 = vpop.xlane.xlu0 %6421
      %v6423 = vsel %vm3592, %v6097, -inf
      %6424 = vmax.xlane.f32.xlu0 %v6423
      %v6425 = vpop.xlane.xlu0 %6424
      %v6426 = vsel %vm3592, %v6100, -inf
      %6427 = vmax.xlane.f32.xlu0 %v6426
      %v6428 = vpop.xlane.xlu0 %6427
      %v6429 = vsel %vm3592, %v6105, -inf
      %6430 = vmax.xlane.f32.xlu0 %v6429
      %v6431 = vpop.xlane.xlu0 %6430
      %v6432 = vsel %vm3592, %v6108, -inf
      %6433 = vmax.xlane.f32.xlu0 %v6432
      %v6434 = vpop.xlane.xlu0 %6433
      %v6435 = vsel %vm3592, %v6113, -inf
      %6436 = vmax.xlane.f32.xlu0 %v6435
      %v6437 = vpop.xlane.xlu0 %6436
      %v6438 = vsel %vm3592, %v6116, -inf
      %6439 = vmax.xlane.f32.xlu0 %v6438
      %v6440 = vpop.xlane.xlu0 %6439
      %v6441 = vsel %vm3592, %v6121, -inf
      %6442 = vmax.xlane.f32.xlu0 %v6441
      %v6443 = vpop.xlane.xlu0 %6442
      %v6444 = vsel %vm3592, %v6124, -inf
      %6445 = vmax.xlane.f32.xlu0 %v6444
      %v6446 = vpop.xlane.xlu0 %6445
      %v6447 = vsel %vm3592, %v6129, -inf
      %6448 = vmax.xlane.f32.xlu0 %v6447
      %v6449 = vpop.xlane.xlu0 %6448
      %v6450 = vsel %vm3592, %v6132, -inf
      %6451 = vmax.xlane.f32.xlu0 %v6450
      %v6452 = vpop.xlane.xlu0 %6451
      %v6453 = vsel %vm3592, %v6137, -inf
      %6454 = vmax.xlane.f32.xlu0 %v6453
      %v6455 = vpop.xlane.xlu0 %6454
      %v6456 = vsel %vm3592, %v6140, -inf
      %6457 = vmax.xlane.f32.xlu0 %v6456
      %v6458 = vpop.xlane.xlu0 %6457
      %v6459 = vsel %vm3592, %v6145, -inf
      %6460 = vmax.xlane.f32.xlu0 %v6459
      %v6461 = vpop.xlane.xlu0 %6460
      %v6462 = vsel %vm3592, %v6148, -inf
      %6463 = vmax.xlane.f32.xlu0 %v6462
      %v6464 = vpop.xlane.xlu0 %6463
      %v6465 = vsel %vm3592, %v6153, -inf
      %6466 = vmax.xlane.f32.xlu0 %v6465
      %v6467 = vpop.xlane.xlu0 %6466
      %v6468 = vsel %vm3592, %v6156, -inf
      %6469 = vmax.xlane.f32.xlu0 %v6468
      %v6470 = vpop.xlane.xlu0 %6469
      %v6471 = vsel %vm3592, %v6161, -inf
      %6472 = vmax.xlane.f32.xlu0 %v6471
      %v6473 = vpop.xlane.xlu0 %6472
      %v6474 = vsel %vm3592, %v6164, -inf
      %6475 = vmax.xlane.f32.xlu0 %v6474
      %v6476 = vpop.xlane.xlu0 %6475
      %v6477 = vsel %vm3592, %v6169, -inf
      %6478 = vmax.xlane.f32.xlu0 %v6477
      %v6479 = vpop.xlane.xlu0 %6478
      %v6480 = vsel %vm3592, %v6172, -inf
      %6481 = vmax.xlane.f32.xlu0 %v6480
      %v6482 = vpop.xlane.xlu0 %6481
      %v6483 = vsel %vm3592, %v6177, -inf
      %6484 = vmax.xlane.f32.xlu0 %v6483
      %v6485 = vpop.xlane.xlu0 %6484
      %v6486 = vsel %vm3592, %v6180, -inf
      %6487 = vmax.xlane.f32.xlu0 %v6486
      %v6488 = vpop.xlane.xlu0 %6487
      %v6489 = vsel %vm3592, %v6185, -inf
      %6490 = vmax.xlane.f32.xlu0 %v6489
      %v6491 = vpop.xlane.xlu0 %6490
      %v6492 = vsel %vm3592, %v6188, -inf
      %6493 = vmax.xlane.f32.xlu0 %v6492
      %v6494 = vpop.xlane.xlu0 %6493
      %v6495 = vsel %vm3592, %v6193, -inf
      %6496 = vmax.xlane.f32.xlu0 %v6495
      %v6497 = vpop.xlane.xlu0 %6496
      %v6498 = vsel %vm3592, %v6196, -inf
      %6499 = vmax.xlane.f32.xlu0 %v6498
      %v6500 = vpop.xlane.xlu0 %6499
      %v6501 = vsel %vm3592, %v6201, -inf
      %6502 = vmax.xlane.f32.xlu0 %v6501
      %v6503 = vpop.xlane.xlu0 %6502
      %v6504 = vsel %vm3592, %v6204, -inf
      %6505 = vmax.xlane.f32.xlu0 %v6504
      %v6506 = vpop.xlane.xlu0 %6505
      %v6507 = vsel %vm3592, %v6209, -inf
      %6508 = vmax.xlane.f32.xlu0 %v6507
      %v6509 = vpop.xlane.xlu0 %6508
      %v6510 = vsel %vm3592, %v6212, -inf
      %6511 = vmax.xlane.f32.xlu0 %v6510
      %v6512 = vpop.xlane.xlu0 %6511
      %v6513 = vsel %vm3592, %v6217, -inf
      %6514 = vmax.xlane.f32.xlu0 %v6513
      %v6515 = vpop.xlane.xlu0 %6514
      %v6516 = vsel %vm3592, %v6220, -inf
      %6517 = vmax.xlane.f32.xlu0 %v6516
      %v6518 = vpop.xlane.xlu0 %6517
      %v6519 = vsel %vm3592, %v6225, -inf
      %6520 = vmax.xlane.f32.xlu0 %v6519
      %v6521 = vpop.xlane.xlu0 %6520
      %v6522 = vsel %vm3592, %v6228, -inf
      %6523 = vmax.xlane.f32.xlu0 %v6522
      %v6524 = vpop.xlane.xlu0 %6523
      %v6525 = vsel %vm3592, %v6233, -inf
      %6526 = vmax.xlane.f32.xlu0 %v6525
      %v6527 = vpop.xlane.xlu0 %6526
      %v6528 = vsel %vm3592, %v6236, -inf
      %6529 = vmax.xlane.f32.xlu0 %v6528
      %v6530 = vpop.xlane.xlu0 %6529
      %v6531 = vsel %vm3592, %v6241, -inf
      %6532 = vmax.xlane.f32.xlu0 %v6531
      %v6533 = vpop.xlane.xlu0 %6532
      %v6534 = vsel %vm3592, %v6244, -inf
      %6535 = vmax.xlane.f32.xlu0 %v6534
      %v6536 = vpop.xlane.xlu0 %6535
      %v6537 = vsel %vm3592, %v6249, -inf
      %6538 = vmax.xlane.f32.xlu0 %v6537
      %v6539 = vpop.xlane.xlu0 %6538
      %v6540 = vsel %vm3592, %v6252, -inf
      %6541 = vmax.xlane.f32.xlu0 %v6540
      %v6542 = vpop.xlane.xlu0 %6541
      %v6543 = vsub.f32 %v5873, %v6257
      %v6544 = vsub.f32 %v5876, %v6260
      %v6545 = vsub.f32 %v5881, %v6263
      %v6546 = vsub.f32 %v5884, %v6266
      %v6547 = vsub.f32 %v5889, %v6269
      %v6548 = vsub.f32 %v5892, %v6272
      %v6549 = vsub.f32 %v5897, %v6275
      %v6550 = vsub.f32 %v5900, %v6278
      %v6551 = vsub.f32 %v5905, %v6281
      %v6552 = vsub.f32 %v5908, %v6284
      %v6553 = vsub.f32 %v5913, %v6287
      %v6554 = vsub.f32 %v5916, %v6290
      %v6555 = vsub.f32 %v5921, %v6293
      %v6556 = vsub.f32 %v5924, %v6296
      %v6557 = vsub.f32 %v5929, %v6299
      %v6558 = vsub.f32 %v5932, %v6302
      %v6559 = vsub.f32 %v5937, %v6305
      %v6560 = vsub.f32 %v5940, %v6308
      %v6561 = vsub.f32 %v5945, %v6311
      %v6562 = vsub.f32 %v5948, %v6314
      %v6563 = vsub.f32 %v5953, %v6317
      %v6564 = vsub.f32 %v5956, %v6320
      %v6565 = vsub.f32 %v5961, %v6323
      %v6566 = vsub.f32 %v5964, %v6326
      %v6567 = vsub.f32 %v5969, %v6329
      %v6568 = vsub.f32 %v5972, %v6332
      %v6569 = vsub.f32 %v5977, %v6335
      %v6570 = vsub.f32 %v5980, %v6338
      %v6571 = vsub.f32 %v5985, %v6341
      %v6572 = vsub.f32 %v5988, %v6344
      %v6573 = vsub.f32 %v5993, %v6347
      %v6574 = vsub.f32 %v5996, %v6350
      %v6575 = vsub.f32 %v6001, %v6353
      %v6576 = vsub.f32 %v6004, %v6356
      %v6577 = vsub.f32 %v6009, %v6359
      %v6578 = vsub.f32 %v6012, %v6362
      %v6579 = vsub.f32 %v6017, %v6365
      %v6580 = vsub.f32 %v6020, %v6368
      %v6581 = vsub.f32 %v6025, %v6371
      %v6582 = vsub.f32 %v6028, %v6374
      %v6583 = vsub.f32 %v6033, %v6377
      %v6584 = vsub.f32 %v6036, %v6380
      %v6585 = vsub.f32 %v6041, %v6383
      %v6586 = vsub.f32 %v6044, %v6386
      %v6587 = vsub.f32 %v6049, %v6389
      %v6588 = vsub.f32 %v6052, %v6392
      %v6589 = vsub.f32 %v6057, %v6395
      %v6590 = vsub.f32 %v6060, %v6398
      %v6591 = vsub.f32 %v6065, %v6401
      %v6592 = vsub.f32 %v6068, %v6404
      %v6593 = vsub.f32 %v6073, %v6407
      %v6594 = vsub.f32 %v6076, %v6410
      %v6595 = vsub.f32 %v6081, %v6413
      %v6596 = vsub.f32 %v6084, %v6416
      %v6597 = vsub.f32 %v6089, %v6419
      %v6598 = vsub.f32 %v6092, %v6422
      %v6599 = vsub.f32 %v6097, %v6425
      %v6600 = vsub.f32 %v6100, %v6428
      %v6601 = vsub.f32 %v6105, %v6431
      %v6602 = vsub.f32 %v6108, %v6434
      %v6603 = vsub.f32 %v6113, %v6437
      %v6604 = vsub.f32 %v6116, %v6440
      %v6605 = vsub.f32 %v6121, %v6443
      %v6606 = vsub.f32 %v6124, %v6446
      %v6607 = vsub.f32 %v6129, %v6449
      %v6608 = vsub.f32 %v6132, %v6452
      %v6609 = vsub.f32 %v6137, %v6455
      %v6610 = vsub.f32 %v6140, %v6458
      %v6611 = vsub.f32 %v6145, %v6461
      %v6612 = vsub.f32 %v6148, %v6464
      %v6613 = vsub.f32 %v6153, %v6467
      %v6614 = vsub.f32 %v6156, %v6470
      %v6615 = vsub.f32 %v6161, %v6473
      %v6616 = vsub.f32 %v6164, %v6476
      %v6617 = vsub.f32 %v6169, %v6479
      %v6618 = vsub.f32 %v6172, %v6482
      %v6619 = vsub.f32 %v6177, %v6485
      %v6620 = vsub.f32 %v6180, %v6488
      %v6621 = vsub.f32 %v6185, %v6491
      %v6622 = vsub.f32 %v6188, %v6494
      %v6623 = vsub.f32 %v6193, %v6497
      %v6624 = vsub.f32 %v6196, %v6500
      %v6625 = vsub.f32 %v6201, %v6503
      %v6626 = vsub.f32 %v6204, %v6506
      %v6627 = vsub.f32 %v6209, %v6509
      %v6628 = vsub.f32 %v6212, %v6512
      %v6629 = vsub.f32 %v6217, %v6515
      %v6630 = vsub.f32 %v6220, %v6518
      %v6631 = vsub.f32 %v6225, %v6521
      %v6632 = vsub.f32 %v6228, %v6524
      %v6633 = vsub.f32 %v6233, %v6527
      %v6634 = vsub.f32 %v6236, %v6530
      %v6635 = vsub.f32 %v6241, %v6533
      %v6636 = vsub.f32 %v6244, %v6536
      %v6637 = vsub.f32 %v6249, %v6539
      %v6638 = vsub.f32 %v6252, %v6542
      %v6639 = vmul.f32 %v6543, 1.442695
      %v6640 = vpow.pop %v6639
      %v6641 = vmul.f32 %v6544, 1.442695
      %v6642 = vpow.pop %v6641
      %v6643 = vmul.f32 %v6545, 1.442695
      %v6644 = vpow.pop %v6643
      %v6645 = vmul.f32 %v6546, 1.442695
      %v6646 = vpow.pop %v6645
      %v6647 = vmul.f32 %v6547, 1.442695
      %v6648 = vpow.pop %v6647
      %v6649 = vmul.f32 %v6548, 1.442695
      %v6650 = vpow.pop %v6649
      %v6651 = vmul.f32 %v6549, 1.442695
      %v6652 = vpow.pop %v6651
      %v6653 = vmul.f32 %v6550, 1.442695
      %v6654 = vpow.pop %v6653
      %v6655 = vmul.f32 %v6551, 1.442695
      %v6656 = vpow.pop %v6655
      %v6657 = vmul.f32 %v6552, 1.442695
      %v6658 = vpow.pop %v6657
      %v6659 = vmul.f32 %v6553, 1.442695
      %v6660 = vpow.pop %v6659
      %v6661 = vmul.f32 %v6554, 1.442695
      %v6662 = vpow.pop %v6661
      %v6663 = vmul.f32 %v6555, 1.442695
      %v6664 = vpow.pop %v6663
      %v6665 = vmul.f32 %v6556, 1.442695
      %v6666 = vpow.pop %v6665
      %v6667 = vmul.f32 %v6557, 1.442695
      %v6668 = vpow.pop %v6667
      %v6669 = vmul.f32 %v6558, 1.442695
      %v6670 = vpow.pop %v6669
      %v6671 = vmul.f32 %v6559, 1.442695
      %v6672 = vpow.pop %v6671
      %v6673 = vmul.f32 %v6560, 1.442695
      %v6674 = vpow.pop %v6673
      %v6675 = vmul.f32 %v6561, 1.442695
      %v6676 = vpow.pop %v6675
      %v6677 = vmul.f32 %v6562, 1.442695
      %v6678 = vpow.pop %v6677
      %v6679 = vmul.f32 %v6563, 1.442695
      %v6680 = vpow.pop %v6679
      %v6681 = vmul.f32 %v6564, 1.442695
      %v6682 = vpow.pop %v6681
      %v6683 = vmul.f32 %v6565, 1.442695
      %v6684 = vpow.pop %v6683
      %v6685 = vmul.f32 %v6566, 1.442695
      %v6686 = vpow.pop %v6685
      %v6687 = vmul.f32 %v6567, 1.442695
      %v6688 = vpow.pop %v6687
      %v6689 = vmul.f32 %v6568, 1.442695
      %v6690 = vpow.pop %v6689
      %v6691 = vmul.f32 %v6569, 1.442695
      %v6692 = vpow.pop %v6691
      %v6693 = vmul.f32 %v6570, 1.442695
      %v6694 = vpow.pop %v6693
      %v6695 = vmul.f32 %v6571, 1.442695
      %v6696 = vpow.pop %v6695
      %v6697 = vmul.f32 %v6572, 1.442695
      %v6698 = vpow.pop %v6697
      %v6699 = vmul.f32 %v6573, 1.442695
      %v6700 = vpow.pop %v6699
      %v6701 = vmul.f32 %v6574, 1.442695
      %v6702 = vpow.pop %v6701
      %v6703 = vmul.f32 %v6575, 1.442695
      %v6704 = vpow.pop %v6703
      %v6705 = vmul.f32 %v6576, 1.442695
      %v6706 = vpow.pop %v6705
      %v6707 = vmul.f32 %v6577, 1.442695
      %v6708 = vpow.pop %v6707
      %v6709 = vmul.f32 %v6578, 1.442695
      %v6710 = vpow.pop %v6709
      %v6711 = vmul.f32 %v6579, 1.442695
      %v6712 = vpow.pop %v6711
      %v6713 = vmul.f32 %v6580, 1.442695
      %v6714 = vpow.pop %v6713
      %v6715 = vmul.f32 %v6581, 1.442695
      %v6716 = vpow.pop %v6715
      %v6717 = vmul.f32 %v6582, 1.442695
      %v6718 = vpow.pop %v6717
      %v6719 = vmul.f32 %v6583, 1.442695
      %v6720 = vpow.pop %v6719
      %v6721 = vmul.f32 %v6584, 1.442695
      %v6722 = vpow.pop %v6721
      %v6723 = vmul.f32 %v6585, 1.442695
      %v6724 = vpow.pop %v6723
      %v6725 = vmul.f32 %v6586, 1.442695
      %v6726 = vpow.pop %v6725
      %v6727 = vmul.f32 %v6587, 1.442695
      %v6728 = vpow.pop %v6727
      %v6729 = vmul.f32 %v6588, 1.442695
      %v6730 = vpow.pop %v6729
      %v6731 = vmul.f32 %v6589, 1.442695
      %v6732 = vpow.pop %v6731
      %v6733 = vmul.f32 %v6590, 1.442695
      %v6734 = vpow.pop %v6733
      %v6735 = vmul.f32 %v6591, 1.442695
      %v6736 = vpow.pop %v6735
      %v6737 = vmul.f32 %v6592, 1.442695
      %v6738 = vpow.pop %v6737
      %v6739 = vmul.f32 %v6593, 1.442695
      %v6740 = vpow.pop %v6739
      %v6741 = vmul.f32 %v6594, 1.442695
      %v6742 = vpow.pop %v6741
      %v6743 = vmul.f32 %v6595, 1.442695
      %v6744 = vpow.pop %v6743
      %v6745 = vmul.f32 %v6596, 1.442695
      %v6746 = vpow.pop %v6745
      %v6747 = vmul.f32 %v6597, 1.442695
      %v6748 = vpow.pop %v6747
      %v6749 = vmul.f32 %v6598, 1.442695
      %v6750 = vpow.pop %v6749
      %v6751 = vmul.f32 %v6599, 1.442695
      %v6752 = vpow.pop %v6751
      %v6753 = vmul.f32 %v6600, 1.442695
      %v6754 = vpow.pop %v6753
      %v6755 = vmul.f32 %v6601, 1.442695
      %v6756 = vpow.pop %v6755
      %v6757 = vmul.f32 %v6602, 1.442695
      %v6758 = vpow.pop %v6757
      %v6759 = vmul.f32 %v6603, 1.442695
      %v6760 = vpow.pop %v6759
      %v6761 = vmul.f32 %v6604, 1.442695
      %v6762 = vpow.pop %v6761
      %v6763 = vmul.f32 %v6605, 1.442695
      %v6764 = vpow.pop %v6763
      %v6765 = vmul.f32 %v6606, 1.442695
      %v6766 = vpow.pop %v6765
      %v6767 = vmul.f32 %v6607, 1.442695
      %v6768 = vpow.pop %v6767
      %v6769 = vmul.f32 %v6608, 1.442695
      %v6770 = vpow.pop %v6769
      %v6771 = vmul.f32 %v6609, 1.442695
      %v6772 = vpow.pop %v6771
      %v6773 = vmul.f32 %v6610, 1.442695
      %v6774 = vpow.pop %v6773
      %v6775 = vmul.f32 %v6611, 1.442695
      %v6776 = vpow.pop %v6775
      %v6777 = vmul.f32 %v6612, 1.442695
      %v6778 = vpow.pop %v6777
      %v6779 = vmul.f32 %v6613, 1.442695
      %v6780 = vpow.pop %v6779
      %v6781 = vmul.f32 %v6614, 1.442695
      %v6782 = vpow.pop %v6781
      %v6783 = vmul.f32 %v6615, 1.442695
      %v6784 = vpow.pop %v6783
      %v6785 = vmul.f32 %v6616, 1.442695
      %v6786 = vpow.pop %v6785
      %v6787 = vmul.f32 %v6617, 1.442695
      %v6788 = vpow.pop %v6787
      %v6789 = vmul.f32 %v6618, 1.442695
      %v6790 = vpow.pop %v6789
      %v6791 = vmul.f32 %v6619, 1.442695
      %v6792 = vpow.pop %v6791
      %v6793 = vmul.f32 %v6620, 1.442695
      %v6794 = vpow.pop %v6793
      %v6795 = vmul.f32 %v6621, 1.442695
      %v6796 = vpow.pop %v6795
      %v6797 = vmul.f32 %v6622, 1.442695
      %v6798 = vpow.pop %v6797
      %v6799 = vmul.f32 %v6623, 1.442695
      %v6800 = vpow.pop %v6799
      %v6801 = vmul.f32 %v6624, 1.442695
      %v6802 = vpow.pop %v6801
      %v6803 = vmul.f32 %v6625, 1.442695
      %v6804 = vpow.pop %v6803
      %v6805 = vmul.f32 %v6626, 1.442695
      %v6806 = vpow.pop %v6805
      %v6807 = vmul.f32 %v6627, 1.442695
      %v6808 = vpow.pop %v6807
      %v6809 = vmul.f32 %v6628, 1.442695
      %v6810 = vpow.pop %v6809
      %v6811 = vmul.f32 %v6629, 1.442695
      %v6812 = vpow.pop %v6811
      %v6813 = vmul.f32 %v6630, 1.442695
      %v6814 = vpow.pop %v6813
      %v6815 = vmul.f32 %v6631, 1.442695
      %v6816 = vpow.pop %v6815
      %v6817 = vmul.f32 %v6632, 1.442695
      %v6818 = vpow.pop %v6817
      %v6819 = vmul.f32 %v6633, 1.442695
      %v6820 = vpow.pop %v6819
      %v6821 = vmul.f32 %v6634, 1.442695
      %v6822 = vpow.pop %v6821
      %v6823 = vmul.f32 %v6635, 1.442695
      %v6824 = vpow.pop %v6823
      %v6825 = vmul.f32 %v6636, 1.442695
      %v6826 = vpow.pop %v6825
      %v6827 = vmul.f32 %v6637, 1.442695
      %v6828 = vpow.pop %v6827
      %v6829 = vmul.f32 %v6638, 1.442695
      %v6830 = vpow.pop %v6829
      %v6831 = vsel %vm3592, %v6640, 0.0
      %6832 = vadd.xlane.f32.xlu0 %v6831
      %v6833 = vpop.xlane.xlu0 %6832
      %v6834 = vsel %vm3592, %v6642, 0.0
      %6835 = vadd.xlane.f32.xlu0 %v6834
      %v6836 = vpop.xlane.xlu0 %6835
      %v6837 = vsel %vm3592, %v6644, 0.0
      %6838 = vadd.xlane.f32.xlu0 %v6837
      %v6839 = vpop.xlane.xlu0 %6838
      %v6840 = vsel %vm3592, %v6646, 0.0
      %6841 = vadd.xlane.f32.xlu0 %v6840
      %v6842 = vpop.xlane.xlu0 %6841
      %v6843 = vsel %vm3592, %v6648, 0.0
      %6844 = vadd.xlane.f32.xlu0 %v6843
      %v6845 = vpop.xlane.xlu0 %6844
      %v6846 = vsel %vm3592, %v6650, 0.0
      %6847 = vadd.xlane.f32.xlu0 %v6846
      %v6848 = vpop.xlane.xlu0 %6847
      %v6849 = vsel %vm3592, %v6652, 0.0
      %6850 = vadd.xlane.f32.xlu0 %v6849
      %v6851 = vpop.xlane.xlu0 %6850
      %v6852 = vsel %vm3592, %v6654, 0.0
      %6853 = vadd.xlane.f32.xlu0 %v6852
      %v6854 = vpop.xlane.xlu0 %6853
      %v6855 = vsel %vm3592, %v6656, 0.0
      %6856 = vadd.xlane.f32.xlu0 %v6855
      %v6857 = vpop.xlane.xlu0 %6856
      %v6858 = vsel %vm3592, %v6658, 0.0
      %6859 = vadd.xlane.f32.xlu0 %v6858
      %v6860 = vpop.xlane.xlu0 %6859
      %v6861 = vsel %vm3592, %v6660, 0.0
      %6862 = vadd.xlane.f32.xlu0 %v6861
      %v6863 = vpop.xlane.xlu0 %6862
      %v6864 = vsel %vm3592, %v6662, 0.0
      %6865 = vadd.xlane.f32.xlu0 %v6864
      %v6866 = vpop.xlane.xlu0 %6865
      %v6867 = vsel %vm3592, %v6664, 0.0
      %6868 = vadd.xlane.f32.xlu0 %v6867
      %v6869 = vpop.xlane.xlu0 %6868
      %v6870 = vsel %vm3592, %v6666, 0.0
      %6871 = vadd.xlane.f32.xlu0 %v6870
      %v6872 = vpop.xlane.xlu0 %6871
      %v6873 = vsel %vm3592, %v6668, 0.0
      %6874 = vadd.xlane.f32.xlu0 %v6873
      %v6875 = vpop.xlane.xlu0 %6874
      %v6876 = vsel %vm3592, %v6670, 0.0
      %6877 = vadd.xlane.f32.xlu0 %v6876
      %v6878 = vpop.xlane.xlu0 %6877
      %v6879 = vsel %vm3592, %v6672, 0.0
      %6880 = vadd.xlane.f32.xlu0 %v6879
      %v6881 = vpop.xlane.xlu0 %6880
      %v6882 = vsel %vm3592, %v6674, 0.0
      %6883 = vadd.xlane.f32.xlu0 %v6882
      %v6884 = vpop.xlane.xlu0 %6883
      %v6885 = vsel %vm3592, %v6676, 0.0
      %6886 = vadd.xlane.f32.xlu0 %v6885
      %v6887 = vpop.xlane.xlu0 %6886
      %v6888 = vsel %vm3592, %v6678, 0.0
      %6889 = vadd.xlane.f32.xlu0 %v6888
      %v6890 = vpop.xlane.xlu0 %6889
      %v6891 = vsel %vm3592, %v6680, 0.0
      %6892 = vadd.xlane.f32.xlu0 %v6891
      %v6893 = vpop.xlane.xlu0 %6892
      %v6894 = vsel %vm3592, %v6682, 0.0
      %6895 = vadd.xlane.f32.xlu0 %v6894
      %v6896 = vpop.xlane.xlu0 %6895
      %v6897 = vsel %vm3592, %v6684, 0.0
      %6898 = vadd.xlane.f32.xlu0 %v6897
      %v6899 = vpop.xlane.xlu0 %6898
      %v6900 = vsel %vm3592, %v6686, 0.0
      %6901 = vadd.xlane.f32.xlu0 %v6900
      %v6902 = vpop.xlane.xlu0 %6901
      %v6903 = vsel %vm3592, %v6688, 0.0
      %6904 = vadd.xlane.f32.xlu0 %v6903
      %v6905 = vpop.xlane.xlu0 %6904
      %v6906 = vsel %vm3592, %v6690, 0.0
      %6907 = vadd.xlane.f32.xlu0 %v6906
      %v6908 = vpop.xlane.xlu0 %6907
      %v6909 = vsel %vm3592, %v6692, 0.0
      %6910 = vadd.xlane.f32.xlu0 %v6909
      %v6911 = vpop.xlane.xlu0 %6910
      %v6912 = vsel %vm3592, %v6694, 0.0
      %6913 = vadd.xlane.f32.xlu0 %v6912
      %v6914 = vpop.xlane.xlu0 %6913
      %v6915 = vsel %vm3592, %v6696, 0.0
      %6916 = vadd.xlane.f32.xlu0 %v6915
      %v6917 = vpop.xlane.xlu0 %6916
      %v6918 = vsel %vm3592, %v6698, 0.0
      %6919 = vadd.xlane.f32.xlu0 %v6918
      %v6920 = vpop.xlane.xlu0 %6919
      %v6921 = vsel %vm3592, %v6700, 0.0
      %6922 = vadd.xlane.f32.xlu0 %v6921
      %v6923 = vpop.xlane.xlu0 %6922
      %v6924 = vsel %vm3592, %v6702, 0.0
      %6925 = vadd.xlane.f32.xlu0 %v6924
      %v6926 = vpop.xlane.xlu0 %6925
      %v6927 = vsel %vm3592, %v6704, 0.0
      %6928 = vadd.xlane.f32.xlu0 %v6927
      %v6929 = vpop.xlane.xlu0 %6928
      %v6930 = vsel %vm3592, %v6706, 0.0
      %6931 = vadd.xlane.f32.xlu0 %v6930
      %v6932 = vpop.xlane.xlu0 %6931
      %v6933 = vsel %vm3592, %v6708, 0.0
      %6934 = vadd.xlane.f32.xlu0 %v6933
      %v6935 = vpop.xlane.xlu0 %6934
      %v6936 = vsel %vm3592, %v6710, 0.0
      %6937 = vadd.xlane.f32.xlu0 %v6936
      %v6938 = vpop.xlane.xlu0 %6937
      %v6939 = vsel %vm3592, %v6712, 0.0
      %6940 = vadd.xlane.f32.xlu0 %v6939
      %v6941 = vpop.xlane.xlu0 %6940
      %v6942 = vsel %vm3592, %v6714, 0.0
      %6943 = vadd.xlane.f32.xlu0 %v6942
      %v6944 = vpop.xlane.xlu0 %6943
      %v6945 = vsel %vm3592, %v6716, 0.0
      %6946 = vadd.xlane.f32.xlu0 %v6945
      %v6947 = vpop.xlane.xlu0 %6946
      %v6948 = vsel %vm3592, %v6718, 0.0
      %6949 = vadd.xlane.f32.xlu0 %v6948
      %v6950 = vpop.xlane.xlu0 %6949
      %v6951 = vsel %vm3592, %v6720, 0.0
      %6952 = vadd.xlane.f32.xlu0 %v6951
      %v6953 = vpop.xlane.xlu0 %6952
      %v6954 = vsel %vm3592, %v6722, 0.0
      %6955 = vadd.xlane.f32.xlu0 %v6954
      %v6956 = vpop.xlane.xlu0 %6955
      %v6957 = vsel %vm3592, %v6724, 0.0
      %6958 = vadd.xlane.f32.xlu0 %v6957
      %v6959 = vpop.xlane.xlu0 %6958
      %v6960 = vsel %vm3592, %v6726, 0.0
      %6961 = vadd.xlane.f32.xlu0 %v6960
      %v6962 = vpop.xlane.xlu0 %6961
      %v6963 = vsel %vm3592, %v6728, 0.0
      %6964 = vadd.xlane.f32.xlu0 %v6963
      %v6965 = vpop.xlane.xlu0 %6964
      %v6966 = vsel %vm3592, %v6730, 0.0
      %6967 = vadd.xlane.f32.xlu0 %v6966
      %v6968 = vpop.xlane.xlu0 %6967
      %v6969 = vsel %vm3592, %v6732, 0.0
      %6970 = vadd.xlane.f32.xlu0 %v6969
      %v6971 = vpop.xlane.xlu0 %6970
      %v6972 = vsel %vm3592, %v6734, 0.0
      %6973 = vadd.xlane.f32.xlu0 %v6972
      %v6974 = vpop.xlane.xlu0 %6973
      %v6975 = vsel %vm3592, %v6736, 0.0
      %6976 = vadd.xlane.f32.xlu0 %v6975
      %v6977 = vpop.xlane.xlu0 %6976
      %v6978 = vsel %vm3592, %v6738, 0.0
      %6979 = vadd.xlane.f32.xlu0 %v6978
      %v6980 = vpop.xlane.xlu0 %6979
      %v6981 = vsel %vm3592, %v6740, 0.0
      %6982 = vadd.xlane.f32.xlu0 %v6981
      %v6983 = vpop.xlane.xlu0 %6982
      %v6984 = vsel %vm3592, %v6742, 0.0
      %6985 = vadd.xlane.f32.xlu0 %v6984
      %v6986 = vpop.xlane.xlu0 %6985
      %v6987 = vsel %vm3592, %v6744, 0.0
      %6988 = vadd.xlane.f32.xlu0 %v6987
      %v6989 = vpop.xlane.xlu0 %6988
      %v6990 = vsel %vm3592, %v6746, 0.0
      %6991 = vadd.xlane.f32.xlu0 %v6990
      %v6992 = vpop.xlane.xlu0 %6991
      %v6993 = vsel %vm3592, %v6748, 0.0
      %6994 = vadd.xlane.f32.xlu0 %v6993
      %v6995 = vpop.xlane.xlu0 %6994
      %v6996 = vsel %vm3592, %v6750, 0.0
      %6997 = vadd.xlane.f32.xlu0 %v6996
      %v6998 = vpop.xlane.xlu0 %6997
      %v6999 = vsel %vm3592, %v6752, 0.0
      %7000 = vadd.xlane.f32.xlu0 %v6999
      %v7001 = vpop.xlane.xlu0 %7000
      %v7002 = vsel %vm3592, %v6754, 0.0
      %7003 = vadd.xlane.f32.xlu0 %v7002
      %v7004 = vpop.xlane.xlu0 %7003
      %v7005 = vsel %vm3592, %v6756, 0.0
      %7006 = vadd.xlane.f32.xlu0 %v7005
      %v7007 = vpop.xlane.xlu0 %7006
      %v7008 = vsel %vm3592, %v6758, 0.0
      %7009 = vadd.xlane.f32.xlu0 %v7008
      %v7010 = vpop.xlane.xlu0 %7009
      %v7011 = vsel %vm3592, %v6760, 0.0
      %7012 = vadd.xlane.f32.xlu0 %v7011
      %v7013 = vpop.xlane.xlu0 %7012
      %v7014 = vsel %vm3592, %v6762, 0.0
      %7015 = vadd.xlane.f32.xlu0 %v7014
      %v7016 = vpop.xlane.xlu0 %7015
      %v7017 = vsel %vm3592, %v6764, 0.0
      %7018 = vadd.xlane.f32.xlu0 %v7017
      %v7019 = vpop.xlane.xlu0 %7018
      %v7020 = vsel %vm3592, %v6766, 0.0
      %7021 = vadd.xlane.f32.xlu0 %v7020
      %v7022 = vpop.xlane.xlu0 %7021
      %v7023 = vsel %vm3592, %v6768, 0.0
      %7024 = vadd.xlane.f32.xlu0 %v7023
      %v7025 = vpop.xlane.xlu0 %7024
      %v7026 = vsel %vm3592, %v6770, 0.0
      %7027 = vadd.xlane.f32.xlu0 %v7026
      %v7028 = vpop.xlane.xlu0 %7027
      %v7029 = vsel %vm3592, %v6772, 0.0
      %7030 = vadd.xlane.f32.xlu0 %v7029
      %v7031 = vpop.xlane.xlu0 %7030
      %v7032 = vsel %vm3592, %v6774, 0.0
      %7033 = vadd.xlane.f32.xlu0 %v7032
      %v7034 = vpop.xlane.xlu0 %7033
      %v7035 = vsel %vm3592, %v6776, 0.0
      %7036 = vadd.xlane.f32.xlu0 %v7035
      %v7037 = vpop.xlane.xlu0 %7036
      %v7038 = vsel %vm3592, %v6778, 0.0
      %7039 = vadd.xlane.f32.xlu0 %v7038
      %v7040 = vpop.xlane.xlu0 %7039
      %v7041 = vsel %vm3592, %v6780, 0.0
      %7042 = vadd.xlane.f32.xlu0 %v7041
      %v7043 = vpop.xlane.xlu0 %7042
      %v7044 = vsel %vm3592, %v6782, 0.0
      %7045 = vadd.xlane.f32.xlu0 %v7044
      %v7046 = vpop.xlane.xlu0 %7045
      %v7047 = vsel %vm3592, %v6784, 0.0
      %7048 = vadd.xlane.f32.xlu0 %v7047
      %v7049 = vpop.xlane.xlu0 %7048
      %v7050 = vsel %vm3592, %v6786, 0.0
      %7051 = vadd.xlane.f32.xlu0 %v7050
      %v7052 = vpop.xlane.xlu0 %7051
      %v7053 = vsel %vm3592, %v6788, 0.0
      %7054 = vadd.xlane.f32.xlu0 %v7053
      %v7055 = vpop.xlane.xlu0 %7054
      %v7056 = vsel %vm3592, %v6790, 0.0
      %7057 = vadd.xlane.f32.xlu0 %v7056
      %v7058 = vpop.xlane.xlu0 %7057
      %v7059 = vsel %vm3592, %v6792, 0.0
      %7060 = vadd.xlane.f32.xlu0 %v7059
      %v7061 = vpop.xlane.xlu0 %7060
      %v7062 = vsel %vm3592, %v6794, 0.0
      %7063 = vadd.xlane.f32.xlu0 %v7062
      %v7064 = vpop.xlane.xlu0 %7063
      %v7065 = vsel %vm3592, %v6796, 0.0
      %7066 = vadd.xlane.f32.xlu0 %v7065
      %v7067 = vpop.xlane.xlu0 %7066
      %v7068 = vsel %vm3592, %v6798, 0.0
      %7069 = vadd.xlane.f32.xlu0 %v7068
      %v7070 = vpop.xlane.xlu0 %7069
      %v7071 = vsel %vm3592, %v6800, 0.0
      %7072 = vadd.xlane.f32.xlu0 %v7071
      %v7073 = vpop.xlane.xlu0 %7072
      %v7074 = vsel %vm3592, %v6802, 0.0
      %7075 = vadd.xlane.f32.xlu0 %v7074
      %v7076 = vpop.xlane.xlu0 %7075
      %v7077 = vsel %vm3592, %v6804, 0.0
      %7078 = vadd.xlane.f32.xlu0 %v7077
      %v7079 = vpop.xlane.xlu0 %7078
      %v7080 = vsel %vm3592, %v6806, 0.0
      %7081 = vadd.xlane.f32.xlu0 %v7080
      %v7082 = vpop.xlane.xlu0 %7081
      %v7083 = vsel %vm3592, %v6808, 0.0
      %7084 = vadd.xlane.f32.xlu0 %v7083
      %v7085 = vpop.xlane.xlu0 %7084
      %v7086 = vsel %vm3592, %v6810, 0.0
      %7087 = vadd.xlane.f32.xlu0 %v7086
      %v7088 = vpop.xlane.xlu0 %7087
      %v7089 = vsel %vm3592, %v6812, 0.0
      %7090 = vadd.xlane.f32.xlu0 %v7089
      %v7091 = vpop.xlane.xlu0 %7090
      %v7092 = vsel %vm3592, %v6814, 0.0
      %7093 = vadd.xlane.f32.xlu0 %v7092
      %v7094 = vpop.xlane.xlu0 %7093
      %v7095 = vsel %vm3592, %v6816, 0.0
      %7096 = vadd.xlane.f32.xlu0 %v7095
      %v7097 = vpop.xlane.xlu0 %7096
      %v7098 = vsel %vm3592, %v6818, 0.0
      %7099 = vadd.xlane.f32.xlu0 %v7098
      %v7100 = vpop.xlane.xlu0 %7099
      %v7101 = vsel %vm3592, %v6820, 0.0
      %7102 = vadd.xlane.f32.xlu0 %v7101
      %v7103 = vpop.xlane.xlu0 %7102
      %v7104 = vsel %vm3592, %v6822, 0.0
      %7105 = vadd.xlane.f32.xlu0 %v7104
      %v7106 = vpop.xlane.xlu0 %7105
      %v7107 = vsel %vm3592, %v6824, 0.0
      %7108 = vadd.xlane.f32.xlu0 %v7107
      %v7109 = vpop.xlane.xlu0 %7108
      %v7110 = vsel %vm3592, %v6826, 0.0
      %7111 = vadd.xlane.f32.xlu0 %v7110
      %v7112 = vpop.xlane.xlu0 %7111
      %v7113 = vsel %vm3592, %v6828, 0.0
      %7114 = vadd.xlane.f32.xlu0 %v7113
      %v7115 = vpop.xlane.xlu0 %7114
      %v7116 = vsel %vm3592, %v6830, 0.0
      %7117 = vadd.xlane.f32.xlu0 %v7116
      %v7118 = vpop.xlane.xlu0 %7117
      %v7119 = vrcp.pop %v6833
      %v7120 = vrcp.pop %v6836
      %v7121 = vrcp.pop %v6839
      %v7122 = vrcp.pop %v6842
      %v7123 = vrcp.pop %v6845
      %v7124 = vrcp.pop %v6848
      %v7125 = vrcp.pop %v6851
      %v7126 = vrcp.pop %v6854
      %v7127 = vrcp.pop %v6857
      %v7128 = vrcp.pop %v6860
      %v7129 = vrcp.pop %v6863
      %v7130 = vrcp.pop %v6866
      %v7131 = vrcp.pop %v6869
      %v7132 = vrcp.pop %v6872
      %v7133 = vrcp.pop %v6875
      %v7134 = vrcp.pop %v6878
      %v7135 = vrcp.pop %v6881
      %v7136 = vrcp.pop %v6884
      %v7137 = vrcp.pop %v6887
      %v7138 = vrcp.pop %v6890
      %v7139 = vrcp.pop %v6893
      %v7140 = vrcp.pop %v6896
      %v7141 = vrcp.pop %v6899
      %v7142 = vrcp.pop %v6902
      %v7143 = vrcp.pop %v6905
      %v7144 = vrcp.pop %v6908
      %v7145 = vrcp.pop %v6911
      %v7146 = vrcp.pop %v6914
      %v7147 = vrcp.pop %v6917
      %v7148 = vrcp.pop %v6920
      %v7149 = vrcp.pop %v6923
      %v7150 = vrcp.pop %v6926
      %v7151 = vrcp.pop %v6929
      %v7152 = vrcp.pop %v6932
      %v7153 = vrcp.pop %v6935
      %v7154 = vrcp.pop %v6938
      %v7155 = vrcp.pop %v6941
      %v7156 = vrcp.pop %v6944
      %v7157 = vrcp.pop %v6947
      %v7158 = vrcp.pop %v6950
      %v7159 = vrcp.pop %v6953
      %v7160 = vrcp.pop %v6956
      %v7161 = vrcp.pop %v6959
      %v7162 = vrcp.pop %v6962
      %v7163 = vrcp.pop %v6965
      %v7164 = vrcp.pop %v6968
      %v7165 = vrcp.pop %v6971
      %v7166 = vrcp.pop %v6974
      %v7167 = vrcp.pop %v6977
      %v7168 = vrcp.pop %v6980
      %v7169 = vrcp.pop %v6983
      %v7170 = vrcp.pop %v6986
      %v7171 = vrcp.pop %v6989
      %v7172 = vrcp.pop %v6992
      %v7173 = vrcp.pop %v6995
      %v7174 = vrcp.pop %v6998
      %v7175 = vrcp.pop %v7001
      %v7176 = vrcp.pop %v7004
      %v7177 = vrcp.pop %v7007
      %v7178 = vrcp.pop %v7010
      %v7179 = vrcp.pop %v7013
      %v7180 = vrcp.pop %v7016
      %v7181 = vrcp.pop %v7019
      %v7182 = vrcp.pop %v7022
      %v7183 = vrcp.pop %v7025
      %v7184 = vrcp.pop %v7028
      %v7185 = vrcp.pop %v7031
      %v7186 = vrcp.pop %v7034
      %v7187 = vrcp.pop %v7037
      %v7188 = vrcp.pop %v7040
      %v7189 = vrcp.pop %v7043
      %v7190 = vrcp.pop %v7046
      %v7191 = vrcp.pop %v7049
      %v7192 = vrcp.pop %v7052
      %v7193 = vrcp.pop %v7055
      %v7194 = vrcp.pop %v7058
      %v7195 = vrcp.pop %v7061
      %v7196 = vrcp.pop %v7064
      %v7197 = vrcp.pop %v7067
      %v7198 = vrcp.pop %v7070
      %v7199 = vrcp.pop %v7073
      %v7200 = vrcp.pop %v7076
      %v7201 = vrcp.pop %v7079
      %v7202 = vrcp.pop %v7082
      %v7203 = vrcp.pop %v7085
      %v7204 = vrcp.pop %v7088
      %v7205 = vrcp.pop %v7091
      %v7206 = vrcp.pop %v7094
      %v7207 = vrcp.pop %v7097
      %v7208 = vrcp.pop %v7100
      %v7209 = vrcp.pop %v7103
      %v7210 = vrcp.pop %v7106
      %v7211 = vrcp.pop %v7109
      %v7212 = vrcp.pop %v7112
      %v7213 = vrcp.pop %v7115
      %v7214 = vrcp.pop %v7118
      %v7215 = vmul.f32 %v6640, %v7119
      %v7216 = vmul.f32 %v6642, %v7120
      %v7217 = vmul.f32 %v6644, %v7121
      %v7218 = vmul.f32 %v6646, %v7122
      %v7219 = vmul.f32 %v6648, %v7123
      %v7220 = vmul.f32 %v6650, %v7124
      %v7221 = vmul.f32 %v6652, %v7125
      %v7222 = vmul.f32 %v6654, %v7126
      %v7223 = vmul.f32 %v6656, %v7127
      %v7224 = vmul.f32 %v6658, %v7128
      %v7225 = vmul.f32 %v6660, %v7129
      %v7226 = vmul.f32 %v6662, %v7130
      %v7227 = vmul.f32 %v6664, %v7131
      %v7228 = vmul.f32 %v6666, %v7132
      %v7229 = vmul.f32 %v6668, %v7133
      %v7230 = vmul.f32 %v6670, %v7134
      %v7231 = vmul.f32 %v6672, %v7135
      %v7232 = vmul.f32 %v6674, %v7136
      %v7233 = vmul.f32 %v6676, %v7137
      %v7234 = vmul.f32 %v6678, %v7138
      %v7235 = vmul.f32 %v6680, %v7139
      %v7236 = vmul.f32 %v6682, %v7140
      %v7237 = vmul.f32 %v6684, %v7141
      %v7238 = vmul.f32 %v6686, %v7142
      %v7239 = vmul.f32 %v6688, %v7143
      %v7240 = vmul.f32 %v6690, %v7144
      %v7241 = vmul.f32 %v6692, %v7145
      %v7242 = vmul.f32 %v6694, %v7146
      %v7243 = vmul.f32 %v6696, %v7147
      %v7244 = vmul.f32 %v6698, %v7148
      %v7245 = vmul.f32 %v6700, %v7149
      %v7246 = vmul.f32 %v6702, %v7150
      %v7247 = vmul.f32 %v6704, %v7151
      %v7248 = vmul.f32 %v6706, %v7152
      %v7249 = vmul.f32 %v6708, %v7153
      %v7250 = vmul.f32 %v6710, %v7154
      %v7251 = vmul.f32 %v6712, %v7155
      %v7252 = vmul.f32 %v6714, %v7156
      %v7253 = vmul.f32 %v6716, %v7157
      %v7254 = vmul.f32 %v6718, %v7158
      %v7255 = vmul.f32 %v6720, %v7159
      %v7256 = vmul.f32 %v6722, %v7160
      %v7257 = vmul.f32 %v6724, %v7161
      %v7258 = vmul.f32 %v6726, %v7162
      %v7259 = vmul.f32 %v6728, %v7163
      %v7260 = vmul.f32 %v6730, %v7164
      %v7261 = vmul.f32 %v6732, %v7165
      %v7262 = vmul.f32 %v6734, %v7166
      %v7263 = vmul.f32 %v6736, %v7167
      %v7264 = vmul.f32 %v6738, %v7168
      %v7265 = vmul.f32 %v6740, %v7169
      %v7266 = vmul.f32 %v6742, %v7170
      %v7267 = vmul.f32 %v6744, %v7171
      %v7268 = vmul.f32 %v6746, %v7172
      %v7269 = vmul.f32 %v6748, %v7173
      %v7270 = vmul.f32 %v6750, %v7174
      %v7271 = vmul.f32 %v6752, %v7175
      %v7272 = vmul.f32 %v6754, %v7176
      %v7273 = vmul.f32 %v6756, %v7177
      %v7274 = vmul.f32 %v6758, %v7178
      %v7275 = vmul.f32 %v6760, %v7179
      %v7276 = vmul.f32 %v6762, %v7180
      %v7277 = vmul.f32 %v6764, %v7181
      %v7278 = vmul.f32 %v6766, %v7182
      %v7279 = vmul.f32 %v6768, %v7183
      %v7280 = vmul.f32 %v6770, %v7184
      %v7281 = vmul.f32 %v6772, %v7185
      %v7282 = vmul.f32 %v6774, %v7186
      %v7283 = vmul.f32 %v6776, %v7187
      %v7284 = vmul.f32 %v6778, %v7188
      %v7285 = vmul.f32 %v6780, %v7189
      %v7286 = vmul.f32 %v6782, %v7190
      %v7287 = vmul.f32 %v6784, %v7191
      %v7288 = vmul.f32 %v6786, %v7192
      %v7289 = vmul.f32 %v6788, %v7193
      %v7290 = vmul.f32 %v6790, %v7194
      %v7291 = vmul.f32 %v6792, %v7195
      %v7292 = vmul.f32 %v6794, %v7196
      %v7293 = vmul.f32 %v6796, %v7197
      %v7294 = vmul.f32 %v6798, %v7198
      %v7295 = vmul.f32 %v6800, %v7199
      %v7296 = vmul.f32 %v6802, %v7200
      %v7297 = vmul.f32 %v6804, %v7201
      %v7298 = vmul.f32 %v6806, %v7202
      %v7299 = vmul.f32 %v6808, %v7203
      %v7300 = vmul.f32 %v6810, %v7204
      %v7301 = vmul.f32 %v6812, %v7205
      %v7302 = vmul.f32 %v6814, %v7206
      %v7303 = vmul.f32 %v6816, %v7207
      %v7304 = vmul.f32 %v6818, %v7208
      %v7305 = vmul.f32 %v6820, %v7209
      %v7306 = vmul.f32 %v6822, %v7210
      %v7307 = vmul.f32 %v6824, %v7211
      %v7308 = vmul.f32 %v6826, %v7212
      %v7309 = vmul.f32 %v6828, %v7213
      %v7310 = vmul.f32 %v6830, %v7214
      %v7311 = vpack.c.bf16 %v7216, %v7215
      %v7312 = vpack.c.bf16 %v7218, %v7217
      %v7313 = vpack.c.bf16 %v7220, %v7219
      %v7314 = vpack.c.bf16 %v7222, %v7221
      %v7315 = vpack.c.bf16 %v7224, %v7223
      %v7316 = vpack.c.bf16 %v7226, %v7225
      %v7317 = vpack.c.bf16 %v7228, %v7227
      %v7318 = vpack.c.bf16 %v7230, %v7229
      %v7319 = vpack.c.bf16 %v7232, %v7231
      %v7320 = vpack.c.bf16 %v7234, %v7233
      %v7321 = vpack.c.bf16 %v7236, %v7235
      %v7322 = vpack.c.bf16 %v7238, %v7237
      %v7323 = vpack.c.bf16 %v7240, %v7239
      %v7324 = vpack.c.bf16 %v7242, %v7241
      %v7325 = vpack.c.bf16 %v7244, %v7243
      %v7326 = vpack.c.bf16 %v7246, %v7245
      %v7327 = vpack.c.bf16 %v7248, %v7247
      %v7328 = vpack.c.bf16 %v7250, %v7249
      %v7329 = vpack.c.bf16 %v7252, %v7251
      %v7330 = vpack.c.bf16 %v7254, %v7253
      %v7331 = vpack.c.bf16 %v7256, %v7255
      %v7332 = vpack.c.bf16 %v7258, %v7257
      %v7333 = vpack.c.bf16 %v7260, %v7259
      %v7334 = vpack.c.bf16 %v7262, %v7261
      %v7335 = vpack.c.bf16 %v7264, %v7263
      %v7336 = vpack.c.bf16 %v7266, %v7265
      %v7337 = vpack.c.bf16 %v7268, %v7267
      %v7338 = vpack.c.bf16 %v7270, %v7269
      %v7339 = vpack.c.bf16 %v7272, %v7271
      %v7340 = vpack.c.bf16 %v7274, %v7273
      %v7341 = vpack.c.bf16 %v7276, %v7275
      %v7342 = vpack.c.bf16 %v7278, %v7277
      %v7343 = vpack.c.bf16 %v7280, %v7279
      %v7344 = vpack.c.bf16 %v7282, %v7281
      %v7345 = vpack.c.bf16 %v7284, %v7283
      %v7346 = vpack.c.bf16 %v7286, %v7285
      %v7347 = vpack.c.bf16 %v7288, %v7287
      %v7348 = vpack.c.bf16 %v7290, %v7289
      %v7349 = vpack.c.bf16 %v7292, %v7291
      %v7350 = vpack.c.bf16 %v7294, %v7293
      %v7351 = vpack.c.bf16 %v7296, %v7295
      %v7352 = vpack.c.bf16 %v7298, %v7297
      %v7353 = vpack.c.bf16 %v7300, %v7299
      %v7354 = vpack.c.bf16 %v7302, %v7301
      %v7355 = vpack.c.bf16 %v7304, %v7303
      %v7356 = vpack.c.bf16 %v7306, %v7305
      %v7357 = vpack.c.bf16 %v7308, %v7307
      %v7358 = vpack.c.bf16 %v7310, %v7309
      %v7360 = vsel %vm3592, %v7311, 0
      %v7363 = vsel %vm3592, %v7312, 0
      %v7366 = vsel %vm3592, %v7313, 0
      %v7369 = vsel %vm3592, %v7314, 0
      %v7372 = vsel %vm3592, %v7315, 0
      %v7375 = vsel %vm3592, %v7316, 0
      %v7378 = vsel %vm3592, %v7317, 0
      %v7381 = vsel %vm3592, %v7318, 0
      %v7384 = vsel %vm3592, %v7319, 0
      %v7387 = vsel %vm3592, %v7320, 0
      %v7390 = vsel %vm3592, %v7321, 0
      %v7393 = vsel %vm3592, %v7322, 0
      %v7396 = vsel %vm3592, %v7323, 0
      %v7399 = vsel %vm3592, %v7324, 0
      %v7402 = vsel %vm3592, %v7325, 0
      %v7405 = vsel %vm3592, %v7326, 0
      %v7408 = vsel %vm3592, %v7327, 0
      %v7411 = vsel %vm3592, %v7328, 0
      %v7414 = vsel %vm3592, %v7329, 0
      %v7417 = vsel %vm3592, %v7330, 0
      %v7420 = vsel %vm3592, %v7331, 0
      %v7423 = vsel %vm3592, %v7332, 0
      %v7426 = vsel %vm3592, %v7333, 0
      %v7429 = vsel %vm3592, %v7334, 0
      %v7432 = vsel %vm3592, %v7335, 0
      %v7435 = vsel %vm3592, %v7336, 0
      %v7438 = vsel %vm3592, %v7337, 0
      %v7441 = vsel %vm3592, %v7338, 0
      %v7444 = vsel %vm3592, %v7339, 0
      %v7447 = vsel %vm3592, %v7340, 0
      %v7450 = vsel %vm3592, %v7341, 0
      %v7453 = vsel %vm3592, %v7342, 0
      %v7456 = vsel %vm3592, %v7343, 0
      %v7459 = vsel %vm3592, %v7344, 0
      %v7462 = vsel %vm3592, %v7345, 0
      %v7465 = vsel %vm3592, %v7346, 0
      %v7468 = vsel %vm3592, %v7347, 0
      %v7471 = vsel %vm3592, %v7348, 0
      %v7474 = vsel %vm3592, %v7349, 0
      %v7477 = vsel %vm3592, %v7350, 0
      %v7480 = vsel %vm3592, %v7351, 0
      %v7483 = vsel %vm3592, %v7352, 0
      %v7486 = vsel %vm3592, %v7353, 0
      %v7489 = vsel %vm3592, %v7354, 0
      %v7492 = vsel %vm3592, %v7355, 0
      %v7495 = vsel %vm3592, %v7356, 0
      %v7498 = vsel %vm3592, %v7357, 0
      %v7501 = vsel %vm3592, %v7358, 0
      %7503 = vmatprep.subr.bf16.mxu0 0
      %7504 = vmatpush1.bf16.msra.mxu0 %v2871
      %7505 = vmatprep.subr.bf16.mxu0 0
      %7506 = vmatpush1.bf16.msra.mxu0 %v2872
      %7507 = vmatprep.subr.bf16.mxu0 0
      %7508 = vmatpush1.bf16.msra.mxu0 %v2873
      %7509 = vmatprep.subr.bf16.mxu0 0
      %7510 = vmatpush1.bf16.msra.mxu0 %v2874
      %7511 = vmatprep.subr.bf16.mxu0 0
      %7512 = vmatpush1.bf16.msra.mxu0 0
      %7513 = vmatprep.subr.bf16.mxu0 0
      %7514 = vmatpush1.bf16.msra.mxu0 0
      %7515 = vmatprep.subr.bf16.mxu0 0
      %7516 = vmatpush1.bf16.msra.mxu0 0
      %7517 = vmatprep.subr.bf16.mxu0 0
      %7518 = vmatpush1.bf16.msra.mxu0 0
      %7519 = vmatprep.subr.bf16.mxu0 0
      %7520 = vmatpush1.bf16.msra.mxu0 0
      %7521 = vmatprep.subr.bf16.mxu0 0
      %7522 = vmatpush1.bf16.msra.mxu0 0
      %7523 = vmatprep.subr.bf16.mxu0 0
      %7524 = vmatpush1.bf16.msra.mxu0 0
      %7525 = vmatprep.subr.bf16.mxu0 0
      %7526 = vmatpush1.bf16.msra.mxu0 0
      %7527 = vmatprep.subr.bf16.mxu0 0
      %7528 = vmatpush1.bf16.msra.mxu0 0
      %7529 = vmatprep.subr.bf16.mxu0 0
      %7530 = vmatpush1.bf16.msra.mxu0 0
      %7531 = vmatprep.subr.bf16.mxu0 0
      %7532 = vmatpush1.bf16.msra.mxu0 0
      %7533 = vmatprep.subr.bf16.mxu0 0
      %7534 = vmatpush1.bf16.msra.mxu0 0
      %7535 = vmatprep.mubr.bf16.mxu0 0
      %7536 = vmatmul.mubr.bf16.gmra.mrb[0].mxu0 %v7360
      %v7537 = vpop.f32.mrb[0].mxu0
      %v7538 = vadd.f32 0.0, %v7537
      %v7539 = vpop.f32.mrb[0].mxu0
      %v7540 = vpop.f32.mrb[0].mxu0
      %v7541 = vadd.f32 0.0, %v7540
      %v7542 = vpop.f32.mrb[0].mxu0
      %7543 = vmatprep.mubr.bf16.mxu0 0
      %7544 = vmatmul.mubr.bf16.gmra.mrb[0].mxu0 %v7363
      %v7545 = vpop.f32.mrb[0].mxu0
      %v7546 = vadd.f32 0.0, %v7545
      %v7547 = vpop.f32.mrb[0].mxu0
      %v7548 = vpop.f32.mrb[0].mxu0
      %v7549 = vadd.f32 0.0, %v7548
      %v7550 = vpop.f32.mrb[0].mxu0
      %7551 = vmatprep.mubr.bf16.mxu0 0
      %7552 = vmatmul.mubr.bf16.gmra.mrb[0].mxu0 %v7366
      %v7553 = vpop.f32.mrb[0].mxu0
      %v7554 = vadd.f32 0.0, %v7553
      %v7555 = vpop.f32.mrb[0].mxu0
      %v7556 = vpop.f32.mrb[0].mxu0
      %v7557 = vadd.f32 0.0, %v7556
      %v7558 = vpop.f32.mrb[0].mxu0
      %7559 = vmatprep.mubr.bf16.mxu0 0
      %7560 = vmatmul.mubr.bf16.gmra.mrb[0].mxu0 %v7369
      %v7561 = vpop.f32.mrb[0].mxu0
      %v7562 = vadd.f32 0.0, %v7561
      %v7563 = vpop.f32.mrb[0].mxu0
      %v7564 = vpop.f32.mrb[0].mxu0
      %v7565 = vadd.f32 0.0, %v7564
      %v7566 = vpop.f32.mrb[0].mxu0
      %7567 = vmatprep.mubr.bf16.mxu0 0
      %7568 = vmatmul.mubr.bf16.gmra.mrb[0].mxu0 %v7372
      %v7569 = vpop.f32.mrb[0].mxu0
      %v7570 = vadd.f32 0.0, %v7569
      %v7571 = vpop.f32.mrb[0].mxu0
      %v7572 = vpop.f32.mrb[0].mxu0
      %v7573 = vadd.f32 0.0, %v7572
      %v7574 = vpop.f32.mrb[0].mxu0
      %7575 = vmatprep.mubr.bf16.mxu0 0
      %7576 = vmatmul.mubr.bf16.gmra.mrb[0].mxu0 %v7375
      %v7577 = vpop.f32.mrb[0].mxu0
      %v7578 = vadd.f32 0.0, %v7577
      %v7579 = vpop.f32.mrb[0].mxu0
      %v7580 = vpop.f32.mrb[0].mxu0
      %v7581 = vadd.f32 0.0, %v7580
      %v7582 = vpop.f32.mrb[0].mxu0
      %7583 = vmatprep.mubr.bf16.mxu0 0
      %7584 = vmatmul.mubr.bf16.gmra.mrb[0].mxu0 %v7378
      %v7585 = vpop.f32.mrb[0].mxu0
      %v7586 = vadd.f32 0.0, %v7585
      %v7587 = vpop.f32.mrb[0].mxu0
      %v7588 = vpop.f32.mrb[0].mxu0
      %v7589 = vadd.f32 0.0, %v7588
      %v7590 = vpop.f32.mrb[0].mxu0
      %7591 = vmatprep.mubr.bf16.mxu0 0
      %7592 = vmatmul.mubr.bf16.gmra.mrb[0].mxu0 %v7381
      %v7593 = vpop.f32.mrb[0].mxu0
      %v7594 = vadd.f32 0.0, %v7593
      %v7595 = vpop.f32.mrb[0].mxu0
      %v7596 = vpop.f32.mrb[0].mxu0
      %v7597 = vadd.f32 0.0, %v7596
      %v7598 = vpop.f32.mrb[0].mxu0
      %7599 = vmatprep.mubr.bf16.mxu0 0
      %7600 = vmatmul.mubr.bf16.gmra.mrb[0].mxu0 %v7384
      %v7601 = vpop.f32.mrb[0].mxu0
      %v7602 = vadd.f32 0.0, %v7601
      %v7603 = vpop.f32.mrb[0].mxu0
      %v7604 = vpop.f32.mrb[0].mxu0
      %v7605 = vadd.f32 0.0, %v7604
      %v7606 = vpop.f32.mrb[0].mxu0
      %7607 = vmatprep.mubr.bf16.mxu0 0
      %7608 = vmatmul.mubr.bf16.gmra.mrb[0].mxu0 %v7387
      %v7609 = vpop.f32.mrb[0].mxu0
      %v7610 = vadd.f32 0.0, %v7609
      %v7611 = vpop.f32.mrb[0].mxu0
      %v7612 = vpop.f32.mrb[0].mxu0
      %v7613 = vadd.f32 0.0, %v7612
      %v7614 = vpop.f32.mrb[0].mxu0
      %7615 = vmatprep.mubr.bf16.mxu0 0
      %7616 = vmatmul.mubr.bf16.gmra.mrb[0].mxu0 %v7390
      %v7617 = vpop.f32.mrb[0].mxu0
      %v7618 = vadd.f32 0.0, %v7617
      %v7619 = vpop.f32.mrb[0].mxu0
      %v7620 = vpop.f32.mrb[0].mxu0
      %v7621 = vadd.f32 0.0, %v7620
      %v7622 = vpop.f32.mrb[0].mxu0
      %7623 = vmatprep.mubr.bf16.mxu0 0
      %7624 = vmatmul.mubr.bf16.gmra.mrb[0].mxu0 %v7393
      %v7625 = vpop.f32.mrb[0].mxu0
      %v7626 = vadd.f32 0.0, %v7625
      %v7627 = vpop.f32.mrb[0].mxu0
      %v7628 = vpop.f32.mrb[0].mxu0
      %v7629 = vadd.f32 0.0, %v7628
      %v7630 = vpop.f32.mrb[0].mxu0
      %7631 = vmatprep.mubr.bf16.mxu0 0
      %7632 = vmatmul.mubr.bf16.gmra.mrb[0].mxu0 %v7396
      %v7633 = vpop.f32.mrb[0].mxu0
      %v7634 = vadd.f32 0.0, %v7633
      %v7635 = vpop.f32.mrb[0].mxu0
      %v7636 = vpop.f32.mrb[0].mxu0
      %v7637 = vadd.f32 0.0, %v7636
      %v7638 = vpop.f32.mrb[0].mxu0
      %7639 = vmatprep.mubr.bf16.mxu0 0
      %7640 = vmatmul.mubr.bf16.gmra.mrb[0].mxu0 %v7399
      %v7641 = vpop.f32.mrb[0].mxu0
      %v7642 = vadd.f32 0.0, %v7641
      %v7643 = vpop.f32.mrb[0].mxu0
      %v7644 = vpop.f32.mrb[0].mxu0
      %v7645 = vadd.f32 0.0, %v7644
      %v7646 = vpop.f32.mrb[0].mxu0
      %7647 = vmatprep.mubr.bf16.mxu0 0
      %7648 = vmatmul.mubr.bf16.gmra.mrb[0].mxu0 %v7402
      %v7649 = vpop.f32.mrb[0].mxu0
      %v7650 = vadd.f32 0.0, %v7649
      %v7651 = vpop.f32.mrb[0].mxu0
      %v7652 = vpop.f32.mrb[0].mxu0
      %v7653 = vadd.f32 0.0, %v7652
      %v7654 = vpop.f32.mrb[0].mxu0
      %7655 = vmatprep.mubr.bf16.mxu0 0
      %7656 = vmatmul.mubr.bf16.gmra.mrb[0].mxu0 %v7405
      %v7657 = vpop.f32.mrb[0].mxu0
      %v7658 = vadd.f32 0.0, %v7657
      %v7659 = vpop.f32.mrb[0].mxu0
      %v7660 = vpop.f32.mrb[0].mxu0
      %v7661 = vadd.f32 0.0, %v7660
      %v7662 = vpop.f32.mrb[0].mxu0
      %7663 = vmatprep.mubr.bf16.mxu0 0
      %7664 = vmatmul.mubr.bf16.gmra.mrb[0].mxu0 %v7408
      %v7665 = vpop.f32.mrb[0].mxu0
      %v7666 = vadd.f32 0.0, %v7665
      %v7667 = vpop.f32.mrb[0].mxu0
      %v7668 = vpop.f32.mrb[0].mxu0
      %v7669 = vadd.f32 0.0, %v7668
      %v7670 = vpop.f32.mrb[0].mxu0
      %7671 = vmatprep.mubr.bf16.mxu0 0
      %7672 = vmatmul.mubr.bf16.gmra.mrb[0].mxu0 %v7411
      %v7673 = vpop.f32.mrb[0].mxu0
      %v7674 = vadd.f32 0.0, %v7673
      %v7675 = vpop.f32.mrb[0].mxu0
      %v7676 = vpop.f32.mrb[0].mxu0
      %v7677 = vadd.f32 0.0, %v7676
      %v7678 = vpop.f32.mrb[0].mxu0
      %7679 = vmatprep.mubr.bf16.mxu0 0
      %7680 = vmatmul.mubr.bf16.gmra.mrb[0].mxu0 %v7414
      %v7681 = vpop.f32.mrb[0].mxu0
      %v7682 = vadd.f32 0.0, %v7681
      %v7683 = vpop.f32.mrb[0].mxu0
      %v7684 = vpop.f32.mrb[0].mxu0
      %v7685 = vadd.f32 0.0, %v7684
      %v7686 = vpop.f32.mrb[0].mxu0
      %7687 = vmatprep.mubr.bf16.mxu0 0
      %7688 = vmatmul.mubr.bf16.gmra.mrb[0].mxu0 %v7417
      %v7689 = vpop.f32.mrb[0].mxu0
      %v7690 = vadd.f32 0.0, %v7689
      %v7691 = vpop.f32.mrb[0].mxu0
      %v7692 = vpop.f32.mrb[0].mxu0
      %v7693 = vadd.f32 0.0, %v7692
      %v7694 = vpop.f32.mrb[0].mxu0
      %7695 = vmatprep.mubr.bf16.mxu0 0
      %7696 = vmatmul.mubr.bf16.gmra.mrb[0].mxu0 %v7420
      %v7697 = vpop.f32.mrb[0].mxu0
      %v7698 = vadd.f32 0.0, %v7697
      %v7699 = vpop.f32.mrb[0].mxu0
      %v7700 = vpop.f32.mrb[0].mxu0
      %v7701 = vadd.f32 0.0, %v7700
      %v7702 = vpop.f32.mrb[0].mxu0
      %7703 = vmatprep.mubr.bf16.mxu0 0
      %7704 = vmatmul.mubr.bf16.gmra.mrb[0].mxu0 %v7423
      %v7705 = vpop.f32.mrb[0].mxu0
      %v7706 = vadd.f32 0.0, %v7705
      %v7707 = vpop.f32.mrb[0].mxu0
      %v7708 = vpop.f32.mrb[0].mxu0
      %v7709 = vadd.f32 0.0, %v7708
      %v7710 = vpop.f32.mrb[0].mxu0
      %7711 = vmatprep.mubr.bf16.mxu0 0
      %7712 = vmatmul.mubr.bf16.gmra.mrb[0].mxu0 %v7426
      %v7713 = vpop.f32.mrb[0].mxu0
      %v7714 = vadd.f32 0.0, %v7713
      %v7715 = vpop.f32.mrb[0].mxu0
      %v7716 = vpop.f32.mrb[0].mxu0
      %v7717 = vadd.f32 0.0, %v7716
      %v7718 = vpop.f32.mrb[0].mxu0
      %7719 = vmatprep.mubr.bf16.mxu0 0
      %7720 = vmatmul.mubr.bf16.gmra.mrb[0].mxu0 %v7429
      %v7721 = vpop.f32.mrb[0].mxu0
      %v7722 = vadd.f32 0.0, %v7721
      %v7723 = vpop.f32.mrb[0].mxu0
      %v7724 = vpop.f32.mrb[0].mxu0
      %v7725 = vadd.f32 0.0, %v7724
      %v7726 = vpop.f32.mrb[0].mxu0
      %7727 = vmatprep.mubr.bf16.mxu0 0
      %7728 = vmatmul.mubr.bf16.gmra.mrb[0].mxu0 %v7432
      %v7729 = vpop.f32.mrb[0].mxu0
      %v7730 = vadd.f32 0.0, %v7729
      %v7731 = vpop.f32.mrb[0].mxu0
      %v7732 = vpop.f32.mrb[0].mxu0
      %v7733 = vadd.f32 0.0, %v7732
      %v7734 = vpop.f32.mrb[0].mxu0
      %7735 = vmatprep.mubr.bf16.mxu0 0
      %7736 = vmatmul.mubr.bf16.gmra.mrb[0].mxu0 %v7435
      %v7737 = vpop.f32.mrb[0].mxu0
      %v7738 = vadd.f32 0.0, %v7737
      %v7739 = vpop.f32.mrb[0].mxu0
      %v7740 = vpop.f32.mrb[0].mxu0
      %v7741 = vadd.f32 0.0, %v7740
      %v7742 = vpop.f32.mrb[0].mxu0
      %7743 = vmatprep.mubr.bf16.mxu0 0
      %7744 = vmatmul.mubr.bf16.gmra.mrb[0].mxu0 %v7438
      %v7745 = vpop.f32.mrb[0].mxu0
      %v7746 = vadd.f32 0.0, %v7745
      %v7747 = vpop.f32.mrb[0].mxu0
      %v7748 = vpop.f32.mrb[0].mxu0
      %v7749 = vadd.f32 0.0, %v7748
      %v7750 = vpop.f32.mrb[0].mxu0
      %7751 = vmatprep.mubr.bf16.mxu0 0
      %7752 = vmatmul.mubr.bf16.gmra.mrb[0].mxu0 %v7441
      %v7753 = vpop.f32.mrb[0].mxu0
      %v7754 = vadd.f32 0.0, %v7753
      %v7755 = vpop.f32.mrb[0].mxu0
      %v7756 = vpop.f32.mrb[0].mxu0
      %v7757 = vadd.f32 0.0, %v7756
      %v7758 = vpop.f32.mrb[0].mxu0
      %7759 = vmatprep.mubr.bf16.mxu0 0
      %7760 = vmatmul.mubr.bf16.gmra.mrb[0].mxu0 %v7444
      %v7761 = vpop.f32.mrb[0].mxu0
      %v7762 = vadd.f32 0.0, %v7761
      %v7763 = vpop.f32.mrb[0].mxu0
      %v7764 = vpop.f32.mrb[0].mxu0
      %v7765 = vadd.f32 0.0, %v7764
      %v7766 = vpop.f32.mrb[0].mxu0
      %7767 = vmatprep.mubr.bf16.mxu0 0
      %7768 = vmatmul.mubr.bf16.gmra.mrb[0].mxu0 %v7447
      %v7769 = vpop.f32.mrb[0].mxu0
      %v7770 = vadd.f32 0.0, %v7769
      %v7771 = vpop.f32.mrb[0].mxu0
      %v7772 = vpop.f32.mrb[0].mxu0
      %v7773 = vadd.f32 0.0, %v7772
      %v7774 = vpop.f32.mrb[0].mxu0
      %7775 = vmatprep.mubr.bf16.mxu0 0
      %7776 = vmatmul.mubr.bf16.gmra.mrb[0].mxu0 %v7450
      %v7777 = vpop.f32.mrb[0].mxu0
      %v7778 = vadd.f32 0.0, %v7777
      %v7779 = vpop.f32.mrb[0].mxu0
      %v7780 = vpop.f32.mrb[0].mxu0
      %v7781 = vadd.f32 0.0, %v7780
      %v7782 = vpop.f32.mrb[0].mxu0
      %7783 = vmatprep.mubr.bf16.mxu0 0
      %7784 = vmatmul.mubr.bf16.gmra.mrb[0].mxu0 %v7453
      %v7785 = vpop.f32.mrb[0].mxu0
      %v7786 = vadd.f32 0.0, %v7785
      %v7787 = vpop.f32.mrb[0].mxu0
      %v7788 = vpop.f32.mrb[0].mxu0
      %v7789 = vadd.f32 0.0, %v7788
      %v7790 = vpop.f32.mrb[0].mxu0
      %7791 = vmatprep.mubr.bf16.mxu0 0
      %7792 = vmatmul.mubr.bf16.gmra.mrb[0].mxu0 %v7456
      %v7793 = vpop.f32.mrb[0].mxu0
      %v7794 = vadd.f32 0.0, %v7793
      %v7795 = vpop.f32.mrb[0].mxu0
      %v7796 = vpop.f32.mrb[0].mxu0
      %v7797 = vadd.f32 0.0, %v7796
      %v7798 = vpop.f32.mrb[0].mxu0
      %7799 = vmatprep.mubr.bf16.mxu0 0
      %7800 = vmatmul.mubr.bf16.gmra.mrb[0].mxu0 %v7459
      %v7801 = vpop.f32.mrb[0].mxu0
      %v7802 = vadd.f32 0.0, %v7801
      %v7803 = vpop.f32.mrb[0].mxu0
      %v7804 = vpop.f32.mrb[0].mxu0
      %v7805 = vadd.f32 0.0, %v7804
      %v7806 = vpop.f32.mrb[0].mxu0
      %7807 = vmatprep.mubr.bf16.mxu0 0
      %7808 = vmatmul.mubr.bf16.gmra.mrb[0].mxu0 %v7462
      %v7809 = vpop.f32.mrb[0].mxu0
      %v7810 = vadd.f32 0.0, %v7809
      %v7811 = vpop.f32.mrb[0].mxu0
      %v7812 = vpop.f32.mrb[0].mxu0
      %v7813 = vadd.f32 0.0, %v7812
      %v7814 = vpop.f32.mrb[0].mxu0
      %7815 = vmatprep.mubr.bf16.mxu0 0
      %7816 = vmatmul.mubr.bf16.gmra.mrb[0].mxu0 %v7465
      %v7817 = vpop.f32.mrb[0].mxu0
      %v7818 = vadd.f32 0.0, %v7817
      %v7819 = vpop.f32.mrb[0].mxu0
      %v7820 = vpop.f32.mrb[0].mxu0
      %v7821 = vadd.f32 0.0, %v7820
      %v7822 = vpop.f32.mrb[0].mxu0
      %7823 = vmatprep.mubr.bf16.mxu0 0
      %7824 = vmatmul.mubr.bf16.gmra.mrb[0].mxu0 %v7468
      %v7825 = vpop.f32.mrb[0].mxu0
      %v7826 = vadd.f32 0.0, %v7825
      %v7827 = vpop.f32.mrb[0].mxu0
      %v7828 = vpop.f32.mrb[0].mxu0
      %v7829 = vadd.f32 0.0, %v7828
      %v7830 = vpop.f32.mrb[0].mxu0
      %7831 = vmatprep.mubr.bf16.mxu0 0
      %7832 = vmatmul.mubr.bf16.gmra.mrb[0].mxu0 %v7471
      %v7833 = vpop.f32.mrb[0].mxu0
      %v7834 = vadd.f32 0.0, %v7833
      %v7835 = vpop.f32.mrb[0].mxu0
      %v7836 = vpop.f32.mrb[0].mxu0
      %v7837 = vadd.f32 0.0, %v7836
      %v7838 = vpop.f32.mrb[0].mxu0
      %7839 = vmatprep.mubr.bf16.mxu0 0
      %7840 = vmatmul.mubr.bf16.gmra.mrb[0].mxu0 %v7474
      %v7841 = vpop.f32.mrb[0].mxu0
      %v7842 = vadd.f32 0.0, %v7841
      %v7843 = vpop.f32.mrb[0].mxu0
      %v7844 = vpop.f32.mrb[0].mxu0
      %v7845 = vadd.f32 0.0, %v7844
      %v7846 = vpop.f32.mrb[0].mxu0
      %7847 = vmatprep.mubr.bf16.mxu0 0
      %7848 = vmatmul.mubr.bf16.gmra.mrb[0].mxu0 %v7477
      %v7849 = vpop.f32.mrb[0].mxu0
      %v7850 = vadd.f32 0.0, %v7849
      %v7851 = vpop.f32.mrb[0].mxu0
      %v7852 = vpop.f32.mrb[0].mxu0
      %v7853 = vadd.f32 0.0, %v7852
      %v7854 = vpop.f32.mrb[0].mxu0
      %7855 = vmatprep.mubr.bf16.mxu0 0
      %7856 = vmatmul.mubr.bf16.gmra.mrb[0].mxu0 %v7480
      %v7857 = vpop.f32.mrb[0].mxu0
      %v7858 = vadd.f32 0.0, %v7857
      %v7859 = vpop.f32.mrb[0].mxu0
      %v7860 = vpop.f32.mrb[0].mxu0
      %v7861 = vadd.f32 0.0, %v7860
      %v7862 = vpop.f32.mrb[0].mxu0
      %7863 = vmatprep.mubr.bf16.mxu0 0
      %7864 = vmatmul.mubr.bf16.gmra.mrb[0].mxu0 %v7483
      %v7865 = vpop.f32.mrb[0].mxu0
      %v7866 = vadd.f32 0.0, %v7865
      %v7867 = vpop.f32.mrb[0].mxu0
      %v7868 = vpop.f32.mrb[0].mxu0
      %v7869 = vadd.f32 0.0, %v7868
      %v7870 = vpop.f32.mrb[0].mxu0
      %7871 = vmatprep.mubr.bf16.mxu0 0
      %7872 = vmatmul.mubr.bf16.gmra.mrb[0].mxu0 %v7486
      %v7873 = vpop.f32.mrb[0].mxu0
      %v7874 = vadd.f32 0.0, %v7873
      %v7875 = vpop.f32.mrb[0].mxu0
      %v7876 = vpop.f32.mrb[0].mxu0
      %v7877 = vadd.f32 0.0, %v7876
      %v7878 = vpop.f32.mrb[0].mxu0
      %7879 = vmatprep.mubr.bf16.mxu0 0
      %7880 = vmatmul.mubr.bf16.gmra.mrb[0].mxu0 %v7489
      %v7881 = vpop.f32.mrb[0].mxu0
      %v7882 = vadd.f32 0.0, %v7881
      %v7883 = vpop.f32.mrb[0].mxu0
      %v7884 = vpop.f32.mrb[0].mxu0
      %v7885 = vadd.f32 0.0, %v7884
      %v7886 = vpop.f32.mrb[0].mxu0
      %7887 = vmatprep.mubr.bf16.mxu0 0
      %7888 = vmatmul.mubr.bf16.gmra.mrb[0].mxu0 %v7492
      %v7889 = vpop.f32.mrb[0].mxu0
      %v7890 = vadd.f32 0.0, %v7889
      %v7891 = vpop.f32.mrb[0].mxu0
      %v7892 = vpop.f32.mrb[0].mxu0
      %v7893 = vadd.f32 0.0, %v7892
      %v7894 = vpop.f32.mrb[0].mxu0
      %7895 = vmatprep.mubr.bf16.mxu0 0
      %7896 = vmatmul.mubr.bf16.gmra.mrb[0].mxu0 %v7495
      %v7897 = vpop.f32.mrb[0].mxu0
      %v7898 = vadd.f32 0.0, %v7897
      %v7899 = vpop.f32.mrb[0].mxu0
      %v7900 = vpop.f32.mrb[0].mxu0
      %v7901 = vadd.f32 0.0, %v7900
      %v7902 = vpop.f32.mrb[0].mxu0
      %7903 = vmatprep.mubr.bf16.mxu0 0
      %7904 = vmatmul.mubr.bf16.gmra.mrb[0].mxu0 %v7498
      %v7905 = vpop.f32.mrb[0].mxu0
      %v7906 = vadd.f32 0.0, %v7905
      %v7907 = vpop.f32.mrb[0].mxu0
      %v7908 = vpop.f32.mrb[0].mxu0
      %v7909 = vadd.f32 0.0, %v7908
      %v7910 = vpop.f32.mrb[0].mxu0
      %7911 = vmatprep.mubr.bf16.mxu0 0
      %7912 = vmatmul.mubr.bf16.gmra.mrb[0].mxu0 %v7501
      %v7913 = vpop.f32.mrb[0].mxu0
      %v7914 = vadd.f32 0.0, %v7913
      %v7915 = vpop.f32.mrb[0].mxu0
      %v7916 = vpop.f32.mrb[0].mxu0
      %v7917 = vadd.f32 0.0, %v7916
      %v7918 = vpop.f32.mrb[0].mxu0
      %7919 = vdwg.mxu0
      %v7920 = vmul.f32 %v7538, %v2802
      %v7921 = vmul.f32 %v7541, %v2802
      %v7922 = vmul.f32 %v7546, %v2802
      %v7923 = vmul.f32 %v7549, %v2802
      %v7924 = vmul.f32 %v7554, %v2802
      %v7925 = vmul.f32 %v7557, %v2802
      %v7926 = vmul.f32 %v7562, %v2802
      %v7927 = vmul.f32 %v7565, %v2802
      %v7928 = vmul.f32 %v7570, %v2806
      %v7929 = vmul.f32 %v7573, %v2806
      %v7930 = vmul.f32 %v7578, %v2806
      %v7931 = vmul.f32 %v7581, %v2806
      %v7932 = vmul.f32 %v7586, %v2806
      %v7933 = vmul.f32 %v7589, %v2806
      %v7934 = vmul.f32 %v7594, %v2806
      %v7935 = vmul.f32 %v7597, %v2806
      %v7936 = vmul.f32 %v7602, %v2810
      %v7937 = vmul.f32 %v7605, %v2810
      %v7938 = vmul.f32 %v7610, %v2810
      %v7939 = vmul.f32 %v7613, %v2810
      %v7940 = vmul.f32 %v7618, %v2810
      %v7941 = vmul.f32 %v7621, %v2810
      %v7942 = vmul.f32 %v7626, %v2810
      %v7943 = vmul.f32 %v7629, %v2810
      %v7944 = vmul.f32 %v7634, %v2814
      %v7945 = vmul.f32 %v7637, %v2814
      %v7946 = vmul.f32 %v7642, %v2814
      %v7947 = vmul.f32 %v7645, %v2814
      %v7948 = vmul.f32 %v7650, %v2814
      %v7949 = vmul.f32 %v7653, %v2814
      %v7950 = vmul.f32 %v7658, %v2814
      %v7951 = vmul.f32 %v7661, %v2814
      %v7952 = vmul.f32 %v7666, %v2818
      %v7953 = vmul.f32 %v7669, %v2818
      %v7954 = vmul.f32 %v7674, %v2818
      %v7955 = vmul.f32 %v7677, %v2818
      %v7956 = vmul.f32 %v7682, %v2818
      %v7957 = vmul.f32 %v7685, %v2818
      %v7958 = vmul.f32 %v7690, %v2818
      %v7959 = vmul.f32 %v7693, %v2818
      %v7960 = vmul.f32 %v7698, %v2822
      %v7961 = vmul.f32 %v7701, %v2822
      %v7962 = vmul.f32 %v7706, %v2822
      %v7963 = vmul.f32 %v7709, %v2822
      %v7964 = vmul.f32 %v7714, %v2822
      %v7965 = vmul.f32 %v7717, %v2822
      %v7966 = vmul.f32 %v7722, %v2822
      %v7967 = vmul.f32 %v7725, %v2822
      %v7968 = vmul.f32 %v7730, %v2826
      %v7969 = vmul.f32 %v7733, %v2826
      %v7970 = vmul.f32 %v7738, %v2826
      %v7971 = vmul.f32 %v7741, %v2826
      %v7972 = vmul.f32 %v7746, %v2826
      %v7973 = vmul.f32 %v7749, %v2826
      %v7974 = vmul.f32 %v7754, %v2826
      %v7975 = vmul.f32 %v7757, %v2826
      %v7976 = vmul.f32 %v7762, %v2830
      %v7977 = vmul.f32 %v7765, %v2830
      %v7978 = vmul.f32 %v7770, %v2830
      %v7979 = vmul.f32 %v7773, %v2830
      %v7980 = vmul.f32 %v7778, %v2830
      %v7981 = vmul.f32 %v7781, %v2830
      %v7982 = vmul.f32 %v7786, %v2830
      %v7983 = vmul.f32 %v7789, %v2830
      %v7984 = vmul.f32 %v7794, %v2834
      %v7985 = vmul.f32 %v7797, %v2834
      %v7986 = vmul.f32 %v7802, %v2834
      %v7987 = vmul.f32 %v7805, %v2834
      %v7988 = vmul.f32 %v7810, %v2834
      %v7989 = vmul.f32 %v7813, %v2834
      %v7990 = vmul.f32 %v7818, %v2834
      %v7991 = vmul.f32 %v7821, %v2834
      %v7992 = vmul.f32 %v7826, %v2838
      %v7993 = vmul.f32 %v7829, %v2838
      %v7994 = vmul.f32 %v7834, %v2838
      %v7995 = vmul.f32 %v7837, %v2838
      %v7996 = vmul.f32 %v7842, %v2838
      %v7997 = vmul.f32 %v7845, %v2838
      %v7998 = vmul.f32 %v7850, %v2838
      %v7999 = vmul.f32 %v7853, %v2838
      %v8000 = vmul.f32 %v7858, %v2842
      %v8001 = vmul.f32 %v7861, %v2842
      %v8002 = vmul.f32 %v7866, %v2842
      %v8003 = vmul.f32 %v7869, %v2842
      %v8004 = vmul.f32 %v7874, %v2842
      %v8005 = vmul.f32 %v7877, %v2842
      %v8006 = vmul.f32 %v7882, %v2842
      %v8007 = vmul.f32 %v7885, %v2842
      %v8008 = vmul.f32 %v7890, %v2846
      %v8009 = vmul.f32 %v7893, %v2846
      %v8010 = vmul.f32 %v7898, %v2846
      %v8011 = vmul.f32 %v7901, %v2846
      %v8012 = vmul.f32 %v7906, %v2846
      %v8013 = vmul.f32 %v7909, %v2846
      %v8014 = vmul.f32 %v7914, %v2846
      %v8015 = vmul.f32 %v7917, %v2846
      %v8016 = vsel %vm576, %v7920, 0.0
      %v8017 = vsel %vm576, %v7928, 0.0
      %v8018 = vadd.f32 %v8016, %v8017
      %v8019 = vsel %vm576, %v7936, 0.0
      %v8020 = vadd.f32 %v8018, %v8019
      %v8021 = vsel %vm576, %v7944, 0.0
      %v8022 = vadd.f32 %v8020, %v8021
      %v8023 = vsel %vm576, %v7952, 0.0
      %v8024 = vadd.f32 %v8022, %v8023
      %v8025 = vsel %vm576, %v7960, 0.0
      %v8026 = vadd.f32 %v8024, %v8025
      %v8027 = vsel %vm576, %v7968, 0.0
      %v8028 = vadd.f32 %v8026, %v8027
      %v8029 = vsel %vm576, %v7976, 0.0
      %v8030 = vadd.f32 %v8028, %v8029
      %v8031 = vsel %vm576, %v7984, 0.0
      %v8032 = vadd.f32 %v8030, %v8031
      %v8033 = vsel %vm576, %v7992, 0.0
      %v8034 = vadd.f32 %v8032, %v8033
      %v8035 = vsel %vm576, %v8000, 0.0
      %v8036 = vadd.f32 %v8034, %v8035
      %v8037 = vsel %vm576, %v8008, 0.0
      %v8038 = vadd.f32 %v8036, %v8037
      %v8039 = vsel %vm576, %v7921, 0.0
      %v8040 = vsel %vm576, %v7929, 0.0
      %v8041 = vadd.f32 %v8039, %v8040
      %v8042 = vsel %vm576, %v7937, 0.0
      %v8043 = vadd.f32 %v8041, %v8042
      %v8044 = vsel %vm576, %v7945, 0.0
      %v8045 = vadd.f32 %v8043, %v8044
      %v8046 = vsel %vm576, %v7953, 0.0
      %v8047 = vadd.f32 %v8045, %v8046
      %v8048 = vsel %vm576, %v7961, 0.0
      %v8049 = vadd.f32 %v8047, %v8048
      %v8050 = vsel %vm576, %v7969, 0.0
      %v8051 = vadd.f32 %v8049, %v8050
      %v8052 = vsel %vm576, %v7977, 0.0
      %v8053 = vadd.f32 %v8051, %v8052
      %v8054 = vsel %vm576, %v7985, 0.0
      %v8055 = vadd.f32 %v8053, %v8054
      %v8056 = vsel %vm576, %v7993, 0.0
      %v8057 = vadd.f32 %v8055, %v8056
      %v8058 = vsel %vm576, %v8001, 0.0
      %v8059 = vadd.f32 %v8057, %v8058
      %v8060 = vsel %vm576, %v8009, 0.0
      %v8061 = vadd.f32 %v8059, %v8060
      %v8062 = vsel %vm576, %v7922, 0.0
      %v8063 = vsel %vm576, %v7930, 0.0
      %v8064 = vadd.f32 %v8062, %v8063
      %v8065 = vsel %vm576, %v7938, 0.0
      %v8066 = vadd.f32 %v8064, %v8065
      %v8067 = vsel %vm576, %v7946, 0.0
      %v8068 = vadd.f32 %v8066, %v8067
      %v8069 = vsel %vm576, %v7954, 0.0
      %v8070 = vadd.f32 %v8068, %v8069
      %v8071 = vsel %vm576, %v7962, 0.0
      %v8072 = vadd.f32 %v8070, %v8071
      %v8073 = vsel %vm576, %v7970, 0.0
      %v8074 = vadd.f32 %v8072, %v8073
      %v8075 = vsel %vm576, %v7978, 0.0
      %v8076 = vadd.f32 %v8074, %v8075
      %v8077 = vsel %vm576, %v7986, 0.0
      %v8078 = vadd.f32 %v8076, %v8077
      %v8079 = vsel %vm576, %v7994, 0.0
      %v8080 = vadd.f32 %v8078, %v8079
      %v8081 = vsel %vm576, %v8002, 0.0
      %v8082 = vadd.f32 %v8080, %v8081
      %v8083 = vsel %vm576, %v8010, 0.0
      %v8084 = vadd.f32 %v8082, %v8083
      %v8085 = vsel %vm576, %v7923, 0.0
      %v8086 = vsel %vm576, %v7931, 0.0
      %v8087 = vadd.f32 %v8085, %v8086
      %v8088 = vsel %vm576, %v7939, 0.0
      %v8089 = vadd.f32 %v8087, %v8088
      %v8090 = vsel %vm576, %v7947, 0.0
      %v8091 = vadd.f32 %v8089, %v8090
      %v8092 = vsel %vm576, %v7955, 0.0
      %v8093 = vadd.f32 %v8091, %v8092
      %v8094 = vsel %vm576, %v7963, 0.0
      %v8095 = vadd.f32 %v8093, %v8094
      %v8096 = vsel %vm576, %v7971, 0.0
      %v8097 = vadd.f32 %v8095, %v8096
      %v8098 = vsel %vm576, %v7979, 0.0
      %v8099 = vadd.f32 %v8097, %v8098
      %v8100 = vsel %vm576, %v7987, 0.0
      %v8101 = vadd.f32 %v8099, %v8100
      %v8102 = vsel %vm576, %v7995, 0.0
      %v8103 = vadd.f32 %v8101, %v8102
      %v8104 = vsel %vm576, %v8003, 0.0
      %v8105 = vadd.f32 %v8103, %v8104
      %v8106 = vsel %vm576, %v8011, 0.0
      %v8107 = vadd.f32 %v8105, %v8106
      %v8108 = vsel %vm576, %v7924, 0.0
      %v8109 = vsel %vm576, %v7932, 0.0
      %v8110 = vadd.f32 %v8108, %v8109
      %v8111 = vsel %vm576, %v7940, 0.0
      %v8112 = vadd.f32 %v8110, %v8111
      %v8113 = vsel %vm576, %v7948, 0.0
      %v8114 = vadd.f32 %v8112, %v8113
      %v8115 = vsel %vm576, %v7956, 0.0
      %v8116 = vadd.f32 %v8114, %v8115
      %v8117 = vsel %vm576, %v7964, 0.0
      %v8118 = vadd.f32 %v8116, %v8117
      %v8119 = vsel %vm576, %v7972, 0.0
      %v8120 = vadd.f32 %v8118, %v8119
      %v8121 = vsel %vm576, %v7980, 0.0
      %v8122 = vadd.f32 %v8120, %v8121
      %v8123 = vsel %vm576, %v7988, 0.0
      %v8124 = vadd.f32 %v8122, %v8123
      %v8125 = vsel %vm576, %v7996, 0.0
      %v8126 = vadd.f32 %v8124, %v8125
      %v8127 = vsel %vm576, %v8004, 0.0
      %v8128 = vadd.f32 %v8126, %v8127
      %v8129 = vsel %vm576, %v8012, 0.0
      %v8130 = vadd.f32 %v8128, %v8129
      %v8131 = vsel %vm576, %v7925, 0.0
      %v8132 = vsel %vm576, %v7933, 0.0
      %v8133 = vadd.f32 %v8131, %v8132
      %v8134 = vsel %vm576, %v7941, 0.0
      %v8135 = vadd.f32 %v8133, %v8134
      %v8136 = vsel %vm576, %v7949, 0.0
      %v8137 = vadd.f32 %v8135, %v8136
      %v8138 = vsel %vm576, %v7957, 0.0
      %v8139 = vadd.f32 %v8137, %v8138
      %v8140 = vsel %vm576, %v7965, 0.0
      %v8141 = vadd.f32 %v8139, %v8140
      %v8142 = vsel %vm576, %v7973, 0.0
      %v8143 = vadd.f32 %v8141, %v8142
      %v8144 = vsel %vm576, %v7981, 0.0
      %v8145 = vadd.f32 %v8143, %v8144
      %v8146 = vsel %vm576, %v7989, 0.0
      %v8147 = vadd.f32 %v8145, %v8146
      %v8148 = vsel %vm576, %v7997, 0.0
      %v8149 = vadd.f32 %v8147, %v8148
      %v8150 = vsel %vm576, %v8005, 0.0
      %v8151 = vadd.f32 %v8149, %v8150
      %v8152 = vsel %vm576, %v8013, 0.0
      %v8153 = vadd.f32 %v8151, %v8152
      %v8154 = vsel %vm576, %v7926, 0.0
      %v8155 = vsel %vm576, %v7934, 0.0
      %v8156 = vadd.f32 %v8154, %v8155
      %v8157 = vsel %vm576, %v7942, 0.0
      %v8158 = vadd.f32 %v8156, %v8157
      %v8159 = vsel %vm576, %v7950, 0.0
      %v8160 = vadd.f32 %v8158, %v8159
      %v8161 = vsel %vm576, %v7958, 0.0
      %v8162 = vadd.f32 %v8160, %v8161
      %v8163 = vsel %vm576, %v7966, 0.0
      %v8164 = vadd.f32 %v8162, %v8163
      %v8165 = vsel %vm576, %v7974, 0.0
      %v8166 = vadd.f32 %v8164, %v8165
      %v8167 = vsel %vm576, %v7982, 0.0
      %v8168 = vadd.f32 %v8166, %v8167
      %v8169 = vsel %vm576, %v7990, 0.0
      %v8170 = vadd.f32 %v8168, %v8169
      %v8171 = vsel %vm576, %v7998, 0.0
      %v8172 = vadd.f32 %v8170, %v8171
      %v8173 = vsel %vm576, %v8006, 0.0
      %v8174 = vadd.f32 %v8172, %v8173
      %v8175 = vsel %vm576, %v8014, 0.0
      %v8176 = vadd.f32 %v8174, %v8175
      %v8177 = vsel %vm576, %v7927, 0.0
      %v8178 = vsel %vm576, %v7935, 0.0
      %v8179 = vadd.f32 %v8177, %v8178
      %v8180 = vsel %vm576, %v7943, 0.0
      %v8181 = vadd.f32 %v8179, %v8180
      %v8182 = vsel %vm576, %v7951, 0.0
      %v8183 = vadd.f32 %v8181, %v8182
      %v8184 = vsel %vm576, %v7959, 0.0
      %v8185 = vadd.f32 %v8183, %v8184
      %v8186 = vsel %vm576, %v7967, 0.0
      %v8187 = vadd.f32 %v8185, %v8186
      %v8188 = vsel %vm576, %v7975, 0.0
      %v8189 = vadd.f32 %v8187, %v8188
      %v8190 = vsel %vm576, %v7983, 0.0
      %v8191 = vadd.f32 %v8189, %v8190
      %v8192 = vsel %vm576, %v7991, 0.0
      %v8193 = vadd.f32 %v8191, %v8192
      %v8194 = vsel %vm576, %v7999, 0.0
      %v8195 = vadd.f32 %v8193, %v8194
      %v8196 = vsel %vm576, %v8007, 0.0
      %v8197 = vadd.f32 %v8195, %v8196
      %v8198 = vsel %vm576, %v8015, 0.0
      %v8199 = vadd.f32 %v8197, %v8198
      %v8200 = vadd.f32 %v5376, %v2706
      %v8201 = vadd.f32 %v5399, %v2707
      %v8202 = vadd.f32 %v5422, %v2708
      %v8203 = vadd.f32 %v5445, %v2709
      %v8204 = vadd.f32 %v5468, %v2710
      %v8205 = vadd.f32 %v5491, %v2711
      %v8206 = vadd.f32 %v5514, %v2712
      %v8207 = vadd.f32 %v5537, %v2713
      %v8208 = vadd.f32 %v8038, %v2714
      %v8209 = vadd.f32 %v8061, %v2715
      %v8210 = vadd.f32 %v8084, %v2716
      %v8211 = vadd.f32 %v8107, %v2717
      %v8212 = vadd.f32 %v8130, %v2718
      %v8213 = vadd.f32 %v8153, %v2719
      %v8214 = vadd.f32 %v8176, %v2720
      %v8215 = vadd.f32 %v8199, %v2721
      %v8216 = vpack.c.bf16 %v8201, %v8200
      %v8217 = vpack.c.bf16 %v8203, %v8202
      %v8218 = vpack.c.bf16 %v8205, %v8204
      %v8219 = vpack.c.bf16 %v8207, %v8206
      %v8220 = vpack.c.bf16 %v8209, %v8208
      %v8221 = vpack.c.bf16 %v8211, %v8210
      %v8222 = vpack.c.bf16 %v8213, %v8212
      %v8223 = vpack.c.bf16 %v8215, %v8214
      %v8224 = vld [vmem:[%s9] sm:$0xf]
      %v8225 = vld [vmem:[%s9 + $0x4] sm:$0xf]
      %v8226 = vld [vmem:[%s9 + $0x8] sm:$0xf]
      %v8227 = vld [vmem:[%s9 + $0xc] sm:$0xf]
      %v8228 = vld [vmem:[%s9 + $0x10] sm:$0xf]
      %v8229 = vld [vmem:[%s9 + $0x14] sm:$0xf]
      %v8230 = vld [vmem:[%s10] sm:$0x1]
      %v8232 = vlaneseq
      %v8233 = vshrl.u32 %v8232, 7
      %v8234 = vsub.s32 0, %v8233
      %v8235 = vrot.slane %v8230, %v8234
      %v8243 = vunpack.c.l.b16 %v8224
      %v8244 = vunpack.c.l.b16 %v8225
      %v8245 = vunpack.c.l.b16 %v8226
      %v8246 = vunpack.c.l.b16 %v8227
      %v8247 = vunpack.c.l.b16 %v8228
      %v8248 = vunpack.c.l.b16 %v8229
      %v8249 = vpack.c.b16 %v8244, %v8243
      %v8250 = vpack.c.b16 %v8246, %v8245
      %v8251 = vpack.c.b16 %v8248, %v8247
      %v8256 = vsel %vm576, %v8216, 0
      %v8259 = vsel %vm576, %v8217, 0
      %v8262 = vsel %vm576, %v8218, 0
      %v8265 = vsel %vm576, %v8219, 0
      %v8268 = vsel %vm576, %v8220, 0
      %v8271 = vsel %vm576, %v8221, 0
      %v8274 = vsel %vm576, %v8222, 0
      %v8277 = vsel %vm576, %v8223, 0
      %8279 = vmatprep.subr.bf16.mxu0 0
      %8280 = vmatpush1.bf16.msra.mxu0 %v8249
      %8281 = vmatprep.subr.bf16.mxu0 0
      %8282 = vmatpush1.bf16.msra.mxu0 %v8250
      %8283 = vmatprep.subr.bf16.mxu0 0
      %8284 = vmatpush1.bf16.msra.mxu0 %v8251
      %8285 = vmatprep.subr.bf16.mxu0 0
      %8286 = vmatpush1.bf16.msra.mxu0 0
      %8287 = vmatprep.subr.bf16.mxu0 0
      %8288 = vmatpush1.bf16.msra.mxu0 0
      %8289 = vmatprep.subr.bf16.mxu0 0
      %8290 = vmatpush1.bf16.msra.mxu0 0
      %8291 = vmatprep.subr.bf16.mxu0 0
      %8292 = vmatpush1.bf16.msra.mxu0 0
      %8293 = vmatprep.subr.bf16.mxu0 0
      %8294 = vmatpush1.bf16.msra.mxu0 0
      %8295 = vmatprep.subr.bf16.mxu0 0
      %8296 = vmatpush1.bf16.msra.mxu0 0
      %8297 = vmatprep.subr.bf16.mxu0 0
      %8298 = vmatpush1.bf16.msra.mxu0 0
      %8299 = vmatprep.subr.bf16.mxu0 0
      %8300 = vmatpush1.bf16.msra.mxu0 0
      %8301 = vmatprep.subr.bf16.mxu0 0
      %8302 = vmatpush1.bf16.msra.mxu0 0
      %8303 = vmatprep.subr.bf16.mxu0 0
      %8304 = vmatpush1.bf16.msra.mxu0 0
      %8305 = vmatprep.subr.bf16.mxu0 0
      %8306 = vmatpush1.bf16.msra.mxu0 0
      %8307 = vmatprep.subr.bf16.mxu0 0
      %8308 = vmatpush1.bf16.msra.mxu0 0
      %8309 = vmatprep.subr.bf16.mxu0 0
      %8310 = vmatpush1.bf16.msra.mxu0 0
      %8311 = vmatprep.mubr.bf16.mxu0 0
      %8312 = vmatmul.mubr.bf16.gmra.mrb[0].mxu0 %v8256
      %v8313 = vpop.f32.mrb[0].mxu0
      %v8314 = vadd.f32 %v8235, %v8313
      %v8315 = vpop.f32.mrb[0].mxu0
      %v8316 = vpop.f32.mrb[0].mxu0
      %v8317 = vadd.f32 %v8235, %v8316
      %v8318 = vpop.f32.mrb[0].mxu0
      %8319 = vmatprep.mubr.bf16.mxu0 0
      %8320 = vmatmul.mubr.bf16.gmra.mrb[0].mxu0 %v8259
      %v8321 = vpop.f32.mrb[0].mxu0
      %v8322 = vadd.f32 %v8235, %v8321
      %v8323 = vpop.f32.mrb[0].mxu0
      %v8324 = vpop.f32.mrb[0].mxu0
      %v8325 = vadd.f32 %v8235, %v8324
      %v8326 = vpop.f32.mrb[0].mxu0
      %8327 = vmatprep.mubr.bf16.mxu0 0
      %8328 = vmatmul.mubr.bf16.gmra.mrb[0].mxu0 %v8262
      %v8329 = vpop.f32.mrb[0].mxu0
      %v8330 = vadd.f32 %v8235, %v8329
      %v8331 = vpop.f32.mrb[0].mxu0
      %v8332 = vpop.f32.mrb[0].mxu0
      %v8333 = vadd.f32 %v8235, %v8332
      %v8334 = vpop.f32.mrb[0].mxu0
      %8335 = vmatprep.mubr.bf16.mxu0 0
      %8336 = vmatmul.mubr.bf16.gmra.mrb[0].mxu0 %v8265
      %v8337 = vpop.f32.mrb[0].mxu0
      %v8338 = vadd.f32 %v8235, %v8337
      %v8339 = vpop.f32.mrb[0].mxu0
      %v8340 = vpop.f32.mrb[0].mxu0
      %v8341 = vadd.f32 %v8235, %v8340
      %v8342 = vpop.f32.mrb[0].mxu0
      %8343 = vmatprep.mubr.bf16.mxu0 0
      %8344 = vmatmul.mubr.bf16.gmra.mrb[0].mxu0 %v8268
      %v8345 = vpop.f32.mrb[0].mxu0
      %v8346 = vadd.f32 %v8235, %v8345
      %v8347 = vpop.f32.mrb[0].mxu0
      %v8348 = vpop.f32.mrb[0].mxu0
      %v8349 = vadd.f32 %v8235, %v8348
      %v8350 = vpop.f32.mrb[0].mxu0
      %8351 = vmatprep.mubr.bf16.mxu0 0
      %8352 = vmatmul.mubr.bf16.gmra.mrb[0].mxu0 %v8271
      %v8353 = vpop.f32.mrb[0].mxu0
      %v8354 = vadd.f32 %v8235, %v8353
      %v8355 = vpop.f32.mrb[0].mxu0
      %v8356 = vpop.f32.mrb[0].mxu0
      %v8357 = vadd.f32 %v8235, %v8356
      %v8358 = vpop.f32.mrb[0].mxu0
      %8359 = vmatprep.mubr.bf16.mxu0 0
      %8360 = vmatmul.mubr.bf16.gmra.mrb[0].mxu0 %v8274
      %v8361 = vpop.f32.mrb[0].mxu0
      %v8362 = vadd.f32 %v8235, %v8361
      %v8363 = vpop.f32.mrb[0].mxu0
      %v8364 = vpop.f32.mrb[0].mxu0
      %v8365 = vadd.f32 %v8235, %v8364
      %v8366 = vpop.f32.mrb[0].mxu0
      %8367 = vmatprep.mubr.bf16.mxu0 0
      %8368 = vmatmul.mubr.bf16.gmra.mrb[0].mxu0 %v8277
      %v8369 = vpop.f32.mrb[0].mxu0
      %v8370 = vadd.f32 %v8235, %v8369
      %v8371 = vpop.f32.mrb[0].mxu0
      %v8372 = vpop.f32.mrb[0].mxu0
      %v8373 = vadd.f32 %v8235, %v8372
      %v8374 = vpop.f32.mrb[0].mxu0
      %8375 = vdwg.mxu0
      %v8376 = vadd.f32 %v558, %v8314
      %v8377 = vadd.f32 %v559, %v8317
      %v8378 = vadd.f32 %v560, %v8322
      %v8379 = vadd.f32 %v561, %v8325
      %v8380 = vadd.f32 %v562, %v8330
      %v8381 = vadd.f32 %v563, %v8333
      %v8382 = vadd.f32 %v564, %v8338
      %v8383 = vadd.f32 %v565, %v8341
      %v8384 = vadd.f32 %v566, %v8346
      %v8385 = vadd.f32 %v567, %v8349
      %v8386 = vadd.f32 %v568, %v8354
      %v8387 = vadd.f32 %v569, %v8357
      %v8388 = vadd.f32 %v570, %v8362
      %v8389 = vadd.f32 %v571, %v8365
      %v8390 = vadd.f32 %v572, %v8370
      %v8391 = vadd.f32 %v573, %v8373
      %v8392 = vld [vmem:[%s11] sm:$0x1]
      %v8393 = vld [vmem:[%s12] sm:$0x1]
      %v8394 = vsel %vm576, %v8376, 0.0
      %8395 = vadd.xlane.f32.xlu0 %v8394
      %v8396 = vpop.xlane.xlu0 %8395
      %v8397 = vsel %vm576, %v8377, 0.0
      %8398 = vadd.xlane.f32.xlu0 %v8397
      %v8399 = vpop.xlane.xlu0 %8398
      %v8400 = vsel %vm576, %v8378, 0.0
      %8401 = vadd.xlane.f32.xlu0 %v8400
      %v8402 = vpop.xlane.xlu0 %8401
      %v8403 = vsel %vm576, %v8379, 0.0
      %8404 = vadd.xlane.f32.xlu0 %v8403
      %v8405 = vpop.xlane.xlu0 %8404
      %v8406 = vsel %vm576, %v8380, 0.0
      %8407 = vadd.xlane.f32.xlu0 %v8406
      %v8408 = vpop.xlane.xlu0 %8407
      %v8409 = vsel %vm576, %v8381, 0.0
      %8410 = vadd.xlane.f32.xlu0 %v8409
      %v8411 = vpop.xlane.xlu0 %8410
      %v8412 = vsel %vm576, %v8382, 0.0
      %8413 = vadd.xlane.f32.xlu0 %v8412
      %v8414 = vpop.xlane.xlu0 %8413
      %v8415 = vsel %vm576, %v8383, 0.0
      %8416 = vadd.xlane.f32.xlu0 %v8415
      %v8417 = vpop.xlane.xlu0 %8416
      %v8418 = vsel %vm576, %v8384, 0.0
      %8419 = vadd.xlane.f32.xlu0 %v8418
      %v8420 = vpop.xlane.xlu0 %8419
      %v8421 = vsel %vm576, %v8385, 0.0
      %8422 = vadd.xlane.f32.xlu0 %v8421
      %v8423 = vpop.xlane.xlu0 %8422
      %v8424 = vsel %vm576, %v8386, 0.0
      %8425 = vadd.xlane.f32.xlu0 %v8424
      %v8426 = vpop.xlane.xlu0 %8425
      %v8427 = vsel %vm576, %v8387, 0.0
      %8428 = vadd.xlane.f32.xlu0 %v8427
      %v8429 = vpop.xlane.xlu0 %8428
      %v8430 = vsel %vm576, %v8388, 0.0
      %8431 = vadd.xlane.f32.xlu0 %v8430
      %v8432 = vpop.xlane.xlu0 %8431
      %v8433 = vsel %vm576, %v8389, 0.0
      %8434 = vadd.xlane.f32.xlu0 %v8433
      %v8435 = vpop.xlane.xlu0 %8434
      %v8436 = vsel %vm576, %v8390, 0.0
      %8437 = vadd.xlane.f32.xlu0 %v8436
      %v8438 = vpop.xlane.xlu0 %8437
      %v8439 = vsel %vm576, %v8391, 0.0
      %8440 = vadd.xlane.f32.xlu0 %v8439
      %v8441 = vpop.xlane.xlu0 %8440
      %v8442 = vmul.f32 %v8396, %v625
      %v8443 = vmul.f32 %v8399, %v625
      %v8444 = vmul.f32 %v8402, %v625
      %v8445 = vmul.f32 %v8405, %v625
      %v8446 = vmul.f32 %v8408, %v625
      %v8447 = vmul.f32 %v8411, %v625
      %v8448 = vmul.f32 %v8414, %v625
      %v8449 = vmul.f32 %v8417, %v625
      %v8450 = vmul.f32 %v8420, %v625
      %v8451 = vmul.f32 %v8423, %v625
      %v8452 = vmul.f32 %v8426, %v625
      %v8453 = vmul.f32 %v8429, %v625
      %v8454 = vmul.f32 %v8432, %v625
      %v8455 = vmul.f32 %v8435, %v625
      %v8456 = vmul.f32 %v8438, %v625
      %v8457 = vmul.f32 %v8441, %v625
      %v8458 = vsub.f32 %v8376, %v8442
      %v8459 = vsub.f32 %v8377, %v8443
      %v8460 = vsub.f32 %v8378, %v8444
      %v8461 = vsub.f32 %v8379, %v8445
      %v8462 = vsub.f32 %v8380, %v8446
      %v8463 = vsub.f32 %v8381, %v8447
      %v8464 = vsub.f32 %v8382, %v8448
      %v8465 = vsub.f32 %v8383, %v8449
      %v8466 = vsub.f32 %v8384, %v8450
      %v8467 = vsub.f32 %v8385, %v8451
      %v8468 = vsub.f32 %v8386, %v8452
      %v8469 = vsub.f32 %v8387, %v8453
      %v8470 = vsub.f32 %v8388, %v8454
      %v8471 = vsub.f32 %v8389, %v8455
      %v8472 = vsub.f32 %v8390, %v8456
      %v8473 = vsub.f32 %v8391, %v8457
      %v8474 = vmul.f32 %v8458, %v8458
      %v8475 = vmul.f32 %v8459, %v8459
      %v8476 = vmul.f32 %v8460, %v8460
      %v8477 = vmul.f32 %v8461, %v8461
      %v8478 = vmul.f32 %v8462, %v8462
      %v8479 = vmul.f32 %v8463, %v8463
      %v8480 = vmul.f32 %v8464, %v8464
      %v8481 = vmul.f32 %v8465, %v8465
      %v8482 = vmul.f32 %v8466, %v8466
      %v8483 = vmul.f32 %v8467, %v8467
      %v8484 = vmul.f32 %v8468, %v8468
      %v8485 = vmul.f32 %v8469, %v8469
      %v8486 = vmul.f32 %v8470, %v8470
      %v8487 = vmul.f32 %v8471, %v8471
      %v8488 = vmul.f32 %v8472, %v8472
      %v8489 = vmul.f32 %v8473, %v8473
      %v8490 = vsel %vm576, %v8474, 0.0
      %8491 = vadd.xlane.f32.xlu0 %v8490
      %v8492 = vpop.xlane.xlu0 %8491
      %v8493 = vsel %vm576, %v8475, 0.0
      %8494 = vadd.xlane.f32.xlu0 %v8493
      %v8495 = vpop.xlane.xlu0 %8494
      %v8496 = vsel %vm576, %v8476, 0.0
      %8497 = vadd.xlane.f32.xlu0 %v8496
      %v8498 = vpop.xlane.xlu0 %8497
      %v8499 = vsel %vm576, %v8477, 0.0
      %8500 = vadd.xlane.f32.xlu0 %v8499
      %v8501 = vpop.xlane.xlu0 %8500
      %v8502 = vsel %vm576, %v8478, 0.0
      %8503 = vadd.xlane.f32.xlu0 %v8502
      %v8504 = vpop.xlane.xlu0 %8503
      %v8505 = vsel %vm576, %v8479, 0.0
      %8506 = vadd.xlane.f32.xlu0 %v8505
      %v8507 = vpop.xlane.xlu0 %8506
      %v8508 = vsel %vm576, %v8480, 0.0
      %8509 = vadd.xlane.f32.xlu0 %v8508
      %v8510 = vpop.xlane.xlu0 %8509
      %v8511 = vsel %vm576, %v8481, 0.0
      %8512 = vadd.xlane.f32.xlu0 %v8511
      %v8513 = vpop.xlane.xlu0 %8512
      %v8514 = vsel %vm576, %v8482, 0.0
      %8515 = vadd.xlane.f32.xlu0 %v8514
      %v8516 = vpop.xlane.xlu0 %8515
      %v8517 = vsel %vm576, %v8483, 0.0
      %8518 = vadd.xlane.f32.xlu0 %v8517
      %v8519 = vpop.xlane.xlu0 %8518
      %v8520 = vsel %vm576, %v8484, 0.0
      %8521 = vadd.xlane.f32.xlu0 %v8520
      %v8522 = vpop.xlane.xlu0 %8521
      %v8523 = vsel %vm576, %v8485, 0.0
      %8524 = vadd.xlane.f32.xlu0 %v8523
      %v8525 = vpop.xlane.xlu0 %8524
      %v8526 = vsel %vm576, %v8486, 0.0
      %8527 = vadd.xlane.f32.xlu0 %v8526
      %v8528 = vpop.xlane.xlu0 %8527
      %v8529 = vsel %vm576, %v8487, 0.0
      %8530 = vadd.xlane.f32.xlu0 %v8529
      %v8531 = vpop.xlane.xlu0 %8530
      %v8532 = vsel %vm576, %v8488, 0.0
      %8533 = vadd.xlane.f32.xlu0 %v8532
      %v8534 = vpop.xlane.xlu0 %8533
      %v8535 = vsel %vm576, %v8489, 0.0
      %8536 = vadd.xlane.f32.xlu0 %v8535
      %v8537 = vpop.xlane.xlu0 %8536
      %v8538 = vmul.f32 %v8492, %v625
      %v8539 = vmul.f32 %v8495, %v625
      %v8540 = vmul.f32 %v8498, %v625
      %v8541 = vmul.f32 %v8501, %v625
      %v8542 = vmul.f32 %v8504, %v625
      %v8543 = vmul.f32 %v8507, %v625
      %v8544 = vmul.f32 %v8510, %v625
      %v8545 = vmul.f32 %v8513, %v625
      %v8546 = vmul.f32 %v8516, %v625
      %v8547 = vmul.f32 %v8519, %v625
      %v8548 = vmul.f32 %v8522, %v625
      %v8549 = vmul.f32 %v8525, %v625
      %v8550 = vmul.f32 %v8528, %v625
      %v8551 = vmul.f32 %v8531, %v625
      %v8552 = vmul.f32 %v8534, %v625
      %v8553 = vmul.f32 %v8537, %v625
      %v8554 = vadd.f32 %v8538, 1e-05
      %v8555 = vadd.f32 %v8539, 1e-05
      %v8556 = vadd.f32 %v8540, 1e-05
      %v8557 = vadd.f32 %v8541, 1e-05
      %v8558 = vadd.f32 %v8542, 1e-05
      %v8559 = vadd.f32 %v8543, 1e-05
      %v8560 = vadd.f32 %v8544, 1e-05
      %v8561 = vadd.f32 %v8545, 1e-05
      %v8562 = vadd.f32 %v8546, 1e-05
      %v8563 = vadd.f32 %v8547, 1e-05
      %v8564 = vadd.f32 %v8548, 1e-05
      %v8565 = vadd.f32 %v8549, 1e-05
      %v8566 = vadd.f32 %v8550, 1e-05
      %v8567 = vadd.f32 %v8551, 1e-05
      %v8568 = vadd.f32 %v8552, 1e-05
      %v8569 = vadd.f32 %v8553, 1e-05
      %v8570 = vrsqrt.pop %v8554
      %v8571 = vrsqrt.pop %v8555
      %v8572 = vrsqrt.pop %v8556
      %v8573 = vrsqrt.pop %v8557
      %v8574 = vrsqrt.pop %v8558
      %v8575 = vrsqrt.pop %v8559
      %v8576 = vrsqrt.pop %v8560
      %v8577 = vrsqrt.pop %v8561
      %v8578 = vrsqrt.pop %v8562
      %v8579 = vrsqrt.pop %v8563
      %v8580 = vrsqrt.pop %v8564
      %v8581 = vrsqrt.pop %v8565
      %v8582 = vrsqrt.pop %v8566
      %v8583 = vrsqrt.pop %v8567
      %v8584 = vrsqrt.pop %v8568
      %v8585 = vrsqrt.pop %v8569
      %v8586 = vmul.f32 %v8458, %v8570
      %v8587 = vmul.f32 %v8459, %v8571
      %v8588 = vmul.f32 %v8460, %v8572
      %v8589 = vmul.f32 %v8461, %v8573
      %v8590 = vmul.f32 %v8462, %v8574
      %v8591 = vmul.f32 %v8463, %v8575
      %v8592 = vmul.f32 %v8464, %v8576
      %v8593 = vmul.f32 %v8465, %v8577
      %v8594 = vmul.f32 %v8466, %v8578
      %v8595 = vmul.f32 %v8467, %v8579
      %v8596 = vmul.f32 %v8468, %v8580
      %v8597 = vmul.f32 %v8469, %v8581
      %v8598 = vmul.f32 %v8470, %v8582
      %v8599 = vmul.f32 %v8471, %v8583
      %v8600 = vmul.f32 %v8472, %v8584
      %v8601 = vmul.f32 %v8473, %v8585
      %v8603 = vlaneseq
      %v8604 = vshrl.u32 %v8603, 7
      %v8605 = vsub.s32 0, %v8604
      %v8606 = vrot.slane %v8392, %v8605
      %v8608 = vmul.f32 %v8586, %v8606
      %v8609 = vmul.f32 %v8587, %v8606
      %v8610 = vmul.f32 %v8588, %v8606
      %v8611 = vmul.f32 %v8589, %v8606
      %v8612 = vmul.f32 %v8590, %v8606
      %v8613 = vmul.f32 %v8591, %v8606
      %v8614 = vmul.f32 %v8592, %v8606
      %v8615 = vmul.f32 %v8593, %v8606
      %v8616 = vmul.f32 %v8594, %v8606
      %v8617 = vmul.f32 %v8595, %v8606
      %v8618 = vmul.f32 %v8596, %v8606
      %v8619 = vmul.f32 %v8597, %v8606
      %v8620 = vmul.f32 %v8598, %v8606
      %v8621 = vmul.f32 %v8599, %v8606
      %v8622 = vmul.f32 %v8600, %v8606
      %v8623 = vmul.f32 %v8601, %v8606
      %v8625 = vlaneseq
      %v8626 = vshrl.u32 %v8625, 7
      %v8627 = vsub.s32 0, %v8626
      %v8628 = vrot.slane %v8393, %v8627
      %v8630 = vadd.f32 %v8608, %v8628
      %v8631 = vadd.f32 %v8609, %v8628
      %v8632 = vadd.f32 %v8610, %v8628
      %v8633 = vadd.f32 %v8611, %v8628
      %v8634 = vadd.f32 %v8612, %v8628
      %v8635 = vadd.f32 %v8613, %v8628
      %v8636 = vadd.f32 %v8614, %v8628
      %v8637 = vadd.f32 %v8615, %v8628
      %v8638 = vadd.f32 %v8616, %v8628
      %v8639 = vadd.f32 %v8617, %v8628
      %v8640 = vadd.f32 %v8618, %v8628
      %v8641 = vadd.f32 %v8619, %v8628
      %v8642 = vadd.f32 %v8620, %v8628
      %v8643 = vadd.f32 %v8621, %v8628
      %v8644 = vadd.f32 %v8622, %v8628
      %v8645 = vadd.f32 %v8623, %v8628
      %v8646 = vpack.c.bf16 %v8631, %v8630
      %v8647 = vpack.c.bf16 %v8633, %v8632
      %v8648 = vpack.c.bf16 %v8635, %v8634
      %v8649 = vpack.c.bf16 %v8637, %v8636
      %v8650 = vpack.c.bf16 %v8639, %v8638
      %v8651 = vpack.c.bf16 %v8641, %v8640
      %v8652 = vpack.c.bf16 %v8643, %v8642
      %v8653 = vpack.c.bf16 %v8645, %v8644
      %v8654 = vld [vmem:[%s13] sm:$0xff]
      %v8655 = vld [vmem:[%s13 + $0x8] sm:$0xff]
      %v8656 = vld [vmem:[%s13 + $0x10] sm:$0xff]
      %v8657 = vld [vmem:[%s13 + $0x18] sm:$0xff]
      %v8658 = vld [vmem:[%s13 + $0x20] sm:$0xff]
      %v8659 = vld [vmem:[%s13 + $0x28] sm:$0xff]
      %v8660 = vld [vmem:[%s14] sm:$0x3]
      %v8662 = vlaneseq
      %v8663 = vshrl.u32 %v8662, 7
      %v8664 = vsub.s32 0, %v8663
      %v8665 = vrot.slane %v8660, %v8664
      %v8666 = vlaneseq
      %v8667 = vshrl.u32 %v8666, 7
      %v8668 = vsub.s32 1, %v8667
      %v8669 = vrot.slane %v8660, %v8668
      %v8678 = vunpack.c.l.b16 %v8654
      %v8679 = vunpack.c.h.b16 %v8654
      %v8680 = vunpack.c.l.b16 %v8655
      %v8681 = vunpack.c.h.b16 %v8655
      %v8682 = vunpack.c.l.b16 %v8656
      %v8683 = vunpack.c.h.b16 %v8656
      %v8684 = vunpack.c.l.b16 %v8657
      %v8685 = vunpack.c.h.b16 %v8657
      %v8686 = vunpack.c.l.b16 %v8658
      %v8687 = vunpack.c.h.b16 %v8658
      %v8688 = vunpack.c.l.b16 %v8659
      %v8689 = vunpack.c.h.b16 %v8659
      %v8690 = vpack.c.b16 %v8680, %v8678
      %v8691 = vpack.c.b16 %v8681, %v8679
      %v8692 = vpack.c.b16 %v8684, %v8682
      %v8693 = vpack.c.b16 %v8685, %v8683
      %v8694 = vpack.c.b16 %v8688, %v8686
      %v8695 = vpack.c.b16 %v8689, %v8687
      %v8703 = vsel %vm576, %v8646, 0
      %v8706 = vsel %vm576, %v8647, 0
      %v8709 = vsel %vm576, %v8648, 0
      %v8712 = vsel %vm576, %v8649, 0
      %v8715 = vsel %vm576, %v8650, 0
      %v8718 = vsel %vm576, %v8651, 0
      %v8721 = vsel %vm576, %v8652, 0
      %v8724 = vsel %vm576, %v8653, 0
      %8726 = vmatprep.subr.bf16.mxu0 %v8691
      %8727 = vmatpush1.bf16.msra.mxu0 %v8690
      %8728 = vmatprep.subr.bf16.mxu0 %v8693
      %8729 = vmatpush1.bf16.msra.mxu0 %v8692
      %8730 = vmatprep.subr.bf16.mxu0 %v8695
      %8731 = vmatpush1.bf16.msra.mxu0 %v8694
      %8732 = vmatprep.subr.bf16.mxu0 0
      %8733 = vmatpush1.bf16.msra.mxu0 0
      %8734 = vmatprep.subr.bf16.mxu0 0
      %8735 = vmatpush1.bf16.msra.mxu0 0
      %8736 = vmatprep.subr.bf16.mxu0 0
      %8737 = vmatpush1.bf16.msra.mxu0 0
      %8738 = vmatprep.subr.bf16.mxu0 0
      %8739 = vmatpush1.bf16.msra.mxu0 0
      %8740 = vmatprep.subr.bf16.mxu0 0
      %8741 = vmatpush1.bf16.msra.mxu0 0
      %8742 = vmatprep.subr.bf16.mxu0 0
      %8743 = vmatpush1.bf16.msra.mxu0 0
      %8744 = vmatprep.subr.bf16.mxu0 0
      %8745 = vmatpush1.bf16.msra.mxu0 0
      %8746 = vmatprep.subr.bf16.mxu0 0
      %8747 = vmatpush1.bf16.msra.mxu0 0
      %8748 = vmatprep.subr.bf16.mxu0 0
      %8749 = vmatpush1.bf16.msra.mxu0 0
      %8750 = vmatprep.subr.bf16.mxu0 0
      %8751 = vmatpush1.bf16.msra.mxu0 0
      %8752 = vmatprep.subr.bf16.mxu0 0
      %8753 = vmatpush1.bf16.msra.mxu0 0
      %8754 = vmatprep.subr.bf16.mxu0 0
      %8755 = vmatpush1.bf16.msra.mxu0 0
      %8756 = vmatprep.subr.bf16.mxu0 0
      %8757 = vmatpush1.bf16.msra.mxu0 0
      %8758 = vmatprep.mubr.bf16.mxu0 0
      %8759 = vmatmul.mubr.bf16.gmra.mrb[0].mxu0 %v8703
      %v8760 = vpop.f32.mrb[0].mxu0
      %v8761 = vadd.f32 %v8665, %v8760
      %v8762 = vpop.f32.mrb[0].mxu0
      %v8763 = vadd.f32 %v8669, %v8762
      %v8764 = vpop.f32.mrb[0].mxu0
      %v8765 = vadd.f32 %v8665, %v8764
      %v8766 = vpop.f32.mrb[0].mxu0
      %v8767 = vadd.f32 %v8669, %v8766
      %8768 = vmatprep.mubr.bf16.mxu0 0
      %8769 = vmatmul.mubr.bf16.gmra.mrb[0].mxu0 %v8706
      %v8770 = vpop.f32.mrb[0].mxu0
      %v8771 = vadd.f32 %v8665, %v8770
      %v8772 = vpop.f32.mrb[0].mxu0
      %v8773 = vadd.f32 %v8669, %v8772
      %v8774 = vpop.f32.mrb[0].mxu0
      %v8775 = vadd.f32 %v8665, %v8774
      %v8776 = vpop.f32.mrb[0].mxu0
      %v8777 = vadd.f32 %v8669, %v8776
      %8778 = vmatprep.mubr.bf16.mxu0 0
      %8779 = vmatmul.mubr.bf16.gmra.mrb[0].mxu0 %v8709
      %v8780 = vpop.f32.mrb[0].mxu0
      %v8781 = vadd.f32 %v8665, %v8780
      %v8782 = vpop.f32.mrb[0].mxu0
      %v8783 = vadd.f32 %v8669, %v8782
      %v8784 = vpop.f32.mrb[0].mxu0
      %v8785 = vadd.f32 %v8665, %v8784
      %v8786 = vpop.f32.mrb[0].mxu0
      %v8787 = vadd.f32 %v8669, %v8786
      %8788 = vmatprep.mubr.bf16.mxu0 0
      %8789 = vmatmul.mubr.bf16.gmra.mrb[0].mxu0 %v8712
      %v8790 = vpop.f32.mrb[0].mxu0
      %v8791 = vadd.f32 %v8665, %v8790
      %v8792 = vpop.f32.mrb[0].mxu0
      %v8793 = vadd.f32 %v8669, %v8792
      %v8794 = vpop.f32.mrb[0].mxu0
      %v8795 = vadd.f32 %v8665, %v8794
      %v8796 = vpop.f32.mrb[0].mxu0
      %v8797 = vadd.f32 %v8669, %v8796
      %8798 = vmatprep.mubr.bf16.mxu0 0
      %8799 = vmatmul.mubr.bf16.gmra.mrb[0].mxu0 %v8715
      %v8800 = vpop.f32.mrb[0].mxu0
      %v8801 = vadd.f32 %v8665, %v8800
      %v8802 = vpop.f32.mrb[0].mxu0
      %v8803 = vadd.f32 %v8669, %v8802
      %v8804 = vpop.f32.mrb[0].mxu0
      %v8805 = vadd.f32 %v8665, %v8804
      %v8806 = vpop.f32.mrb[0].mxu0
      %v8807 = vadd.f32 %v8669, %v8806
      %8808 = vmatprep.mubr.bf16.mxu0 0
      %8809 = vmatmul.mubr.bf16.gmra.mrb[0].mxu0 %v8718
      %v8810 = vpop.f32.mrb[0].mxu0
      %v8811 = vadd.f32 %v8665, %v8810
      %v8812 = vpop.f32.mrb[0].mxu0
      %v8813 = vadd.f32 %v8669, %v8812
      %v8814 = vpop.f32.mrb[0].mxu0
      %v8815 = vadd.f32 %v8665, %v8814
      %v8816 = vpop.f32.mrb[0].mxu0
      %v8817 = vadd.f32 %v8669, %v8816
      %8818 = vmatprep.mubr.bf16.mxu0 0
      %8819 = vmatmul.mubr.bf16.gmra.mrb[0].mxu0 %v8721
      %v8820 = vpop.f32.mrb[0].mxu0
      %v8821 = vadd.f32 %v8665, %v8820
      %v8822 = vpop.f32.mrb[0].mxu0
      %v8823 = vadd.f32 %v8669, %v8822
      %v8824 = vpop.f32.mrb[0].mxu0
      %v8825 = vadd.f32 %v8665, %v8824
      %v8826 = vpop.f32.mrb[0].mxu0
      %v8827 = vadd.f32 %v8669, %v8826
      %8828 = vmatprep.mubr.bf16.mxu0 0
      %8829 = vmatmul.mubr.bf16.gmra.mrb[0].mxu0 %v8724
      %v8830 = vpop.f32.mrb[0].mxu0
      %v8831 = vadd.f32 %v8665, %v8830
      %v8832 = vpop.f32.mrb[0].mxu0
      %v8833 = vadd.f32 %v8669, %v8832
      %v8834 = vpop.f32.mrb[0].mxu0
      %v8835 = vadd.f32 %v8665, %v8834
      %v8836 = vpop.f32.mrb[0].mxu0
      %v8837 = vadd.f32 %v8669, %v8836
      %8838 = vdwg.mxu0
      %v8839 = vmul.f32 %v8761, 0.5
      %v8840 = vmul.f32 %v8763, 0.5
      %v8841 = vmul.f32 %v8765, 0.5
      %v8842 = vmul.f32 %v8767, 0.5
      %v8843 = vmul.f32 %v8771, 0.5
      %v8844 = vmul.f32 %v8773, 0.5
      %v8845 = vmul.f32 %v8775, 0.5
      %v8846 = vmul.f32 %v8777, 0.5
      %v8847 = vmul.f32 %v8781, 0.5
      %v8848 = vmul.f32 %v8783, 0.5
      %v8849 = vmul.f32 %v8785, 0.5
      %v8850 = vmul.f32 %v8787, 0.5
      %v8851 = vmul.f32 %v8791, 0.5
      %v8852 = vmul.f32 %v8793, 0.5
      %v8853 = vmul.f32 %v8795, 0.5
      %v8854 = vmul.f32 %v8797, 0.5
      %v8855 = vmul.f32 %v8801, 0.5
      %v8856 = vmul.f32 %v8803, 0.5
      %v8857 = vmul.f32 %v8805, 0.5
      %v8858 = vmul.f32 %v8807, 0.5
      %v8859 = vmul.f32 %v8811, 0.5
      %v8860 = vmul.f32 %v8813, 0.5
      %v8861 = vmul.f32 %v8815, 0.5
      %v8862 = vmul.f32 %v8817, 0.5
      %v8863 = vmul.f32 %v8821, 0.5
      %v8864 = vmul.f32 %v8823, 0.5
      %v8865 = vmul.f32 %v8825, 0.5
      %v8866 = vmul.f32 %v8827, 0.5
      %v8867 = vmul.f32 %v8831, 0.5
      %v8868 = vmul.f32 %v8833, 0.5
      %v8869 = vmul.f32 %v8835, 0.5
      %v8870 = vmul.f32 %v8837, 0.5
      %v8871 = vmul.f32 %v8761, 0.70710677
      %v8872 = vmul.f32 %v8763, 0.70710677
      %v8873 = vmul.f32 %v8765, 0.70710677
      %v8874 = vmul.f32 %v8767, 0.70710677
      %v8875 = vmul.f32 %v8771, 0.70710677
      %v8876 = vmul.f32 %v8773, 0.70710677
      %v8877 = vmul.f32 %v8775, 0.70710677
      %v8878 = vmul.f32 %v8777, 0.70710677
      %v8879 = vmul.f32 %v8781, 0.70710677
      %v8880 = vmul.f32 %v8783, 0.70710677
      %v8881 = vmul.f32 %v8785, 0.70710677
      %v8882 = vmul.f32 %v8787, 0.70710677
      %v8883 = vmul.f32 %v8791, 0.70710677
      %v8884 = vmul.f32 %v8793, 0.70710677
      %v8885 = vmul.f32 %v8795, 0.70710677
      %v8886 = vmul.f32 %v8797, 0.70710677
      %v8887 = vmul.f32 %v8801, 0.70710677
      %v8888 = vmul.f32 %v8803, 0.70710677
      %v8889 = vmul.f32 %v8805, 0.70710677
      %v8890 = vmul.f32 %v8807, 0.70710677
      %v8891 = vmul.f32 %v8811, 0.70710677
      %v8892 = vmul.f32 %v8813, 0.70710677
      %v8893 = vmul.f32 %v8815, 0.70710677
      %v8894 = vmul.f32 %v8817, 0.70710677
      %v8895 = vmul.f32 %v8821, 0.70710677
      %v8896 = vmul.f32 %v8823, 0.70710677
      %v8897 = vmul.f32 %v8825, 0.70710677
      %v8898 = vmul.f32 %v8827, 0.70710677
      %v8899 = vmul.f32 %v8831, 0.70710677
      %v8900 = vmul.f32 %v8833, 0.70710677
      %v8901 = vmul.f32 %v8835, 0.70710677
      %v8902 = vmul.f32 %v8837, 0.70710677
      %v8903 = verf.f32.pop %v8871
      %v8904 = verf.f32.pop %v8872
      %v8905 = verf.f32.pop %v8873
      %v8906 = verf.f32.pop %v8874
      %v8907 = verf.f32.pop %v8875
      %v8908 = verf.f32.pop %v8876
      %v8909 = verf.f32.pop %v8877
      %v8910 = verf.f32.pop %v8878
      %v8911 = verf.f32.pop %v8879
      %v8912 = verf.f32.pop %v8880
      %v8913 = verf.f32.pop %v8881
      %v8914 = verf.f32.pop %v8882
      %v8915 = verf.f32.pop %v8883
      %v8916 = verf.f32.pop %v8884
      %v8917 = verf.f32.pop %v8885
      %v8918 = verf.f32.pop %v8886
      %v8919 = verf.f32.pop %v8887
      %v8920 = verf.f32.pop %v8888
      %v8921 = verf.f32.pop %v8889
      %v8922 = verf.f32.pop %v8890
      %v8923 = verf.f32.pop %v8891
      %v8924 = verf.f32.pop %v8892
      %v8925 = verf.f32.pop %v8893
      %v8926 = verf.f32.pop %v8894
      %v8927 = verf.f32.pop %v8895
      %v8928 = verf.f32.pop %v8896
      %v8929 = verf.f32.pop %v8897
      %v8930 = verf.f32.pop %v8898
      %v8931 = verf.f32.pop %v8899
      %v8932 = verf.f32.pop %v8900
      %v8933 = verf.f32.pop %v8901
      %v8934 = verf.f32.pop %v8902
      %v8935 = vadd.f32 %v8903, 1.0
      %v8936 = vadd.f32 %v8904, 1.0
      %v8937 = vadd.f32 %v8905, 1.0
      %v8938 = vadd.f32 %v8906, 1.0
      %v8939 = vadd.f32 %v8907, 1.0
      %v8940 = vadd.f32 %v8908, 1.0
      %v8941 = vadd.f32 %v8909, 1.0
      %v8942 = vadd.f32 %v8910, 1.0
      %v8943 = vadd.f32 %v8911, 1.0
      %v8944 = vadd.f32 %v8912, 1.0
      %v8945 = vadd.f32 %v8913, 1.0
      %v8946 = vadd.f32 %v8914, 1.0
      %v8947 = vadd.f32 %v8915, 1.0
      %v8948 = vadd.f32 %v8916, 1.0
      %v8949 = vadd.f32 %v8917, 1.0
      %v8950 = vadd.f32 %v8918, 1.0
      %v8951 = vadd.f32 %v8919, 1.0
      %v8952 = vadd.f32 %v8920, 1.0
      %v8953 = vadd.f32 %v8921, 1.0
      %v8954 = vadd.f32 %v8922, 1.0
      %v8955 = vadd.f32 %v8923, 1.0
      %v8956 = vadd.f32 %v8924, 1.0
      %v8957 = vadd.f32 %v8925, 1.0
      %v8958 = vadd.f32 %v8926, 1.0
      %v8959 = vadd.f32 %v8927, 1.0
      %v8960 = vadd.f32 %v8928, 1.0
      %v8961 = vadd.f32 %v8929, 1.0
      %v8962 = vadd.f32 %v8930, 1.0
      %v8963 = vadd.f32 %v8931, 1.0
      %v8964 = vadd.f32 %v8932, 1.0
      %v8965 = vadd.f32 %v8933, 1.0
      %v8966 = vadd.f32 %v8934, 1.0
      %v8967 = vmul.f32 %v8839, %v8935
      %v8968 = vmul.f32 %v8840, %v8936
      %v8969 = vmul.f32 %v8841, %v8937
      %v8970 = vmul.f32 %v8842, %v8938
      %v8971 = vmul.f32 %v8843, %v8939
      %v8972 = vmul.f32 %v8844, %v8940
      %v8973 = vmul.f32 %v8845, %v8941
      %v8974 = vmul.f32 %v8846, %v8942
      %v8975 = vmul.f32 %v8847, %v8943
      %v8976 = vmul.f32 %v8848, %v8944
      %v8977 = vmul.f32 %v8849, %v8945
      %v8978 = vmul.f32 %v8850, %v8946
      %v8979 = vmul.f32 %v8851, %v8947
      %v8980 = vmul.f32 %v8852, %v8948
      %v8981 = vmul.f32 %v8853, %v8949
      %v8982 = vmul.f32 %v8854, %v8950
      %v8983 = vmul.f32 %v8855, %v8951
      %v8984 = vmul.f32 %v8856, %v8952
      %v8985 = vmul.f32 %v8857, %v8953
      %v8986 = vmul.f32 %v8858, %v8954
      %v8987 = vmul.f32 %v8859, %v8955
      %v8988 = vmul.f32 %v8860, %v8956
      %v8989 = vmul.f32 %v8861, %v8957
      %v8990 = vmul.f32 %v8862, %v8958
      %v8991 = vmul.f32 %v8863, %v8959
      %v8992 = vmul.f32 %v8864, %v8960
      %v8993 = vmul.f32 %v8865, %v8961
      %v8994 = vmul.f32 %v8866, %v8962
      %v8995 = vmul.f32 %v8867, %v8963
      %v8996 = vmul.f32 %v8868, %v8964
      %v8997 = vmul.f32 %v8869, %v8965
      %v8998 = vmul.f32 %v8870, %v8966
      %v8999 = vpack.c.bf16 %v8969, %v8967
      %v9000 = vpack.c.bf16 %v8970, %v8968
      %v9001 = vpack.c.bf16 %v8973, %v8971
      %v9002 = vpack.c.bf16 %v8974, %v8972
      %v9003 = vpack.c.bf16 %v8977, %v8975
      %v9004 = vpack.c.bf16 %v8978, %v8976
      %v9005 = vpack.c.bf16 %v8981, %v8979
      %v9006 = vpack.c.bf16 %v8982, %v8980
      %v9007 = vpack.c.bf16 %v8985, %v8983
      %v9008 = vpack.c.bf16 %v8986, %v8984
      %v9009 = vpack.c.bf16 %v8989, %v8987
      %v9010 = vpack.c.bf16 %v8990, %v8988
      %v9011 = vpack.c.bf16 %v8993, %v8991
      %v9012 = vpack.c.bf16 %v8994, %v8992
      %v9013 = vpack.c.bf16 %v8997, %v8995
      %v9014 = vpack.c.bf16 %v8998, %v8996
      %v9015 = vld [vmem:[%s15] sm:$0xf]
      %v9016 = vld [vmem:[%s15 + $0x4] sm:$0xf]
      %v9017 = vld [vmem:[%s15 + $0x8] sm:$0xf]
      %v9018 = vld [vmem:[%s15 + $0xc] sm:$0xf]
      %v9019 = vld [vmem:[%s15 + $0x10] sm:$0xf]
      %v9020 = vld [vmem:[%s15 + $0x14] sm:$0xf]
      %v9021 = vld [vmem:[%s15 + $0x18] sm:$0xf]
      %v9022 = vld [vmem:[%s15 + $0x1c] sm:$0xf]
      %v9023 = vld [vmem:[%s15 + $0x20] sm:$0xf]
      %v9024 = vld [vmem:[%s15 + $0x24] sm:$0xf]
      %v9025 = vld [vmem:[%s15 + $0x28] sm:$0xf]
      %v9026 = vld [vmem:[%s15 + $0x2c] sm:$0xf]
      %v9027 = vld [vmem:[%s15 + $0x30] sm:$0xf]
      %v9028 = vld [vmem:[%s15 + $0x34] sm:$0xf]
      %v9029 = vld [vmem:[%s15 + $0x38] sm:$0xf]
      %v9030 = vld [vmem:[%s15 + $0x3c] sm:$0xf]
      %v9031 = vld [vmem:[%s15 + $0x40] sm:$0xf]
      %v9032 = vld [vmem:[%s15 + $0x44] sm:$0xf]
      %v9033 = vld [vmem:[%s15 + $0x48] sm:$0xf]
      %v9034 = vld [vmem:[%s15 + $0x4c] sm:$0xf]
      %v9035 = vld [vmem:[%s15 + $0x50] sm:$0xf]
      %v9036 = vld [vmem:[%s15 + $0x54] sm:$0xf]
      %v9037 = vld [vmem:[%s15 + $0x58] sm:$0xf]
      %v9038 = vld [vmem:[%s15 + $0x5c] sm:$0xf]
      %v9039 = vld [vmem:[%s16] sm:$0x1]
      %v9041 = vlaneseq
      %v9042 = vshrl.u32 %v9041, 7
      %v9043 = vsub.s32 0, %v9042
      %v9044 = vrot.slane %v9039, %v9043
      %v9070 = vunpack.c.l.b16 %v9015
      %v9071 = vunpack.c.l.b16 %v9016
      %v9072 = vunpack.c.l.b16 %v9017
      %v9073 = vunpack.c.l.b16 %v9018
      %v9074 = vunpack.c.l.b16 %v9019
      %v9075 = vunpack.c.l.b16 %v9020
      %v9076 = vunpack.c.l.b16 %v9021
      %v9077 = vunpack.c.l.b16 %v9022
      %v9078 = vunpack.c.l.b16 %v9023
      %v9079 = vunpack.c.l.b16 %v9024
      %v9080 = vunpack.c.l.b16 %v9025
      %v9081 = vunpack.c.l.b16 %v9026
      %v9082 = vunpack.c.l.b16 %v9027
      %v9083 = vunpack.c.l.b16 %v9028
      %v9084 = vunpack.c.l.b16 %v9029
      %v9085 = vunpack.c.l.b16 %v9030
      %v9086 = vunpack.c.l.b16 %v9031
      %v9087 = vunpack.c.l.b16 %v9032
      %v9088 = vunpack.c.l.b16 %v9033
      %v9089 = vunpack.c.l.b16 %v9034
      %v9090 = vunpack.c.l.b16 %v9035
      %v9091 = vunpack.c.l.b16 %v9036
      %v9092 = vunpack.c.l.b16 %v9037
      %v9093 = vunpack.c.l.b16 %v9038
      %v9094 = vpack.c.b16 %v9071, %v9070
      %v9095 = vpack.c.b16 %v9073, %v9072
      %v9096 = vpack.c.b16 %v9075, %v9074
      %v9097 = vpack.c.b16 %v9077, %v9076
      %v9098 = vpack.c.b16 %v9079, %v9078
      %v9099 = vpack.c.b16 %v9081, %v9080
      %v9100 = vpack.c.b16 %v9083, %v9082
      %v9101 = vpack.c.b16 %v9085, %v9084
      %v9102 = vpack.c.b16 %v9087, %v9086
      %v9103 = vpack.c.b16 %v9089, %v9088
      %v9104 = vpack.c.b16 %v9091, %v9090
      %v9105 = vpack.c.b16 %v9093, %v9092
      %v9119 = vsel %vm3592, %v9000, 0
      %v9122 = vsel %vm3592, %v9002, 0
      %v9125 = vsel %vm3592, %v9004, 0
      %v9128 = vsel %vm3592, %v9006, 0
      %v9131 = vsel %vm3592, %v9008, 0
      %v9134 = vsel %vm3592, %v9010, 0
      %v9137 = vsel %vm3592, %v9012, 0
      %v9140 = vsel %vm3592, %v9014, 0
      %9142 = vmatprep.subr.bf16.mxu0 0
      %9143 = vmatpush1.bf16.msra.mxu0 %v9094
      %9144 = vmatprep.subr.bf16.mxu0 0
      %9145 = vmatpush1.bf16.msra.mxu0 %v9095
      %9146 = vmatprep.subr.bf16.mxu0 0
      %9147 = vmatpush1.bf16.msra.mxu0 %v9096
      %9148 = vmatprep.subr.bf16.mxu0 0
      %9149 = vmatpush1.bf16.msra.mxu0 %v9097
      %9150 = vmatprep.subr.bf16.mxu0 0
      %9151 = vmatpush1.bf16.msra.mxu0 %v9098
      %9152 = vmatprep.subr.bf16.mxu0 0
      %9153 = vmatpush1.bf16.msra.mxu0 %v9099
      %9154 = vmatprep.subr.bf16.mxu0 0
      %9155 = vmatpush1.bf16.msra.mxu0 %v9100
      %9156 = vmatprep.subr.bf16.mxu0 0
      %9157 = vmatpush1.bf16.msra.mxu0 %v9101
      %9158 = vmatprep.subr.bf16.mxu0 0
      %9159 = vmatpush1.bf16.msra.mxu0 %v9102
      %9160 = vmatprep.subr.bf16.mxu0 0
      %9161 = vmatpush1.bf16.msra.mxu0 %v9103
      %9162 = vmatprep.subr.bf16.mxu0 0
      %9163 = vmatpush1.bf16.msra.mxu0 %v9104
      %9164 = vmatprep.subr.bf16.mxu0 0
      %9165 = vmatpush1.bf16.msra.mxu0 %v9105
      %9166 = vmatprep.subr.bf16.mxu0 0
      %9167 = vmatpush1.bf16.msra.mxu0 0
      %9168 = vmatprep.subr.bf16.mxu0 0
      %9169 = vmatpush1.bf16.msra.mxu0 0
      %9170 = vmatprep.subr.bf16.mxu0 0
      %9171 = vmatpush1.bf16.msra.mxu0 0
      %9172 = vmatprep.subr.bf16.mxu0 0
      %9173 = vmatpush1.bf16.msra.mxu0 0
      %9174 = vmatprep.mubr.bf16.mxu0 %v9119
      %9175 = vmatmul.mubr.bf16.gmra.mrb[0].mxu0 %v8999
      %v9176 = vpop.f32.mrb[0].mxu0
      %v9177 = vadd.f32 %v9044, %v9176
      %v9178 = vpop.f32.mrb[0].mxu0
      %v9179 = vpop.f32.mrb[0].mxu0
      %v9180 = vadd.f32 %v9044, %v9179
      %v9181 = vpop.f32.mrb[0].mxu0
      %9182 = vmatprep.mubr.bf16.mxu0 %v9122
      %9183 = vmatmul.mubr.bf16.gmra.mrb[0].mxu0 %v9001
      %v9184 = vpop.f32.mrb[0].mxu0
      %v9185 = vadd.f32 %v9044, %v9184
      %v9186 = vpop.f32.mrb[0].mxu0
      %v9187 = vpop.f32.mrb[0].mxu0
      %v9188 = vadd.f32 %v9044, %v9187
      %v9189 = vpop.f32.mrb[0].mxu0
      %9190 = vmatprep.mubr.bf16.mxu0 %v9125
      %9191 = vmatmul.mubr.bf16.gmra.mrb[0].mxu0 %v9003
      %v9192 = vpop.f32.mrb[0].mxu0
      %v9193 = vadd.f32 %v9044, %v9192
      %v9194 = vpop.f32.mrb[0].mxu0
      %v9195 = vpop.f32.mrb[0].mxu0
      %v9196 = vadd.f32 %v9044, %v9195
      %v9197 = vpop.f32.mrb[0].mxu0
      %9198 = vmatprep.mubr.bf16.mxu0 %v9128
      %9199 = vmatmul.mubr.bf16.gmra.mrb[0].mxu0 %v9005
      %v9200 = vpop.f32.mrb[0].mxu0
      %v9201 = vadd.f32 %v9044, %v9200
      %v9202 = vpop.f32.mrb[0].mxu0
      %v9203 = vpop.f32.mrb[0].mxu0
      %v9204 = vadd.f32 %v9044, %v9203
      %v9205 = vpop.f32.mrb[0].mxu0
      %9206 = vmatprep.mubr.bf16.mxu0 %v9131
      %9207 = vmatmul.mubr.bf16.gmra.mrb[0].mxu0 %v9007
      %v9208 = vpop.f32.mrb[0].mxu0
      %v9209 = vadd.f32 %v9044, %v9208
      %v9210 = vpop.f32.mrb[0].mxu0
      %v9211 = vpop.f32.mrb[0].mxu0
      %v9212 = vadd.f32 %v9044, %v9211
      %v9213 = vpop.f32.mrb[0].mxu0
      %9214 = vmatprep.mubr.bf16.mxu0 %v9134
      %9215 = vmatmul.mubr.bf16.gmra.mrb[0].mxu0 %v9009
      %v9216 = vpop.f32.mrb[0].mxu0
      %v9217 = vadd.f32 %v9044, %v9216
      %v9218 = vpop.f32.mrb[0].mxu0
      %v9219 = vpop.f32.mrb[0].mxu0
      %v9220 = vadd.f32 %v9044, %v9219
      %v9221 = vpop.f32.mrb[0].mxu0
      %9222 = vmatprep.mubr.bf16.mxu0 %v9137
      %9223 = vmatmul.mubr.bf16.gmra.mrb[0].mxu0 %v9011
      %v9224 = vpop.f32.mrb[0].mxu0
      %v9225 = vadd.f32 %v9044, %v9224
      %v9226 = vpop.f32.mrb[0].mxu0
      %v9227 = vpop.f32.mrb[0].mxu0
      %v9228 = vadd.f32 %v9044, %v9227
      %v9229 = vpop.f32.mrb[0].mxu0
      %9230 = vmatprep.mubr.bf16.mxu0 %v9140
      %9231 = vmatmul.mubr.bf16.gmra.mrb[0].mxu0 %v9013
      %v9232 = vpop.f32.mrb[0].mxu0
      %v9233 = vadd.f32 %v9044, %v9232
      %v9234 = vpop.f32.mrb[0].mxu0
      %v9235 = vpop.f32.mrb[0].mxu0
      %v9236 = vadd.f32 %v9044, %v9235
      %v9237 = vpop.f32.mrb[0].mxu0
      %9238 = vdwg.mxu0
      %v9239 = vadd.f32 %v8376, %v9177
      %v9240 = vadd.f32 %v8377, %v9180
      %v9241 = vadd.f32 %v8378, %v9185
      %v9242 = vadd.f32 %v8379, %v9188
      %v9243 = vadd.f32 %v8380, %v9193
      %v9244 = vadd.f32 %v8381, %v9196
      %v9245 = vadd.f32 %v8382, %v9201
      %v9246 = vadd.f32 %v8383, %v9204
      %v9247 = vadd.f32 %v8384, %v9209
      %v9248 = vadd.f32 %v8385, %v9212
      %v9249 = vadd.f32 %v8386, %v9217
      %v9250 = vadd.f32 %v8387, %v9220
      %v9251 = vadd.f32 %v8388, %v9225
      %v9252 = vadd.f32 %v8389, %v9228
      %v9253 = vadd.f32 %v8390, %v9233
      %v9254 = vadd.f32 %v8391, %v9236
      %9255 = vst.msk [vmem:[%s555] sm:$0xff] %vm576, %v9239
      %9256 = vst.msk [vmem:[%s555 + $0x8] sm:$0xff] %vm576, %v9240
      %9257 = vst.msk [vmem:[%s555 + $0x10] sm:$0xff] %vm576, %v9241
      %9258 = vst.msk [vmem:[%s555 + $0x18] sm:$0xff] %vm576, %v9242
      %9259 = vst.msk [vmem:[%s555 + $0x20] sm:$0xff] %vm576, %v9243
      %9260 = vst.msk [vmem:[%s555 + $0x28] sm:$0xff] %vm576, %v9244
      %9261 = vst.msk [vmem:[%s555 + $0x30] sm:$0xff] %vm576, %v9245
      %9262 = vst.msk [vmem:[%s555 + $0x38] sm:$0xff] %vm576, %v9246
      %9263 = vst.msk [vmem:[%s555 + $0x40] sm:$0xff] %vm576, %v9247
      %9264 = vst.msk [vmem:[%s555 + $0x48] sm:$0xff] %vm576, %v9248
      %9265 = vst.msk [vmem:[%s555 + $0x50] sm:$0xff] %vm576, %v9249
      %9266 = vst.msk [vmem:[%s555 + $0x58] sm:$0xff] %vm576, %v9250
      %9267 = vst.msk [vmem:[%s555 + $0x60] sm:$0xff] %vm576, %v9251
      %9268 = vst.msk [vmem:[%s555 + $0x68] sm:$0xff] %vm576, %v9252
      %9269 = vst.msk [vmem:[%s555 + $0x70] sm:$0xff] %vm576, %v9253
      %9270 = vst.msk [vmem:[%s555 + $0x78] sm:$0xff] %vm576, %v9254
      %s9271 = smul.u32 2, %s28
      %p9272 = scmp.lt.s32.totalorder %s9271, 3
      %s9273 = scalar_select %p9272, %s9271, 3
      %s9274 = smul.addr %s9273, 8
      %s9275 = smul.addr %s9274, 8
      %s9276 = scalar_lea.vmem %s17, %s9275
      // Predicated region
      $region89: #{spw_trans_block_forward.1} parent=87 // pred_check
        %p9277 = pneg %p408
      $region90: #{spw_trans_block_forward.1} parent=87 // pred_check_branch
        %9279 = sbr.rel (%p9277) target = $region92
      $region91: #{spw_trans_block_forward.1} parent=87 // pred_region
        %s9280 = smul.u32 2, %s28
      $region92: #{spw_trans_block_forward.1} parent=87 // pred_fallthru
        _
    $region88: #{spw_trans_block_forward.1} parent=5 // pred_fallthru
      _
    %p9281 = scmp.le.s32.totalorder 2, %s23
    // Predicated region
    $region93: #{spw_trans_block_forward.1} parent=5 // pred_check
      %p9282 = pneg %p9281
    $region94: #{spw_trans_block_forward.1} parent=5 // pred_check_branch
      %9284 = sbr.rel (%p9282) target = $region96
    $region95: #{spw_trans_block_forward.1} parent=5 // pred_region
      %s9285 = ssub.s32 %s23, 2
      // Predicated region
      $region97: #{spw_trans_block_forward.1} parent=95 // pred_check
        %p9286 = pneg %p414
      $region98: #{spw_trans_block_forward.1} parent=95 // pred_check_branch
        %9288 = sbr.rel (%p9286) target = $region100
      $region99: #{spw_trans_block_forward.1} parent=95 // pred_region
        %s9289 = smul.u32 2, %s29
        %p9290 = scmp.lt.s32.totalorder %s9289, 3
        %s9291 = scalar_select %p9290, %s9289, 3
        %s9292 = smul.addr %s9291, 8
        %s9293 = smul.addr %s9292, 8
        %s9294 = scalar_lea.vmem %s17, %s9293
      $region100: #{spw_trans_block_forward.1} parent=95 // pred_fallthru
        _
    $region96: #{spw_trans_block_forward.1} parent=5 // pred_fallthru
      _
  $region6: #{spw_trans_block_forward.1} parent=0 // loop_footer
    %s27 = sadd.s32 1, %s23
  $region7: #{spw_trans_block_forward.1} parent=0 // loop_footer_branch
    %22 = sbr.rel target = $region3
  $region8: #{spw_trans_block_forward.1} parent=0 // loop_exit
    _

</llo_original>
